<compile_context>
chip_gen: v6e
topology: v6e:2x2x1
jax: 0.10.0
libtpu: 0.0.40
codegen_flags: <defaults>
</compile_context>

<pallas_src>
import jax
import jax.numpy as jnp
from jax import lax
from jax.experimental import pallas as pl
from jax.experimental.pallas import tpu as pltpu

EPS = 1e-5          # nn.BatchNorm2d default eps
NEG_SLOPE = 0.01    # F.leaky_relu default negative_slope


def _make_encoder_kernel(p0):
    n4 = float(64 * p0)   # element count for the final 1-channel BatchNorm

    def kernel(x_ref,
               w1_ref, p1_ref, m1_ref,
               w2_ref, p2_ref, m2_ref,
               w3_ref, p3_ref, m3_ref,
               w4_ref, s4_ref,
               out_ref):

        def layer(a_bf16, w_ref, p_ref, m_ref):
            # ConvTranspose(k=2,s=2) as one lane-fused matmul: bf16 in, f32 acc.
            t = jnp.dot(a_bf16, w_ref[...], preferred_element_type=jnp.float32)
            p = p_ref[...]                         # rows: (bias, gamma, beta), tiled
            t = t + p[0:1, :]
            # --- BatchNorm2d, training-mode batch stats, one pass (sum & sumsq) ---
            s = jnp.sum(t, axis=0, keepdims=True)        # per-lane sum
            ss = jnp.sum(t * t, axis=0, keepdims=True)   # per-lane sum of squares
            stats = jnp.concatenate([s, ss], axis=0)     # (2, L)
            # pool over sub-pixel groups per channel and broadcast back to lanes:
            # one tiny (exact) 2-row matmul against a constant 0/(1/N) matrix.
            pooled = jnp.dot(stats, m_ref[...],
                             preferred_element_type=jnp.float32,
                             precision=lax.Precision.HIGHEST)
            mean = pooled[0:1, :]
            var = pooled[1:2, :] - mean * mean           # E[x^2] - mean^2
            scale = lax.rsqrt(var + EPS) * p[1:2, :]     # * gamma
            shift = p[2:3, :] - mean * scale             # + beta
            y = t * scale + shift
            # leaky_relu(y) == max(y, 0.01*y)
            return jnp.maximum(y, NEG_SLOPE * y)

        x1 = layer(x_ref[...], w1_ref, p1_ref, m1_ref)                # [P0, 4*f1]
        x2 = layer(x1.astype(jnp.bfloat16), w2_ref, p2_ref, m2_ref)   # [P0, 16*f2]
        x3 = layer(x2.astype(jnp.bfloat16), w3_ref, p3_ref, m3_ref)   # [P0, 64*f3]

        # 1x1 ConvTranspose (f3 -> 1) for all 64 sub-pixel groups at once.
        y = jnp.dot(x3.astype(jnp.bfloat16), w4_ref[...],
                    preferred_element_type=jnp.float32) + s4_ref[0]   # [P0, 64]

        # final BatchNorm2d(1): single channel -> full-tensor batch stats
        s = jnp.sum(jnp.sum(y, axis=0, keepdims=True), axis=1, keepdims=True)
        ss = jnp.sum(jnp.sum(y * y, axis=0, keepdims=True), axis=1, keepdims=True)
        mean = s * (1.0 / n4)
        var = ss * (1.0 / n4) - mean * mean
        yn = (y - mean) * (lax.rsqrt(var + EPS) * s4_ref[1]) + s4_ref[2]
        # sigmoid already lands in (0,1); the module's clamp(0,1) is a no-op.
        out_ref[...] = jax.nn.sigmoid(yn)

    return kernel


def encoder_pallas(inp, params, width, H0, W0):
    P0 = H0 * W0
    f1, f2, f3 = width * 2, width // 2, width // 4

    # rows = coarse spatial positions (i0*W0 + j0), lanes = input channels
    x0 = inp[0].reshape(width, P0).T.astype(jnp.bfloat16)             # [P0, width]

    def fuse(w):
        # [Cin, Cout, 2, 2] -> [Cin, 4*Cout], lane = (ki*2+kj)*Cout + c
        cin, cout = w.shape[0], w.shape[1]
        return jnp.transpose(w, (0, 2, 3, 1)).reshape(cin, 4 * cout).astype(jnp.float32)

    def bdiag(wf, groups):
        # same fused weight applied independently per existing sub-pixel group
        return jnp.kron(jnp.eye(groups, dtype=jnp.float32), wf)

    def bnp(groups, b, g, be):
        # rows = (conv bias, bn gamma, bn beta), each tiled across groups
        tile = lambda v: jnp.tile(v.reshape(1, -1).astype(jnp.float32), (1, groups))
        return jnp.concatenate([tile(b), tile(g), tile(be)], axis=0)

    def pool(groups, c):
        # per-channel mean over (groups x P0) elements, broadcast back to all lanes
        n = groups * P0
        return jnp.kron(jnp.ones((groups, groups), jnp.float32),
                        jnp.eye(c, dtype=jnp.float32)) * (1.0 / n)

    w1 = fuse(params['w1']).astype(jnp.bfloat16)                      # [width, 4*f1]
    w2 = bdiag(fuse(params['w2']), 4).astype(jnp.bfloat16)            # [4*f1, 16*f2]
    w3 = bdiag(fuse(params['w3']), 16).astype(jnp.bfloat16)           # [16*f2, 64*f3]
    w4 = bdiag(params['w4'].reshape(f3, 1).astype(jnp.float32),
               64).astype(jnp.bfloat16)                               # [64*f3, 64]
    s4 = jnp.concatenate([params['b4'], params['g4'], params['be4']]
                         ).astype(jnp.float32)                        # (3,) scalars

    args = (
        x0,
        w1, bnp(4,  params['b1'], params['g1'], params['be1']), pool(4,  f1),
        w2, bnp(16, params['b2'], params['g2'], params['be2']), pool(16, f2),
        w3, bnp(64, params['b3'], params['g3'], params['be3']), pool(64, f3),
        w4, s4,
    )

    vmem = pl.BlockSpec(memory_space=pltpu.MemorySpace.VMEM)
    smem = pl.BlockSpec(memory_space=pltpu.MemorySpace.SMEM)

    # TODO(synk): on v7x, split the row axis over the 2 TensorCores (grid + two-pass
    # BN with per-tile sum/sumsq accumulators); a single invocation suffices here.
    out = pl.pallas_call(
        _make_encoder_kernel(P0),
        out_shape=jax.ShapeDtypeStruct((P0, 64), jnp.float32),
        in_specs=[vmem] * 11 + [smem],
        out_specs=vmem,
        compiler_params=pltpu.CompilerParams(vmem_limit_bytes=32 * 1024 * 1024),
    )(*args)

    # out[p0, g]: p0 = i0*W0 + j0, g = ki1*32 + kj1*16 + ki2*8 + kj2*4 + ki3*2 + kj3
    # Final pixel: I = 8*i0 + 4*ki1 + 2*ki2 + ki3,  J likewise with kj.
    y = out.reshape(H0, W0, 2, 2, 2, 2, 2, 2)    # (i0,j0,ki1,kj1,ki2,kj2,ki3,kj3)
    y = jnp.transpose(y, (0, 2, 4, 6, 1, 3, 5, 7))
    return y.reshape(1, 1, 8 * H0, 8 * W0)


# ---------------- pure-JAX (NCHW) reference for correctness check -------------
def encoder_reference(inp, params, width, H0, W0):
    x = inp[0].reshape(1, width, H0, W0).astype(jnp.float32)

    def ct(x, w, b, stride):
        k = w.shape[2]
        w_conv = jnp.transpose(jnp.flip(w, (2, 3)), (1, 0, 2, 3))      # OIHW
        y = lax.conv_general_dilated(
            x, w_conv, window_strides=(1, 1),
            padding=[(k - 1, k - 1), (k - 1, k - 1)],
            lhs_dilation=(stride, stride),
            dimension_numbers=('NCHW', 'OIHW', 'NCHW'),
            precision=lax.Precision.HIGHEST)
        return y + b.reshape(1, -1, 1, 1)

    def bn(x, g, be):
        mean = jnp.mean(x, axis=(0, 2, 3), keepdims=True)
        var = jnp.mean(jnp.square(x - mean), axis=(0, 2, 3), keepdims=True)
        return (x - mean) / jnp.sqrt(var + EPS) * g.reshape(1, -1, 1, 1) \
            + be.reshape(1, -1, 1, 1)

    def leaky(x):
        return jnp.where(x >= 0, x, NEG_SLOPE * x)

    x = leaky(bn(ct(x, params['w1'], params['b1'], 2), params['g1'], params['be1']))
    x = leaky(bn(ct(x, params['w2'], params['b2'], 2), params['g2'], params['be2']))
    x = leaky(bn(ct(x, params['w3'], params['b3'], 2), params['g3'], params['be3']))
    x = bn(ct(x, params['w4'], params['b4'], 1), params['g4'], params['be4'])
    x = jax.nn.sigmoid(x)
    return jnp.clip(x, 0.0, 1.0)


if __name__ == "__main__":
    # shapes implied by the module: width = bits_per_input = 32, f1/f2/f3 derived;
    # small spatial size H0 = W0 = 8 stands in for (w//8, h//8).
    width = 32
    f1, f2, f3 = width * 2, width // 2, width // 4
    H0, W0 = 8, 8

    key = jax.random.PRNGKey(0)
    ks = jax.random.split(key, 17)

    def u(k, shape, scale):
        return scale * jax.random.uniform(k, shape, jnp.float32, -1.0, 1.0)

    params = {
        # ConvTranspose2d weights are [in_channels, out_channels, kH, kW]
        'w1': u(ks[0], (width, f1, 2, 2), 0.2), 'b1': u(ks[1], (f1,), 0.2),
        'g1': 1.0 + u(ks[2], (f1,), 0.1),       'be1': u(ks[3], (f1,), 0.1),
        'w2': u(ks[4], (f1, f2, 2, 2), 0.2),    'b2': u(ks[5], (f2,), 0.2),
        'g2': 1.0 + u(ks[6], (f2,), 0.1),       'be2': u(ks[7], (f2,), 0.1),
        'w3': u(ks[8], (f2, f3, 2, 2), 0.2),    'b3': u(ks[9], (f3,), 0.2),
        'g3': 1.0 + u(ks[10], (f3,), 0.1),      'be3': u(ks[11], (f3,), 0.1),
        'w4': u(ks[12], (f3, 1, 1, 1), 0.3),    'b4': u(ks[13], (1,), 0.2),
        'g4': 1.0 + u(ks[14], (1,), 0.1),       'be4': u(ks[15], (1,), 0.1),
    }

    inp = jax.random.normal(ks[16], (1, width, H0, W0), jnp.float32)

    out = jax.block_until_ready(encoder_pallas(inp, params, width, H0, W0))
    ref = jax.block_until_ready(encoder_reference(inp, params, width, H0, W0))

    assert out.shape == (1, 1, 8 * H0, 8 * W0), out.shape
    # tolerance accounts for bf16 MXU operands in the kernel (per perf feedback)
    # vs the f32 / Precision.HIGHEST reference
    err = float(jnp.max(jnp.abs(out - ref)))
    assert err < 2.5e-2, err

    print("KERNEL_OK")
</pallas_src>

<mosaic_0001>
module attributes {stable_mosaic.version = 11 : i64} {
  func.func @kernel(%arg0: memref<64x32xbf16, #tpu.memory_space<vmem>>, %arg1: memref<32x256xbf16, #tpu.memory_space<vmem>>, %arg2: memref<3x256xf32, #tpu.memory_space<vmem>>, %arg3: memref<256x256xf32, #tpu.memory_space<vmem>>, %arg4: memref<256x256xbf16, #tpu.memory_space<vmem>>, %arg5: memref<3x256xf32, #tpu.memory_space<vmem>>, %arg6: memref<256x256xf32, #tpu.memory_space<vmem>>, %arg7: memref<256x512xbf16, #tpu.memory_space<vmem>>, %arg8: memref<3x512xf32, #tpu.memory_space<vmem>>, %arg9: memref<512x512xf32, #tpu.memory_space<vmem>>, %arg10: memref<512x64xbf16, #tpu.memory_space<vmem>>, %arg11: memref<3xf32, #tpu.memory_space<smem>>, %arg12: memref<64x64xf32, #tpu.memory_space<vmem>>) attributes {dimension_semantics = [], scalar_prefetch = 0 : i64, scratch_operands = 0 : i64, tpu.core_type = #tpu.core_type<tc>} {
    %c0 = arith.constant 0 : index
    %c0_0 = arith.constant 0 : index
    %0 = vector.load %arg0[%c0, %c0_0] : memref<64x32xbf16, #tpu.memory_space<vmem>>, vector<64x32xbf16>
    %c0_1 = arith.constant 0 : index
    %c0_2 = arith.constant 0 : index
    %1 = vector.load %arg1[%c0_1, %c0_2] : memref<32x256xbf16, #tpu.memory_space<vmem>>, vector<32x256xbf16>
    %cst = arith.constant dense<0.000000e+00> : vector<64x256xf32>
    %2 = tpu.matmul %0, %1, %cst {dimension_numbers = #tpu.dot_dimension_numbers<[1], [0], [0], [1], [0, 0, 1, 1], [], []>} : vector<64x32xbf16>, vector<32x256xbf16>, vector<64x256xf32> -> vector<64x256xf32>
    %c0_3 = arith.constant 0 : index
    %c0_4 = arith.constant 0 : index
    %3 = vector.load %arg2[%c0_3, %c0_4] : memref<3x256xf32, #tpu.memory_space<vmem>>, vector<3x256xf32>
    %4 = vector.extract_strided_slice %3 {offsets = [0, 0], sizes = [1, 256], strides = [1, 1]} : vector<3x256xf32> to vector<1x256xf32>
    %5 = vector.broadcast %4 : vector<1x256xf32> to vector<64x256xf32>
    %6 = arith.addf %2, %5 : vector<64x256xf32>
    %cst_5 = arith.constant dense<0.000000e+00> : vector<256xf32>
    %7 = vector.multi_reduction <add>, %6, %cst_5 [0] : vector<64x256xf32> to vector<256xf32>
    %8 = vector.shape_cast %7 : vector<256xf32> to vector<1x256xf32>
    %9 = arith.mulf %6, %6 : vector<64x256xf32>
    %cst_6 = arith.constant dense<0.000000e+00> : vector<256xf32>
    %10 = vector.multi_reduction <add>, %9, %cst_6 [0] : vector<64x256xf32> to vector<256xf32>
    %11 = vector.shape_cast %10 : vector<256xf32> to vector<1x256xf32>
    %12 = tpu.concatenate %8, %11 in 0 : vector<1x256xf32>, vector<1x256xf32> -> vector<2x256xf32>
    %c0_7 = arith.constant 0 : index
    %c0_8 = arith.constant 0 : index
    %13 = vector.load %arg3[%c0_7, %c0_8] : memref<256x256xf32, #tpu.memory_space<vmem>>, vector<256x256xf32>
    %cst_9 = arith.constant dense<0.000000e+00> : vector<2x256xf32>
    %14 = tpu.matmul %12, %13, %cst_9 {dimension_numbers = #tpu.dot_dimension_numbers<[1], [0], [0], [1], [0, 0, 1, 1], [], []>, precision = #tpu.contract_precision<fp32>} : vector<2x256xf32>, vector<256x256xf32>, vector<2x256xf32> -> vector<2x256xf32>
    %15 = vector.extract_strided_slice %14 {offsets = [0, 0], sizes = [1, 256], strides = [1, 1]} : vector<2x256xf32> to vector<1x256xf32>
    %16 = vector.extract_strided_slice %14 {offsets = [1, 0], sizes = [1, 256], strides = [1, 1]} : vector<2x256xf32> to vector<1x256xf32>
    %17 = arith.mulf %15, %15 : vector<1x256xf32>
    %18 = arith.subf %16, %17 : vector<1x256xf32>
    %cst_10 = arith.constant 9.99999974E-6 : f32
    %19 = vector.broadcast %cst_10 : f32 to vector<1x256xf32>
    %20 = arith.addf %18, %19 : vector<1x256xf32>
    %21 = math.rsqrt %20 : vector<1x256xf32>
    %22 = vector.extract_strided_slice %3 {offsets = [1, 0], sizes = [1, 256], strides = [1, 1]} : vector<3x256xf32> to vector<1x256xf32>
    %23 = arith.mulf %21, %22 : vector<1x256xf32>
    %24 = vector.extract_strided_slice %3 {offsets = [2, 0], sizes = [1, 256], strides = [1, 1]} : vector<3x256xf32> to vector<1x256xf32>
    %25 = arith.mulf %15, %23 : vector<1x256xf32>
    %26 = arith.subf %24, %25 : vector<1x256xf32>
    %27 = vector.broadcast %23 : vector<1x256xf32> to vector<64x256xf32>
    %28 = arith.mulf %6, %27 : vector<64x256xf32>
    %29 = vector.broadcast %26 : vector<1x256xf32> to vector<64x256xf32>
    %30 = arith.addf %28, %29 : vector<64x256xf32>
    %cst_11 = arith.constant 0.00999999977 : f32
    %31 = vector.broadcast %cst_11 : f32 to vector<64x256xf32>
    %32 = arith.mulf %31, %30 : vector<64x256xf32>
    %33 = arith.maximumf %30, %32 : vector<64x256xf32>
    %34 = arith.truncf %33 : vector<64x256xf32> to vector<64x256xbf16>
    %c0_12 = arith.constant 0 : index
    %c0_13 = arith.constant 0 : index
    %35 = vector.load %arg4[%c0_12, %c0_13] : memref<256x256xbf16, #tpu.memory_space<vmem>>, vector<256x256xbf16>
    %cst_14 = arith.constant dense<0.000000e+00> : vector<64x256xf32>
    %36 = tpu.matmul %34, %35, %cst_14 {dimension_numbers = #tpu.dot_dimension_numbers<[1], [0], [0], [1], [0, 0, 1, 1], [], []>} : vector<64x256xbf16>, vector<256x256xbf16>, vector<64x256xf32> -> vector<64x256xf32>
    %c0_15 = arith.constant 0 : index
    %c0_16 = arith.constant 0 : index
    %37 = vector.load %arg5[%c0_15, %c0_16] : memref<3x256xf32, #tpu.memory_space<vmem>>, vector<3x256xf32>
    %38 = vector.extract_strided_slice %37 {offsets = [0, 0], sizes = [1, 256], strides = [1, 1]} : vector<3x256xf32> to vector<1x256xf32>
    %39 = vector.broadcast %38 : vector<1x256xf32> to vector<64x256xf32>
    %40 = arith.addf %36, %39 : vector<64x256xf32>
    %cst_17 = arith.constant dense<0.000000e+00> : vector<256xf32>
    %41 = vector.multi_reduction <add>, %40, %cst_17 [0] : vector<64x256xf32> to vector<256xf32>
    %42 = vector.shape_cast %41 : vector<256xf32> to vector<1x256xf32>
    %43 = arith.mulf %40, %40 : vector<64x256xf32>
    %cst_18 = arith.constant dense<0.000000e+00> : vector<256xf32>
    %44 = vector.multi_reduction <add>, %43, %cst_18 [0] : vector<64x256xf32> to vector<256xf32>
    %45 = vector.shape_cast %44 : vector<256xf32> to vector<1x256xf32>
    %46 = tpu.concatenate %42, %45 in 0 : vector<1x256xf32>, vector<1x256xf32> -> vector<2x256xf32>
    %c0_19 = arith.constant 0 : index
    %c0_20 = arith.constant 0 : index
    %47 = vector.load %arg6[%c0_19, %c0_20] : memref<256x256xf32, #tpu.memory_space<vmem>>, vector<256x256xf32>
    %cst_21 = arith.constant dense<0.000000e+00> : vector<2x256xf32>
    %48 = tpu.matmul %46, %47, %cst_21 {dimension_numbers = #tpu.dot_dimension_numbers<[1], [0], [0], [1], [0, 0, 1, 1], [], []>, precision = #tpu.contract_precision<fp32>} : vector<2x256xf32>, vector<256x256xf32>, vector<2x256xf32> -> vector<2x256xf32>
    %49 = vector.extract_strided_slice %48 {offsets = [0, 0], sizes = [1, 256], strides = [1, 1]} : vector<2x256xf32> to vector<1x256xf32>
    %50 = vector.extract_strided_slice %48 {offsets = [1, 0], sizes = [1, 256], strides = [1, 1]} : vector<2x256xf32> to vector<1x256xf32>
    %51 = arith.mulf %49, %49 : vector<1x256xf32>
    %52 = arith.subf %50, %51 : vector<1x256xf32>
    %cst_22 = arith.constant 9.99999974E-6 : f32
    %53 = vector.broadcast %cst_22 : f32 to vector<1x256xf32>
    %54 = arith.addf %52, %53 : vector<1x256xf32>
    %55 = math.rsqrt %54 : vector<1x256xf32>
    %56 = vector.extract_strided_slice %37 {offsets = [1, 0], sizes = [1, 256], strides = [1, 1]} : vector<3x256xf32> to vector<1x256xf32>
    %57 = arith.mulf %55, %56 : vector<1x256xf32>
    %58 = vector.extract_strided_slice %37 {offsets = [2, 0], sizes = [1, 256], strides = [1, 1]} : vector<3x256xf32> to vector<1x256xf32>
    %59 = arith.mulf %49, %57 : vector<1x256xf32>
    %60 = arith.subf %58, %59 : vector<1x256xf32>
    %61 = vector.broadcast %57 : vector<1x256xf32> to vector<64x256xf32>
    %62 = arith.mulf %40, %61 : vector<64x256xf32>
    %63 = vector.broadcast %60 : vector<1x256xf32> to vector<64x256xf32>
    %64 = arith.addf %62, %63 : vector<64x256xf32>
    %cst_23 = arith.constant 0.00999999977 : f32
    %65 = vector.broadcast %cst_23 : f32 to vector<64x256xf32>
    %66 = arith.mulf %65, %64 : vector<64x256xf32>
    %67 = arith.maximumf %64, %66 : vector<64x256xf32>
    %68 = arith.truncf %67 : vector<64x256xf32> to vector<64x256xbf16>
    %c0_24 = arith.constant 0 : index
    %c0_25 = arith.constant 0 : index
    %69 = vector.load %arg7[%c0_24, %c0_25] : memref<256x512xbf16, #tpu.memory_space<vmem>>, vector<256x512xbf16>
    %cst_26 = arith.constant dense<0.000000e+00> : vector<64x512xf32>
    %70 = tpu.matmul %68, %69, %cst_26 {dimension_numbers = #tpu.dot_dimension_numbers<[1], [0], [0], [1], [0, 0, 1, 1], [], []>} : vector<64x256xbf16>, vector<256x512xbf16>, vector<64x512xf32> -> vector<64x512xf32>
    %c0_27 = arith.constant 0 : index
    %c0_28 = arith.constant 0 : index
    %71 = vector.load %arg8[%c0_27, %c0_28] : memref<3x512xf32, #tpu.memory_space<vmem>>, vector<3x512xf32>
    %72 = vector.extract_strided_slice %71 {offsets = [0, 0], sizes = [1, 512], strides = [1, 1]} : vector<3x512xf32> to vector<1x512xf32>
    %73 = vector.broadcast %72 : vector<1x512xf32> to vector<64x512xf32>
    %74 = arith.addf %70, %73 : vector<64x512xf32>
    %cst_29 = arith.constant dense<0.000000e+00> : vector<512xf32>
    %75 = vector.multi_reduction <add>, %74, %cst_29 [0] : vector<64x512xf32> to vector<512xf32>
    %76 = vector.shape_cast %75 : vector<512xf32> to vector<1x512xf32>
    %77 = arith.mulf %74, %74 : vector<64x512xf32>
    %cst_30 = arith.constant dense<0.000000e+00> : vector<512xf32>
    %78 = vector.multi_reduction <add>, %77, %cst_30 [0] : vector<64x512xf32> to vector<512xf32>
    %79 = vector.shape_cast %78 : vector<512xf32> to vector<1x512xf32>
    %80 = tpu.concatenate %76, %79 in 0 : vector<1x512xf32>, vector<1x512xf32> -> vector<2x512xf32>
    %c0_31 = arith.constant 0 : index
    %c0_32 = arith.constant 0 : index
    %81 = vector.load %arg9[%c0_31, %c0_32] : memref<512x512xf32, #tpu.memory_space<vmem>>, vector<512x512xf32>
    %cst_33 = arith.constant dense<0.000000e+00> : vector<2x512xf32>
    %82 = tpu.matmul %80, %81, %cst_33 {dimension_numbers = #tpu.dot_dimension_numbers<[1], [0], [0], [1], [0, 0, 1, 1], [], []>, precision = #tpu.contract_precision<fp32>} : vector<2x512xf32>, vector<512x512xf32>, vector<2x512xf32> -> vector<2x512xf32>
    %83 = vector.extract_strided_slice %82 {offsets = [0, 0], sizes = [1, 512], strides = [1, 1]} : vector<2x512xf32> to vector<1x512xf32>
    %84 = vector.extract_strided_slice %82 {offsets = [1, 0], sizes = [1, 512], strides = [1, 1]} : vector<2x512xf32> to vector<1x512xf32>
    %85 = arith.mulf %83, %83 : vector<1x512xf32>
    %86 = arith.subf %84, %85 : vector<1x512xf32>
    %cst_34 = arith.constant 9.99999974E-6 : f32
    %87 = vector.broadcast %cst_34 : f32 to vector<1x512xf32>
    %88 = arith.addf %86, %87 : vector<1x512xf32>
    %89 = math.rsqrt %88 : vector<1x512xf32>
    %90 = vector.extract_strided_slice %71 {offsets = [1, 0], sizes = [1, 512], strides = [1, 1]} : vector<3x512xf32> to vector<1x512xf32>
    %91 = arith.mulf %89, %90 : vector<1x512xf32>
    %92 = vector.extract_strided_slice %71 {offsets = [2, 0], sizes = [1, 512], strides = [1, 1]} : vector<3x512xf32> to vector<1x512xf32>
    %93 = arith.mulf %83, %91 : vector<1x512xf32>
    %94 = arith.subf %92, %93 : vector<1x512xf32>
    %95 = vector.broadcast %91 : vector<1x512xf32> to vector<64x512xf32>
    %96 = arith.mulf %74, %95 : vector<64x512xf32>
    %97 = vector.broadcast %94 : vector<1x512xf32> to vector<64x512xf32>
    %98 = arith.addf %96, %97 : vector<64x512xf32>
    %cst_35 = arith.constant 0.00999999977 : f32
    %99 = vector.broadcast %cst_35 : f32 to vector<64x512xf32>
    %100 = arith.mulf %99, %98 : vector<64x512xf32>
    %101 = arith.maximumf %98, %100 : vector<64x512xf32>
    %102 = arith.truncf %101 : vector<64x512xf32> to vector<64x512xbf16>
    %c0_36 = arith.constant 0 : index
    %c0_37 = arith.constant 0 : index
    %103 = vector.load %arg10[%c0_36, %c0_37] : memref<512x64xbf16, #tpu.memory_space<vmem>>, vector<512x64xbf16>
    %cst_38 = arith.constant dense<0.000000e+00> : vector<64x64xf32>
    %104 = tpu.matmul %102, %103, %cst_38 {dimension_numbers = #tpu.dot_dimension_numbers<[1], [0], [0], [1], [0, 0, 1, 1], [], []>} : vector<64x512xbf16>, vector<512x64xbf16>, vector<64x64xf32> -> vector<64x64xf32>
    %c0_39 = arith.constant 0 : index
    %105 = memref.load %arg11[%c0_39] : memref<3xf32, #tpu.memory_space<smem>>
    %106 = vector.broadcast %105 : f32 to vector<64x64xf32>
    %107 = arith.addf %104, %106 : vector<64x64xf32>
    %cst_40 = arith.constant dense<0.000000e+00> : vector<64xf32>
    %108 = vector.multi_reduction <add>, %107, %cst_40 [0] : vector<64x64xf32> to vector<64xf32>
    %109 = vector.shape_cast %108 : vector<64xf32> to vector<1x64xf32>
    %cst_41 = arith.constant dense<0.000000e+00> : vector<1xf32>
    %110 = vector.multi_reduction <add>, %109, %cst_41 [1] : vector<1x64xf32> to vector<1xf32>
    %111 = vector.shape_cast %110 : vector<1xf32> to vector<1x1xf32>
    %112 = arith.mulf %107, %107 : vector<64x64xf32>
    %cst_42 = arith.constant dense<0.000000e+00> : vector<64xf32>
    %113 = vector.multi_reduction <add>, %112, %cst_42 [0] : vector<64x64xf32> to vector<64xf32>
    %114 = vector.shape_cast %113 : vector<64xf32> to vector<1x64xf32>
    %cst_43 = arith.constant dense<0.000000e+00> : vector<1xf32>
    %115 = vector.multi_reduction <add>, %114, %cst_43 [1] : vector<1x64xf32> to vector<1xf32>
    %116 = vector.shape_cast %115 : vector<1xf32> to vector<1x1xf32>
    %cst_44 = arith.constant 2.44140625E-4 : f32
    %117 = vector.broadcast %cst_44 : f32 to vector<1x1xf32>
    %118 = arith.mulf %111, %117 : vector<1x1xf32>
    %cst_45 = arith.constant 2.44140625E-4 : f32
    %119 = vector.broadcast %cst_45 : f32 to vector<1x1xf32>
    %120 = arith.mulf %116, %119 : vector<1x1xf32>
    %121 = arith.mulf %118, %118 : vector<1x1xf32>
    %122 = arith.subf %120, %121 : vector<1x1xf32>
    %123 = vector.broadcast %118 : vector<1x1xf32> to vector<64x64xf32>
    %124 = arith.subf %107, %123 : vector<64x64xf32>
    %cst_46 = arith.constant 9.99999974E-6 : f32
    %125 = vector.broadcast %cst_46 : f32 to vector<1x1xf32>
    %126 = arith.addf %122, %125 : vector<1x1xf32>
    %127 = math.rsqrt %126 : vector<1x1xf32>
    %c1 = arith.constant 1 : index
    %128 = memref.load %arg11[%c1] : memref<3xf32, #tpu.memory_space<smem>>
    %129 = vector.broadcast %128 : f32 to vector<1x1xf32>
    %130 = arith.mulf %127, %129 : vector<1x1xf32>
    %131 = vector.broadcast %130 : vector<1x1xf32> to vector<64x64xf32>
    %132 = arith.mulf %124, %131 : vector<64x64xf32>
    %c2 = arith.constant 2 : index
    %133 = memref.load %arg11[%c2] : memref<3xf32, #tpu.memory_space<smem>>
    %134 = vector.broadcast %133 : f32 to vector<64x64xf32>
    %135 = arith.addf %132, %134 : vector<64x64xf32>
    %136 = arith.negf %135 : vector<64x64xf32>
    %137 = math.exp %136 : vector<64x64xf32>
    %cst_47 = arith.constant 1.000000e+00 : f32
    %138 = vector.broadcast %cst_47 : f32 to vector<64x64xf32>
    %139 = arith.addf %138, %137 : vector<64x64xf32>
    %140 = arith.divf %138, %139 : vector<64x64xf32>
    %c0_48 = arith.constant 0 : index
    %c0_49 = arith.constant 0 : index
    %141 = vector.load %arg12[%c0_48, %c0_49] : memref<64x64xf32, #tpu.memory_space<vmem>>, vector<64x64xf32>
    tpu.vector_store %arg12[%c0_48, %c0_49], %140 {strides = array<i32>} : memref<64x64xf32, #tpu.memory_space<vmem>>, vector<64x64xf32>,
    return
  }
}

</mosaic_0001>

<llo_original>
// kernel: tpu_custom_call.1
$region0: #{tpu_custom_call.1}
  #allocation0 [shape = 'u32[]', space=smem, size = 0x4, offset = 0x4, fixed_abs, tag = 'smem constant byte address 0x4 - core index']
  #allocation1 [shape = 'u32[144,128]{1,0:T(1,128)}', space=vmem, size = 0x12000, scoped, tag = 'internal scratch']
  %s0 = inlined_call_operand.vmem [shape: bf16[64,32], index: 0, kind: input, shape index: {}]
  %s1 = inlined_call_operand.vmem [shape: bf16[32,256], index: 1, kind: input, shape index: {}]
  %s2 = inlined_call_operand.vmem [shape: f32[3,256], index: 2, kind: input, shape index: {}]
  %s3 = inlined_call_operand.hbm [shape: f32[256,256], index: 3, kind: input, shape index: {}]
  %s4 = inlined_call_operand.vmem [shape: bf16[256,256], index: 4, kind: input, shape index: {}]
  %s5 = inlined_call_operand.vmem [shape: f32[3,256], index: 5, kind: input, shape index: {}]
  %s6 = inlined_call_operand.hbm [shape: f32[256,256], index: 6, kind: input, shape index: {}]
  %s7 = inlined_call_operand.hbm [shape: bf16[256,512], index: 7, kind: input, shape index: {}]
  %s8 = inlined_call_operand.vmem [shape: f32[3,512], index: 8, kind: input, shape index: {}]
  %s9 = inlined_call_operand.hbm [shape: f32[512,512], index: 9, kind: input, shape index: {}]
  %s10 = inlined_call_operand.vmem [shape: bf16[512,64], index: 10, kind: input, shape index: {}]
  %s11 = inlined_call_operand.vmem [shape: f32[3], index: 11, kind: input, shape index: {}]
  %s12 = inlined_call_operand.hbm [shape: f32[64,64], index: 12, kind: output, shape index: {}]
  %s13 = sld [smem:[#allocation0]]
  $region78: #{tpu_custom_call.1} parent=0
    _
  %s15 = ssub.s32 1, %s13
  %s16 = scalar_select 0, %s15, %s13
  $region1: #{tpu_custom_call.1} parent=0
    #allocation2 [shape = 'u8[262144]{0}', space=vmem, size = 0x40000, scoped, tag = 'input window, operand 3, single buffered']
    #allocation3 [shape = 's32[1]{0}', space=sflag, size = 0x4, scoped, tag = 'scoped memory for tpu_custom_call.1']
    #allocation4 [shape = 's32[1]{0}', space=sflag, size = 0x4, scoped, tag = 'scoped memory for tpu_custom_call.1']
    #allocation5 [shape = 's32[1]{0}', space=sflag, size = 0x4, scoped, tag = 'scoped memory for tpu_custom_call.1']
    #allocation6 [shape = 'u8[262144]{0}', space=vmem, size = 0x40000, scoped, tag = 'input window, operand 6, single buffered']
    #allocation7 [shape = 's32[1]{0}', space=sflag, size = 0x4, scoped, tag = 'scoped memory for tpu_custom_call.1']
    #allocation8 [shape = 'u8[262144]{0}', space=vmem, size = 0x40000, scoped, tag = 'input window, operand 7, single buffered']
    #allocation9 [shape = 'u8[1048576]{0}', space=vmem, size = 0x100000, scoped, tag = 'input window, operand 9, single buffered']
    #allocation10 [shape = 's32[1]{0}', space=sflag, size = 0x4, scoped, tag = 'scoped memory for tpu_custom_call.1']
    #allocation11 [shape = 'u8[512]{0}', space=smem, size = 0x200, scoped, tag = 'input window, operand 11, single buffered']
    #allocation12 [shape = 'u8[32768]{0}', space=vmem, size = 0x8000, scoped, tag = 'output window, operand 0, single buffered']
    %17 = vsyncpa [#allocation3], 0
    %18 = vsyncpa [#allocation7], 0
    %19 = vsyncpa [#allocation10], 0
    %20 = vsyncpa [#allocation5], 0
    %21 = vsyncpa [#allocation4], 0
    // Predicated region
    $region2: #{tpu_custom_call.1} parent=1 // pred_check
      _
    $region3: #{tpu_custom_call.1} parent=1 // pred_check_branch
      %23 = sbr.rel (0) target = $region5
    $region4: #{tpu_custom_call.1} parent=1 // pred_region
      _
    $region5: #{tpu_custom_call.1} parent=1 // pred_fallthru
      _
    // Predicated region
    $region6: #{tpu_custom_call.1} parent=1 // pred_check
      _
    $region7: #{tpu_custom_call.1} parent=1 // pred_check_branch
      %25 = sbr.rel (0) target = $region9
    $region8: #{tpu_custom_call.1} parent=1 // pred_region
      _
    $region9: #{tpu_custom_call.1} parent=1 // pred_fallthru
      _
    // Predicated region
    $region10: #{tpu_custom_call.1} parent=1 // pred_check
      _
    $region11: #{tpu_custom_call.1} parent=1 // pred_check_branch
      %27 = sbr.rel (0) target = $region13
    $region12: #{tpu_custom_call.1} parent=1 // pred_region
      _
    $region13: #{tpu_custom_call.1} parent=1 // pred_fallthru
      _
    // Predicated region
    $region14: #{tpu_custom_call.1} parent=1 // pred_check
      _
    $region15: #{tpu_custom_call.1} parent=1 // pred_check_branch
      %29 = sbr.rel (0) target = $region17
    $region16: #{tpu_custom_call.1} parent=1 // pred_region
      %s31 = ssub.s32 8192, 8192
      %32 = vsyncadd [#allocation3], %s31
      %s33 = sshll.u32 [#allocation2], 4
      %s34 = int_to_ptr.vmem [resolvable:$true] %s33
      %39 = dma.hbm_to_vmem [thread:$0]  %s3, 8192, %s34, [#allocation3], 256, 256, 16
    $region17: #{tpu_custom_call.1} parent=1 // pred_fallthru
      _
    // Predicated region
    $region18: #{tpu_custom_call.1} parent=1 // pred_check
      _
    $region19: #{tpu_custom_call.1} parent=1 // pred_check_branch
      %41 = sbr.rel (0) target = $region21
    $region20: #{tpu_custom_call.1} parent=1 // pred_region
      _
    $region21: #{tpu_custom_call.1} parent=1 // pred_fallthru
      _
    // Predicated region
    $region22: #{tpu_custom_call.1} parent=1 // pred_check
      _
    $region23: #{tpu_custom_call.1} parent=1 // pred_check_branch
      %43 = sbr.rel (0) target = $region25
    $region24: #{tpu_custom_call.1} parent=1 // pred_region
      _
    $region25: #{tpu_custom_call.1} parent=1 // pred_fallthru
      _
    // Predicated region
    $region26: #{tpu_custom_call.1} parent=1 // pred_check
      _
    $region27: #{tpu_custom_call.1} parent=1 // pred_check_branch
      %45 = sbr.rel (0) target = $region29
    $region28: #{tpu_custom_call.1} parent=1 // pred_region
      %s47 = ssub.s32 8192, 8192
      %48 = vsyncadd [#allocation7], %s47
      %s49 = sshll.u32 [#allocation6], 4
      %s50 = int_to_ptr.vmem [resolvable:$true] %s49
      %55 = dma.hbm_to_vmem [thread:$0]  %s6, 8192, %s50, [#allocation7], 256, 256, 16
    $region29: #{tpu_custom_call.1} parent=1 // pred_fallthru
      _
    // Predicated region
    $region30: #{tpu_custom_call.1} parent=1 // pred_check
      _
    $region31: #{tpu_custom_call.1} parent=1 // pred_check_branch
      %57 = sbr.rel (0) target = $region33
    $region32: #{tpu_custom_call.1} parent=1 // pred_region
      %s59 = ssub.s32 8192, 8192
      %60 = vsyncadd [#allocation7], %s59
      %s61 = sshll.u32 [#allocation8], 4
      %s62 = int_to_ptr.vmem [resolvable:$true] %s61
      %67 = dma.hbm_to_vmem [thread:$0]  %s7, 8192, %s62, [#allocation7], 256, 256, 16
    $region33: #{tpu_custom_call.1} parent=1 // pred_fallthru
      _
    // Predicated region
    $region34: #{tpu_custom_call.1} parent=1 // pred_check
      _
    $region35: #{tpu_custom_call.1} parent=1 // pred_check_branch
      %69 = sbr.rel (0) target = $region37
    $region36: #{tpu_custom_call.1} parent=1 // pred_region
      _
    $region37: #{tpu_custom_call.1} parent=1 // pred_fallthru
      _
    // Predicated region
    $region38: #{tpu_custom_call.1} parent=1 // pred_check
      _
    $region39: #{tpu_custom_call.1} parent=1 // pred_check_branch
      %71 = sbr.rel (0) target = $region41
    $region40: #{tpu_custom_call.1} parent=1 // pred_region
      %s73 = ssub.s32 32768, 32768
      %74 = vsyncadd [#allocation10], %s73
      %s75 = sshll.u32 [#allocation9], 4
      %s76 = int_to_ptr.vmem [resolvable:$true] %s75
      %81 = dma.hbm_to_vmem [thread:$0]  %s9, 32768, %s76, [#allocation10], 512, 512, 32
    $region41: #{tpu_custom_call.1} parent=1 // pred_fallthru
      _
    // Predicated region
    $region42: #{tpu_custom_call.1} parent=1 // pred_check
      _
    $region43: #{tpu_custom_call.1} parent=1 // pred_check_branch
      %83 = sbr.rel (0) target = $region45
    $region44: #{tpu_custom_call.1} parent=1 // pred_region
      _
    $region45: #{tpu_custom_call.1} parent=1 // pred_fallthru
      _
    // Predicated region
    $region46: #{tpu_custom_call.1} parent=1 // pred_check
      _
    $region47: #{tpu_custom_call.1} parent=1 // pred_check_branch
      %85 = sbr.rel (0) target = $region49
    $region48: #{tpu_custom_call.1} parent=1 // pred_region
      %s87 = ssub.s32 16, 16
      %88 = vsyncadd [#allocation5], %s87
      %s90 = sshll.u32 %s11, 4
      %s91 = int_to_ptr.vmem [resolvable:$true] %s90
      %93 = dma.vmem_to_smem %s91, 16, [#allocation11], [#allocation5]
    $region49: #{tpu_custom_call.1} parent=1 // pred_fallthru
      _
    // Predicated region
    $region50: #{tpu_custom_call.1} parent=1 // pred_check
      _
    $region51: #{tpu_custom_call.1} parent=1 // pred_check_branch
      %95 = sbr.rel (0) target = $region53
    $region52: #{tpu_custom_call.1} parent=1 // pred_region
      %96 = dma.done [#allocation3], 8192
    $region53: #{tpu_custom_call.1} parent=1 // pred_fallthru
      _
    // Predicated region
    $region54: #{tpu_custom_call.1} parent=1 // pred_check
      _
    $region55: #{tpu_custom_call.1} parent=1 // pred_check_branch
      %98 = sbr.rel (0) target = $region57
    $region56: #{tpu_custom_call.1} parent=1 // pred_region
      %99 = dma.done [#allocation7], 8192
    $region57: #{tpu_custom_call.1} parent=1 // pred_fallthru
      _
    // Predicated region
    $region58: #{tpu_custom_call.1} parent=1 // pred_check
      _
    $region59: #{tpu_custom_call.1} parent=1 // pred_check_branch
      %101 = sbr.rel (0) target = $region61
    $region60: #{tpu_custom_call.1} parent=1 // pred_region
      %102 = dma.done [#allocation7], 8192
    $region61: #{tpu_custom_call.1} parent=1 // pred_fallthru
      _
    // Predicated region
    $region62: #{tpu_custom_call.1} parent=1 // pred_check
      _
    $region63: #{tpu_custom_call.1} parent=1 // pred_check_branch
      %104 = sbr.rel (0) target = $region65
    $region64: #{tpu_custom_call.1} parent=1 // pred_region
      %105 = dma.done [#allocation10], 32768
    $region65: #{tpu_custom_call.1} parent=1 // pred_fallthru
      _
    // Predicated region
    $region66: #{tpu_custom_call.1} parent=1 // pred_check
      _
    $region67: #{tpu_custom_call.1} parent=1 // pred_check_branch
      %107 = sbr.rel (0) target = $region69
    $region68: #{tpu_custom_call.1} parent=1 // pred_region
      %108 = dma.done [#allocation5], 16
    $region69: #{tpu_custom_call.1} parent=1 // pred_fallthru
      _
    %109 = sfence
    %v111 = vld [vmem:[%s0] sm:$0xf]
    %v112 = vld [vmem:[%s0 + $0x4] sm:$0xf]
    %v113 = vld [vmem:[%s0 + $0x8] sm:$0xf]
    %v114 = vld [vmem:[%s0 + $0xc] sm:$0xf]
    %v115 = vld [vmem:[%s0 + $0x10] sm:$0xf]
    %v116 = vld [vmem:[%s0 + $0x14] sm:$0xf]
    %v117 = vld [vmem:[%s0 + $0x18] sm:$0xf]
    %v118 = vld [vmem:[%s0 + $0x1c] sm:$0xf]
    %v119 = vld [vmem:[%s1] sm:$0xff]
    %v120 = vld [vmem:[%s1 + $0x8] sm:$0xff]
    %v121 = vld [vmem:[%s1 + $0x10] sm:$0xff]
    %v122 = vld [vmem:[%s1 + $0x18] sm:$0xff]
    %v123 = vld [vmem:[%s2] sm:$0x77]
    %v125 = vlaneseq
    %v126 = vshrl.u32 %v125, 7
    %v127 = vsub.s32 0, %v126
    %v128 = vrot.slane %v123, %v127
    %v129 = vlaneseq
    %v130 = vshrl.u32 %v129, 7
    %v131 = vsub.s32 4, %v130
    %v132 = vrot.slane %v123, %v131
    %v135 = vlaneseq
    %v136 = vshrl.u32 %v135, 7
    %v137 = vsub.s32 0, %v136
    %v138 = vrot.slane %v128, %v137
    %v139 = vlaneseq
    %v140 = vshrl.u32 %v139, 7
    %v141 = vsub.s32 0, %v140
    %v142 = vrot.slane %v132, %v141
    %v151 = vunpack.c.l.b16 %v111
    %v152 = vunpack.c.l.b16 %v112
    %v153 = vunpack.c.l.b16 %v113
    %v154 = vunpack.c.l.b16 %v114
    %v155 = vunpack.c.l.b16 %v115
    %v156 = vunpack.c.l.b16 %v116
    %v157 = vunpack.c.l.b16 %v117
    %v158 = vunpack.c.l.b16 %v118
    %v159 = vpack.c.b16 %v152, %v151
    %v160 = vpack.c.b16 %v154, %v153
    %v161 = vpack.c.b16 %v156, %v155
    %v162 = vpack.c.b16 %v158, %v157
    %v167 = vunpack.c.l.b16 %v119
    %v168 = vunpack.c.h.b16 %v119
    %v169 = vunpack.c.l.b16 %v120
    %v170 = vunpack.c.h.b16 %v120
    %v171 = vunpack.c.l.b16 %v121
    %v172 = vunpack.c.h.b16 %v121
    %v173 = vunpack.c.l.b16 %v122
    %v174 = vunpack.c.h.b16 %v122
    %v175 = vpack.c.b16 %v169, %v167
    %v176 = vpack.c.b16 %v170, %v168
    %v177 = vpack.c.b16 %v173, %v171
    %v178 = vpack.c.b16 %v174, %v172
    %vm183 = vcmask 261120
    %v185 = vsel %vm183, %v159, 0
    %v188 = vsel %vm183, %v160, 0
    %v191 = vsel %vm183, %v161, 0
    %v194 = vsel %vm183, %v162, 0
    %196 = vmatprep.subr.bf16.mxu0 0
    %197 = vmatpush1.bf16.msra.mxu0 0
    %198 = vmatprep.subr.bf16.mxu0 0
    %199 = vmatpush1.bf16.msra.mxu0 0
    %200 = vmatprep.subr.bf16.mxu0 0
    %201 = vmatpush1.bf16.msra.mxu0 0
    %202 = vmatprep.subr.bf16.mxu0 0
    %203 = vmatpush1.bf16.msra.mxu0 0
    %204 = vmatprep.subr.bf16.mxu0 0
    %205 = vmatpush1.bf16.msra.mxu0 0
    %206 = vmatprep.subr.bf16.mxu0 0
    %207 = vmatpush1.bf16.msra.mxu0 0
    %208 = vmatprep.subr.bf16.mxu0 %v178
    %209 = vmatpush1.bf16.msra.mxu0 %v177
    %210 = vmatprep.subr.bf16.mxu0 %v176
    %211 = vmatpush1.bf16.msra.mxu0 %v175
    %212 = vmatprep.subr.bf16.mxu0 0
    %213 = vmatpush2.bf16.msra.mxu0 0
    %214 = vmatprep.subr.bf16.mxu0 0
    %215 = vmatpush2.bf16.msra.mxu0 0
    %216 = vmatprep.subr.bf16.mxu0 0
    %217 = vmatpush2.bf16.msra.mxu0 0
    %218 = vmatprep.subr.bf16.mxu0 0
    %219 = vmatpush2.bf16.msra.mxu0 0
    %220 = vmatprep.subr.bf16.mxu0 0
    %221 = vmatpush2.bf16.msra.mxu0 0
    %222 = vmatprep.subr.bf16.mxu0 0
    %223 = vmatpush2.bf16.msra.mxu0 0
    %224 = vmatprep.subr.bf16.mxu0 0
    %225 = vmatpush2.bf16.msra.mxu0 0
    %226 = vmatprep.subr.bf16.mxu0 0
    %227 = vmatpush2.bf16.msra.mxu0 0
    %228 = vmatprep.mubr.bf16.mxu0 0
    %229 = vmatmul.mubr.bf16.gmra.mxu0 %v185
    %v230 = vpop.f32.mrf.mxu0
    %v231 = vadd.f32 %v138, %v230
    %v232 = vpop.f32.mrf.mxu0
    %v233 = vadd.f32 %v142, %v232
    %v234 = vpop.f32.mrf.mxu0
    %v235 = vadd.f32 %v138, %v234
    %v236 = vpop.f32.mrf.mxu0
    %v237 = vadd.f32 %v142, %v236
    %238 = vmatprep.mubr.bf16.mxu0 0
    %239 = vmatmul.mubr.bf16.gmra.mxu0 %v188
    %v240 = vpop.f32.mrf.mxu0
    %v241 = vadd.f32 %v138, %v240
    %v242 = vpop.f32.mrf.mxu0
    %v243 = vadd.f32 %v142, %v242
    %v244 = vpop.f32.mrf.mxu0
    %v245 = vadd.f32 %v138, %v244
    %v246 = vpop.f32.mrf.mxu0
    %v247 = vadd.f32 %v142, %v246
    %248 = vmatprep.mubr.bf16.mxu0 0
    %249 = vmatmul.mubr.bf16.gmra.mxu0 %v191
    %v250 = vpop.f32.mrf.mxu0
    %v251 = vadd.f32 %v138, %v250
    %v252 = vpop.f32.mrf.mxu0
    %v253 = vadd.f32 %v142, %v252
    %v254 = vpop.f32.mrf.mxu0
    %v255 = vadd.f32 %v138, %v254
    %v256 = vpop.f32.mrf.mxu0
    %v257 = vadd.f32 %v142, %v256
    %258 = vmatprep.mubr.bf16.mxu0 0
    %259 = vmatmul.mubr.bf16.gmra.mxu0 %v194
    %v260 = vpop.f32.mrf.mxu0
    %v261 = vadd.f32 %v138, %v260
    %v262 = vpop.f32.mrf.mxu0
    %v263 = vadd.f32 %v142, %v262
    %v264 = vpop.f32.mrf.mxu0
    %v265 = vadd.f32 %v138, %v264
    %v266 = vpop.f32.mrf.mxu0
    %v267 = vadd.f32 %v142, %v266
    %268 = vdwg.mxu0
    %v269 = vadd.f32 %v231, %v235
    %v270 = vadd.f32 %v269, %v241
    %v271 = vadd.f32 %v270, %v245
    %v272 = vadd.f32 %v271, %v251
    %v273 = vadd.f32 %v272, %v255
    %v274 = vadd.f32 %v273, %v261
    %v275 = vadd.f32 %v274, %v265
    %v276 = vrot.slane %v275, 4
    %v277 = vadd.f32 %v275, %v276
    %v278 = vrot.slane %v277, 2
    %v279 = vadd.f32 %v277, %v278
    %v280 = vrot.slane %v279, 1
    %v281 = vadd.f32 %v279, %v280
    %v282 = vadd.f32 %v233, %v237
    %v283 = vadd.f32 %v282, %v243
    %v284 = vadd.f32 %v283, %v247
    %v285 = vadd.f32 %v284, %v253
    %v286 = vadd.f32 %v285, %v257
    %v287 = vadd.f32 %v286, %v263
    %v288 = vadd.f32 %v287, %v267
    %v289 = vrot.slane %v288, 4
    %v290 = vadd.f32 %v288, %v289
    %v291 = vrot.slane %v290, 2
    %v292 = vadd.f32 %v290, %v291
    %v293 = vrot.slane %v292, 1
    %v294 = vadd.f32 %v292, %v293
    %v295 = vmul.f32 %v231, %v231
    %v296 = vmul.f32 %v233, %v233
    %v297 = vmul.f32 %v235, %v235
    %v298 = vmul.f32 %v237, %v237
    %v299 = vmul.f32 %v241, %v241
    %v300 = vmul.f32 %v243, %v243
    %v301 = vmul.f32 %v245, %v245
    %v302 = vmul.f32 %v247, %v247
    %v303 = vmul.f32 %v251, %v251
    %v304 = vmul.f32 %v253, %v253
    %v305 = vmul.f32 %v255, %v255
    %v306 = vmul.f32 %v257, %v257
    %v307 = vmul.f32 %v261, %v261
    %v308 = vmul.f32 %v263, %v263
    %v309 = vmul.f32 %v265, %v265
    %v310 = vmul.f32 %v267, %v267
    %v311 = vadd.f32 %v295, %v297
    %v312 = vadd.f32 %v311, %v299
    %v313 = vadd.f32 %v312, %v301
    %v314 = vadd.f32 %v313, %v303
    %v315 = vadd.f32 %v314, %v305
    %v316 = vadd.f32 %v315, %v307
    %v317 = vadd.f32 %v316, %v309
    %v318 = vrot.slane %v317, 4
    %v319 = vadd.f32 %v317, %v318
    %v320 = vrot.slane %v319, 2
    %v321 = vadd.f32 %v319, %v320
    %v322 = vrot.slane %v321, 1
    %v323 = vadd.f32 %v321, %v322
    %v324 = vadd.f32 %v296, %v298
    %v325 = vadd.f32 %v324, %v300
    %v326 = vadd.f32 %v325, %v302
    %v327 = vadd.f32 %v326, %v304
    %v328 = vadd.f32 %v327, %v306
    %v329 = vadd.f32 %v328, %v308
    %v330 = vadd.f32 %v329, %v310
    %v331 = vrot.slane %v330, 4
    %v332 = vadd.f32 %v330, %v331
    %v333 = vrot.slane %v332, 2
    %v334 = vadd.f32 %v332, %v333
    %v335 = vrot.slane %v334, 1
    %v336 = vadd.f32 %v334, %v335
    %vm337 = vcmask 1040384
    %v338 = vsel %vm337, %v281, %v323
    %v339 = vsel %vm337, %v294, %v336
    %v340 = vld [vmem:[#allocation2] sm:$0xff]
    %v341 = vld [vmem:[#allocation2 + $0x8] sm:$0xff]
    %v342 = vld [vmem:[#allocation2 + $0x10] sm:$0xff]
    %v343 = vld [vmem:[#allocation2 + $0x18] sm:$0xff]
    %v344 = vld [vmem:[#allocation2 + $0x20] sm:$0xff]
    %v345 = vld [vmem:[#allocation2 + $0x28] sm:$0xff]
    %v346 = vld [vmem:[#allocation2 + $0x30] sm:$0xff]
    %v347 = vld [vmem:[#allocation2 + $0x38] sm:$0xff]
    %v348 = vld [vmem:[#allocation2 + $0x40] sm:$0xff]
    %v349 = vld [vmem:[#allocation2 + $0x48] sm:$0xff]
    %v350 = vld [vmem:[#allocation2 + $0x50] sm:$0xff]
    %v351 = vld [vmem:[#allocation2 + $0x58] sm:$0xff]
    %v352 = vld [vmem:[#allocation2 + $0x60] sm:$0xff]
    %v353 = vld [vmem:[#allocation2 + $0x68] sm:$0xff]
    %v354 = vld [vmem:[#allocation2 + $0x70] sm:$0xff]
    %v355 = vld [vmem:[#allocation2 + $0x78] sm:$0xff]
    %v356 = vld [vmem:[#allocation2 + $0x80] sm:$0xff]
    %v357 = vld [vmem:[#allocation2 + $0x88] sm:$0xff]
    %v358 = vld [vmem:[#allocation2 + $0x90] sm:$0xff]
    %v359 = vld [vmem:[#allocation2 + $0x98] sm:$0xff]
    %v360 = vld [vmem:[#allocation2 + $0xa0] sm:$0xff]
    %v361 = vld [vmem:[#allocation2 + $0xa8] sm:$0xff]
    %v362 = vld [vmem:[#allocation2 + $0xb0] sm:$0xff]
    %v363 = vld [vmem:[#allocation2 + $0xb8] sm:$0xff]
    %v364 = vld [vmem:[#allocation2 + $0xc0] sm:$0xff]
    %v365 = vld [vmem:[#allocation2 + $0xc8] sm:$0xff]
    %v366 = vld [vmem:[#allocation2 + $0xd0] sm:$0xff]
    %v367 = vld [vmem:[#allocation2 + $0xd8] sm:$0xff]
    %v368 = vld [vmem:[#allocation2 + $0xe0] sm:$0xff]
    %v369 = vld [vmem:[#allocation2 + $0xe8] sm:$0xff]
    %v370 = vld [vmem:[#allocation2 + $0xf0] sm:$0xff]
    %v371 = vld [vmem:[#allocation2 + $0xf8] sm:$0xff]
    %v372 = vld [vmem:[#allocation2 + $0x100] sm:$0xff]
    %v373 = vld [vmem:[#allocation2 + $0x108] sm:$0xff]
    %v374 = vld [vmem:[#allocation2 + $0x110] sm:$0xff]
    %v375 = vld [vmem:[#allocation2 + $0x118] sm:$0xff]
    %v376 = vld [vmem:[#allocation2 + $0x120] sm:$0xff]
    %v377 = vld [vmem:[#allocation2 + $0x128] sm:$0xff]
    %v378 = vld [vmem:[#allocation2 + $0x130] sm:$0xff]
    %v379 = vld [vmem:[#allocation2 + $0x138] sm:$0xff]
    %v380 = vld [vmem:[#allocation2 + $0x140] sm:$0xff]
    %v381 = vld [vmem:[#allocation2 + $0x148] sm:$0xff]
    %v382 = vld [vmem:[#allocation2 + $0x150] sm:$0xff]
    %v383 = vld [vmem:[#allocation2 + $0x158] sm:$0xff]
    %v384 = vld [vmem:[#allocation2 + $0x160] sm:$0xff]
    %v385 = vld [vmem:[#allocation2 + $0x168] sm:$0xff]
    %v386 = vld [vmem:[#allocation2 + $0x170] sm:$0xff]
    %v387 = vld [vmem:[#allocation2 + $0x178] sm:$0xff]
    %v388 = vld [vmem:[#allocation2 + $0x180] sm:$0xff]
    %v389 = vld [vmem:[#allocation2 + $0x188] sm:$0xff]
    %v390 = vld [vmem:[#allocation2 + $0x190] sm:$0xff]
    %v391 = vld [vmem:[#allocation2 + $0x198] sm:$0xff]
    %v392 = vld [vmem:[#allocation2 + $0x1a0] sm:$0xff]
    %v393 = vld [vmem:[#allocation2 + $0x1a8] sm:$0xff]
    %v394 = vld [vmem:[#allocation2 + $0x1b0] sm:$0xff]
    %v395 = vld [vmem:[#allocation2 + $0x1b8] sm:$0xff]
    %v396 = vld [vmem:[#allocation2 + $0x1c0] sm:$0xff]
    %v397 = vld [vmem:[#allocation2 + $0x1c8] sm:$0xff]
    %v398 = vld [vmem:[#allocation2 + $0x1d0] sm:$0xff]
    %v399 = vld [vmem:[#allocation2 + $0x1d8] sm:$0xff]
    %v400 = vld [vmem:[#allocation2 + $0x1e0] sm:$0xff]
    %v401 = vld [vmem:[#allocation2 + $0x1e8] sm:$0xff]
    %v402 = vld [vmem:[#allocation2 + $0x1f0] sm:$0xff]
    %v403 = vld [vmem:[#allocation2 + $0x1f8] sm:$0xff]
    %v404 = vand.u32 %v371, 4294901760
    %405 = vmatprep.subr.mxu0 %v404
    %v406 = vand.u32 %v370, 4294901760
    %407 = vmatpush1.msra.mxu0 %v406
    %v408 = vand.u32 %v369, 4294901760
    %409 = vmatprep.subr.mxu0 %v408
    %v410 = vand.u32 %v368, 4294901760
    %411 = vmatpush1.msra.mxu0 %v410
    %v412 = vand.u32 %v367, 4294901760
    %413 = vmatprep.subr.mxu0 %v412
    %v414 = vand.u32 %v366, 4294901760
    %415 = vmatpush1.msra.mxu0 %v414
    %v416 = vand.u32 %v365, 4294901760
    %417 = vmatprep.subr.mxu0 %v416
    %v418 = vand.u32 %v364, 4294901760
    %419 = vmatpush1.msra.mxu0 %v418
    %v420 = vand.u32 %v363, 4294901760
    %421 = vmatprep.subr.mxu0 %v420
    %v422 = vand.u32 %v362, 4294901760
    %423 = vmatpush1.msra.mxu0 %v422
    %v424 = vand.u32 %v361, 4294901760
    %425 = vmatprep.subr.mxu0 %v424
    %v426 = vand.u32 %v360, 4294901760
    %427 = vmatpush1.msra.mxu0 %v426
    %v428 = vand.u32 %v359, 4294901760
    %429 = vmatprep.subr.mxu0 %v428
    %v430 = vand.u32 %v358, 4294901760
    %431 = vmatpush1.msra.mxu0 %v430
    %v432 = vand.u32 %v357, 4294901760
    %433 = vmatprep.subr.mxu0 %v432
    %v434 = vand.u32 %v356, 4294901760
    %435 = vmatpush1.msra.mxu0 %v434
    %v436 = vand.u32 %v355, 4294901760
    %437 = vmatprep.subr.mxu0 %v436
    %v438 = vand.u32 %v354, 4294901760
    %439 = vmatpush1.msra.mxu0 %v438
    %v440 = vand.u32 %v353, 4294901760
    %441 = vmatprep.subr.mxu0 %v440
    %v442 = vand.u32 %v352, 4294901760
    %443 = vmatpush1.msra.mxu0 %v442
    %v444 = vand.u32 %v351, 4294901760
    %445 = vmatprep.subr.mxu0 %v444
    %v446 = vand.u32 %v350, 4294901760
    %447 = vmatpush1.msra.mxu0 %v446
    %v448 = vand.u32 %v349, 4294901760
    %449 = vmatprep.subr.mxu0 %v448
    %v450 = vand.u32 %v348, 4294901760
    %451 = vmatpush1.msra.mxu0 %v450
    %v452 = vand.u32 %v347, 4294901760
    %453 = vmatprep.subr.mxu0 %v452
    %v454 = vand.u32 %v346, 4294901760
    %455 = vmatpush1.msra.mxu0 %v454
    %v456 = vand.u32 %v345, 4294901760
    %457 = vmatprep.subr.mxu0 %v456
    %v458 = vand.u32 %v344, 4294901760
    %459 = vmatpush1.msra.mxu0 %v458
    %v460 = vand.u32 %v343, 4294901760
    %461 = vmatprep.subr.mxu0 %v460
    %v462 = vand.u32 %v342, 4294901760
    %463 = vmatpush1.msra.mxu0 %v462
    %v464 = vand.u32 %v341, 4294901760
    %465 = vmatprep.subr.mxu0 %v464
    %v466 = vand.u32 %v340, 4294901760
    %467 = vmatpush1.msra.mxu0 %v466
    %v468 = vand.u32 %v403, 4294901760
    %469 = vmatprep.subr.mxu0 %v468
    %v470 = vand.u32 %v402, 4294901760
    %471 = vmatpush2.msra.mxu0 %v470
    %v472 = vand.u32 %v401, 4294901760
    %473 = vmatprep.subr.mxu0 %v472
    %v474 = vand.u32 %v400, 4294901760
    %475 = vmatpush2.msra.mxu0 %v474
    %v476 = vand.u32 %v399, 4294901760
    %477 = vmatprep.subr.mxu0 %v476
    %v478 = vand.u32 %v398, 4294901760
    %479 = vmatpush2.msra.mxu0 %v478
    %v480 = vand.u32 %v397, 4294901760
    %481 = vmatprep.subr.mxu0 %v480
    %v482 = vand.u32 %v396, 4294901760
    %483 = vmatpush2.msra.mxu0 %v482
    %v484 = vand.u32 %v395, 4294901760
    %485 = vmatprep.subr.mxu0 %v484
    %v486 = vand.u32 %v394, 4294901760
    %487 = vmatpush2.msra.mxu0 %v486
    %v488 = vand.u32 %v393, 4294901760
    %489 = vmatprep.subr.mxu0 %v488
    %v490 = vand.u32 %v392, 4294901760
    %491 = vmatpush2.msra.mxu0 %v490
    %v492 = vand.u32 %v391, 4294901760
    %493 = vmatprep.subr.mxu0 %v492
    %v494 = vand.u32 %v390, 4294901760
    %495 = vmatpush2.msra.mxu0 %v494
    %v496 = vand.u32 %v389, 4294901760
    %497 = vmatprep.subr.mxu0 %v496
    %v498 = vand.u32 %v388, 4294901760
    %499 = vmatpush2.msra.mxu0 %v498
    %v500 = vand.u32 %v387, 4294901760
    %501 = vmatprep.subr.mxu0 %v500
    %v502 = vand.u32 %v386, 4294901760
    %503 = vmatpush2.msra.mxu0 %v502
    %v504 = vand.u32 %v385, 4294901760
    %505 = vmatprep.subr.mxu0 %v504
    %v506 = vand.u32 %v384, 4294901760
    %507 = vmatpush2.msra.mxu0 %v506
    %v508 = vand.u32 %v383, 4294901760
    %509 = vmatprep.subr.mxu0 %v508
    %v510 = vand.u32 %v382, 4294901760
    %511 = vmatpush2.msra.mxu0 %v510
    %v512 = vand.u32 %v381, 4294901760
    %513 = vmatprep.subr.mxu0 %v512
    %v514 = vand.u32 %v380, 4294901760
    %515 = vmatpush2.msra.mxu0 %v514
    %v516 = vand.u32 %v379, 4294901760
    %517 = vmatprep.subr.mxu0 %v516
    %v518 = vand.u32 %v378, 4294901760
    %519 = vmatpush2.msra.mxu0 %v518
    %v520 = vand.u32 %v377, 4294901760
    %521 = vmatprep.subr.mxu0 %v520
    %v522 = vand.u32 %v376, 4294901760
    %523 = vmatpush2.msra.mxu0 %v522
    %v524 = vand.u32 %v375, 4294901760
    %525 = vmatprep.subr.mxu0 %v524
    %v526 = vand.u32 %v374, 4294901760
    %527 = vmatpush2.msra.mxu0 %v526
    %v528 = vand.u32 %v373, 4294901760
    %529 = vmatprep.subr.mxu0 %v528
    %v530 = vand.u32 %v372, 4294901760
    %531 = vmatpush2.msra.mxu0 %v530
    %v532 = vand.u32 %v339, 4294901760
    %v533 = vsub.f32 %v339, %v532
    %v534 = vand.u32 %v533, 4294901760
    %v535 = vsub.f32 %v533, %v534
    %v536 = vand.u32 %v535, 4294901760
    %537 = vmatprep.mubr.f32.mxu0 %v536
    %v538 = vand.u32 %v338, 4294901760
    %v539 = vsub.f32 %v338, %v538
    %v540 = vand.u32 %v539, 4294901760
    %v541 = vsub.f32 %v539, %v540
    %v542 = vand.u32 %v541, 4294901760
    %543 = vmatmul.mubr.f32.gmra.mxu0 %v542
    %v544 = vpop.f32.mrf.mxu0
    %v545 = vadd.f32 0.0, %v544
    %v546 = vpop.f32.mrf.mxu0
    %v547 = vadd.f32 0.0, %v546
    %548 = vdwg.mxu0
    %v549 = vand.u32 %v371, 4294901760
    %v550 = vsub.f32 %v371, %v549
    %v551 = vand.u32 %v550, 4294901760
    %v552 = vsub.f32 %v550, %v551
    %v553 = vand.u32 %v552, 4294901760
    %554 = vmatprep.subr.mxu0 %v553
    %v555 = vand.u32 %v370, 4294901760
    %v556 = vsub.f32 %v370, %v555
    %v557 = vand.u32 %v556, 4294901760
    %v558 = vsub.f32 %v556, %v557
    %v559 = vand.u32 %v558, 4294901760
    %560 = vmatpush1.msra.mxu0 %v559
    %v561 = vand.u32 %v369, 4294901760
    %v562 = vsub.f32 %v369, %v561
    %v563 = vand.u32 %v562, 4294901760
    %v564 = vsub.f32 %v562, %v563
    %v565 = vand.u32 %v564, 4294901760
    %566 = vmatprep.subr.mxu0 %v565
    %v567 = vand.u32 %v368, 4294901760
    %v568 = vsub.f32 %v368, %v567
    %v569 = vand.u32 %v568, 4294901760
    %v570 = vsub.f32 %v568, %v569
    %v571 = vand.u32 %v570, 4294901760
    %572 = vmatpush1.msra.mxu0 %v571
    %v573 = vand.u32 %v367, 4294901760
    %v574 = vsub.f32 %v367, %v573
    %v575 = vand.u32 %v574, 4294901760
    %v576 = vsub.f32 %v574, %v575
    %v577 = vand.u32 %v576, 4294901760
    %578 = vmatprep.subr.mxu0 %v577
    %v579 = vand.u32 %v366, 4294901760
    %v580 = vsub.f32 %v366, %v579
    %v581 = vand.u32 %v580, 4294901760
    %v582 = vsub.f32 %v580, %v581
    %v583 = vand.u32 %v582, 4294901760
    %584 = vmatpush1.msra.mxu0 %v583
    %v585 = vand.u32 %v365, 4294901760
    %v586 = vsub.f32 %v365, %v585
    %v587 = vand.u32 %v586, 4294901760
    %v588 = vsub.f32 %v586, %v587
    %v589 = vand.u32 %v588, 4294901760
    %590 = vmatprep.subr.mxu0 %v589
    %v591 = vand.u32 %v364, 4294901760
    %v592 = vsub.f32 %v364, %v591
    %v593 = vand.u32 %v592, 4294901760
    %v594 = vsub.f32 %v592, %v593
    %v595 = vand.u32 %v594, 4294901760
    %596 = vmatpush1.msra.mxu0 %v595
    %v597 = vand.u32 %v363, 4294901760
    %v598 = vsub.f32 %v363, %v597
    %v599 = vand.u32 %v598, 4294901760
    %v600 = vsub.f32 %v598, %v599
    %v601 = vand.u32 %v600, 4294901760
    %602 = vmatprep.subr.mxu0 %v601
    %v603 = vand.u32 %v362, 4294901760
    %v604 = vsub.f32 %v362, %v603
    %v605 = vand.u32 %v604, 4294901760
    %v606 = vsub.f32 %v604, %v605
    %v607 = vand.u32 %v606, 4294901760
    %608 = vmatpush1.msra.mxu0 %v607
    %v609 = vand.u32 %v361, 4294901760
    %v610 = vsub.f32 %v361, %v609
    %v611 = vand.u32 %v610, 4294901760
    %v612 = vsub.f32 %v610, %v611
    %v613 = vand.u32 %v612, 4294901760
    %614 = vmatprep.subr.mxu0 %v613
    %v615 = vand.u32 %v360, 4294901760
    %v616 = vsub.f32 %v360, %v615
    %v617 = vand.u32 %v616, 4294901760
    %v618 = vsub.f32 %v616, %v617
    %v619 = vand.u32 %v618, 4294901760
    %620 = vmatpush1.msra.mxu0 %v619
    %v621 = vand.u32 %v359, 4294901760
    %v622 = vsub.f32 %v359, %v621
    %v623 = vand.u32 %v622, 4294901760
    %v624 = vsub.f32 %v622, %v623
    %v625 = vand.u32 %v624, 4294901760
    %626 = vmatprep.subr.mxu0 %v625
    %v627 = vand.u32 %v358, 4294901760
    %v628 = vsub.f32 %v358, %v627
    %v629 = vand.u32 %v628, 4294901760
    %v630 = vsub.f32 %v628, %v629
    %v631 = vand.u32 %v630, 4294901760
    %632 = vmatpush1.msra.mxu0 %v631
    %v633 = vand.u32 %v357, 4294901760
    %v634 = vsub.f32 %v357, %v633
    %v635 = vand.u32 %v634, 4294901760
    %v636 = vsub.f32 %v634, %v635
    %v637 = vand.u32 %v636, 4294901760
    %638 = vmatprep.subr.mxu0 %v637
    %v639 = vand.u32 %v356, 4294901760
    %v640 = vsub.f32 %v356, %v639
    %v641 = vand.u32 %v640, 4294901760
    %v642 = vsub.f32 %v640, %v641
    %v643 = vand.u32 %v642, 4294901760
    %644 = vmatpush1.msra.mxu0 %v643
    %v645 = vand.u32 %v355, 4294901760
    %v646 = vsub.f32 %v355, %v645
    %v647 = vand.u32 %v646, 4294901760
    %v648 = vsub.f32 %v646, %v647
    %v649 = vand.u32 %v648, 4294901760
    %650 = vmatprep.subr.mxu0 %v649
    %v651 = vand.u32 %v354, 4294901760
    %v652 = vsub.f32 %v354, %v651
    %v653 = vand.u32 %v652, 4294901760
    %v654 = vsub.f32 %v652, %v653
    %v655 = vand.u32 %v654, 4294901760
    %656 = vmatpush1.msra.mxu0 %v655
    %v657 = vand.u32 %v353, 4294901760
    %v658 = vsub.f32 %v353, %v657
    %v659 = vand.u32 %v658, 4294901760
    %v660 = vsub.f32 %v658, %v659
    %v661 = vand.u32 %v660, 4294901760
    %662 = vmatprep.subr.mxu0 %v661
    %v663 = vand.u32 %v352, 4294901760
    %v664 = vsub.f32 %v352, %v663
    %v665 = vand.u32 %v664, 4294901760
    %v666 = vsub.f32 %v664, %v665
    %v667 = vand.u32 %v666, 4294901760
    %668 = vmatpush1.msra.mxu0 %v667
    %v669 = vand.u32 %v351, 4294901760
    %v670 = vsub.f32 %v351, %v669
    %v671 = vand.u32 %v670, 4294901760
    %v672 = vsub.f32 %v670, %v671
    %v673 = vand.u32 %v672, 4294901760
    %674 = vmatprep.subr.mxu0 %v673
    %v675 = vand.u32 %v350, 4294901760
    %v676 = vsub.f32 %v350, %v675
    %v677 = vand.u32 %v676, 4294901760
    %v678 = vsub.f32 %v676, %v677
    %v679 = vand.u32 %v678, 4294901760
    %680 = vmatpush1.msra.mxu0 %v679
    %v681 = vand.u32 %v349, 4294901760
    %v682 = vsub.f32 %v349, %v681
    %v683 = vand.u32 %v682, 4294901760
    %v684 = vsub.f32 %v682, %v683
    %v685 = vand.u32 %v684, 4294901760
    %686 = vmatprep.subr.mxu0 %v685
    %v687 = vand.u32 %v348, 4294901760
    %v688 = vsub.f32 %v348, %v687
    %v689 = vand.u32 %v688, 4294901760
    %v690 = vsub.f32 %v688, %v689
    %v691 = vand.u32 %v690, 4294901760
    %692 = vmatpush1.msra.mxu0 %v691
    %v693 = vand.u32 %v347, 4294901760
    %v694 = vsub.f32 %v347, %v693
    %v695 = vand.u32 %v694, 4294901760
    %v696 = vsub.f32 %v694, %v695
    %v697 = vand.u32 %v696, 4294901760
    %698 = vmatprep.subr.mxu0 %v697
    %v699 = vand.u32 %v346, 4294901760
    %v700 = vsub.f32 %v346, %v699
    %v701 = vand.u32 %v700, 4294901760
    %v702 = vsub.f32 %v700, %v701
    %v703 = vand.u32 %v702, 4294901760
    %704 = vmatpush1.msra.mxu0 %v703
    %v705 = vand.u32 %v345, 4294901760
    %v706 = vsub.f32 %v345, %v705
    %v707 = vand.u32 %v706, 4294901760
    %v708 = vsub.f32 %v706, %v707
    %v709 = vand.u32 %v708, 4294901760
    %710 = vmatprep.subr.mxu0 %v709
    %v711 = vand.u32 %v344, 4294901760
    %v712 = vsub.f32 %v344, %v711
    %v713 = vand.u32 %v712, 4294901760
    %v714 = vsub.f32 %v712, %v713
    %v715 = vand.u32 %v714, 4294901760
    %716 = vmatpush1.msra.mxu0 %v715
    %v717 = vand.u32 %v343, 4294901760
    %v718 = vsub.f32 %v343, %v717
    %v719 = vand.u32 %v718, 4294901760
    %v720 = vsub.f32 %v718, %v719
    %v721 = vand.u32 %v720, 4294901760
    %722 = vmatprep.subr.mxu0 %v721
    %v723 = vand.u32 %v342, 4294901760
    %v724 = vsub.f32 %v342, %v723
    %v725 = vand.u32 %v724, 4294901760
    %v726 = vsub.f32 %v724, %v725
    %v727 = vand.u32 %v726, 4294901760
    %728 = vmatpush1.msra.mxu0 %v727
    %v729 = vand.u32 %v341, 4294901760
    %v730 = vsub.f32 %v341, %v729
    %v731 = vand.u32 %v730, 4294901760
    %v732 = vsub.f32 %v730, %v731
    %v733 = vand.u32 %v732, 4294901760
    %734 = vmatprep.subr.mxu0 %v733
    %v735 = vand.u32 %v340, 4294901760
    %v736 = vsub.f32 %v340, %v735
    %v737 = vand.u32 %v736, 4294901760
    %v738 = vsub.f32 %v736, %v737
    %v739 = vand.u32 %v738, 4294901760
    %740 = vmatpush1.msra.mxu0 %v739
    %v741 = vand.u32 %v403, 4294901760
    %v742 = vsub.f32 %v403, %v741
    %v743 = vand.u32 %v742, 4294901760
    %v744 = vsub.f32 %v742, %v743
    %v745 = vand.u32 %v744, 4294901760
    %746 = vmatprep.subr.mxu0 %v745
    %v747 = vand.u32 %v402, 4294901760
    %v748 = vsub.f32 %v402, %v747
    %v749 = vand.u32 %v748, 4294901760
    %v750 = vsub.f32 %v748, %v749
    %v751 = vand.u32 %v750, 4294901760
    %752 = vmatpush2.msra.mxu0 %v751
    %v753 = vand.u32 %v401, 4294901760
    %v754 = vsub.f32 %v401, %v753
    %v755 = vand.u32 %v754, 4294901760
    %v756 = vsub.f32 %v754, %v755
    %v757 = vand.u32 %v756, 4294901760
    %758 = vmatprep.subr.mxu0 %v757
    %v759 = vand.u32 %v400, 4294901760
    %v760 = vsub.f32 %v400, %v759
    %v761 = vand.u32 %v760, 4294901760
    %v762 = vsub.f32 %v760, %v761
    %v763 = vand.u32 %v762, 4294901760
    %764 = vmatpush2.msra.mxu0 %v763
    %v765 = vand.u32 %v399, 4294901760
    %v766 = vsub.f32 %v399, %v765
    %v767 = vand.u32 %v766, 4294901760
    %v768 = vsub.f32 %v766, %v767
    %v769 = vand.u32 %v768, 4294901760
    %770 = vmatprep.subr.mxu0 %v769
    %v771 = vand.u32 %v398, 4294901760
    %v772 = vsub.f32 %v398, %v771
    %v773 = vand.u32 %v772, 4294901760
    %v774 = vsub.f32 %v772, %v773
    %v775 = vand.u32 %v774, 4294901760
    %776 = vmatpush2.msra.mxu0 %v775
    %v777 = vand.u32 %v397, 4294901760
    %v778 = vsub.f32 %v397, %v777
    %v779 = vand.u32 %v778, 4294901760
    %v780 = vsub.f32 %v778, %v779
    %v781 = vand.u32 %v780, 4294901760
    %782 = vmatprep.subr.mxu0 %v781
    %v783 = vand.u32 %v396, 4294901760
    %v784 = vsub.f32 %v396, %v783
    %v785 = vand.u32 %v784, 4294901760
    %v786 = vsub.f32 %v784, %v785
    %v787 = vand.u32 %v786, 4294901760
    %788 = vmatpush2.msra.mxu0 %v787
    %v789 = vand.u32 %v395, 4294901760
    %v790 = vsub.f32 %v395, %v789
    %v791 = vand.u32 %v790, 4294901760
    %v792 = vsub.f32 %v790, %v791
    %v793 = vand.u32 %v792, 4294901760
    %794 = vmatprep.subr.mxu0 %v793
    %v795 = vand.u32 %v394, 4294901760
    %v796 = vsub.f32 %v394, %v795
    %v797 = vand.u32 %v796, 4294901760
    %v798 = vsub.f32 %v796, %v797
    %v799 = vand.u32 %v798, 4294901760
    %800 = vmatpush2.msra.mxu0 %v799
    %v801 = vand.u32 %v393, 4294901760
    %v802 = vsub.f32 %v393, %v801
    %v803 = vand.u32 %v802, 4294901760
    %v804 = vsub.f32 %v802, %v803
    %v805 = vand.u32 %v804, 4294901760
    %806 = vmatprep.subr.mxu0 %v805
    %v807 = vand.u32 %v392, 4294901760
    %v808 = vsub.f32 %v392, %v807
    %v809 = vand.u32 %v808, 4294901760
    %v810 = vsub.f32 %v808, %v809
    %v811 = vand.u32 %v810, 4294901760
    %812 = vmatpush2.msra.mxu0 %v811
    %v813 = vand.u32 %v391, 4294901760
    %v814 = vsub.f32 %v391, %v813
    %v815 = vand.u32 %v814, 4294901760
    %v816 = vsub.f32 %v814, %v815
    %v817 = vand.u32 %v816, 4294901760
    %818 = vmatprep.subr.mxu0 %v817
    %v819 = vand.u32 %v390, 4294901760
    %v820 = vsub.f32 %v390, %v819
    %v821 = vand.u32 %v820, 4294901760
    %v822 = vsub.f32 %v820, %v821
    %v823 = vand.u32 %v822, 4294901760
    %824 = vmatpush2.msra.mxu0 %v823
    %v825 = vand.u32 %v389, 4294901760
    %v826 = vsub.f32 %v389, %v825
    %v827 = vand.u32 %v826, 4294901760
    %v828 = vsub.f32 %v826, %v827
    %v829 = vand.u32 %v828, 4294901760
    %830 = vmatprep.subr.mxu0 %v829
    %v831 = vand.u32 %v388, 4294901760
    %v832 = vsub.f32 %v388, %v831
    %v833 = vand.u32 %v832, 4294901760
    %v834 = vsub.f32 %v832, %v833
    %v835 = vand.u32 %v834, 4294901760
    %836 = vmatpush2.msra.mxu0 %v835
    %v837 = vand.u32 %v387, 4294901760
    %v838 = vsub.f32 %v387, %v837
    %v839 = vand.u32 %v838, 4294901760
    %v840 = vsub.f32 %v838, %v839
    %v841 = vand.u32 %v840, 4294901760
    %842 = vmatprep.subr.mxu0 %v841
    %v843 = vand.u32 %v386, 4294901760
    %v844 = vsub.f32 %v386, %v843
    %v845 = vand.u32 %v844, 4294901760
    %v846 = vsub.f32 %v844, %v845
    %v847 = vand.u32 %v846, 4294901760
    %848 = vmatpush2.msra.mxu0 %v847
    %v849 = vand.u32 %v385, 4294901760
    %v850 = vsub.f32 %v385, %v849
    %v851 = vand.u32 %v850, 4294901760
    %v852 = vsub.f32 %v850, %v851
    %v853 = vand.u32 %v852, 4294901760
    %854 = vmatprep.subr.mxu0 %v853
    %v855 = vand.u32 %v384, 4294901760
    %v856 = vsub.f32 %v384, %v855
    %v857 = vand.u32 %v856, 4294901760
    %v858 = vsub.f32 %v856, %v857
    %v859 = vand.u32 %v858, 4294901760
    %860 = vmatpush2.msra.mxu0 %v859
    %v861 = vand.u32 %v383, 4294901760
    %v862 = vsub.f32 %v383, %v861
    %v863 = vand.u32 %v862, 4294901760
    %v864 = vsub.f32 %v862, %v863
    %v865 = vand.u32 %v864, 4294901760
    %866 = vmatprep.subr.mxu0 %v865
    %v867 = vand.u32 %v382, 4294901760
    %v868 = vsub.f32 %v382, %v867
    %v869 = vand.u32 %v868, 4294901760
    %v870 = vsub.f32 %v868, %v869
    %v871 = vand.u32 %v870, 4294901760
    %872 = vmatpush2.msra.mxu0 %v871
    %v873 = vand.u32 %v381, 4294901760
    %v874 = vsub.f32 %v381, %v873
    %v875 = vand.u32 %v874, 4294901760
    %v876 = vsub.f32 %v874, %v875
    %v877 = vand.u32 %v876, 4294901760
    %878 = vmatprep.subr.mxu0 %v877
    %v879 = vand.u32 %v380, 4294901760
    %v880 = vsub.f32 %v380, %v879
    %v881 = vand.u32 %v880, 4294901760
    %v882 = vsub.f32 %v880, %v881
    %v883 = vand.u32 %v882, 4294901760
    %884 = vmatpush2.msra.mxu0 %v883
    %v885 = vand.u32 %v379, 4294901760
    %v886 = vsub.f32 %v379, %v885
    %v887 = vand.u32 %v886, 4294901760
    %v888 = vsub.f32 %v886, %v887
    %v889 = vand.u32 %v888, 4294901760
    %890 = vmatprep.subr.mxu0 %v889
    %v891 = vand.u32 %v378, 4294901760
    %v892 = vsub.f32 %v378, %v891
    %v893 = vand.u32 %v892, 4294901760
    %v894 = vsub.f32 %v892, %v893
    %v895 = vand.u32 %v894, 4294901760
    %896 = vmatpush2.msra.mxu0 %v895
    %v897 = vand.u32 %v377, 4294901760
    %v898 = vsub.f32 %v377, %v897
    %v899 = vand.u32 %v898, 4294901760
    %v900 = vsub.f32 %v898, %v899
    %v901 = vand.u32 %v900, 4294901760
    %902 = vmatprep.subr.mxu0 %v901
    %v903 = vand.u32 %v376, 4294901760
    %v904 = vsub.f32 %v376, %v903
    %v905 = vand.u32 %v904, 4294901760
    %v906 = vsub.f32 %v904, %v905
    %v907 = vand.u32 %v906, 4294901760
    %908 = vmatpush2.msra.mxu0 %v907
    %v909 = vand.u32 %v375, 4294901760
    %v910 = vsub.f32 %v375, %v909
    %v911 = vand.u32 %v910, 4294901760
    %v912 = vsub.f32 %v910, %v911
    %v913 = vand.u32 %v912, 4294901760
    %914 = vmatprep.subr.mxu0 %v913
    %v915 = vand.u32 %v374, 4294901760
    %v916 = vsub.f32 %v374, %v915
    %v917 = vand.u32 %v916, 4294901760
    %v918 = vsub.f32 %v916, %v917
    %v919 = vand.u32 %v918, 4294901760
    %920 = vmatpush2.msra.mxu0 %v919
    %v921 = vand.u32 %v373, 4294901760
    %v922 = vsub.f32 %v373, %v921
    %v923 = vand.u32 %v922, 4294901760
    %v924 = vsub.f32 %v922, %v923
    %v925 = vand.u32 %v924, 4294901760
    %926 = vmatprep.subr.mxu0 %v925
    %v927 = vand.u32 %v372, 4294901760
    %v928 = vsub.f32 %v372, %v927
    %v929 = vand.u32 %v928, 4294901760
    %v930 = vsub.f32 %v928, %v929
    %v931 = vand.u32 %v930, 4294901760
    %932 = vmatpush2.msra.mxu0 %v931
    %v933 = vand.u32 %v339, 4294901760
    %934 = vmatprep.mubr.f32.mxu0 %v933
    %v935 = vand.u32 %v338, 4294901760
    %936 = vmatmul.mubr.f32.gmra.mxu0 %v935
    %v937 = vpop.f32.mrf.mxu0
    %v938 = vadd.f32 %v545, %v937
    %v939 = vpop.f32.mrf.mxu0
    %v940 = vadd.f32 %v547, %v939
    %941 = vdwg.mxu0
    %v942 = vand.u32 %v371, 4294901760
    %v943 = vsub.f32 %v371, %v942
    %944 = vmatprep.subr.mxu0 %v943
    %v945 = vand.u32 %v370, 4294901760
    %v946 = vsub.f32 %v370, %v945
    %947 = vmatpush1.msra.mxu0 %v946
    %v948 = vand.u32 %v369, 4294901760
    %v949 = vsub.f32 %v369, %v948
    %950 = vmatprep.subr.mxu0 %v949
    %v951 = vand.u32 %v368, 4294901760
    %v952 = vsub.f32 %v368, %v951
    %953 = vmatpush1.msra.mxu0 %v952
    %v954 = vand.u32 %v367, 4294901760
    %v955 = vsub.f32 %v367, %v954
    %956 = vmatprep.subr.mxu0 %v955
    %v957 = vand.u32 %v366, 4294901760
    %v958 = vsub.f32 %v366, %v957
    %959 = vmatpush1.msra.mxu0 %v958
    %v960 = vand.u32 %v365, 4294901760
    %v961 = vsub.f32 %v365, %v960
    %962 = vmatprep.subr.mxu0 %v961
    %v963 = vand.u32 %v364, 4294901760
    %v964 = vsub.f32 %v364, %v963
    %965 = vmatpush1.msra.mxu0 %v964
    %v966 = vand.u32 %v363, 4294901760
    %v967 = vsub.f32 %v363, %v966
    %968 = vmatprep.subr.mxu0 %v967
    %v969 = vand.u32 %v362, 4294901760
    %v970 = vsub.f32 %v362, %v969
    %971 = vmatpush1.msra.mxu0 %v970
    %v972 = vand.u32 %v361, 4294901760
    %v973 = vsub.f32 %v361, %v972
    %974 = vmatprep.subr.mxu0 %v973
    %v975 = vand.u32 %v360, 4294901760
    %v976 = vsub.f32 %v360, %v975
    %977 = vmatpush1.msra.mxu0 %v976
    %v978 = vand.u32 %v359, 4294901760
    %v979 = vsub.f32 %v359, %v978
    %980 = vmatprep.subr.mxu0 %v979
    %v981 = vand.u32 %v358, 4294901760
    %v982 = vsub.f32 %v358, %v981
    %983 = vmatpush1.msra.mxu0 %v982
    %v984 = vand.u32 %v357, 4294901760
    %v985 = vsub.f32 %v357, %v984
    %986 = vmatprep.subr.mxu0 %v985
    %v987 = vand.u32 %v356, 4294901760
    %v988 = vsub.f32 %v356, %v987
    %989 = vmatpush1.msra.mxu0 %v988
    %v990 = vand.u32 %v355, 4294901760
    %v991 = vsub.f32 %v355, %v990
    %992 = vmatprep.subr.mxu0 %v991
    %v993 = vand.u32 %v354, 4294901760
    %v994 = vsub.f32 %v354, %v993
    %995 = vmatpush1.msra.mxu0 %v994
    %v996 = vand.u32 %v353, 4294901760
    %v997 = vsub.f32 %v353, %v996
    %998 = vmatprep.subr.mxu0 %v997
    %v999 = vand.u32 %v352, 4294901760
    %v1000 = vsub.f32 %v352, %v999
    %1001 = vmatpush1.msra.mxu0 %v1000
    %v1002 = vand.u32 %v351, 4294901760
    %v1003 = vsub.f32 %v351, %v1002
    %1004 = vmatprep.subr.mxu0 %v1003
    %v1005 = vand.u32 %v350, 4294901760
    %v1006 = vsub.f32 %v350, %v1005
    %1007 = vmatpush1.msra.mxu0 %v1006
    %v1008 = vand.u32 %v349, 4294901760
    %v1009 = vsub.f32 %v349, %v1008
    %1010 = vmatprep.subr.mxu0 %v1009
    %v1011 = vand.u32 %v348, 4294901760
    %v1012 = vsub.f32 %v348, %v1011
    %1013 = vmatpush1.msra.mxu0 %v1012
    %v1014 = vand.u32 %v347, 4294901760
    %v1015 = vsub.f32 %v347, %v1014
    %1016 = vmatprep.subr.mxu0 %v1015
    %v1017 = vand.u32 %v346, 4294901760
    %v1018 = vsub.f32 %v346, %v1017
    %1019 = vmatpush1.msra.mxu0 %v1018
    %v1020 = vand.u32 %v345, 4294901760
    %v1021 = vsub.f32 %v345, %v1020
    %1022 = vmatprep.subr.mxu0 %v1021
    %v1023 = vand.u32 %v344, 4294901760
    %v1024 = vsub.f32 %v344, %v1023
    %1025 = vmatpush1.msra.mxu0 %v1024
    %v1026 = vand.u32 %v343, 4294901760
    %v1027 = vsub.f32 %v343, %v1026
    %1028 = vmatprep.subr.mxu0 %v1027
    %v1029 = vand.u32 %v342, 4294901760
    %v1030 = vsub.f32 %v342, %v1029
    %1031 = vmatpush1.msra.mxu0 %v1030
    %v1032 = vand.u32 %v341, 4294901760
    %v1033 = vsub.f32 %v341, %v1032
    %1034 = vmatprep.subr.mxu0 %v1033
    %v1035 = vand.u32 %v340, 4294901760
    %v1036 = vsub.f32 %v340, %v1035
    %1037 = vmatpush1.msra.mxu0 %v1036
    %v1038 = vand.u32 %v403, 4294901760
    %v1039 = vsub.f32 %v403, %v1038
    %1040 = vmatprep.subr.mxu0 %v1039
    %v1041 = vand.u32 %v402, 4294901760
    %v1042 = vsub.f32 %v402, %v1041
    %1043 = vmatpush2.msra.mxu0 %v1042
    %v1044 = vand.u32 %v401, 4294901760
    %v1045 = vsub.f32 %v401, %v1044
    %1046 = vmatprep.subr.mxu0 %v1045
    %v1047 = vand.u32 %v400, 4294901760
    %v1048 = vsub.f32 %v400, %v1047
    %1049 = vmatpush2.msra.mxu0 %v1048
    %v1050 = vand.u32 %v399, 4294901760
    %v1051 = vsub.f32 %v399, %v1050
    %1052 = vmatprep.subr.mxu0 %v1051
    %v1053 = vand.u32 %v398, 4294901760
    %v1054 = vsub.f32 %v398, %v1053
    %1055 = vmatpush2.msra.mxu0 %v1054
    %v1056 = vand.u32 %v397, 4294901760
    %v1057 = vsub.f32 %v397, %v1056
    %1058 = vmatprep.subr.mxu0 %v1057
    %v1059 = vand.u32 %v396, 4294901760
    %v1060 = vsub.f32 %v396, %v1059
    %1061 = vmatpush2.msra.mxu0 %v1060
    %v1062 = vand.u32 %v395, 4294901760
    %v1063 = vsub.f32 %v395, %v1062
    %1064 = vmatprep.subr.mxu0 %v1063
    %v1065 = vand.u32 %v394, 4294901760
    %v1066 = vsub.f32 %v394, %v1065
    %1067 = vmatpush2.msra.mxu0 %v1066
    %v1068 = vand.u32 %v393, 4294901760
    %v1069 = vsub.f32 %v393, %v1068
    %1070 = vmatprep.subr.mxu0 %v1069
    %v1071 = vand.u32 %v392, 4294901760
    %v1072 = vsub.f32 %v392, %v1071
    %1073 = vmatpush2.msra.mxu0 %v1072
    %v1074 = vand.u32 %v391, 4294901760
    %v1075 = vsub.f32 %v391, %v1074
    %1076 = vmatprep.subr.mxu0 %v1075
    %v1077 = vand.u32 %v390, 4294901760
    %v1078 = vsub.f32 %v390, %v1077
    %1079 = vmatpush2.msra.mxu0 %v1078
    %v1080 = vand.u32 %v389, 4294901760
    %v1081 = vsub.f32 %v389, %v1080
    %1082 = vmatprep.subr.mxu0 %v1081
    %v1083 = vand.u32 %v388, 4294901760
    %v1084 = vsub.f32 %v388, %v1083
    %1085 = vmatpush2.msra.mxu0 %v1084
    %v1086 = vand.u32 %v387, 4294901760
    %v1087 = vsub.f32 %v387, %v1086
    %1088 = vmatprep.subr.mxu0 %v1087
    %v1089 = vand.u32 %v386, 4294901760
    %v1090 = vsub.f32 %v386, %v1089
    %1091 = vmatpush2.msra.mxu0 %v1090
    %v1092 = vand.u32 %v385, 4294901760
    %v1093 = vsub.f32 %v385, %v1092
    %1094 = vmatprep.subr.mxu0 %v1093
    %v1095 = vand.u32 %v384, 4294901760
    %v1096 = vsub.f32 %v384, %v1095
    %1097 = vmatpush2.msra.mxu0 %v1096
    %v1098 = vand.u32 %v383, 4294901760
    %v1099 = vsub.f32 %v383, %v1098
    %1100 = vmatprep.subr.mxu0 %v1099
    %v1101 = vand.u32 %v382, 4294901760
    %v1102 = vsub.f32 %v382, %v1101
    %1103 = vmatpush2.msra.mxu0 %v1102
    %v1104 = vand.u32 %v381, 4294901760
    %v1105 = vsub.f32 %v381, %v1104
    %1106 = vmatprep.subr.mxu0 %v1105
    %v1107 = vand.u32 %v380, 4294901760
    %v1108 = vsub.f32 %v380, %v1107
    %1109 = vmatpush2.msra.mxu0 %v1108
    %v1110 = vand.u32 %v379, 4294901760
    %v1111 = vsub.f32 %v379, %v1110
    %1112 = vmatprep.subr.mxu0 %v1111
    %v1113 = vand.u32 %v378, 4294901760
    %v1114 = vsub.f32 %v378, %v1113
    %1115 = vmatpush2.msra.mxu0 %v1114
    %v1116 = vand.u32 %v377, 4294901760
    %v1117 = vsub.f32 %v377, %v1116
    %1118 = vmatprep.subr.mxu0 %v1117
    %v1119 = vand.u32 %v376, 4294901760
    %v1120 = vsub.f32 %v376, %v1119
    %1121 = vmatpush2.msra.mxu0 %v1120
    %v1122 = vand.u32 %v375, 4294901760
    %v1123 = vsub.f32 %v375, %v1122
    %1124 = vmatprep.subr.mxu0 %v1123
    %v1125 = vand.u32 %v374, 4294901760
    %v1126 = vsub.f32 %v374, %v1125
    %1127 = vmatpush2.msra.mxu0 %v1126
    %v1128 = vand.u32 %v373, 4294901760
    %v1129 = vsub.f32 %v373, %v1128
    %1130 = vmatprep.subr.mxu0 %v1129
    %v1131 = vand.u32 %v372, 4294901760
    %v1132 = vsub.f32 %v372, %v1131
    %1133 = vmatpush2.msra.mxu0 %v1132
    %v1134 = vand.u32 %v339, 4294901760
    %v1135 = vsub.f32 %v339, %v1134
    %1136 = vmatprep.mubr.f32.mxu0 %v1135
    %v1137 = vand.u32 %v338, 4294901760
    %v1138 = vsub.f32 %v338, %v1137
    %1139 = vmatmul.mubr.f32.gmra.mxu0 %v1138
    %v1140 = vpop.f32.mrf.mxu0
    %v1141 = vadd.f32 %v938, %v1140
    %v1142 = vpop.f32.mrf.mxu0
    %v1143 = vadd.f32 %v940, %v1142
    %1144 = vdwg.mxu0
    %v1145 = vand.u32 %v371, 4294901760
    %1146 = vmatprep.subr.mxu0 %v1145
    %v1147 = vand.u32 %v370, 4294901760
    %1148 = vmatpush1.msra.mxu0 %v1147
    %v1149 = vand.u32 %v369, 4294901760
    %1150 = vmatprep.subr.mxu0 %v1149
    %v1151 = vand.u32 %v368, 4294901760
    %1152 = vmatpush1.msra.mxu0 %v1151
    %v1153 = vand.u32 %v367, 4294901760
    %1154 = vmatprep.subr.mxu0 %v1153
    %v1155 = vand.u32 %v366, 4294901760
    %1156 = vmatpush1.msra.mxu0 %v1155
    %v1157 = vand.u32 %v365, 4294901760
    %1158 = vmatprep.subr.mxu0 %v1157
    %v1159 = vand.u32 %v364, 4294901760
    %1160 = vmatpush1.msra.mxu0 %v1159
    %v1161 = vand.u32 %v363, 4294901760
    %1162 = vmatprep.subr.mxu0 %v1161
    %v1163 = vand.u32 %v362, 4294901760
    %1164 = vmatpush1.msra.mxu0 %v1163
    %v1165 = vand.u32 %v361, 4294901760
    %1166 = vmatprep.subr.mxu0 %v1165
    %v1167 = vand.u32 %v360, 4294901760
    %1168 = vmatpush1.msra.mxu0 %v1167
    %v1169 = vand.u32 %v359, 4294901760
    %1170 = vmatprep.subr.mxu0 %v1169
    %v1171 = vand.u32 %v358, 4294901760
    %1172 = vmatpush1.msra.mxu0 %v1171
    %v1173 = vand.u32 %v357, 4294901760
    %1174 = vmatprep.subr.mxu0 %v1173
    %v1175 = vand.u32 %v356, 4294901760
    %1176 = vmatpush1.msra.mxu0 %v1175
    %v1177 = vand.u32 %v355, 4294901760
    %1178 = vmatprep.subr.mxu0 %v1177
    %v1179 = vand.u32 %v354, 4294901760
    %1180 = vmatpush1.msra.mxu0 %v1179
    %v1181 = vand.u32 %v353, 4294901760
    %1182 = vmatprep.subr.mxu0 %v1181
    %v1183 = vand.u32 %v352, 4294901760
    %1184 = vmatpush1.msra.mxu0 %v1183
    %v1185 = vand.u32 %v351, 4294901760
    %1186 = vmatprep.subr.mxu0 %v1185
    %v1187 = vand.u32 %v350, 4294901760
    %1188 = vmatpush1.msra.mxu0 %v1187
    %v1189 = vand.u32 %v349, 4294901760
    %1190 = vmatprep.subr.mxu0 %v1189
    %v1191 = vand.u32 %v348, 4294901760
    %1192 = vmatpush1.msra.mxu0 %v1191
    %v1193 = vand.u32 %v347, 4294901760
    %1194 = vmatprep.subr.mxu0 %v1193
    %v1195 = vand.u32 %v346, 4294901760
    %1196 = vmatpush1.msra.mxu0 %v1195
    %v1197 = vand.u32 %v345, 4294901760
    %1198 = vmatprep.subr.mxu0 %v1197
    %v1199 = vand.u32 %v344, 4294901760
    %1200 = vmatpush1.msra.mxu0 %v1199
    %v1201 = vand.u32 %v343, 4294901760
    %1202 = vmatprep.subr.mxu0 %v1201
    %v1203 = vand.u32 %v342, 4294901760
    %1204 = vmatpush1.msra.mxu0 %v1203
    %v1205 = vand.u32 %v341, 4294901760
    %1206 = vmatprep.subr.mxu0 %v1205
    %v1207 = vand.u32 %v340, 4294901760
    %1208 = vmatpush1.msra.mxu0 %v1207
    %v1209 = vand.u32 %v403, 4294901760
    %1210 = vmatprep.subr.mxu0 %v1209
    %v1211 = vand.u32 %v402, 4294901760
    %1212 = vmatpush2.msra.mxu0 %v1211
    %v1213 = vand.u32 %v401, 4294901760
    %1214 = vmatprep.subr.mxu0 %v1213
    %v1215 = vand.u32 %v400, 4294901760
    %1216 = vmatpush2.msra.mxu0 %v1215
    %v1217 = vand.u32 %v399, 4294901760
    %1218 = vmatprep.subr.mxu0 %v1217
    %v1219 = vand.u32 %v398, 4294901760
    %1220 = vmatpush2.msra.mxu0 %v1219
    %v1221 = vand.u32 %v397, 4294901760
    %1222 = vmatprep.subr.mxu0 %v1221
    %v1223 = vand.u32 %v396, 4294901760
    %1224 = vmatpush2.msra.mxu0 %v1223
    %v1225 = vand.u32 %v395, 4294901760
    %1226 = vmatprep.subr.mxu0 %v1225
    %v1227 = vand.u32 %v394, 4294901760
    %1228 = vmatpush2.msra.mxu0 %v1227
    %v1229 = vand.u32 %v393, 4294901760
    %1230 = vmatprep.subr.mxu0 %v1229
    %v1231 = vand.u32 %v392, 4294901760
    %1232 = vmatpush2.msra.mxu0 %v1231
    %v1233 = vand.u32 %v391, 4294901760
    %1234 = vmatprep.subr.mxu0 %v1233
    %v1235 = vand.u32 %v390, 4294901760
    %1236 = vmatpush2.msra.mxu0 %v1235
    %v1237 = vand.u32 %v389, 4294901760
    %1238 = vmatprep.subr.mxu0 %v1237
    %v1239 = vand.u32 %v388, 4294901760
    %1240 = vmatpush2.msra.mxu0 %v1239
    %v1241 = vand.u32 %v387, 4294901760
    %1242 = vmatprep.subr.mxu0 %v1241
    %v1243 = vand.u32 %v386, 4294901760
    %1244 = vmatpush2.msra.mxu0 %v1243
    %v1245 = vand.u32 %v385, 4294901760
    %1246 = vmatprep.subr.mxu0 %v1245
    %v1247 = vand.u32 %v384, 4294901760
    %1248 = vmatpush2.msra.mxu0 %v1247
    %v1249 = vand.u32 %v383, 4294901760
    %1250 = vmatprep.subr.mxu0 %v1249
    %v1251 = vand.u32 %v382, 4294901760
    %1252 = vmatpush2.msra.mxu0 %v1251
    %v1253 = vand.u32 %v381, 4294901760
    %1254 = vmatprep.subr.mxu0 %v1253
    %v1255 = vand.u32 %v380, 4294901760
    %1256 = vmatpush2.msra.mxu0 %v1255
    %v1257 = vand.u32 %v379, 4294901760
    %1258 = vmatprep.subr.mxu0 %v1257
    %v1259 = vand.u32 %v378, 4294901760
    %1260 = vmatpush2.msra.mxu0 %v1259
    %v1261 = vand.u32 %v377, 4294901760
    %1262 = vmatprep.subr.mxu0 %v1261
    %v1263 = vand.u32 %v376, 4294901760
    %1264 = vmatpush2.msra.mxu0 %v1263
    %v1265 = vand.u32 %v375, 4294901760
    %1266 = vmatprep.subr.mxu0 %v1265
    %v1267 = vand.u32 %v374, 4294901760
    %1268 = vmatpush2.msra.mxu0 %v1267
    %v1269 = vand.u32 %v373, 4294901760
    %1270 = vmatprep.subr.mxu0 %v1269
    %v1271 = vand.u32 %v372, 4294901760
    %1272 = vmatpush2.msra.mxu0 %v1271
    %v1273 = vand.u32 %v339, 4294901760
    %v1274 = vsub.f32 %v339, %v1273
    %v1275 = vand.u32 %v1274, 4294901760
    %1276 = vmatprep.mubr.f32.mxu0 %v1275
    %v1277 = vand.u32 %v338, 4294901760
    %v1278 = vsub.f32 %v338, %v1277
    %v1279 = vand.u32 %v1278, 4294901760
    %1280 = vmatmul.mubr.f32.gmra.mxu0 %v1279
    %v1281 = vpop.f32.mrf.mxu0
    %v1282 = vadd.f32 %v1141, %v1281
    %v1283 = vpop.f32.mrf.mxu0
    %v1284 = vadd.f32 %v1143, %v1283
    %1285 = vdwg.mxu0
    %v1286 = vand.u32 %v371, 4294901760
    %v1287 = vsub.f32 %v371, %v1286
    %v1288 = vand.u32 %v1287, 4294901760
    %1289 = vmatprep.subr.mxu0 %v1288
    %v1290 = vand.u32 %v370, 4294901760
    %v1291 = vsub.f32 %v370, %v1290
    %v1292 = vand.u32 %v1291, 4294901760
    %1293 = vmatpush1.msra.mxu0 %v1292
    %v1294 = vand.u32 %v369, 4294901760
    %v1295 = vsub.f32 %v369, %v1294
    %v1296 = vand.u32 %v1295, 4294901760
    %1297 = vmatprep.subr.mxu0 %v1296
    %v1298 = vand.u32 %v368, 4294901760
    %v1299 = vsub.f32 %v368, %v1298
    %v1300 = vand.u32 %v1299, 4294901760
    %1301 = vmatpush1.msra.mxu0 %v1300
    %v1302 = vand.u32 %v367, 4294901760
    %v1303 = vsub.f32 %v367, %v1302
    %v1304 = vand.u32 %v1303, 4294901760
    %1305 = vmatprep.subr.mxu0 %v1304
    %v1306 = vand.u32 %v366, 4294901760
    %v1307 = vsub.f32 %v366, %v1306
    %v1308 = vand.u32 %v1307, 4294901760
    %1309 = vmatpush1.msra.mxu0 %v1308
    %v1310 = vand.u32 %v365, 4294901760
    %v1311 = vsub.f32 %v365, %v1310
    %v1312 = vand.u32 %v1311, 4294901760
    %1313 = vmatprep.subr.mxu0 %v1312
    %v1314 = vand.u32 %v364, 4294901760
    %v1315 = vsub.f32 %v364, %v1314
    %v1316 = vand.u32 %v1315, 4294901760
    %1317 = vmatpush1.msra.mxu0 %v1316
    %v1318 = vand.u32 %v363, 4294901760
    %v1319 = vsub.f32 %v363, %v1318
    %v1320 = vand.u32 %v1319, 4294901760
    %1321 = vmatprep.subr.mxu0 %v1320
    %v1322 = vand.u32 %v362, 4294901760
    %v1323 = vsub.f32 %v362, %v1322
    %v1324 = vand.u32 %v1323, 4294901760
    %1325 = vmatpush1.msra.mxu0 %v1324
    %v1326 = vand.u32 %v361, 4294901760
    %v1327 = vsub.f32 %v361, %v1326
    %v1328 = vand.u32 %v1327, 4294901760
    %1329 = vmatprep.subr.mxu0 %v1328
    %v1330 = vand.u32 %v360, 4294901760
    %v1331 = vsub.f32 %v360, %v1330
    %v1332 = vand.u32 %v1331, 4294901760
    %1333 = vmatpush1.msra.mxu0 %v1332
    %v1334 = vand.u32 %v359, 4294901760
    %v1335 = vsub.f32 %v359, %v1334
    %v1336 = vand.u32 %v1335, 4294901760
    %1337 = vmatprep.subr.mxu0 %v1336
    %v1338 = vand.u32 %v358, 4294901760
    %v1339 = vsub.f32 %v358, %v1338
    %v1340 = vand.u32 %v1339, 4294901760
    %1341 = vmatpush1.msra.mxu0 %v1340
    %v1342 = vand.u32 %v357, 4294901760
    %v1343 = vsub.f32 %v357, %v1342
    %v1344 = vand.u32 %v1343, 4294901760
    %1345 = vmatprep.subr.mxu0 %v1344
    %v1346 = vand.u32 %v356, 4294901760
    %v1347 = vsub.f32 %v356, %v1346
    %v1348 = vand.u32 %v1347, 4294901760
    %1349 = vmatpush1.msra.mxu0 %v1348
    %v1350 = vand.u32 %v355, 4294901760
    %v1351 = vsub.f32 %v355, %v1350
    %v1352 = vand.u32 %v1351, 4294901760
    %1353 = vmatprep.subr.mxu0 %v1352
    %v1354 = vand.u32 %v354, 4294901760
    %v1355 = vsub.f32 %v354, %v1354
    %v1356 = vand.u32 %v1355, 4294901760
    %1357 = vmatpush1.msra.mxu0 %v1356
    %v1358 = vand.u32 %v353, 4294901760
    %v1359 = vsub.f32 %v353, %v1358
    %v1360 = vand.u32 %v1359, 4294901760
    %1361 = vmatprep.subr.mxu0 %v1360
    %v1362 = vand.u32 %v352, 4294901760
    %v1363 = vsub.f32 %v352, %v1362
    %v1364 = vand.u32 %v1363, 4294901760
    %1365 = vmatpush1.msra.mxu0 %v1364
    %v1366 = vand.u32 %v351, 4294901760
    %v1367 = vsub.f32 %v351, %v1366
    %v1368 = vand.u32 %v1367, 4294901760
    %1369 = vmatprep.subr.mxu0 %v1368
    %v1370 = vand.u32 %v350, 4294901760
    %v1371 = vsub.f32 %v350, %v1370
    %v1372 = vand.u32 %v1371, 4294901760
    %1373 = vmatpush1.msra.mxu0 %v1372
    %v1374 = vand.u32 %v349, 4294901760
    %v1375 = vsub.f32 %v349, %v1374
    %v1376 = vand.u32 %v1375, 4294901760
    %1377 = vmatprep.subr.mxu0 %v1376
    %v1378 = vand.u32 %v348, 4294901760
    %v1379 = vsub.f32 %v348, %v1378
    %v1380 = vand.u32 %v1379, 4294901760
    %1381 = vmatpush1.msra.mxu0 %v1380
    %v1382 = vand.u32 %v347, 4294901760
    %v1383 = vsub.f32 %v347, %v1382
    %v1384 = vand.u32 %v1383, 4294901760
    %1385 = vmatprep.subr.mxu0 %v1384
    %v1386 = vand.u32 %v346, 4294901760
    %v1387 = vsub.f32 %v346, %v1386
    %v1388 = vand.u32 %v1387, 4294901760
    %1389 = vmatpush1.msra.mxu0 %v1388
    %v1390 = vand.u32 %v345, 4294901760
    %v1391 = vsub.f32 %v345, %v1390
    %v1392 = vand.u32 %v1391, 4294901760
    %1393 = vmatprep.subr.mxu0 %v1392
    %v1394 = vand.u32 %v344, 4294901760
    %v1395 = vsub.f32 %v344, %v1394
    %v1396 = vand.u32 %v1395, 4294901760
    %1397 = vmatpush1.msra.mxu0 %v1396
    %v1398 = vand.u32 %v343, 4294901760
    %v1399 = vsub.f32 %v343, %v1398
    %v1400 = vand.u32 %v1399, 4294901760
    %1401 = vmatprep.subr.mxu0 %v1400
    %v1402 = vand.u32 %v342, 4294901760
    %v1403 = vsub.f32 %v342, %v1402
    %v1404 = vand.u32 %v1403, 4294901760
    %1405 = vmatpush1.msra.mxu0 %v1404
    %v1406 = vand.u32 %v341, 4294901760
    %v1407 = vsub.f32 %v341, %v1406
    %v1408 = vand.u32 %v1407, 4294901760
    %1409 = vmatprep.subr.mxu0 %v1408
    %v1410 = vand.u32 %v340, 4294901760
    %v1411 = vsub.f32 %v340, %v1410
    %v1412 = vand.u32 %v1411, 4294901760
    %1413 = vmatpush1.msra.mxu0 %v1412
    %v1414 = vand.u32 %v403, 4294901760
    %v1415 = vsub.f32 %v403, %v1414
    %v1416 = vand.u32 %v1415, 4294901760
    %1417 = vmatprep.subr.mxu0 %v1416
    %v1418 = vand.u32 %v402, 4294901760
    %v1419 = vsub.f32 %v402, %v1418
    %v1420 = vand.u32 %v1419, 4294901760
    %1421 = vmatpush2.msra.mxu0 %v1420
    %v1422 = vand.u32 %v401, 4294901760
    %v1423 = vsub.f32 %v401, %v1422
    %v1424 = vand.u32 %v1423, 4294901760
    %1425 = vmatprep.subr.mxu0 %v1424
    %v1426 = vand.u32 %v400, 4294901760
    %v1427 = vsub.f32 %v400, %v1426
    %v1428 = vand.u32 %v1427, 4294901760
    %1429 = vmatpush2.msra.mxu0 %v1428
    %v1430 = vand.u32 %v399, 4294901760
    %v1431 = vsub.f32 %v399, %v1430
    %v1432 = vand.u32 %v1431, 4294901760
    %1433 = vmatprep.subr.mxu0 %v1432
    %v1434 = vand.u32 %v398, 4294901760
    %v1435 = vsub.f32 %v398, %v1434
    %v1436 = vand.u32 %v1435, 4294901760
    %1437 = vmatpush2.msra.mxu0 %v1436
    %v1438 = vand.u32 %v397, 4294901760
    %v1439 = vsub.f32 %v397, %v1438
    %v1440 = vand.u32 %v1439, 4294901760
    %1441 = vmatprep.subr.mxu0 %v1440
    %v1442 = vand.u32 %v396, 4294901760
    %v1443 = vsub.f32 %v396, %v1442
    %v1444 = vand.u32 %v1443, 4294901760
    %1445 = vmatpush2.msra.mxu0 %v1444
    %v1446 = vand.u32 %v395, 4294901760
    %v1447 = vsub.f32 %v395, %v1446
    %v1448 = vand.u32 %v1447, 4294901760
    %1449 = vmatprep.subr.mxu0 %v1448
    %v1450 = vand.u32 %v394, 4294901760
    %v1451 = vsub.f32 %v394, %v1450
    %v1452 = vand.u32 %v1451, 4294901760
    %1453 = vmatpush2.msra.mxu0 %v1452
    %v1454 = vand.u32 %v393, 4294901760
    %v1455 = vsub.f32 %v393, %v1454
    %v1456 = vand.u32 %v1455, 4294901760
    %1457 = vmatprep.subr.mxu0 %v1456
    %v1458 = vand.u32 %v392, 4294901760
    %v1459 = vsub.f32 %v392, %v1458
    %v1460 = vand.u32 %v1459, 4294901760
    %1461 = vmatpush2.msra.mxu0 %v1460
    %v1462 = vand.u32 %v391, 4294901760
    %v1463 = vsub.f32 %v391, %v1462
    %v1464 = vand.u32 %v1463, 4294901760
    %1465 = vmatprep.subr.mxu0 %v1464
    %v1466 = vand.u32 %v390, 4294901760
    %v1467 = vsub.f32 %v390, %v1466
    %v1468 = vand.u32 %v1467, 4294901760
    %1469 = vmatpush2.msra.mxu0 %v1468
    %v1470 = vand.u32 %v389, 4294901760
    %v1471 = vsub.f32 %v389, %v1470
    %v1472 = vand.u32 %v1471, 4294901760
    %1473 = vmatprep.subr.mxu0 %v1472
    %v1474 = vand.u32 %v388, 4294901760
    %v1475 = vsub.f32 %v388, %v1474
    %v1476 = vand.u32 %v1475, 4294901760
    %1477 = vmatpush2.msra.mxu0 %v1476
    %v1478 = vand.u32 %v387, 4294901760
    %v1479 = vsub.f32 %v387, %v1478
    %v1480 = vand.u32 %v1479, 4294901760
    %1481 = vmatprep.subr.mxu0 %v1480
    %v1482 = vand.u32 %v386, 4294901760
    %v1483 = vsub.f32 %v386, %v1482
    %v1484 = vand.u32 %v1483, 4294901760
    %1485 = vmatpush2.msra.mxu0 %v1484
    %v1486 = vand.u32 %v385, 4294901760
    %v1487 = vsub.f32 %v385, %v1486
    %v1488 = vand.u32 %v1487, 4294901760
    %1489 = vmatprep.subr.mxu0 %v1488
    %v1490 = vand.u32 %v384, 4294901760
    %v1491 = vsub.f32 %v384, %v1490
    %v1492 = vand.u32 %v1491, 4294901760
    %1493 = vmatpush2.msra.mxu0 %v1492
    %v1494 = vand.u32 %v383, 4294901760
    %v1495 = vsub.f32 %v383, %v1494
    %v1496 = vand.u32 %v1495, 4294901760
    %1497 = vmatprep.subr.mxu0 %v1496
    %v1498 = vand.u32 %v382, 4294901760
    %v1499 = vsub.f32 %v382, %v1498
    %v1500 = vand.u32 %v1499, 4294901760
    %1501 = vmatpush2.msra.mxu0 %v1500
    %v1502 = vand.u32 %v381, 4294901760
    %v1503 = vsub.f32 %v381, %v1502
    %v1504 = vand.u32 %v1503, 4294901760
    %1505 = vmatprep.subr.mxu0 %v1504
    %v1506 = vand.u32 %v380, 4294901760
    %v1507 = vsub.f32 %v380, %v1506
    %v1508 = vand.u32 %v1507, 4294901760
    %1509 = vmatpush2.msra.mxu0 %v1508
    %v1510 = vand.u32 %v379, 4294901760
    %v1511 = vsub.f32 %v379, %v1510
    %v1512 = vand.u32 %v1511, 4294901760
    %1513 = vmatprep.subr.mxu0 %v1512
    %v1514 = vand.u32 %v378, 4294901760
    %v1515 = vsub.f32 %v378, %v1514
    %v1516 = vand.u32 %v1515, 4294901760
    %1517 = vmatpush2.msra.mxu0 %v1516
    %v1518 = vand.u32 %v377, 4294901760
    %v1519 = vsub.f32 %v377, %v1518
    %v1520 = vand.u32 %v1519, 4294901760
    %1521 = vmatprep.subr.mxu0 %v1520
    %v1522 = vand.u32 %v376, 4294901760
    %v1523 = vsub.f32 %v376, %v1522
    %v1524 = vand.u32 %v1523, 4294901760
    %1525 = vmatpush2.msra.mxu0 %v1524
    %v1526 = vand.u32 %v375, 4294901760
    %v1527 = vsub.f32 %v375, %v1526
    %v1528 = vand.u32 %v1527, 4294901760
    %1529 = vmatprep.subr.mxu0 %v1528
    %v1530 = vand.u32 %v374, 4294901760
    %v1531 = vsub.f32 %v374, %v1530
    %v1532 = vand.u32 %v1531, 4294901760
    %1533 = vmatpush2.msra.mxu0 %v1532
    %v1534 = vand.u32 %v373, 4294901760
    %v1535 = vsub.f32 %v373, %v1534
    %v1536 = vand.u32 %v1535, 4294901760
    %1537 = vmatprep.subr.mxu0 %v1536
    %v1538 = vand.u32 %v372, 4294901760
    %v1539 = vsub.f32 %v372, %v1538
    %v1540 = vand.u32 %v1539, 4294901760
    %1541 = vmatpush2.msra.mxu0 %v1540
    %v1542 = vand.u32 %v339, 4294901760
    %1543 = vmatprep.mubr.f32.mxu0 %v1542
    %v1544 = vand.u32 %v338, 4294901760
    %1545 = vmatmul.mubr.f32.gmra.mxu0 %v1544
    %v1546 = vpop.f32.mrf.mxu0
    %v1547 = vadd.f32 %v1282, %v1546
    %v1548 = vpop.f32.mrf.mxu0
    %v1549 = vadd.f32 %v1284, %v1548
    %1550 = vdwg.mxu0
    %v1551 = vand.u32 %v371, 4294901760
    %1552 = vmatprep.subr.mxu0 %v1551
    %v1553 = vand.u32 %v370, 4294901760
    %1554 = vmatpush1.msra.mxu0 %v1553
    %v1555 = vand.u32 %v369, 4294901760
    %1556 = vmatprep.subr.mxu0 %v1555
    %v1557 = vand.u32 %v368, 4294901760
    %1558 = vmatpush1.msra.mxu0 %v1557
    %v1559 = vand.u32 %v367, 4294901760
    %1560 = vmatprep.subr.mxu0 %v1559
    %v1561 = vand.u32 %v366, 4294901760
    %1562 = vmatpush1.msra.mxu0 %v1561
    %v1563 = vand.u32 %v365, 4294901760
    %1564 = vmatprep.subr.mxu0 %v1563
    %v1565 = vand.u32 %v364, 4294901760
    %1566 = vmatpush1.msra.mxu0 %v1565
    %v1567 = vand.u32 %v363, 4294901760
    %1568 = vmatprep.subr.mxu0 %v1567
    %v1569 = vand.u32 %v362, 4294901760
    %1570 = vmatpush1.msra.mxu0 %v1569
    %v1571 = vand.u32 %v361, 4294901760
    %1572 = vmatprep.subr.mxu0 %v1571
    %v1573 = vand.u32 %v360, 4294901760
    %1574 = vmatpush1.msra.mxu0 %v1573
    %v1575 = vand.u32 %v359, 4294901760
    %1576 = vmatprep.subr.mxu0 %v1575
    %v1577 = vand.u32 %v358, 4294901760
    %1578 = vmatpush1.msra.mxu0 %v1577
    %v1579 = vand.u32 %v357, 4294901760
    %1580 = vmatprep.subr.mxu0 %v1579
    %v1581 = vand.u32 %v356, 4294901760
    %1582 = vmatpush1.msra.mxu0 %v1581
    %v1583 = vand.u32 %v355, 4294901760
    %1584 = vmatprep.subr.mxu0 %v1583
    %v1585 = vand.u32 %v354, 4294901760
    %1586 = vmatpush1.msra.mxu0 %v1585
    %v1587 = vand.u32 %v353, 4294901760
    %1588 = vmatprep.subr.mxu0 %v1587
    %v1589 = vand.u32 %v352, 4294901760
    %1590 = vmatpush1.msra.mxu0 %v1589
    %v1591 = vand.u32 %v351, 4294901760
    %1592 = vmatprep.subr.mxu0 %v1591
    %v1593 = vand.u32 %v350, 4294901760
    %1594 = vmatpush1.msra.mxu0 %v1593
    %v1595 = vand.u32 %v349, 4294901760
    %1596 = vmatprep.subr.mxu0 %v1595
    %v1597 = vand.u32 %v348, 4294901760
    %1598 = vmatpush1.msra.mxu0 %v1597
    %v1599 = vand.u32 %v347, 4294901760
    %1600 = vmatprep.subr.mxu0 %v1599
    %v1601 = vand.u32 %v346, 4294901760
    %1602 = vmatpush1.msra.mxu0 %v1601
    %v1603 = vand.u32 %v345, 4294901760
    %1604 = vmatprep.subr.mxu0 %v1603
    %v1605 = vand.u32 %v344, 4294901760
    %1606 = vmatpush1.msra.mxu0 %v1605
    %v1607 = vand.u32 %v343, 4294901760
    %1608 = vmatprep.subr.mxu0 %v1607
    %v1609 = vand.u32 %v342, 4294901760
    %1610 = vmatpush1.msra.mxu0 %v1609
    %v1611 = vand.u32 %v341, 4294901760
    %1612 = vmatprep.subr.mxu0 %v1611
    %v1613 = vand.u32 %v340, 4294901760
    %1614 = vmatpush1.msra.mxu0 %v1613
    %v1615 = vand.u32 %v403, 4294901760
    %1616 = vmatprep.subr.mxu0 %v1615
    %v1617 = vand.u32 %v402, 4294901760
    %1618 = vmatpush2.msra.mxu0 %v1617
    %v1619 = vand.u32 %v401, 4294901760
    %1620 = vmatprep.subr.mxu0 %v1619
    %v1621 = vand.u32 %v400, 4294901760
    %1622 = vmatpush2.msra.mxu0 %v1621
    %v1623 = vand.u32 %v399, 4294901760
    %1624 = vmatprep.subr.mxu0 %v1623
    %v1625 = vand.u32 %v398, 4294901760
    %1626 = vmatpush2.msra.mxu0 %v1625
    %v1627 = vand.u32 %v397, 4294901760
    %1628 = vmatprep.subr.mxu0 %v1627
    %v1629 = vand.u32 %v396, 4294901760
    %1630 = vmatpush2.msra.mxu0 %v1629
    %v1631 = vand.u32 %v395, 4294901760
    %1632 = vmatprep.subr.mxu0 %v1631
    %v1633 = vand.u32 %v394, 4294901760
    %1634 = vmatpush2.msra.mxu0 %v1633
    %v1635 = vand.u32 %v393, 4294901760
    %1636 = vmatprep.subr.mxu0 %v1635
    %v1637 = vand.u32 %v392, 4294901760
    %1638 = vmatpush2.msra.mxu0 %v1637
    %v1639 = vand.u32 %v391, 4294901760
    %1640 = vmatprep.subr.mxu0 %v1639
    %v1641 = vand.u32 %v390, 4294901760
    %1642 = vmatpush2.msra.mxu0 %v1641
    %v1643 = vand.u32 %v389, 4294901760
    %1644 = vmatprep.subr.mxu0 %v1643
    %v1645 = vand.u32 %v388, 4294901760
    %1646 = vmatpush2.msra.mxu0 %v1645
    %v1647 = vand.u32 %v387, 4294901760
    %1648 = vmatprep.subr.mxu0 %v1647
    %v1649 = vand.u32 %v386, 4294901760
    %1650 = vmatpush2.msra.mxu0 %v1649
    %v1651 = vand.u32 %v385, 4294901760
    %1652 = vmatprep.subr.mxu0 %v1651
    %v1653 = vand.u32 %v384, 4294901760
    %1654 = vmatpush2.msra.mxu0 %v1653
    %v1655 = vand.u32 %v383, 4294901760
    %1656 = vmatprep.subr.mxu0 %v1655
    %v1657 = vand.u32 %v382, 4294901760
    %1658 = vmatpush2.msra.mxu0 %v1657
    %v1659 = vand.u32 %v381, 4294901760
    %1660 = vmatprep.subr.mxu0 %v1659
    %v1661 = vand.u32 %v380, 4294901760
    %1662 = vmatpush2.msra.mxu0 %v1661
    %v1663 = vand.u32 %v379, 4294901760
    %1664 = vmatprep.subr.mxu0 %v1663
    %v1665 = vand.u32 %v378, 4294901760
    %1666 = vmatpush2.msra.mxu0 %v1665
    %v1667 = vand.u32 %v377, 4294901760
    %1668 = vmatprep.subr.mxu0 %v1667
    %v1669 = vand.u32 %v376, 4294901760
    %1670 = vmatpush2.msra.mxu0 %v1669
    %v1671 = vand.u32 %v375, 4294901760
    %1672 = vmatprep.subr.mxu0 %v1671
    %v1673 = vand.u32 %v374, 4294901760
    %1674 = vmatpush2.msra.mxu0 %v1673
    %v1675 = vand.u32 %v373, 4294901760
    %1676 = vmatprep.subr.mxu0 %v1675
    %v1677 = vand.u32 %v372, 4294901760
    %1678 = vmatpush2.msra.mxu0 %v1677
    %v1679 = vand.u32 %v339, 4294901760
    %1680 = vmatprep.mubr.f32.mxu0 %v1679
    %v1681 = vand.u32 %v338, 4294901760
    %1682 = vmatmul.mubr.f32.gmra.mxu0 %v1681
    %v1683 = vpop.f32.mrf.mxu0
    %v1684 = vadd.f32 %v1547, %v1683
    %v1685 = vpop.f32.mrf.mxu0
    %v1686 = vadd.f32 %v1549, %v1685
    %1687 = vdwg.mxu0
    %v1688 = vmul.f32 %v1684, %v1684
    %v1689 = vmul.f32 %v1686, %v1686
    %v1692 = vrot.slane %v1688, 7
    %v1693 = vrot.slane %v1689, 7
    %v1696 = vsub.f32 %v1684, %v1692
    %v1697 = vsub.f32 %v1686, %v1693
    %v1698 = vadd.f32 %v1696, 1e-05
    %v1699 = vadd.f32 %v1697, 1e-05
    %v1700 = vrsqrt.pop %v1698
    %v1701 = vrsqrt.pop %v1699
    %v1702 = vlaneseq
    %v1703 = vshrl.u32 %v1702, 7
    %v1704 = vsub.s32 1, %v1703
    %v1705 = vrot.slane %v123, %v1704
    %v1706 = vlaneseq
    %v1707 = vshrl.u32 %v1706, 7
    %v1708 = vsub.s32 5, %v1707
    %v1709 = vrot.slane %v123, %v1708
    %v1712 = vmul.f32 %v1700, %v1705
    %v1713 = vmul.f32 %v1701, %v1709
    %v1716 = vrot.slane %v1712, 1
    %v1717 = vrot.slane %v1713, 1
    %v1720 = vmul.f32 %v1684, %v1716
    %v1721 = vmul.f32 %v1686, %v1717
    %v1724 = vcombine.low %v1720, %v1721
    %v1725 = vrot.slane %v1724, 6
    %v1727 = vsub.f32 %v123, %v1725
    %v1728 = vlaneseq
    %v1729 = vshrl.u32 %v1728, 7
    %v1730 = vsub.s32 1, %v1729
    %v1731 = vrot.slane %v1712, %v1730
    %v1732 = vlaneseq
    %v1733 = vshrl.u32 %v1732, 7
    %v1734 = vsub.s32 1, %v1733
    %v1735 = vrot.slane %v1713, %v1734
    %v1736 = vmul.f32 %v231, %v1731
    %v1737 = vmul.f32 %v233, %v1735
    %v1738 = vmul.f32 %v235, %v1731
    %v1739 = vmul.f32 %v237, %v1735
    %v1740 = vmul.f32 %v241, %v1731
    %v1741 = vmul.f32 %v243, %v1735
    %v1742 = vmul.f32 %v245, %v1731
    %v1743 = vmul.f32 %v247, %v1735
    %v1744 = vmul.f32 %v251, %v1731
    %v1745 = vmul.f32 %v253, %v1735
    %v1746 = vmul.f32 %v255, %v1731
    %v1747 = vmul.f32 %v257, %v1735
    %v1748 = vmul.f32 %v261, %v1731
    %v1749 = vmul.f32 %v263, %v1735
    %v1750 = vmul.f32 %v265, %v1731
    %v1751 = vmul.f32 %v267, %v1735
    %v1753 = vlaneseq
    %v1754 = vshrl.u32 %v1753, 7
    %v1755 = vsub.s32 2, %v1754
    %v1756 = vrot.slane %v1727, %v1755
    %v1757 = vlaneseq
    %v1758 = vshrl.u32 %v1757, 7
    %v1759 = vsub.s32 6, %v1758
    %v1760 = vrot.slane %v1727, %v1759
    %v1763 = vlaneseq
    %v1764 = vshrl.u32 %v1763, 7
    %v1765 = vsub.s32 2, %v1764
    %v1766 = vrot.slane %v1756, %v1765
    %v1767 = vlaneseq
    %v1768 = vshrl.u32 %v1767, 7
    %v1769 = vsub.s32 2, %v1768
    %v1770 = vrot.slane %v1760, %v1769
    %v1771 = vadd.f32 %v1736, %v1766
    %v1772 = vadd.f32 %v1737, %v1770
    %v1773 = vadd.f32 %v1738, %v1766
    %v1774 = vadd.f32 %v1739, %v1770
    %v1775 = vadd.f32 %v1740, %v1766
    %v1776 = vadd.f32 %v1741, %v1770
    %v1777 = vadd.f32 %v1742, %v1766
    %v1778 = vadd.f32 %v1743, %v1770
    %v1779 = vadd.f32 %v1744, %v1766
    %v1780 = vadd.f32 %v1745, %v1770
    %v1781 = vadd.f32 %v1746, %v1766
    %v1782 = vadd.f32 %v1747, %v1770
    %v1783 = vadd.f32 %v1748, %v1766
    %v1784 = vadd.f32 %v1749, %v1770
    %v1785 = vadd.f32 %v1750, %v1766
    %v1786 = vadd.f32 %v1751, %v1770
    %v1787 = vmul.f32 %v1771, 0.01
    %v1788 = vmul.f32 %v1772, 0.01
    %v1789 = vmul.f32 %v1773, 0.01
    %v1790 = vmul.f32 %v1774, 0.01
    %v1791 = vmul.f32 %v1775, 0.01
    %v1792 = vmul.f32 %v1776, 0.01
    %v1793 = vmul.f32 %v1777, 0.01
    %v1794 = vmul.f32 %v1778, 0.01
    %v1795 = vmul.f32 %v1779, 0.01
    %v1796 = vmul.f32 %v1780, 0.01
    %v1797 = vmul.f32 %v1781, 0.01
    %v1798 = vmul.f32 %v1782, 0.01
    %v1799 = vmul.f32 %v1783, 0.01
    %v1800 = vmul.f32 %v1784, 0.01
    %v1801 = vmul.f32 %v1785, 0.01
    %v1802 = vmul.f32 %v1786, 0.01
    %v1803 = vmax.f32 %v1771, %v1787
    %v1804 = vmax.f32 %v1772, %v1788
    %v1805 = vmax.f32 %v1773, %v1789
    %v1806 = vmax.f32 %v1774, %v1790
    %v1807 = vmax.f32 %v1775, %v1791
    %v1808 = vmax.f32 %v1776, %v1792
    %v1809 = vmax.f32 %v1777, %v1793
    %v1810 = vmax.f32 %v1778, %v1794
    %v1811 = vmax.f32 %v1779, %v1795
    %v1812 = vmax.f32 %v1780, %v1796
    %v1813 = vmax.f32 %v1781, %v1797
    %v1814 = vmax.f32 %v1782, %v1798
    %v1815 = vmax.f32 %v1783, %v1799
    %v1816 = vmax.f32 %v1784, %v1800
    %v1817 = vmax.f32 %v1785, %v1801
    %v1818 = vmax.f32 %v1786, %v1802
    %v1819 = vpack.c.bf16 %v1805, %v1803
    %v1820 = vpack.c.bf16 %v1806, %v1804
    %v1821 = vpack.c.bf16 %v1809, %v1807
    %v1822 = vpack.c.bf16 %v1810, %v1808
    %v1823 = vpack.c.bf16 %v1813, %v1811
    %v1824 = vpack.c.bf16 %v1814, %v1812
    %v1825 = vpack.c.bf16 %v1817, %v1815
    %v1826 = vpack.c.bf16 %v1818, %v1816
    %v1827 = vld [vmem:[%s4] sm:$0xff]
    %v1828 = vld [vmem:[%s4 + $0x8] sm:$0xff]
    %v1829 = vld [vmem:[%s4 + $0x10] sm:$0xff]
    %v1830 = vld [vmem:[%s4 + $0x18] sm:$0xff]
    %v1831 = vld [vmem:[%s4 + $0x20] sm:$0xff]
    %v1832 = vld [vmem:[%s4 + $0x28] sm:$0xff]
    %v1833 = vld [vmem:[%s4 + $0x30] sm:$0xff]
    %v1834 = vld [vmem:[%s4 + $0x38] sm:$0xff]
    %v1835 = vld [vmem:[%s4 + $0x40] sm:$0xff]
    %v1836 = vld [vmem:[%s4 + $0x48] sm:$0xff]
    %v1837 = vld [vmem:[%s4 + $0x50] sm:$0xff]
    %v1838 = vld [vmem:[%s4 + $0x58] sm:$0xff]
    %v1839 = vld [vmem:[%s4 + $0x60] sm:$0xff]
    %v1840 = vld [vmem:[%s4 + $0x68] sm:$0xff]
    %v1841 = vld [vmem:[%s4 + $0x70] sm:$0xff]
    %v1842 = vld [vmem:[%s4 + $0x78] sm:$0xff]
    %v1843 = vld [vmem:[%s4 + $0x80] sm:$0xff]
    %v1844 = vld [vmem:[%s4 + $0x88] sm:$0xff]
    %v1845 = vld [vmem:[%s4 + $0x90] sm:$0xff]
    %v1846 = vld [vmem:[%s4 + $0x98] sm:$0xff]
    %v1847 = vld [vmem:[%s4 + $0xa0] sm:$0xff]
    %v1848 = vld [vmem:[%s4 + $0xa8] sm:$0xff]
    %v1849 = vld [vmem:[%s4 + $0xb0] sm:$0xff]
    %v1850 = vld [vmem:[%s4 + $0xb8] sm:$0xff]
    %v1851 = vld [vmem:[%s4 + $0xc0] sm:$0xff]
    %v1852 = vld [vmem:[%s4 + $0xc8] sm:$0xff]
    %v1853 = vld [vmem:[%s4 + $0xd0] sm:$0xff]
    %v1854 = vld [vmem:[%s4 + $0xd8] sm:$0xff]
    %v1855 = vld [vmem:[%s4 + $0xe0] sm:$0xff]
    %v1856 = vld [vmem:[%s4 + $0xe8] sm:$0xff]
    %v1857 = vld [vmem:[%s4 + $0xf0] sm:$0xff]
    %v1858 = vld [vmem:[%s4 + $0xf8] sm:$0xff]
    %v1859 = vld [vmem:[%s5] sm:$0x77]
    %v1861 = vlaneseq
    %v1862 = vshrl.u32 %v1861, 7
    %v1863 = vsub.s32 0, %v1862
    %v1864 = vrot.slane %v1859, %v1863
    %v1865 = vlaneseq
    %v1866 = vshrl.u32 %v1865, 7
    %v1867 = vsub.s32 4, %v1866
    %v1868 = vrot.slane %v1859, %v1867
    %v1871 = vlaneseq
    %v1872 = vshrl.u32 %v1871, 7
    %v1873 = vsub.s32 0, %v1872
    %v1874 = vrot.slane %v1864, %v1873
    %v1875 = vlaneseq
    %v1876 = vshrl.u32 %v1875, 7
    %v1877 = vsub.s32 0, %v1876
    %v1878 = vrot.slane %v1868, %v1877
    %v1911 = vunpack.c.l.b16 %v1827
    %v1912 = vunpack.c.h.b16 %v1827
    %v1913 = vunpack.c.l.b16 %v1828
    %v1914 = vunpack.c.h.b16 %v1828
    %v1915 = vunpack.c.l.b16 %v1829
    %v1916 = vunpack.c.h.b16 %v1829
    %v1917 = vunpack.c.l.b16 %v1830
    %v1918 = vunpack.c.h.b16 %v1830
    %v1919 = vunpack.c.l.b16 %v1831
    %v1920 = vunpack.c.h.b16 %v1831
    %v1921 = vunpack.c.l.b16 %v1832
    %v1922 = vunpack.c.h.b16 %v1832
    %v1923 = vunpack.c.l.b16 %v1833
    %v1924 = vunpack.c.h.b16 %v1833
    %v1925 = vunpack.c.l.b16 %v1834
    %v1926 = vunpack.c.h.b16 %v1834
    %v1927 = vunpack.c.l.b16 %v1835
    %v1928 = vunpack.c.h.b16 %v1835
    %v1929 = vunpack.c.l.b16 %v1836
    %v1930 = vunpack.c.h.b16 %v1836
    %v1931 = vunpack.c.l.b16 %v1837
    %v1932 = vunpack.c.h.b16 %v1837
    %v1933 = vunpack.c.l.b16 %v1838
    %v1934 = vunpack.c.h.b16 %v1838
    %v1935 = vunpack.c.l.b16 %v1839
    %v1936 = vunpack.c.h.b16 %v1839
    %v1937 = vunpack.c.l.b16 %v1840
    %v1938 = vunpack.c.h.b16 %v1840
    %v1939 = vunpack.c.l.b16 %v1841
    %v1940 = vunpack.c.h.b16 %v1841
    %v1941 = vunpack.c.l.b16 %v1842
    %v1942 = vunpack.c.h.b16 %v1842
    %v1943 = vunpack.c.l.b16 %v1843
    %v1944 = vunpack.c.h.b16 %v1843
    %v1945 = vunpack.c.l.b16 %v1844
    %v1946 = vunpack.c.h.b16 %v1844
    %v1947 = vunpack.c.l.b16 %v1845
    %v1948 = vunpack.c.h.b16 %v1845
    %v1949 = vunpack.c.l.b16 %v1846
    %v1950 = vunpack.c.h.b16 %v1846
    %v1951 = vunpack.c.l.b16 %v1847
    %v1952 = vunpack.c.h.b16 %v1847
    %v1953 = vunpack.c.l.b16 %v1848
    %v1954 = vunpack.c.h.b16 %v1848
    %v1955 = vunpack.c.l.b16 %v1849
    %v1956 = vunpack.c.h.b16 %v1849
    %v1957 = vunpack.c.l.b16 %v1850
    %v1958 = vunpack.c.h.b16 %v1850
    %v1959 = vunpack.c.l.b16 %v1851
    %v1960 = vunpack.c.h.b16 %v1851
    %v1961 = vunpack.c.l.b16 %v1852
    %v1962 = vunpack.c.h.b16 %v1852
    %v1963 = vunpack.c.l.b16 %v1853
    %v1964 = vunpack.c.h.b16 %v1853
    %v1965 = vunpack.c.l.b16 %v1854
    %v1966 = vunpack.c.h.b16 %v1854
    %v1967 = vunpack.c.l.b16 %v1855
    %v1968 = vunpack.c.h.b16 %v1855
    %v1969 = vunpack.c.l.b16 %v1856
    %v1970 = vunpack.c.h.b16 %v1856
    %v1971 = vunpack.c.l.b16 %v1857
    %v1972 = vunpack.c.h.b16 %v1857
    %v1973 = vunpack.c.l.b16 %v1858
    %v1974 = vunpack.c.h.b16 %v1858
    %v1975 = vpack.c.b16 %v1913, %v1911
    %v1976 = vpack.c.b16 %v1914, %v1912
    %v1977 = vpack.c.b16 %v1917, %v1915
    %v1978 = vpack.c.b16 %v1918, %v1916
    %v1979 = vpack.c.b16 %v1921, %v1919
    %v1980 = vpack.c.b16 %v1922, %v1920
    %v1981 = vpack.c.b16 %v1925, %v1923
    %v1982 = vpack.c.b16 %v1926, %v1924
    %v1983 = vpack.c.b16 %v1929, %v1927
    %v1984 = vpack.c.b16 %v1930, %v1928
    %v1985 = vpack.c.b16 %v1933, %v1931
    %v1986 = vpack.c.b16 %v1934, %v1932
    %v1987 = vpack.c.b16 %v1937, %v1935
    %v1988 = vpack.c.b16 %v1938, %v1936
    %v1989 = vpack.c.b16 %v1941, %v1939
    %v1990 = vpack.c.b16 %v1942, %v1940
    %v1991 = vpack.c.b16 %v1945, %v1943
    %v1992 = vpack.c.b16 %v1946, %v1944
    %v1993 = vpack.c.b16 %v1949, %v1947
    %v1994 = vpack.c.b16 %v1950, %v1948
    %v1995 = vpack.c.b16 %v1953, %v1951
    %v1996 = vpack.c.b16 %v1954, %v1952
    %v1997 = vpack.c.b16 %v1957, %v1955
    %v1998 = vpack.c.b16 %v1958, %v1956
    %v1999 = vpack.c.b16 %v1961, %v1959
    %v2000 = vpack.c.b16 %v1962, %v1960
    %v2001 = vpack.c.b16 %v1965, %v1963
    %v2002 = vpack.c.b16 %v1966, %v1964
    %v2003 = vpack.c.b16 %v1969, %v1967
    %v2004 = vpack.c.b16 %v1970, %v1968
    %v2005 = vpack.c.b16 %v1973, %v1971
    %v2006 = vpack.c.b16 %v1974, %v1972
    %2039 = vmatprep.subr.bf16.mxu0 %v1990
    %2040 = vmatpush1.bf16.msra.mxu0 %v1989
    %2041 = vmatprep.subr.bf16.mxu0 %v1988
    %2042 = vmatpush1.bf16.msra.mxu0 %v1987
    %2043 = vmatprep.subr.bf16.mxu0 %v1986
    %2044 = vmatpush1.bf16.msra.mxu0 %v1985
    %2045 = vmatprep.subr.bf16.mxu0 %v1984
    %2046 = vmatpush1.bf16.msra.mxu0 %v1983
    %2047 = vmatprep.subr.bf16.mxu0 %v1982
    %2048 = vmatpush1.bf16.msra.mxu0 %v1981
    %2049 = vmatprep.subr.bf16.mxu0 %v1980
    %2050 = vmatpush1.bf16.msra.mxu0 %v1979
    %2051 = vmatprep.subr.bf16.mxu0 %v1978
    %2052 = vmatpush1.bf16.msra.mxu0 %v1977
    %2053 = vmatprep.subr.bf16.mxu0 %v1976
    %2054 = vmatpush1.bf16.msra.mxu0 %v1975
    %2055 = vmatprep.subr.bf16.mxu0 %v2006
    %2056 = vmatpush2.bf16.msra.mxu0 %v2005
    %2057 = vmatprep.subr.bf16.mxu0 %v2004
    %2058 = vmatpush2.bf16.msra.mxu0 %v2003
    %2059 = vmatprep.subr.bf16.mxu0 %v2002
    %2060 = vmatpush2.bf16.msra.mxu0 %v2001
    %2061 = vmatprep.subr.bf16.mxu0 %v2000
    %2062 = vmatpush2.bf16.msra.mxu0 %v1999
    %2063 = vmatprep.subr.bf16.mxu0 %v1998
    %2064 = vmatpush2.bf16.msra.mxu0 %v1997
    %2065 = vmatprep.subr.bf16.mxu0 %v1996
    %2066 = vmatpush2.bf16.msra.mxu0 %v1995
    %2067 = vmatprep.subr.bf16.mxu0 %v1994
    %2068 = vmatpush2.bf16.msra.mxu0 %v1993
    %2069 = vmatprep.subr.bf16.mxu0 %v1992
    %2070 = vmatpush2.bf16.msra.mxu0 %v1991
    %2071 = vmatprep.mubr.bf16.mxu0 %v1820
    %2072 = vmatmul.mubr.bf16.gmra.mxu0 %v1819
    %v2073 = vpop.f32.mrf.mxu0
    %v2074 = vadd.f32 %v1874, %v2073
    %v2075 = vpop.f32.mrf.mxu0
    %v2076 = vadd.f32 %v1878, %v2075
    %v2077 = vpop.f32.mrf.mxu0
    %v2078 = vadd.f32 %v1874, %v2077
    %v2079 = vpop.f32.mrf.mxu0
    %v2080 = vadd.f32 %v1878, %v2079
    %2081 = vmatprep.mubr.bf16.mxu0 %v1822
    %2082 = vmatmul.mubr.bf16.gmra.mxu0 %v1821
    %v2083 = vpop.f32.mrf.mxu0
    %v2084 = vadd.f32 %v1874, %v2083
    %v2085 = vpop.f32.mrf.mxu0
    %v2086 = vadd.f32 %v1878, %v2085
    %v2087 = vpop.f32.mrf.mxu0
    %v2088 = vadd.f32 %v1874, %v2087
    %v2089 = vpop.f32.mrf.mxu0
    %v2090 = vadd.f32 %v1878, %v2089
    %2091 = vmatprep.mubr.bf16.mxu0 %v1824
    %2092 = vmatmul.mubr.bf16.gmra.mxu0 %v1823
    %v2093 = vpop.f32.mrf.mxu0
    %v2094 = vadd.f32 %v1874, %v2093
    %v2095 = vpop.f32.mrf.mxu0
    %v2096 = vadd.f32 %v1878, %v2095
    %v2097 = vpop.f32.mrf.mxu0
    %v2098 = vadd.f32 %v1874, %v2097
    %v2099 = vpop.f32.mrf.mxu0
    %v2100 = vadd.f32 %v1878, %v2099
    %2101 = vmatprep.mubr.bf16.mxu0 %v1826
    %2102 = vmatmul.mubr.bf16.gmra.mxu0 %v1825
    %v2103 = vpop.f32.mrf.mxu0
    %v2104 = vadd.f32 %v1874, %v2103
    %v2105 = vpop.f32.mrf.mxu0
    %v2106 = vadd.f32 %v1878, %v2105
    %v2107 = vpop.f32.mrf.mxu0
    %v2108 = vadd.f32 %v1874, %v2107
    %v2109 = vpop.f32.mrf.mxu0
    %v2110 = vadd.f32 %v1878, %v2109
    %2111 = vdwg.mxu0
    %v2112 = vadd.f32 %v2074, %v2078
    %v2113 = vadd.f32 %v2112, %v2084
    %v2114 = vadd.f32 %v2113, %v2088
    %v2115 = vadd.f32 %v2114, %v2094
    %v2116 = vadd.f32 %v2115, %v2098
    %v2117 = vadd.f32 %v2116, %v2104
    %v2118 = vadd.f32 %v2117, %v2108
    %v2119 = vrot.slane %v2118, 4
    %v2120 = vadd.f32 %v2118, %v2119
    %v2121 = vrot.slane %v2120, 2
    %v2122 = vadd.f32 %v2120, %v2121
    %v2123 = vrot.slane %v2122, 1
    %v2124 = vadd.f32 %v2122, %v2123
    %v2125 = vadd.f32 %v2076, %v2080
    %v2126 = vadd.f32 %v2125, %v2086
    %v2127 = vadd.f32 %v2126, %v2090
    %v2128 = vadd.f32 %v2127, %v2096
    %v2129 = vadd.f32 %v2128, %v2100
    %v2130 = vadd.f32 %v2129, %v2106
    %v2131 = vadd.f32 %v2130, %v2110
    %v2132 = vrot.slane %v2131, 4
    %v2133 = vadd.f32 %v2131, %v2132
    %v2134 = vrot.slane %v2133, 2
    %v2135 = vadd.f32 %v2133, %v2134
    %v2136 = vrot.slane %v2135, 1
    %v2137 = vadd.f32 %v2135, %v2136
    %v2138 = vmul.f32 %v2074, %v2074
    %v2139 = vmul.f32 %v2076, %v2076
    %v2140 = vmul.f32 %v2078, %v2078
    %v2141 = vmul.f32 %v2080, %v2080
    %v2142 = vmul.f32 %v2084, %v2084
    %v2143 = vmul.f32 %v2086, %v2086
    %v2144 = vmul.f32 %v2088, %v2088
    %v2145 = vmul.f32 %v2090, %v2090
    %v2146 = vmul.f32 %v2094, %v2094
    %v2147 = vmul.f32 %v2096, %v2096
    %v2148 = vmul.f32 %v2098, %v2098
    %v2149 = vmul.f32 %v2100, %v2100
    %v2150 = vmul.f32 %v2104, %v2104
    %v2151 = vmul.f32 %v2106, %v2106
    %v2152 = vmul.f32 %v2108, %v2108
    %v2153 = vmul.f32 %v2110, %v2110
    %v2154 = vadd.f32 %v2138, %v2140
    %v2155 = vadd.f32 %v2154, %v2142
    %v2156 = vadd.f32 %v2155, %v2144
    %v2157 = vadd.f32 %v2156, %v2146
    %v2158 = vadd.f32 %v2157, %v2148
    %v2159 = vadd.f32 %v2158, %v2150
    %v2160 = vadd.f32 %v2159, %v2152
    %v2161 = vrot.slane %v2160, 4
    %v2162 = vadd.f32 %v2160, %v2161
    %v2163 = vrot.slane %v2162, 2
    %v2164 = vadd.f32 %v2162, %v2163
    %v2165 = vrot.slane %v2164, 1
    %v2166 = vadd.f32 %v2164, %v2165
    %v2167 = vadd.f32 %v2139, %v2141
    %v2168 = vadd.f32 %v2167, %v2143
    %v2169 = vadd.f32 %v2168, %v2145
    %v2170 = vadd.f32 %v2169, %v2147
    %v2171 = vadd.f32 %v2170, %v2149
    %v2172 = vadd.f32 %v2171, %v2151
    %v2173 = vadd.f32 %v2172, %v2153
    %v2174 = vrot.slane %v2173, 4
    %v2175 = vadd.f32 %v2173, %v2174
    %v2176 = vrot.slane %v2175, 2
    %v2177 = vadd.f32 %v2175, %v2176
    %v2178 = vrot.slane %v2177, 1
    %v2179 = vadd.f32 %v2177, %v2178
    %v2180 = vsel %vm337, %v2124, %v2166
    %v2181 = vsel %vm337, %v2137, %v2179
    %v2182 = vld [vmem:[#allocation6] sm:$0xff]
    %v2183 = vld [vmem:[#allocation6 + $0x8] sm:$0xff]
    %v2184 = vld [vmem:[#allocation6 + $0x10] sm:$0xff]
    %v2185 = vld [vmem:[#allocation6 + $0x18] sm:$0xff]
    %v2186 = vld [vmem:[#allocation6 + $0x20] sm:$0xff]
    %v2187 = vld [vmem:[#allocation6 + $0x28] sm:$0xff]
    %v2188 = vld [vmem:[#allocation6 + $0x30] sm:$0xff]
    %v2189 = vld [vmem:[#allocation6 + $0x38] sm:$0xff]
    %v2190 = vld [vmem:[#allocation6 + $0x40] sm:$0xff]
    %v2191 = vld [vmem:[#allocation6 + $0x48] sm:$0xff]
    %v2192 = vld [vmem:[#allocation6 + $0x50] sm:$0xff]
    %v2193 = vld [vmem:[#allocation6 + $0x58] sm:$0xff]
    %v2194 = vld [vmem:[#allocation6 + $0x60] sm:$0xff]
    %v2195 = vld [vmem:[#allocation6 + $0x68] sm:$0xff]
    %v2196 = vld [vmem:[#allocation6 + $0x70] sm:$0xff]
    %v2197 = vld [vmem:[#allocation6 + $0x78] sm:$0xff]
    %v2198 = vld [vmem:[#allocation6 + $0x80] sm:$0xff]
    %v2199 = vld [vmem:[#allocation6 + $0x88] sm:$0xff]
    %v2200 = vld [vmem:[#allocation6 + $0x90] sm:$0xff]
    %v2201 = vld [vmem:[#allocation6 + $0x98] sm:$0xff]
    %v2202 = vld [vmem:[#allocation6 + $0xa0] sm:$0xff]
    %v2203 = vld [vmem:[#allocation6 + $0xa8] sm:$0xff]
    %v2204 = vld [vmem:[#allocation6 + $0xb0] sm:$0xff]
    %v2205 = vld [vmem:[#allocation6 + $0xb8] sm:$0xff]
    %v2206 = vld [vmem:[#allocation6 + $0xc0] sm:$0xff]
    %v2207 = vld [vmem:[#allocation6 + $0xc8] sm:$0xff]
    %v2208 = vld [vmem:[#allocation6 + $0xd0] sm:$0xff]
    %v2209 = vld [vmem:[#allocation6 + $0xd8] sm:$0xff]
    %v2210 = vld [vmem:[#allocation6 + $0xe0] sm:$0xff]
    %v2211 = vld [vmem:[#allocation6 + $0xe8] sm:$0xff]
    %v2212 = vld [vmem:[#allocation6 + $0xf0] sm:$0xff]
    %v2213 = vld [vmem:[#allocation6 + $0xf8] sm:$0xff]
    %v2214 = vld [vmem:[#allocation6 + $0x100] sm:$0xff]
    %v2215 = vld [vmem:[#allocation6 + $0x108] sm:$0xff]
    %v2216 = vld [vmem:[#allocation6 + $0x110] sm:$0xff]
    %v2217 = vld [vmem:[#allocation6 + $0x118] sm:$0xff]
    %v2218 = vld [vmem:[#allocation6 + $0x120] sm:$0xff]
    %v2219 = vld [vmem:[#allocation6 + $0x128] sm:$0xff]
    %v2220 = vld [vmem:[#allocation6 + $0x130] sm:$0xff]
    %v2221 = vld [vmem:[#allocation6 + $0x138] sm:$0xff]
    %v2222 = vld [vmem:[#allocation6 + $0x140] sm:$0xff]
    %v2223 = vld [vmem:[#allocation6 + $0x148] sm:$0xff]
    %v2224 = vld [vmem:[#allocation6 + $0x150] sm:$0xff]
    %v2225 = vld [vmem:[#allocation6 + $0x158] sm:$0xff]
    %v2226 = vld [vmem:[#allocation6 + $0x160] sm:$0xff]
    %v2227 = vld [vmem:[#allocation6 + $0x168] sm:$0xff]
    %v2228 = vld [vmem:[#allocation6 + $0x170] sm:$0xff]
    %v2229 = vld [vmem:[#allocation6 + $0x178] sm:$0xff]
    %v2230 = vld [vmem:[#allocation6 + $0x180] sm:$0xff]
    %v2231 = vld [vmem:[#allocation6 + $0x188] sm:$0xff]
    %v2232 = vld [vmem:[#allocation6 + $0x190] sm:$0xff]
    %v2233 = vld [vmem:[#allocation6 + $0x198] sm:$0xff]
    %v2234 = vld [vmem:[#allocation6 + $0x1a0] sm:$0xff]
    %v2235 = vld [vmem:[#allocation6 + $0x1a8] sm:$0xff]
    %v2236 = vld [vmem:[#allocation6 + $0x1b0] sm:$0xff]
    %v2237 = vld [vmem:[#allocation6 + $0x1b8] sm:$0xff]
    %v2238 = vld [vmem:[#allocation6 + $0x1c0] sm:$0xff]
    %v2239 = vld [vmem:[#allocation6 + $0x1c8] sm:$0xff]
    %v2240 = vld [vmem:[#allocation6 + $0x1d0] sm:$0xff]
    %v2241 = vld [vmem:[#allocation6 + $0x1d8] sm:$0xff]
    %v2242 = vld [vmem:[#allocation6 + $0x1e0] sm:$0xff]
    %v2243 = vld [vmem:[#allocation6 + $0x1e8] sm:$0xff]
    %v2244 = vld [vmem:[#allocation6 + $0x1f0] sm:$0xff]
    %v2245 = vld [vmem:[#allocation6 + $0x1f8] sm:$0xff]
    %v2246 = vand.u32 %v2213, 4294901760
    %2247 = vmatprep.subr.mxu0 %v2246
    %v2248 = vand.u32 %v2212, 4294901760
    %2249 = vmatpush1.msra.mxu0 %v2248
    %v2250 = vand.u32 %v2211, 4294901760
    %2251 = vmatprep.subr.mxu0 %v2250
    %v2252 = vand.u32 %v2210, 4294901760
    %2253 = vmatpush1.msra.mxu0 %v2252
    %v2254 = vand.u32 %v2209, 4294901760
    %2255 = vmatprep.subr.mxu0 %v2254
    %v2256 = vand.u32 %v2208, 4294901760
    %2257 = vmatpush1.msra.mxu0 %v2256
    %v2258 = vand.u32 %v2207, 4294901760
    %2259 = vmatprep.subr.mxu0 %v2258
    %v2260 = vand.u32 %v2206, 4294901760
    %2261 = vmatpush1.msra.mxu0 %v2260
    %v2262 = vand.u32 %v2205, 4294901760
    %2263 = vmatprep.subr.mxu0 %v2262
    %v2264 = vand.u32 %v2204, 4294901760
    %2265 = vmatpush1.msra.mxu0 %v2264
    %v2266 = vand.u32 %v2203, 4294901760
    %2267 = vmatprep.subr.mxu0 %v2266
    %v2268 = vand.u32 %v2202, 4294901760
    %2269 = vmatpush1.msra.mxu0 %v2268
    %v2270 = vand.u32 %v2201, 4294901760
    %2271 = vmatprep.subr.mxu0 %v2270
    %v2272 = vand.u32 %v2200, 4294901760
    %2273 = vmatpush1.msra.mxu0 %v2272
    %v2274 = vand.u32 %v2199, 4294901760
    %2275 = vmatprep.subr.mxu0 %v2274
    %v2276 = vand.u32 %v2198, 4294901760
    %2277 = vmatpush1.msra.mxu0 %v2276
    %v2278 = vand.u32 %v2197, 4294901760
    %2279 = vmatprep.subr.mxu0 %v2278
    %v2280 = vand.u32 %v2196, 4294901760
    %2281 = vmatpush1.msra.mxu0 %v2280
    %v2282 = vand.u32 %v2195, 4294901760
    %2283 = vmatprep.subr.mxu0 %v2282
    %v2284 = vand.u32 %v2194, 4294901760
    %2285 = vmatpush1.msra.mxu0 %v2284
    %v2286 = vand.u32 %v2193, 4294901760
    %2287 = vmatprep.subr.mxu0 %v2286
    %v2288 = vand.u32 %v2192, 4294901760
    %2289 = vmatpush1.msra.mxu0 %v2288
    %v2290 = vand.u32 %v2191, 4294901760
    %2291 = vmatprep.subr.mxu0 %v2290
    %v2292 = vand.u32 %v2190, 4294901760
    %2293 = vmatpush1.msra.mxu0 %v2292
    %v2294 = vand.u32 %v2189, 4294901760
    %2295 = vmatprep.subr.mxu0 %v2294
    %v2296 = vand.u32 %v2188, 4294901760
    %2297 = vmatpush1.msra.mxu0 %v2296
    %v2298 = vand.u32 %v2187, 4294901760
    %2299 = vmatprep.subr.mxu0 %v2298
    %v2300 = vand.u32 %v2186, 4294901760
    %2301 = vmatpush1.msra.mxu0 %v2300
    %v2302 = vand.u32 %v2185, 4294901760
    %2303 = vmatprep.subr.mxu0 %v2302
    %v2304 = vand.u32 %v2184, 4294901760
    %2305 = vmatpush1.msra.mxu0 %v2304
    %v2306 = vand.u32 %v2183, 4294901760
    %2307 = vmatprep.subr.mxu0 %v2306
    %v2308 = vand.u32 %v2182, 4294901760
    %2309 = vmatpush1.msra.mxu0 %v2308
    %v2310 = vand.u32 %v2245, 4294901760
    %2311 = vmatprep.subr.mxu0 %v2310
    %v2312 = vand.u32 %v2244, 4294901760
    %2313 = vmatpush2.msra.mxu0 %v2312
    %v2314 = vand.u32 %v2243, 4294901760
    %2315 = vmatprep.subr.mxu0 %v2314
    %v2316 = vand.u32 %v2242, 4294901760
    %2317 = vmatpush2.msra.mxu0 %v2316
    %v2318 = vand.u32 %v2241, 4294901760
    %2319 = vmatprep.subr.mxu0 %v2318
    %v2320 = vand.u32 %v2240, 4294901760
    %2321 = vmatpush2.msra.mxu0 %v2320
    %v2322 = vand.u32 %v2239, 4294901760
    %2323 = vmatprep.subr.mxu0 %v2322
    %v2324 = vand.u32 %v2238, 4294901760
    %2325 = vmatpush2.msra.mxu0 %v2324
    %v2326 = vand.u32 %v2237, 4294901760
    %2327 = vmatprep.subr.mxu0 %v2326
    %v2328 = vand.u32 %v2236, 4294901760
    %2329 = vmatpush2.msra.mxu0 %v2328
    %v2330 = vand.u32 %v2235, 4294901760
    %2331 = vmatprep.subr.mxu0 %v2330
    %v2332 = vand.u32 %v2234, 4294901760
    %2333 = vmatpush2.msra.mxu0 %v2332
    %v2334 = vand.u32 %v2233, 4294901760
    %2335 = vmatprep.subr.mxu0 %v2334
    %v2336 = vand.u32 %v2232, 4294901760
    %2337 = vmatpush2.msra.mxu0 %v2336
    %v2338 = vand.u32 %v2231, 4294901760
    %2339 = vmatprep.subr.mxu0 %v2338
    %v2340 = vand.u32 %v2230, 4294901760
    %2341 = vmatpush2.msra.mxu0 %v2340
    %v2342 = vand.u32 %v2229, 4294901760
    %2343 = vmatprep.subr.mxu0 %v2342
    %v2344 = vand.u32 %v2228, 4294901760
    %2345 = vmatpush2.msra.mxu0 %v2344
    %v2346 = vand.u32 %v2227, 4294901760
    %2347 = vmatprep.subr.mxu0 %v2346
    %v2348 = vand.u32 %v2226, 4294901760
    %2349 = vmatpush2.msra.mxu0 %v2348
    %v2350 = vand.u32 %v2225, 4294901760
    %2351 = vmatprep.subr.mxu0 %v2350
    %v2352 = vand.u32 %v2224, 4294901760
    %2353 = vmatpush2.msra.mxu0 %v2352
    %v2354 = vand.u32 %v2223, 4294901760
    %2355 = vmatprep.subr.mxu0 %v2354
    %v2356 = vand.u32 %v2222, 4294901760
    %2357 = vmatpush2.msra.mxu0 %v2356
    %v2358 = vand.u32 %v2221, 4294901760
    %2359 = vmatprep.subr.mxu0 %v2358
    %v2360 = vand.u32 %v2220, 4294901760
    %2361 = vmatpush2.msra.mxu0 %v2360
    %v2362 = vand.u32 %v2219, 4294901760
    %2363 = vmatprep.subr.mxu0 %v2362
    %v2364 = vand.u32 %v2218, 4294901760
    %2365 = vmatpush2.msra.mxu0 %v2364
    %v2366 = vand.u32 %v2217, 4294901760
    %2367 = vmatprep.subr.mxu0 %v2366
    %v2368 = vand.u32 %v2216, 4294901760
    %2369 = vmatpush2.msra.mxu0 %v2368
    %v2370 = vand.u32 %v2215, 4294901760
    %2371 = vmatprep.subr.mxu0 %v2370
    %v2372 = vand.u32 %v2214, 4294901760
    %2373 = vmatpush2.msra.mxu0 %v2372
    %v2374 = vand.u32 %v2181, 4294901760
    %v2375 = vsub.f32 %v2181, %v2374
    %v2376 = vand.u32 %v2375, 4294901760
    %v2377 = vsub.f32 %v2375, %v2376
    %v2378 = vand.u32 %v2377, 4294901760
    %2379 = vmatprep.mubr.f32.mxu0 %v2378
    %v2380 = vand.u32 %v2180, 4294901760
    %v2381 = vsub.f32 %v2180, %v2380
    %v2382 = vand.u32 %v2381, 4294901760
    %v2383 = vsub.f32 %v2381, %v2382
    %v2384 = vand.u32 %v2383, 4294901760
    %2385 = vmatmul.mubr.f32.gmra.mxu0 %v2384
    %v2386 = vpop.f32.mrf.mxu0
    %v2387 = vadd.f32 0.0, %v2386
    %v2388 = vpop.f32.mrf.mxu0
    %v2389 = vadd.f32 0.0, %v2388
    %2390 = vdwg.mxu0
    %v2391 = vand.u32 %v2213, 4294901760
    %v2392 = vsub.f32 %v2213, %v2391
    %v2393 = vand.u32 %v2392, 4294901760
    %v2394 = vsub.f32 %v2392, %v2393
    %v2395 = vand.u32 %v2394, 4294901760
    %2396 = vmatprep.subr.mxu0 %v2395
    %v2397 = vand.u32 %v2212, 4294901760
    %v2398 = vsub.f32 %v2212, %v2397
    %v2399 = vand.u32 %v2398, 4294901760
    %v2400 = vsub.f32 %v2398, %v2399
    %v2401 = vand.u32 %v2400, 4294901760
    %2402 = vmatpush1.msra.mxu0 %v2401
    %v2403 = vand.u32 %v2211, 4294901760
    %v2404 = vsub.f32 %v2211, %v2403
    %v2405 = vand.u32 %v2404, 4294901760
    %v2406 = vsub.f32 %v2404, %v2405
    %v2407 = vand.u32 %v2406, 4294901760
    %2408 = vmatprep.subr.mxu0 %v2407
    %v2409 = vand.u32 %v2210, 4294901760
    %v2410 = vsub.f32 %v2210, %v2409
    %v2411 = vand.u32 %v2410, 4294901760
    %v2412 = vsub.f32 %v2410, %v2411
    %v2413 = vand.u32 %v2412, 4294901760
    %2414 = vmatpush1.msra.mxu0 %v2413
    %v2415 = vand.u32 %v2209, 4294901760
    %v2416 = vsub.f32 %v2209, %v2415
    %v2417 = vand.u32 %v2416, 4294901760
    %v2418 = vsub.f32 %v2416, %v2417
    %v2419 = vand.u32 %v2418, 4294901760
    %2420 = vmatprep.subr.mxu0 %v2419
    %v2421 = vand.u32 %v2208, 4294901760
    %v2422 = vsub.f32 %v2208, %v2421
    %v2423 = vand.u32 %v2422, 4294901760
    %v2424 = vsub.f32 %v2422, %v2423
    %v2425 = vand.u32 %v2424, 4294901760
    %2426 = vmatpush1.msra.mxu0 %v2425
    %v2427 = vand.u32 %v2207, 4294901760
    %v2428 = vsub.f32 %v2207, %v2427
    %v2429 = vand.u32 %v2428, 4294901760
    %v2430 = vsub.f32 %v2428, %v2429
    %v2431 = vand.u32 %v2430, 4294901760
    %2432 = vmatprep.subr.mxu0 %v2431
    %v2433 = vand.u32 %v2206, 4294901760
    %v2434 = vsub.f32 %v2206, %v2433
    %v2435 = vand.u32 %v2434, 4294901760
    %v2436 = vsub.f32 %v2434, %v2435
    %v2437 = vand.u32 %v2436, 4294901760
    %2438 = vmatpush1.msra.mxu0 %v2437
    %v2439 = vand.u32 %v2205, 4294901760
    %v2440 = vsub.f32 %v2205, %v2439
    %v2441 = vand.u32 %v2440, 4294901760
    %v2442 = vsub.f32 %v2440, %v2441
    %v2443 = vand.u32 %v2442, 4294901760
    %2444 = vmatprep.subr.mxu0 %v2443
    %v2445 = vand.u32 %v2204, 4294901760
    %v2446 = vsub.f32 %v2204, %v2445
    %v2447 = vand.u32 %v2446, 4294901760
    %v2448 = vsub.f32 %v2446, %v2447
    %v2449 = vand.u32 %v2448, 4294901760
    %2450 = vmatpush1.msra.mxu0 %v2449
    %v2451 = vand.u32 %v2203, 4294901760
    %v2452 = vsub.f32 %v2203, %v2451
    %v2453 = vand.u32 %v2452, 4294901760
    %v2454 = vsub.f32 %v2452, %v2453
    %v2455 = vand.u32 %v2454, 4294901760
    %2456 = vmatprep.subr.mxu0 %v2455
    %v2457 = vand.u32 %v2202, 4294901760
    %v2458 = vsub.f32 %v2202, %v2457
    %v2459 = vand.u32 %v2458, 4294901760
    %v2460 = vsub.f32 %v2458, %v2459
    %v2461 = vand.u32 %v2460, 4294901760
    %2462 = vmatpush1.msra.mxu0 %v2461
    %v2463 = vand.u32 %v2201, 4294901760
    %v2464 = vsub.f32 %v2201, %v2463
    %v2465 = vand.u32 %v2464, 4294901760
    %v2466 = vsub.f32 %v2464, %v2465
    %v2467 = vand.u32 %v2466, 4294901760
    %2468 = vmatprep.subr.mxu0 %v2467
    %v2469 = vand.u32 %v2200, 4294901760
    %v2470 = vsub.f32 %v2200, %v2469
    %v2471 = vand.u32 %v2470, 4294901760
    %v2472 = vsub.f32 %v2470, %v2471
    %v2473 = vand.u32 %v2472, 4294901760
    %2474 = vmatpush1.msra.mxu0 %v2473
    %v2475 = vand.u32 %v2199, 4294901760
    %v2476 = vsub.f32 %v2199, %v2475
    %v2477 = vand.u32 %v2476, 4294901760
    %v2478 = vsub.f32 %v2476, %v2477
    %v2479 = vand.u32 %v2478, 4294901760
    %2480 = vmatprep.subr.mxu0 %v2479
    %v2481 = vand.u32 %v2198, 4294901760
    %v2482 = vsub.f32 %v2198, %v2481
    %v2483 = vand.u32 %v2482, 4294901760
    %v2484 = vsub.f32 %v2482, %v2483
    %v2485 = vand.u32 %v2484, 4294901760
    %2486 = vmatpush1.msra.mxu0 %v2485
    %v2487 = vand.u32 %v2197, 4294901760
    %v2488 = vsub.f32 %v2197, %v2487
    %v2489 = vand.u32 %v2488, 4294901760
    %v2490 = vsub.f32 %v2488, %v2489
    %v2491 = vand.u32 %v2490, 4294901760
    %2492 = vmatprep.subr.mxu0 %v2491
    %v2493 = vand.u32 %v2196, 4294901760
    %v2494 = vsub.f32 %v2196, %v2493
    %v2495 = vand.u32 %v2494, 4294901760
    %v2496 = vsub.f32 %v2494, %v2495
    %v2497 = vand.u32 %v2496, 4294901760
    %2498 = vmatpush1.msra.mxu0 %v2497
    %v2499 = vand.u32 %v2195, 4294901760
    %v2500 = vsub.f32 %v2195, %v2499
    %v2501 = vand.u32 %v2500, 4294901760
    %v2502 = vsub.f32 %v2500, %v2501
    %v2503 = vand.u32 %v2502, 4294901760
    %2504 = vmatprep.subr.mxu0 %v2503
    %v2505 = vand.u32 %v2194, 4294901760
    %v2506 = vsub.f32 %v2194, %v2505
    %v2507 = vand.u32 %v2506, 4294901760
    %v2508 = vsub.f32 %v2506, %v2507
    %v2509 = vand.u32 %v2508, 4294901760
    %2510 = vmatpush1.msra.mxu0 %v2509
    %v2511 = vand.u32 %v2193, 4294901760
    %v2512 = vsub.f32 %v2193, %v2511
    %v2513 = vand.u32 %v2512, 4294901760
    %v2514 = vsub.f32 %v2512, %v2513
    %v2515 = vand.u32 %v2514, 4294901760
    %2516 = vmatprep.subr.mxu0 %v2515
    %v2517 = vand.u32 %v2192, 4294901760
    %v2518 = vsub.f32 %v2192, %v2517
    %v2519 = vand.u32 %v2518, 4294901760
    %v2520 = vsub.f32 %v2518, %v2519
    %v2521 = vand.u32 %v2520, 4294901760
    %2522 = vmatpush1.msra.mxu0 %v2521
    %v2523 = vand.u32 %v2191, 4294901760
    %v2524 = vsub.f32 %v2191, %v2523
    %v2525 = vand.u32 %v2524, 4294901760
    %v2526 = vsub.f32 %v2524, %v2525
    %v2527 = vand.u32 %v2526, 4294901760
    %2528 = vmatprep.subr.mxu0 %v2527
    %v2529 = vand.u32 %v2190, 4294901760
    %v2530 = vsub.f32 %v2190, %v2529
    %v2531 = vand.u32 %v2530, 4294901760
    %v2532 = vsub.f32 %v2530, %v2531
    %v2533 = vand.u32 %v2532, 4294901760
    %2534 = vmatpush1.msra.mxu0 %v2533
    %v2535 = vand.u32 %v2189, 4294901760
    %v2536 = vsub.f32 %v2189, %v2535
    %v2537 = vand.u32 %v2536, 4294901760
    %v2538 = vsub.f32 %v2536, %v2537
    %v2539 = vand.u32 %v2538, 4294901760
    %2540 = vmatprep.subr.mxu0 %v2539
    %v2541 = vand.u32 %v2188, 4294901760
    %v2542 = vsub.f32 %v2188, %v2541
    %v2543 = vand.u32 %v2542, 4294901760
    %v2544 = vsub.f32 %v2542, %v2543
    %v2545 = vand.u32 %v2544, 4294901760
    %2546 = vmatpush1.msra.mxu0 %v2545
    %v2547 = vand.u32 %v2187, 4294901760
    %v2548 = vsub.f32 %v2187, %v2547
    %v2549 = vand.u32 %v2548, 4294901760
    %v2550 = vsub.f32 %v2548, %v2549
    %v2551 = vand.u32 %v2550, 4294901760
    %2552 = vmatprep.subr.mxu0 %v2551
    %v2553 = vand.u32 %v2186, 4294901760
    %v2554 = vsub.f32 %v2186, %v2553
    %v2555 = vand.u32 %v2554, 4294901760
    %v2556 = vsub.f32 %v2554, %v2555
    %v2557 = vand.u32 %v2556, 4294901760
    %2558 = vmatpush1.msra.mxu0 %v2557
    %v2559 = vand.u32 %v2185, 4294901760
    %v2560 = vsub.f32 %v2185, %v2559
    %v2561 = vand.u32 %v2560, 4294901760
    %v2562 = vsub.f32 %v2560, %v2561
    %v2563 = vand.u32 %v2562, 4294901760
    %2564 = vmatprep.subr.mxu0 %v2563
    %v2565 = vand.u32 %v2184, 4294901760
    %v2566 = vsub.f32 %v2184, %v2565
    %v2567 = vand.u32 %v2566, 4294901760
    %v2568 = vsub.f32 %v2566, %v2567
    %v2569 = vand.u32 %v2568, 4294901760
    %2570 = vmatpush1.msra.mxu0 %v2569
    %v2571 = vand.u32 %v2183, 4294901760
    %v2572 = vsub.f32 %v2183, %v2571
    %v2573 = vand.u32 %v2572, 4294901760
    %v2574 = vsub.f32 %v2572, %v2573
    %v2575 = vand.u32 %v2574, 4294901760
    %2576 = vmatprep.subr.mxu0 %v2575
    %v2577 = vand.u32 %v2182, 4294901760
    %v2578 = vsub.f32 %v2182, %v2577
    %v2579 = vand.u32 %v2578, 4294901760
    %v2580 = vsub.f32 %v2578, %v2579
    %v2581 = vand.u32 %v2580, 4294901760
    %2582 = vmatpush1.msra.mxu0 %v2581
    %v2583 = vand.u32 %v2245, 4294901760
    %v2584 = vsub.f32 %v2245, %v2583
    %v2585 = vand.u32 %v2584, 4294901760
    %v2586 = vsub.f32 %v2584, %v2585
    %v2587 = vand.u32 %v2586, 4294901760
    %2588 = vmatprep.subr.mxu0 %v2587
    %v2589 = vand.u32 %v2244, 4294901760
    %v2590 = vsub.f32 %v2244, %v2589
    %v2591 = vand.u32 %v2590, 4294901760
    %v2592 = vsub.f32 %v2590, %v2591
    %v2593 = vand.u32 %v2592, 4294901760
    %2594 = vmatpush2.msra.mxu0 %v2593
    %v2595 = vand.u32 %v2243, 4294901760
    %v2596 = vsub.f32 %v2243, %v2595
    %v2597 = vand.u32 %v2596, 4294901760
    %v2598 = vsub.f32 %v2596, %v2597
    %v2599 = vand.u32 %v2598, 4294901760
    %2600 = vmatprep.subr.mxu0 %v2599
    %v2601 = vand.u32 %v2242, 4294901760
    %v2602 = vsub.f32 %v2242, %v2601
    %v2603 = vand.u32 %v2602, 4294901760
    %v2604 = vsub.f32 %v2602, %v2603
    %v2605 = vand.u32 %v2604, 4294901760
    %2606 = vmatpush2.msra.mxu0 %v2605
    %v2607 = vand.u32 %v2241, 4294901760
    %v2608 = vsub.f32 %v2241, %v2607
    %v2609 = vand.u32 %v2608, 4294901760
    %v2610 = vsub.f32 %v2608, %v2609
    %v2611 = vand.u32 %v2610, 4294901760
    %2612 = vmatprep.subr.mxu0 %v2611
    %v2613 = vand.u32 %v2240, 4294901760
    %v2614 = vsub.f32 %v2240, %v2613
    %v2615 = vand.u32 %v2614, 4294901760
    %v2616 = vsub.f32 %v2614, %v2615
    %v2617 = vand.u32 %v2616, 4294901760
    %2618 = vmatpush2.msra.mxu0 %v2617
    %v2619 = vand.u32 %v2239, 4294901760
    %v2620 = vsub.f32 %v2239, %v2619
    %v2621 = vand.u32 %v2620, 4294901760
    %v2622 = vsub.f32 %v2620, %v2621
    %v2623 = vand.u32 %v2622, 4294901760
    %2624 = vmatprep.subr.mxu0 %v2623
    %v2625 = vand.u32 %v2238, 4294901760
    %v2626 = vsub.f32 %v2238, %v2625
    %v2627 = vand.u32 %v2626, 4294901760
    %v2628 = vsub.f32 %v2626, %v2627
    %v2629 = vand.u32 %v2628, 4294901760
    %2630 = vmatpush2.msra.mxu0 %v2629
    %v2631 = vand.u32 %v2237, 4294901760
    %v2632 = vsub.f32 %v2237, %v2631
    %v2633 = vand.u32 %v2632, 4294901760
    %v2634 = vsub.f32 %v2632, %v2633
    %v2635 = vand.u32 %v2634, 4294901760
    %2636 = vmatprep.subr.mxu0 %v2635
    %v2637 = vand.u32 %v2236, 4294901760
    %v2638 = vsub.f32 %v2236, %v2637
    %v2639 = vand.u32 %v2638, 4294901760
    %v2640 = vsub.f32 %v2638, %v2639
    %v2641 = vand.u32 %v2640, 4294901760
    %2642 = vmatpush2.msra.mxu0 %v2641
    %v2643 = vand.u32 %v2235, 4294901760
    %v2644 = vsub.f32 %v2235, %v2643
    %v2645 = vand.u32 %v2644, 4294901760
    %v2646 = vsub.f32 %v2644, %v2645
    %v2647 = vand.u32 %v2646, 4294901760
    %2648 = vmatprep.subr.mxu0 %v2647
    %v2649 = vand.u32 %v2234, 4294901760
    %v2650 = vsub.f32 %v2234, %v2649
    %v2651 = vand.u32 %v2650, 4294901760
    %v2652 = vsub.f32 %v2650, %v2651
    %v2653 = vand.u32 %v2652, 4294901760
    %2654 = vmatpush2.msra.mxu0 %v2653
    %v2655 = vand.u32 %v2233, 4294901760
    %v2656 = vsub.f32 %v2233, %v2655
    %v2657 = vand.u32 %v2656, 4294901760
    %v2658 = vsub.f32 %v2656, %v2657
    %v2659 = vand.u32 %v2658, 4294901760
    %2660 = vmatprep.subr.mxu0 %v2659
    %v2661 = vand.u32 %v2232, 4294901760
    %v2662 = vsub.f32 %v2232, %v2661
    %v2663 = vand.u32 %v2662, 4294901760
    %v2664 = vsub.f32 %v2662, %v2663
    %v2665 = vand.u32 %v2664, 4294901760
    %2666 = vmatpush2.msra.mxu0 %v2665
    %v2667 = vand.u32 %v2231, 4294901760
    %v2668 = vsub.f32 %v2231, %v2667
    %v2669 = vand.u32 %v2668, 4294901760
    %v2670 = vsub.f32 %v2668, %v2669
    %v2671 = vand.u32 %v2670, 4294901760
    %2672 = vmatprep.subr.mxu0 %v2671
    %v2673 = vand.u32 %v2230, 4294901760
    %v2674 = vsub.f32 %v2230, %v2673
    %v2675 = vand.u32 %v2674, 4294901760
    %v2676 = vsub.f32 %v2674, %v2675
    %v2677 = vand.u32 %v2676, 4294901760
    %2678 = vmatpush2.msra.mxu0 %v2677
    %v2679 = vand.u32 %v2229, 4294901760
    %v2680 = vsub.f32 %v2229, %v2679
    %v2681 = vand.u32 %v2680, 4294901760
    %v2682 = vsub.f32 %v2680, %v2681
    %v2683 = vand.u32 %v2682, 4294901760
    %2684 = vmatprep.subr.mxu0 %v2683
    %v2685 = vand.u32 %v2228, 4294901760
    %v2686 = vsub.f32 %v2228, %v2685
    %v2687 = vand.u32 %v2686, 4294901760
    %v2688 = vsub.f32 %v2686, %v2687
    %v2689 = vand.u32 %v2688, 4294901760
    %2690 = vmatpush2.msra.mxu0 %v2689
    %v2691 = vand.u32 %v2227, 4294901760
    %v2692 = vsub.f32 %v2227, %v2691
    %v2693 = vand.u32 %v2692, 4294901760
    %v2694 = vsub.f32 %v2692, %v2693
    %v2695 = vand.u32 %v2694, 4294901760
    %2696 = vmatprep.subr.mxu0 %v2695
    %v2697 = vand.u32 %v2226, 4294901760
    %v2698 = vsub.f32 %v2226, %v2697
    %v2699 = vand.u32 %v2698, 4294901760
    %v2700 = vsub.f32 %v2698, %v2699
    %v2701 = vand.u32 %v2700, 4294901760
    %2702 = vmatpush2.msra.mxu0 %v2701
    %v2703 = vand.u32 %v2225, 4294901760
    %v2704 = vsub.f32 %v2225, %v2703
    %v2705 = vand.u32 %v2704, 4294901760
    %v2706 = vsub.f32 %v2704, %v2705
    %v2707 = vand.u32 %v2706, 4294901760
    %2708 = vmatprep.subr.mxu0 %v2707
    %v2709 = vand.u32 %v2224, 4294901760
    %v2710 = vsub.f32 %v2224, %v2709
    %v2711 = vand.u32 %v2710, 4294901760
    %v2712 = vsub.f32 %v2710, %v2711
    %v2713 = vand.u32 %v2712, 4294901760
    %2714 = vmatpush2.msra.mxu0 %v2713
    %v2715 = vand.u32 %v2223, 4294901760
    %v2716 = vsub.f32 %v2223, %v2715
    %v2717 = vand.u32 %v2716, 4294901760
    %v2718 = vsub.f32 %v2716, %v2717
    %v2719 = vand.u32 %v2718, 4294901760
    %2720 = vmatprep.subr.mxu0 %v2719
    %v2721 = vand.u32 %v2222, 4294901760
    %v2722 = vsub.f32 %v2222, %v2721
    %v2723 = vand.u32 %v2722, 4294901760
    %v2724 = vsub.f32 %v2722, %v2723
    %v2725 = vand.u32 %v2724, 4294901760
    %2726 = vmatpush2.msra.mxu0 %v2725
    %v2727 = vand.u32 %v2221, 4294901760
    %v2728 = vsub.f32 %v2221, %v2727
    %v2729 = vand.u32 %v2728, 4294901760
    %v2730 = vsub.f32 %v2728, %v2729
    %v2731 = vand.u32 %v2730, 4294901760
    %2732 = vmatprep.subr.mxu0 %v2731
    %v2733 = vand.u32 %v2220, 4294901760
    %v2734 = vsub.f32 %v2220, %v2733
    %v2735 = vand.u32 %v2734, 4294901760
    %v2736 = vsub.f32 %v2734, %v2735
    %v2737 = vand.u32 %v2736, 4294901760
    %2738 = vmatpush2.msra.mxu0 %v2737
    %v2739 = vand.u32 %v2219, 4294901760
    %v2740 = vsub.f32 %v2219, %v2739
    %v2741 = vand.u32 %v2740, 4294901760
    %v2742 = vsub.f32 %v2740, %v2741
    %v2743 = vand.u32 %v2742, 4294901760
    %2744 = vmatprep.subr.mxu0 %v2743
    %v2745 = vand.u32 %v2218, 4294901760
    %v2746 = vsub.f32 %v2218, %v2745
    %v2747 = vand.u32 %v2746, 4294901760
    %v2748 = vsub.f32 %v2746, %v2747
    %v2749 = vand.u32 %v2748, 4294901760
    %2750 = vmatpush2.msra.mxu0 %v2749
    %v2751 = vand.u32 %v2217, 4294901760
    %v2752 = vsub.f32 %v2217, %v2751
    %v2753 = vand.u32 %v2752, 4294901760
    %v2754 = vsub.f32 %v2752, %v2753
    %v2755 = vand.u32 %v2754, 4294901760
    %2756 = vmatprep.subr.mxu0 %v2755
    %v2757 = vand.u32 %v2216, 4294901760
    %v2758 = vsub.f32 %v2216, %v2757
    %v2759 = vand.u32 %v2758, 4294901760
    %v2760 = vsub.f32 %v2758, %v2759
    %v2761 = vand.u32 %v2760, 4294901760
    %2762 = vmatpush2.msra.mxu0 %v2761
    %v2763 = vand.u32 %v2215, 4294901760
    %v2764 = vsub.f32 %v2215, %v2763
    %v2765 = vand.u32 %v2764, 4294901760
    %v2766 = vsub.f32 %v2764, %v2765
    %v2767 = vand.u32 %v2766, 4294901760
    %2768 = vmatprep.subr.mxu0 %v2767
    %v2769 = vand.u32 %v2214, 4294901760
    %v2770 = vsub.f32 %v2214, %v2769
    %v2771 = vand.u32 %v2770, 4294901760
    %v2772 = vsub.f32 %v2770, %v2771
    %v2773 = vand.u32 %v2772, 4294901760
    %2774 = vmatpush2.msra.mxu0 %v2773
    %v2775 = vand.u32 %v2181, 4294901760
    %2776 = vmatprep.mubr.f32.mxu0 %v2775
    %v2777 = vand.u32 %v2180, 4294901760
    %2778 = vmatmul.mubr.f32.gmra.mxu0 %v2777
    %v2779 = vpop.f32.mrf.mxu0
    %v2780 = vadd.f32 %v2387, %v2779
    %v2781 = vpop.f32.mrf.mxu0
    %v2782 = vadd.f32 %v2389, %v2781
    %2783 = vdwg.mxu0
    %v2784 = vand.u32 %v2213, 4294901760
    %v2785 = vsub.f32 %v2213, %v2784
    %2786 = vmatprep.subr.mxu0 %v2785
    %v2787 = vand.u32 %v2212, 4294901760
    %v2788 = vsub.f32 %v2212, %v2787
    %2789 = vmatpush1.msra.mxu0 %v2788
    %v2790 = vand.u32 %v2211, 4294901760
    %v2791 = vsub.f32 %v2211, %v2790
    %2792 = vmatprep.subr.mxu0 %v2791
    %v2793 = vand.u32 %v2210, 4294901760
    %v2794 = vsub.f32 %v2210, %v2793
    %2795 = vmatpush1.msra.mxu0 %v2794
    %v2796 = vand.u32 %v2209, 4294901760
    %v2797 = vsub.f32 %v2209, %v2796
    %2798 = vmatprep.subr.mxu0 %v2797
    %v2799 = vand.u32 %v2208, 4294901760
    %v2800 = vsub.f32 %v2208, %v2799
    %2801 = vmatpush1.msra.mxu0 %v2800
    %v2802 = vand.u32 %v2207, 4294901760
    %v2803 = vsub.f32 %v2207, %v2802
    %2804 = vmatprep.subr.mxu0 %v2803
    %v2805 = vand.u32 %v2206, 4294901760
    %v2806 = vsub.f32 %v2206, %v2805
    %2807 = vmatpush1.msra.mxu0 %v2806
    %v2808 = vand.u32 %v2205, 4294901760
    %v2809 = vsub.f32 %v2205, %v2808
    %2810 = vmatprep.subr.mxu0 %v2809
    %v2811 = vand.u32 %v2204, 4294901760
    %v2812 = vsub.f32 %v2204, %v2811
    %2813 = vmatpush1.msra.mxu0 %v2812
    %v2814 = vand.u32 %v2203, 4294901760
    %v2815 = vsub.f32 %v2203, %v2814
    %2816 = vmatprep.subr.mxu0 %v2815
    %v2817 = vand.u32 %v2202, 4294901760
    %v2818 = vsub.f32 %v2202, %v2817
    %2819 = vmatpush1.msra.mxu0 %v2818
    %v2820 = vand.u32 %v2201, 4294901760
    %v2821 = vsub.f32 %v2201, %v2820
    %2822 = vmatprep.subr.mxu0 %v2821
    %v2823 = vand.u32 %v2200, 4294901760
    %v2824 = vsub.f32 %v2200, %v2823
    %2825 = vmatpush1.msra.mxu0 %v2824
    %v2826 = vand.u32 %v2199, 4294901760
    %v2827 = vsub.f32 %v2199, %v2826
    %2828 = vmatprep.subr.mxu0 %v2827
    %v2829 = vand.u32 %v2198, 4294901760
    %v2830 = vsub.f32 %v2198, %v2829
    %2831 = vmatpush1.msra.mxu0 %v2830
    %v2832 = vand.u32 %v2197, 4294901760
    %v2833 = vsub.f32 %v2197, %v2832
    %2834 = vmatprep.subr.mxu0 %v2833
    %v2835 = vand.u32 %v2196, 4294901760
    %v2836 = vsub.f32 %v2196, %v2835
    %2837 = vmatpush1.msra.mxu0 %v2836
    %v2838 = vand.u32 %v2195, 4294901760
    %v2839 = vsub.f32 %v2195, %v2838
    %2840 = vmatprep.subr.mxu0 %v2839
    %v2841 = vand.u32 %v2194, 4294901760
    %v2842 = vsub.f32 %v2194, %v2841
    %2843 = vmatpush1.msra.mxu0 %v2842
    %v2844 = vand.u32 %v2193, 4294901760
    %v2845 = vsub.f32 %v2193, %v2844
    %2846 = vmatprep.subr.mxu0 %v2845
    %v2847 = vand.u32 %v2192, 4294901760
    %v2848 = vsub.f32 %v2192, %v2847
    %2849 = vmatpush1.msra.mxu0 %v2848
    %v2850 = vand.u32 %v2191, 4294901760
    %v2851 = vsub.f32 %v2191, %v2850
    %2852 = vmatprep.subr.mxu0 %v2851
    %v2853 = vand.u32 %v2190, 4294901760
    %v2854 = vsub.f32 %v2190, %v2853
    %2855 = vmatpush1.msra.mxu0 %v2854
    %v2856 = vand.u32 %v2189, 4294901760
    %v2857 = vsub.f32 %v2189, %v2856
    %2858 = vmatprep.subr.mxu0 %v2857
    %v2859 = vand.u32 %v2188, 4294901760
    %v2860 = vsub.f32 %v2188, %v2859
    %2861 = vmatpush1.msra.mxu0 %v2860
    %v2862 = vand.u32 %v2187, 4294901760
    %v2863 = vsub.f32 %v2187, %v2862
    %2864 = vmatprep.subr.mxu0 %v2863
    %v2865 = vand.u32 %v2186, 4294901760
    %v2866 = vsub.f32 %v2186, %v2865
    %2867 = vmatpush1.msra.mxu0 %v2866
    %v2868 = vand.u32 %v2185, 4294901760
    %v2869 = vsub.f32 %v2185, %v2868
    %2870 = vmatprep.subr.mxu0 %v2869
    %v2871 = vand.u32 %v2184, 4294901760
    %v2872 = vsub.f32 %v2184, %v2871
    %2873 = vmatpush1.msra.mxu0 %v2872
    %v2874 = vand.u32 %v2183, 4294901760
    %v2875 = vsub.f32 %v2183, %v2874
    %2876 = vmatprep.subr.mxu0 %v2875
    %v2877 = vand.u32 %v2182, 4294901760
    %v2878 = vsub.f32 %v2182, %v2877
    %2879 = vmatpush1.msra.mxu0 %v2878
    %v2880 = vand.u32 %v2245, 4294901760
    %v2881 = vsub.f32 %v2245, %v2880
    %2882 = vmatprep.subr.mxu0 %v2881
    %v2883 = vand.u32 %v2244, 4294901760
    %v2884 = vsub.f32 %v2244, %v2883
    %2885 = vmatpush2.msra.mxu0 %v2884
    %v2886 = vand.u32 %v2243, 4294901760
    %v2887 = vsub.f32 %v2243, %v2886
    %2888 = vmatprep.subr.mxu0 %v2887
    %v2889 = vand.u32 %v2242, 4294901760
    %v2890 = vsub.f32 %v2242, %v2889
    %2891 = vmatpush2.msra.mxu0 %v2890
    %v2892 = vand.u32 %v2241, 4294901760
    %v2893 = vsub.f32 %v2241, %v2892
    %2894 = vmatprep.subr.mxu0 %v2893
    %v2895 = vand.u32 %v2240, 4294901760
    %v2896 = vsub.f32 %v2240, %v2895
    %2897 = vmatpush2.msra.mxu0 %v2896
    %v2898 = vand.u32 %v2239, 4294901760
    %v2899 = vsub.f32 %v2239, %v2898
    %2900 = vmatprep.subr.mxu0 %v2899
    %v2901 = vand.u32 %v2238, 4294901760
    %v2902 = vsub.f32 %v2238, %v2901
    %2903 = vmatpush2.msra.mxu0 %v2902
    %v2904 = vand.u32 %v2237, 4294901760
    %v2905 = vsub.f32 %v2237, %v2904
    %2906 = vmatprep.subr.mxu0 %v2905
    %v2907 = vand.u32 %v2236, 4294901760
    %v2908 = vsub.f32 %v2236, %v2907
    %2909 = vmatpush2.msra.mxu0 %v2908
    %v2910 = vand.u32 %v2235, 4294901760
    %v2911 = vsub.f32 %v2235, %v2910
    %2912 = vmatprep.subr.mxu0 %v2911
    %v2913 = vand.u32 %v2234, 4294901760
    %v2914 = vsub.f32 %v2234, %v2913
    %2915 = vmatpush2.msra.mxu0 %v2914
    %v2916 = vand.u32 %v2233, 4294901760
    %v2917 = vsub.f32 %v2233, %v2916
    %2918 = vmatprep.subr.mxu0 %v2917
    %v2919 = vand.u32 %v2232, 4294901760
    %v2920 = vsub.f32 %v2232, %v2919
    %2921 = vmatpush2.msra.mxu0 %v2920
    %v2922 = vand.u32 %v2231, 4294901760
    %v2923 = vsub.f32 %v2231, %v2922
    %2924 = vmatprep.subr.mxu0 %v2923
    %v2925 = vand.u32 %v2230, 4294901760
    %v2926 = vsub.f32 %v2230, %v2925
    %2927 = vmatpush2.msra.mxu0 %v2926
    %v2928 = vand.u32 %v2229, 4294901760
    %v2929 = vsub.f32 %v2229, %v2928
    %2930 = vmatprep.subr.mxu0 %v2929
    %v2931 = vand.u32 %v2228, 4294901760
    %v2932 = vsub.f32 %v2228, %v2931
    %2933 = vmatpush2.msra.mxu0 %v2932
    %v2934 = vand.u32 %v2227, 4294901760
    %v2935 = vsub.f32 %v2227, %v2934
    %2936 = vmatprep.subr.mxu0 %v2935
    %v2937 = vand.u32 %v2226, 4294901760
    %v2938 = vsub.f32 %v2226, %v2937
    %2939 = vmatpush2.msra.mxu0 %v2938
    %v2940 = vand.u32 %v2225, 4294901760
    %v2941 = vsub.f32 %v2225, %v2940
    %2942 = vmatprep.subr.mxu0 %v2941
    %v2943 = vand.u32 %v2224, 4294901760
    %v2944 = vsub.f32 %v2224, %v2943
    %2945 = vmatpush2.msra.mxu0 %v2944
    %v2946 = vand.u32 %v2223, 4294901760
    %v2947 = vsub.f32 %v2223, %v2946
    %2948 = vmatprep.subr.mxu0 %v2947
    %v2949 = vand.u32 %v2222, 4294901760
    %v2950 = vsub.f32 %v2222, %v2949
    %2951 = vmatpush2.msra.mxu0 %v2950
    %v2952 = vand.u32 %v2221, 4294901760
    %v2953 = vsub.f32 %v2221, %v2952
    %2954 = vmatprep.subr.mxu0 %v2953
    %v2955 = vand.u32 %v2220, 4294901760
    %v2956 = vsub.f32 %v2220, %v2955
    %2957 = vmatpush2.msra.mxu0 %v2956
    %v2958 = vand.u32 %v2219, 4294901760
    %v2959 = vsub.f32 %v2219, %v2958
    %2960 = vmatprep.subr.mxu0 %v2959
    %v2961 = vand.u32 %v2218, 4294901760
    %v2962 = vsub.f32 %v2218, %v2961
    %2963 = vmatpush2.msra.mxu0 %v2962
    %v2964 = vand.u32 %v2217, 4294901760
    %v2965 = vsub.f32 %v2217, %v2964
    %2966 = vmatprep.subr.mxu0 %v2965
    %v2967 = vand.u32 %v2216, 4294901760
    %v2968 = vsub.f32 %v2216, %v2967
    %2969 = vmatpush2.msra.mxu0 %v2968
    %v2970 = vand.u32 %v2215, 4294901760
    %v2971 = vsub.f32 %v2215, %v2970
    %2972 = vmatprep.subr.mxu0 %v2971
    %v2973 = vand.u32 %v2214, 4294901760
    %v2974 = vsub.f32 %v2214, %v2973
    %2975 = vmatpush2.msra.mxu0 %v2974
    %v2976 = vand.u32 %v2181, 4294901760
    %v2977 = vsub.f32 %v2181, %v2976
    %2978 = vmatprep.mubr.f32.mxu0 %v2977
    %v2979 = vand.u32 %v2180, 4294901760
    %v2980 = vsub.f32 %v2180, %v2979
    %2981 = vmatmul.mubr.f32.gmra.mxu0 %v2980
    %v2982 = vpop.f32.mrf.mxu0
    %v2983 = vadd.f32 %v2780, %v2982
    %v2984 = vpop.f32.mrf.mxu0
    %v2985 = vadd.f32 %v2782, %v2984
    %2986 = vdwg.mxu0
    %v2987 = vand.u32 %v2213, 4294901760
    %2988 = vmatprep.subr.mxu0 %v2987
    %v2989 = vand.u32 %v2212, 4294901760
    %2990 = vmatpush1.msra.mxu0 %v2989
    %v2991 = vand.u32 %v2211, 4294901760
    %2992 = vmatprep.subr.mxu0 %v2991
    %v2993 = vand.u32 %v2210, 4294901760
    %2994 = vmatpush1.msra.mxu0 %v2993
    %v2995 = vand.u32 %v2209, 4294901760
    %2996 = vmatprep.subr.mxu0 %v2995
    %v2997 = vand.u32 %v2208, 4294901760
    %2998 = vmatpush1.msra.mxu0 %v2997
    %v2999 = vand.u32 %v2207, 4294901760
    %3000 = vmatprep.subr.mxu0 %v2999
    %v3001 = vand.u32 %v2206, 4294901760
    %3002 = vmatpush1.msra.mxu0 %v3001
    %v3003 = vand.u32 %v2205, 4294901760
    %3004 = vmatprep.subr.mxu0 %v3003
    %v3005 = vand.u32 %v2204, 4294901760
    %3006 = vmatpush1.msra.mxu0 %v3005
    %v3007 = vand.u32 %v2203, 4294901760
    %3008 = vmatprep.subr.mxu0 %v3007
    %v3009 = vand.u32 %v2202, 4294901760
    %3010 = vmatpush1.msra.mxu0 %v3009
    %v3011 = vand.u32 %v2201, 4294901760
    %3012 = vmatprep.subr.mxu0 %v3011
    %v3013 = vand.u32 %v2200, 4294901760
    %3014 = vmatpush1.msra.mxu0 %v3013
    %v3015 = vand.u32 %v2199, 4294901760
    %3016 = vmatprep.subr.mxu0 %v3015
    %v3017 = vand.u32 %v2198, 4294901760
    %3018 = vmatpush1.msra.mxu0 %v3017
    %v3019 = vand.u32 %v2197, 4294901760
    %3020 = vmatprep.subr.mxu0 %v3019
    %v3021 = vand.u32 %v2196, 4294901760
    %3022 = vmatpush1.msra.mxu0 %v3021
    %v3023 = vand.u32 %v2195, 4294901760
    %3024 = vmatprep.subr.mxu0 %v3023
    %v3025 = vand.u32 %v2194, 4294901760
    %3026 = vmatpush1.msra.mxu0 %v3025
    %v3027 = vand.u32 %v2193, 4294901760
    %3028 = vmatprep.subr.mxu0 %v3027
    %v3029 = vand.u32 %v2192, 4294901760
    %3030 = vmatpush1.msra.mxu0 %v3029
    %v3031 = vand.u32 %v2191, 4294901760
    %3032 = vmatprep.subr.mxu0 %v3031
    %v3033 = vand.u32 %v2190, 4294901760
    %3034 = vmatpush1.msra.mxu0 %v3033
    %v3035 = vand.u32 %v2189, 4294901760
    %3036 = vmatprep.subr.mxu0 %v3035
    %v3037 = vand.u32 %v2188, 4294901760
    %3038 = vmatpush1.msra.mxu0 %v3037
    %v3039 = vand.u32 %v2187, 4294901760
    %3040 = vmatprep.subr.mxu0 %v3039
    %v3041 = vand.u32 %v2186, 4294901760
    %3042 = vmatpush1.msra.mxu0 %v3041
    %v3043 = vand.u32 %v2185, 4294901760
    %3044 = vmatprep.subr.mxu0 %v3043
    %v3045 = vand.u32 %v2184, 4294901760
    %3046 = vmatpush1.msra.mxu0 %v3045
    %v3047 = vand.u32 %v2183, 4294901760
    %3048 = vmatprep.subr.mxu0 %v3047
    %v3049 = vand.u32 %v2182, 4294901760
    %3050 = vmatpush1.msra.mxu0 %v3049
    %v3051 = vand.u32 %v2245, 4294901760
    %3052 = vmatprep.subr.mxu0 %v3051
    %v3053 = vand.u32 %v2244, 4294901760
    %3054 = vmatpush2.msra.mxu0 %v3053
    %v3055 = vand.u32 %v2243, 4294901760
    %3056 = vmatprep.subr.mxu0 %v3055
    %v3057 = vand.u32 %v2242, 4294901760
    %3058 = vmatpush2.msra.mxu0 %v3057
    %v3059 = vand.u32 %v2241, 4294901760
    %3060 = vmatprep.subr.mxu0 %v3059
    %v3061 = vand.u32 %v2240, 4294901760
    %3062 = vmatpush2.msra.mxu0 %v3061
    %v3063 = vand.u32 %v2239, 4294901760
    %3064 = vmatprep.subr.mxu0 %v3063
    %v3065 = vand.u32 %v2238, 4294901760
    %3066 = vmatpush2.msra.mxu0 %v3065
    %v3067 = vand.u32 %v2237, 4294901760
    %3068 = vmatprep.subr.mxu0 %v3067
    %v3069 = vand.u32 %v2236, 4294901760
    %3070 = vmatpush2.msra.mxu0 %v3069
    %v3071 = vand.u32 %v2235, 4294901760
    %3072 = vmatprep.subr.mxu0 %v3071
    %v3073 = vand.u32 %v2234, 4294901760
    %3074 = vmatpush2.msra.mxu0 %v3073
    %v3075 = vand.u32 %v2233, 4294901760
    %3076 = vmatprep.subr.mxu0 %v3075
    %v3077 = vand.u32 %v2232, 4294901760
    %3078 = vmatpush2.msra.mxu0 %v3077
    %v3079 = vand.u32 %v2231, 4294901760
    %3080 = vmatprep.subr.mxu0 %v3079
    %v3081 = vand.u32 %v2230, 4294901760
    %3082 = vmatpush2.msra.mxu0 %v3081
    %v3083 = vand.u32 %v2229, 4294901760
    %3084 = vmatprep.subr.mxu0 %v3083
    %v3085 = vand.u32 %v2228, 4294901760
    %3086 = vmatpush2.msra.mxu0 %v3085
    %v3087 = vand.u32 %v2227, 4294901760
    %3088 = vmatprep.subr.mxu0 %v3087
    %v3089 = vand.u32 %v2226, 4294901760
    %3090 = vmatpush2.msra.mxu0 %v3089
    %v3091 = vand.u32 %v2225, 4294901760
    %3092 = vmatprep.subr.mxu0 %v3091
    %v3093 = vand.u32 %v2224, 4294901760
    %3094 = vmatpush2.msra.mxu0 %v3093
    %v3095 = vand.u32 %v2223, 4294901760
    %3096 = vmatprep.subr.mxu0 %v3095
    %v3097 = vand.u32 %v2222, 4294901760
    %3098 = vmatpush2.msra.mxu0 %v3097
    %v3099 = vand.u32 %v2221, 4294901760
    %3100 = vmatprep.subr.mxu0 %v3099
    %v3101 = vand.u32 %v2220, 4294901760
    %3102 = vmatpush2.msra.mxu0 %v3101
    %v3103 = vand.u32 %v2219, 4294901760
    %3104 = vmatprep.subr.mxu0 %v3103
    %v3105 = vand.u32 %v2218, 4294901760
    %3106 = vmatpush2.msra.mxu0 %v3105
    %v3107 = vand.u32 %v2217, 4294901760
    %3108 = vmatprep.subr.mxu0 %v3107
    %v3109 = vand.u32 %v2216, 4294901760
    %3110 = vmatpush2.msra.mxu0 %v3109
    %v3111 = vand.u32 %v2215, 4294901760
    %3112 = vmatprep.subr.mxu0 %v3111
    %v3113 = vand.u32 %v2214, 4294901760
    %3114 = vmatpush2.msra.mxu0 %v3113
    %v3115 = vand.u32 %v2181, 4294901760
    %v3116 = vsub.f32 %v2181, %v3115
    %v3117 = vand.u32 %v3116, 4294901760
    %3118 = vmatprep.mubr.f32.mxu0 %v3117
    %v3119 = vand.u32 %v2180, 4294901760
    %v3120 = vsub.f32 %v2180, %v3119
    %v3121 = vand.u32 %v3120, 4294901760
    %3122 = vmatmul.mubr.f32.gmra.mxu0 %v3121
    %v3123 = vpop.f32.mrf.mxu0
    %v3124 = vadd.f32 %v2983, %v3123
    %v3125 = vpop.f32.mrf.mxu0
    %v3126 = vadd.f32 %v2985, %v3125
    %3127 = vdwg.mxu0
    %v3128 = vand.u32 %v2213, 4294901760
    %v3129 = vsub.f32 %v2213, %v3128
    %v3130 = vand.u32 %v3129, 4294901760
    %3131 = vmatprep.subr.mxu0 %v3130
    %v3132 = vand.u32 %v2212, 4294901760
    %v3133 = vsub.f32 %v2212, %v3132
    %v3134 = vand.u32 %v3133, 4294901760
    %3135 = vmatpush1.msra.mxu0 %v3134
    %v3136 = vand.u32 %v2211, 4294901760
    %v3137 = vsub.f32 %v2211, %v3136
    %v3138 = vand.u32 %v3137, 4294901760
    %3139 = vmatprep.subr.mxu0 %v3138
    %v3140 = vand.u32 %v2210, 4294901760
    %v3141 = vsub.f32 %v2210, %v3140
    %v3142 = vand.u32 %v3141, 4294901760
    %3143 = vmatpush1.msra.mxu0 %v3142
    %v3144 = vand.u32 %v2209, 4294901760
    %v3145 = vsub.f32 %v2209, %v3144
    %v3146 = vand.u32 %v3145, 4294901760
    %3147 = vmatprep.subr.mxu0 %v3146
    %v3148 = vand.u32 %v2208, 4294901760
    %v3149 = vsub.f32 %v2208, %v3148
    %v3150 = vand.u32 %v3149, 4294901760
    %3151 = vmatpush1.msra.mxu0 %v3150
    %v3152 = vand.u32 %v2207, 4294901760
    %v3153 = vsub.f32 %v2207, %v3152
    %v3154 = vand.u32 %v3153, 4294901760
    %3155 = vmatprep.subr.mxu0 %v3154
    %v3156 = vand.u32 %v2206, 4294901760
    %v3157 = vsub.f32 %v2206, %v3156
    %v3158 = vand.u32 %v3157, 4294901760
    %3159 = vmatpush1.msra.mxu0 %v3158
    %v3160 = vand.u32 %v2205, 4294901760
    %v3161 = vsub.f32 %v2205, %v3160
    %v3162 = vand.u32 %v3161, 4294901760
    %3163 = vmatprep.subr.mxu0 %v3162
    %v3164 = vand.u32 %v2204, 4294901760
    %v3165 = vsub.f32 %v2204, %v3164
    %v3166 = vand.u32 %v3165, 4294901760
    %3167 = vmatpush1.msra.mxu0 %v3166
    %v3168 = vand.u32 %v2203, 4294901760
    %v3169 = vsub.f32 %v2203, %v3168
    %v3170 = vand.u32 %v3169, 4294901760
    %3171 = vmatprep.subr.mxu0 %v3170
    %v3172 = vand.u32 %v2202, 4294901760
    %v3173 = vsub.f32 %v2202, %v3172
    %v3174 = vand.u32 %v3173, 4294901760
    %3175 = vmatpush1.msra.mxu0 %v3174
    %v3176 = vand.u32 %v2201, 4294901760
    %v3177 = vsub.f32 %v2201, %v3176
    %v3178 = vand.u32 %v3177, 4294901760
    %3179 = vmatprep.subr.mxu0 %v3178
    %v3180 = vand.u32 %v2200, 4294901760
    %v3181 = vsub.f32 %v2200, %v3180
    %v3182 = vand.u32 %v3181, 4294901760
    %3183 = vmatpush1.msra.mxu0 %v3182
    %v3184 = vand.u32 %v2199, 4294901760
    %v3185 = vsub.f32 %v2199, %v3184
    %v3186 = vand.u32 %v3185, 4294901760
    %3187 = vmatprep.subr.mxu0 %v3186
    %v3188 = vand.u32 %v2198, 4294901760
    %v3189 = vsub.f32 %v2198, %v3188
    %v3190 = vand.u32 %v3189, 4294901760
    %3191 = vmatpush1.msra.mxu0 %v3190
    %v3192 = vand.u32 %v2197, 4294901760
    %v3193 = vsub.f32 %v2197, %v3192
    %v3194 = vand.u32 %v3193, 4294901760
    %3195 = vmatprep.subr.mxu0 %v3194
    %v3196 = vand.u32 %v2196, 4294901760
    %v3197 = vsub.f32 %v2196, %v3196
    %v3198 = vand.u32 %v3197, 4294901760
    %3199 = vmatpush1.msra.mxu0 %v3198
    %v3200 = vand.u32 %v2195, 4294901760
    %v3201 = vsub.f32 %v2195, %v3200
    %v3202 = vand.u32 %v3201, 4294901760
    %3203 = vmatprep.subr.mxu0 %v3202
    %v3204 = vand.u32 %v2194, 4294901760
    %v3205 = vsub.f32 %v2194, %v3204
    %v3206 = vand.u32 %v3205, 4294901760
    %3207 = vmatpush1.msra.mxu0 %v3206
    %v3208 = vand.u32 %v2193, 4294901760
    %v3209 = vsub.f32 %v2193, %v3208
    %v3210 = vand.u32 %v3209, 4294901760
    %3211 = vmatprep.subr.mxu0 %v3210
    %v3212 = vand.u32 %v2192, 4294901760
    %v3213 = vsub.f32 %v2192, %v3212
    %v3214 = vand.u32 %v3213, 4294901760
    %3215 = vmatpush1.msra.mxu0 %v3214
    %v3216 = vand.u32 %v2191, 4294901760
    %v3217 = vsub.f32 %v2191, %v3216
    %v3218 = vand.u32 %v3217, 4294901760
    %3219 = vmatprep.subr.mxu0 %v3218
    %v3220 = vand.u32 %v2190, 4294901760
    %v3221 = vsub.f32 %v2190, %v3220
    %v3222 = vand.u32 %v3221, 4294901760
    %3223 = vmatpush1.msra.mxu0 %v3222
    %v3224 = vand.u32 %v2189, 4294901760
    %v3225 = vsub.f32 %v2189, %v3224
    %v3226 = vand.u32 %v3225, 4294901760
    %3227 = vmatprep.subr.mxu0 %v3226
    %v3228 = vand.u32 %v2188, 4294901760
    %v3229 = vsub.f32 %v2188, %v3228
    %v3230 = vand.u32 %v3229, 4294901760
    %3231 = vmatpush1.msra.mxu0 %v3230
    %v3232 = vand.u32 %v2187, 4294901760
    %v3233 = vsub.f32 %v2187, %v3232
    %v3234 = vand.u32 %v3233, 4294901760
    %3235 = vmatprep.subr.mxu0 %v3234
    %v3236 = vand.u32 %v2186, 4294901760
    %v3237 = vsub.f32 %v2186, %v3236
    %v3238 = vand.u32 %v3237, 4294901760
    %3239 = vmatpush1.msra.mxu0 %v3238
    %v3240 = vand.u32 %v2185, 4294901760
    %v3241 = vsub.f32 %v2185, %v3240
    %v3242 = vand.u32 %v3241, 4294901760
    %3243 = vmatprep.subr.mxu0 %v3242
    %v3244 = vand.u32 %v2184, 4294901760
    %v3245 = vsub.f32 %v2184, %v3244
    %v3246 = vand.u32 %v3245, 4294901760
    %3247 = vmatpush1.msra.mxu0 %v3246
    %v3248 = vand.u32 %v2183, 4294901760
    %v3249 = vsub.f32 %v2183, %v3248
    %v3250 = vand.u32 %v3249, 4294901760
    %3251 = vmatprep.subr.mxu0 %v3250
    %v3252 = vand.u32 %v2182, 4294901760
    %v3253 = vsub.f32 %v2182, %v3252
    %v3254 = vand.u32 %v3253, 4294901760
    %3255 = vmatpush1.msra.mxu0 %v3254
    %v3256 = vand.u32 %v2245, 4294901760
    %v3257 = vsub.f32 %v2245, %v3256
    %v3258 = vand.u32 %v3257, 4294901760
    %3259 = vmatprep.subr.mxu0 %v3258
    %v3260 = vand.u32 %v2244, 4294901760
    %v3261 = vsub.f32 %v2244, %v3260
    %v3262 = vand.u32 %v3261, 4294901760
    %3263 = vmatpush2.msra.mxu0 %v3262
    %v3264 = vand.u32 %v2243, 4294901760
    %v3265 = vsub.f32 %v2243, %v3264
    %v3266 = vand.u32 %v3265, 4294901760
    %3267 = vmatprep.subr.mxu0 %v3266
    %v3268 = vand.u32 %v2242, 4294901760
    %v3269 = vsub.f32 %v2242, %v3268
    %v3270 = vand.u32 %v3269, 4294901760
    %3271 = vmatpush2.msra.mxu0 %v3270
    %v3272 = vand.u32 %v2241, 4294901760
    %v3273 = vsub.f32 %v2241, %v3272
    %v3274 = vand.u32 %v3273, 4294901760
    %3275 = vmatprep.subr.mxu0 %v3274
    %v3276 = vand.u32 %v2240, 4294901760
    %v3277 = vsub.f32 %v2240, %v3276
    %v3278 = vand.u32 %v3277, 4294901760
    %3279 = vmatpush2.msra.mxu0 %v3278
    %v3280 = vand.u32 %v2239, 4294901760
    %v3281 = vsub.f32 %v2239, %v3280
    %v3282 = vand.u32 %v3281, 4294901760
    %3283 = vmatprep.subr.mxu0 %v3282
    %v3284 = vand.u32 %v2238, 4294901760
    %v3285 = vsub.f32 %v2238, %v3284
    %v3286 = vand.u32 %v3285, 4294901760
    %3287 = vmatpush2.msra.mxu0 %v3286
    %v3288 = vand.u32 %v2237, 4294901760
    %v3289 = vsub.f32 %v2237, %v3288
    %v3290 = vand.u32 %v3289, 4294901760
    %3291 = vmatprep.subr.mxu0 %v3290
    %v3292 = vand.u32 %v2236, 4294901760
    %v3293 = vsub.f32 %v2236, %v3292
    %v3294 = vand.u32 %v3293, 4294901760
    %3295 = vmatpush2.msra.mxu0 %v3294
    %v3296 = vand.u32 %v2235, 4294901760
    %v3297 = vsub.f32 %v2235, %v3296
    %v3298 = vand.u32 %v3297, 4294901760
    %3299 = vmatprep.subr.mxu0 %v3298
    %v3300 = vand.u32 %v2234, 4294901760
    %v3301 = vsub.f32 %v2234, %v3300
    %v3302 = vand.u32 %v3301, 4294901760
    %3303 = vmatpush2.msra.mxu0 %v3302
    %v3304 = vand.u32 %v2233, 4294901760
    %v3305 = vsub.f32 %v2233, %v3304
    %v3306 = vand.u32 %v3305, 4294901760
    %3307 = vmatprep.subr.mxu0 %v3306
    %v3308 = vand.u32 %v2232, 4294901760
    %v3309 = vsub.f32 %v2232, %v3308
    %v3310 = vand.u32 %v3309, 4294901760
    %3311 = vmatpush2.msra.mxu0 %v3310
    %v3312 = vand.u32 %v2231, 4294901760
    %v3313 = vsub.f32 %v2231, %v3312
    %v3314 = vand.u32 %v3313, 4294901760
    %3315 = vmatprep.subr.mxu0 %v3314
    %v3316 = vand.u32 %v2230, 4294901760
    %v3317 = vsub.f32 %v2230, %v3316
    %v3318 = vand.u32 %v3317, 4294901760
    %3319 = vmatpush2.msra.mxu0 %v3318
    %v3320 = vand.u32 %v2229, 4294901760
    %v3321 = vsub.f32 %v2229, %v3320
    %v3322 = vand.u32 %v3321, 4294901760
    %3323 = vmatprep.subr.mxu0 %v3322
    %v3324 = vand.u32 %v2228, 4294901760
    %v3325 = vsub.f32 %v2228, %v3324
    %v3326 = vand.u32 %v3325, 4294901760
    %3327 = vmatpush2.msra.mxu0 %v3326
    %v3328 = vand.u32 %v2227, 4294901760
    %v3329 = vsub.f32 %v2227, %v3328
    %v3330 = vand.u32 %v3329, 4294901760
    %3331 = vmatprep.subr.mxu0 %v3330
    %v3332 = vand.u32 %v2226, 4294901760
    %v3333 = vsub.f32 %v2226, %v3332
    %v3334 = vand.u32 %v3333, 4294901760
    %3335 = vmatpush2.msra.mxu0 %v3334
    %v3336 = vand.u32 %v2225, 4294901760
    %v3337 = vsub.f32 %v2225, %v3336
    %v3338 = vand.u32 %v3337, 4294901760
    %3339 = vmatprep.subr.mxu0 %v3338
    %v3340 = vand.u32 %v2224, 4294901760
    %v3341 = vsub.f32 %v2224, %v3340
    %v3342 = vand.u32 %v3341, 4294901760
    %3343 = vmatpush2.msra.mxu0 %v3342
    %v3344 = vand.u32 %v2223, 4294901760
    %v3345 = vsub.f32 %v2223, %v3344
    %v3346 = vand.u32 %v3345, 4294901760
    %3347 = vmatprep.subr.mxu0 %v3346
    %v3348 = vand.u32 %v2222, 4294901760
    %v3349 = vsub.f32 %v2222, %v3348
    %v3350 = vand.u32 %v3349, 4294901760
    %3351 = vmatpush2.msra.mxu0 %v3350
    %v3352 = vand.u32 %v2221, 4294901760
    %v3353 = vsub.f32 %v2221, %v3352
    %v3354 = vand.u32 %v3353, 4294901760
    %3355 = vmatprep.subr.mxu0 %v3354
    %v3356 = vand.u32 %v2220, 4294901760
    %v3357 = vsub.f32 %v2220, %v3356
    %v3358 = vand.u32 %v3357, 4294901760
    %3359 = vmatpush2.msra.mxu0 %v3358
    %v3360 = vand.u32 %v2219, 4294901760
    %v3361 = vsub.f32 %v2219, %v3360
    %v3362 = vand.u32 %v3361, 4294901760
    %3363 = vmatprep.subr.mxu0 %v3362
    %v3364 = vand.u32 %v2218, 4294901760
    %v3365 = vsub.f32 %v2218, %v3364
    %v3366 = vand.u32 %v3365, 4294901760
    %3367 = vmatpush2.msra.mxu0 %v3366
    %v3368 = vand.u32 %v2217, 4294901760
    %v3369 = vsub.f32 %v2217, %v3368
    %v3370 = vand.u32 %v3369, 4294901760
    %3371 = vmatprep.subr.mxu0 %v3370
    %v3372 = vand.u32 %v2216, 4294901760
    %v3373 = vsub.f32 %v2216, %v3372
    %v3374 = vand.u32 %v3373, 4294901760
    %3375 = vmatpush2.msra.mxu0 %v3374
    %v3376 = vand.u32 %v2215, 4294901760
    %v3377 = vsub.f32 %v2215, %v3376
    %v3378 = vand.u32 %v3377, 4294901760
    %3379 = vmatprep.subr.mxu0 %v3378
    %v3380 = vand.u32 %v2214, 4294901760
    %v3381 = vsub.f32 %v2214, %v3380
    %v3382 = vand.u32 %v3381, 4294901760
    %3383 = vmatpush2.msra.mxu0 %v3382
    %v3384 = vand.u32 %v2181, 4294901760
    %3385 = vmatprep.mubr.f32.mxu0 %v3384
    %v3386 = vand.u32 %v2180, 4294901760
    %3387 = vmatmul.mubr.f32.gmra.mxu0 %v3386
    %v3388 = vpop.f32.mrf.mxu0
    %v3389 = vadd.f32 %v3124, %v3388
    %v3390 = vpop.f32.mrf.mxu0
    %v3391 = vadd.f32 %v3126, %v3390
    %3392 = vdwg.mxu0
    %v3393 = vand.u32 %v2213, 4294901760
    %3394 = vmatprep.subr.mxu0 %v3393
    %v3395 = vand.u32 %v2212, 4294901760
    %3396 = vmatpush1.msra.mxu0 %v3395
    %v3397 = vand.u32 %v2211, 4294901760
    %3398 = vmatprep.subr.mxu0 %v3397
    %v3399 = vand.u32 %v2210, 4294901760
    %3400 = vmatpush1.msra.mxu0 %v3399
    %v3401 = vand.u32 %v2209, 4294901760
    %3402 = vmatprep.subr.mxu0 %v3401
    %v3403 = vand.u32 %v2208, 4294901760
    %3404 = vmatpush1.msra.mxu0 %v3403
    %v3405 = vand.u32 %v2207, 4294901760
    %3406 = vmatprep.subr.mxu0 %v3405
    %v3407 = vand.u32 %v2206, 4294901760
    %3408 = vmatpush1.msra.mxu0 %v3407
    %v3409 = vand.u32 %v2205, 4294901760
    %3410 = vmatprep.subr.mxu0 %v3409
    %v3411 = vand.u32 %v2204, 4294901760
    %3412 = vmatpush1.msra.mxu0 %v3411
    %v3413 = vand.u32 %v2203, 4294901760
    %3414 = vmatprep.subr.mxu0 %v3413
    %v3415 = vand.u32 %v2202, 4294901760
    %3416 = vmatpush1.msra.mxu0 %v3415
    %v3417 = vand.u32 %v2201, 4294901760
    %3418 = vmatprep.subr.mxu0 %v3417
    %v3419 = vand.u32 %v2200, 4294901760
    %3420 = vmatpush1.msra.mxu0 %v3419
    %v3421 = vand.u32 %v2199, 4294901760
    %3422 = vmatprep.subr.mxu0 %v3421
    %v3423 = vand.u32 %v2198, 4294901760
    %3424 = vmatpush1.msra.mxu0 %v3423
    %v3425 = vand.u32 %v2197, 4294901760
    %3426 = vmatprep.subr.mxu0 %v3425
    %v3427 = vand.u32 %v2196, 4294901760
    %3428 = vmatpush1.msra.mxu0 %v3427
    %v3429 = vand.u32 %v2195, 4294901760
    %3430 = vmatprep.subr.mxu0 %v3429
    %v3431 = vand.u32 %v2194, 4294901760
    %3432 = vmatpush1.msra.mxu0 %v3431
    %v3433 = vand.u32 %v2193, 4294901760
    %3434 = vmatprep.subr.mxu0 %v3433
    %v3435 = vand.u32 %v2192, 4294901760
    %3436 = vmatpush1.msra.mxu0 %v3435
    %v3437 = vand.u32 %v2191, 4294901760
    %3438 = vmatprep.subr.mxu0 %v3437
    %v3439 = vand.u32 %v2190, 4294901760
    %3440 = vmatpush1.msra.mxu0 %v3439
    %v3441 = vand.u32 %v2189, 4294901760
    %3442 = vmatprep.subr.mxu0 %v3441
    %v3443 = vand.u32 %v2188, 4294901760
    %3444 = vmatpush1.msra.mxu0 %v3443
    %v3445 = vand.u32 %v2187, 4294901760
    %3446 = vmatprep.subr.mxu0 %v3445
    %v3447 = vand.u32 %v2186, 4294901760
    %3448 = vmatpush1.msra.mxu0 %v3447
    %v3449 = vand.u32 %v2185, 4294901760
    %3450 = vmatprep.subr.mxu0 %v3449
    %v3451 = vand.u32 %v2184, 4294901760
    %3452 = vmatpush1.msra.mxu0 %v3451
    %v3453 = vand.u32 %v2183, 4294901760
    %3454 = vmatprep.subr.mxu0 %v3453
    %v3455 = vand.u32 %v2182, 4294901760
    %3456 = vmatpush1.msra.mxu0 %v3455
    %v3457 = vand.u32 %v2245, 4294901760
    %3458 = vmatprep.subr.mxu0 %v3457
    %v3459 = vand.u32 %v2244, 4294901760
    %3460 = vmatpush2.msra.mxu0 %v3459
    %v3461 = vand.u32 %v2243, 4294901760
    %3462 = vmatprep.subr.mxu0 %v3461
    %v3463 = vand.u32 %v2242, 4294901760
    %3464 = vmatpush2.msra.mxu0 %v3463
    %v3465 = vand.u32 %v2241, 4294901760
    %3466 = vmatprep.subr.mxu0 %v3465
    %v3467 = vand.u32 %v2240, 4294901760
    %3468 = vmatpush2.msra.mxu0 %v3467
    %v3469 = vand.u32 %v2239, 4294901760
    %3470 = vmatprep.subr.mxu0 %v3469
    %v3471 = vand.u32 %v2238, 4294901760
    %3472 = vmatpush2.msra.mxu0 %v3471
    %v3473 = vand.u32 %v2237, 4294901760
    %3474 = vmatprep.subr.mxu0 %v3473
    %v3475 = vand.u32 %v2236, 4294901760
    %3476 = vmatpush2.msra.mxu0 %v3475
    %v3477 = vand.u32 %v2235, 4294901760
    %3478 = vmatprep.subr.mxu0 %v3477
    %v3479 = vand.u32 %v2234, 4294901760
    %3480 = vmatpush2.msra.mxu0 %v3479
    %v3481 = vand.u32 %v2233, 4294901760
    %3482 = vmatprep.subr.mxu0 %v3481
    %v3483 = vand.u32 %v2232, 4294901760
    %3484 = vmatpush2.msra.mxu0 %v3483
    %v3485 = vand.u32 %v2231, 4294901760
    %3486 = vmatprep.subr.mxu0 %v3485
    %v3487 = vand.u32 %v2230, 4294901760
    %3488 = vmatpush2.msra.mxu0 %v3487
    %v3489 = vand.u32 %v2229, 4294901760
    %3490 = vmatprep.subr.mxu0 %v3489
    %v3491 = vand.u32 %v2228, 4294901760
    %3492 = vmatpush2.msra.mxu0 %v3491
    %v3493 = vand.u32 %v2227, 4294901760
    %3494 = vmatprep.subr.mxu0 %v3493
    %v3495 = vand.u32 %v2226, 4294901760
    %3496 = vmatpush2.msra.mxu0 %v3495
    %v3497 = vand.u32 %v2225, 4294901760
    %3498 = vmatprep.subr.mxu0 %v3497
    %v3499 = vand.u32 %v2224, 4294901760
    %3500 = vmatpush2.msra.mxu0 %v3499
    %v3501 = vand.u32 %v2223, 4294901760
    %3502 = vmatprep.subr.mxu0 %v3501
    %v3503 = vand.u32 %v2222, 4294901760
    %3504 = vmatpush2.msra.mxu0 %v3503
    %v3505 = vand.u32 %v2221, 4294901760
    %3506 = vmatprep.subr.mxu0 %v3505
    %v3507 = vand.u32 %v2220, 4294901760
    %3508 = vmatpush2.msra.mxu0 %v3507
    %v3509 = vand.u32 %v2219, 4294901760
    %3510 = vmatprep.subr.mxu0 %v3509
    %v3511 = vand.u32 %v2218, 4294901760
    %3512 = vmatpush2.msra.mxu0 %v3511
    %v3513 = vand.u32 %v2217, 4294901760
    %3514 = vmatprep.subr.mxu0 %v3513
    %v3515 = vand.u32 %v2216, 4294901760
    %3516 = vmatpush2.msra.mxu0 %v3515
    %v3517 = vand.u32 %v2215, 4294901760
    %3518 = vmatprep.subr.mxu0 %v3517
    %v3519 = vand.u32 %v2214, 4294901760
    %3520 = vmatpush2.msra.mxu0 %v3519
    %v3521 = vand.u32 %v2181, 4294901760
    %3522 = vmatprep.mubr.f32.mxu0 %v3521
    %v3523 = vand.u32 %v2180, 4294901760
    %3524 = vmatmul.mubr.f32.gmra.mxu0 %v3523
    %v3525 = vpop.f32.mrf.mxu0
    %v3526 = vadd.f32 %v3389, %v3525
    %v3527 = vpop.f32.mrf.mxu0
    %v3528 = vadd.f32 %v3391, %v3527
    %3529 = vdwg.mxu0
    %v3530 = vmul.f32 %v3526, %v3526
    %v3531 = vmul.f32 %v3528, %v3528
    %v3534 = vrot.slane %v3530, 7
    %v3535 = vrot.slane %v3531, 7
    %v3538 = vsub.f32 %v3526, %v3534
    %v3539 = vsub.f32 %v3528, %v3535
    %v3540 = vadd.f32 %v3538, 1e-05
    %v3541 = vadd.f32 %v3539, 1e-05
    %v3542 = vrsqrt.pop %v3540
    %v3543 = vrsqrt.pop %v3541
    %v3544 = vlaneseq
    %v3545 = vshrl.u32 %v3544, 7
    %v3546 = vsub.s32 1, %v3545
    %v3547 = vrot.slane %v1859, %v3546
    %v3548 = vlaneseq
    %v3549 = vshrl.u32 %v3548, 7
    %v3550 = vsub.s32 5, %v3549
    %v3551 = vrot.slane %v1859, %v3550
    %v3554 = vmul.f32 %v3542, %v3547
    %v3555 = vmul.f32 %v3543, %v3551
    %v3558 = vrot.slane %v3554, 1
    %v3559 = vrot.slane %v3555, 1
    %v3562 = vmul.f32 %v3526, %v3558
    %v3563 = vmul.f32 %v3528, %v3559
    %v3566 = vcombine.low %v3562, %v3563
    %v3567 = vrot.slane %v3566, 6
    %v3569 = vsub.f32 %v1859, %v3567
    %v3570 = vlaneseq
    %v3571 = vshrl.u32 %v3570, 7
    %v3572 = vsub.s32 1, %v3571
    %v3573 = vrot.slane %v3554, %v3572
    %v3574 = vlaneseq
    %v3575 = vshrl.u32 %v3574, 7
    %v3576 = vsub.s32 1, %v3575
    %v3577 = vrot.slane %v3555, %v3576
    %v3578 = vmul.f32 %v2074, %v3573
    %v3579 = vmul.f32 %v2076, %v3577
    %v3580 = vmul.f32 %v2078, %v3573
    %v3581 = vmul.f32 %v2080, %v3577
    %v3582 = vmul.f32 %v2084, %v3573
    %v3583 = vmul.f32 %v2086, %v3577
    %v3584 = vmul.f32 %v2088, %v3573
    %v3585 = vmul.f32 %v2090, %v3577
    %v3586 = vmul.f32 %v2094, %v3573
    %v3587 = vmul.f32 %v2096, %v3577
    %v3588 = vmul.f32 %v2098, %v3573
    %v3589 = vmul.f32 %v2100, %v3577
    %v3590 = vmul.f32 %v2104, %v3573
    %v3591 = vmul.f32 %v2106, %v3577
    %v3592 = vmul.f32 %v2108, %v3573
    %v3593 = vmul.f32 %v2110, %v3577
    %v3595 = vlaneseq
    %v3596 = vshrl.u32 %v3595, 7
    %v3597 = vsub.s32 2, %v3596
    %v3598 = vrot.slane %v3569, %v3597
    %v3599 = vlaneseq
    %v3600 = vshrl.u32 %v3599, 7
    %v3601 = vsub.s32 6, %v3600
    %v3602 = vrot.slane %v3569, %v3601
    %v3605 = vlaneseq
    %v3606 = vshrl.u32 %v3605, 7
    %v3607 = vsub.s32 2, %v3606
    %v3608 = vrot.slane %v3598, %v3607
    %v3609 = vlaneseq
    %v3610 = vshrl.u32 %v3609, 7
    %v3611 = vsub.s32 2, %v3610
    %v3612 = vrot.slane %v3602, %v3611
    %v3613 = vadd.f32 %v3578, %v3608
    %v3614 = vadd.f32 %v3579, %v3612
    %v3615 = vadd.f32 %v3580, %v3608
    %v3616 = vadd.f32 %v3581, %v3612
    %v3617 = vadd.f32 %v3582, %v3608
    %v3618 = vadd.f32 %v3583, %v3612
    %v3619 = vadd.f32 %v3584, %v3608
    %v3620 = vadd.f32 %v3585, %v3612
    %v3621 = vadd.f32 %v3586, %v3608
    %v3622 = vadd.f32 %v3587, %v3612
    %v3623 = vadd.f32 %v3588, %v3608
    %v3624 = vadd.f32 %v3589, %v3612
    %v3625 = vadd.f32 %v3590, %v3608
    %v3626 = vadd.f32 %v3591, %v3612
    %v3627 = vadd.f32 %v3592, %v3608
    %v3628 = vadd.f32 %v3593, %v3612
    %v3629 = vmul.f32 %v3613, 0.01
    %v3630 = vmul.f32 %v3614, 0.01
    %v3631 = vmul.f32 %v3615, 0.01
    %v3632 = vmul.f32 %v3616, 0.01
    %v3633 = vmul.f32 %v3617, 0.01
    %v3634 = vmul.f32 %v3618, 0.01
    %v3635 = vmul.f32 %v3619, 0.01
    %v3636 = vmul.f32 %v3620, 0.01
    %v3637 = vmul.f32 %v3621, 0.01
    %v3638 = vmul.f32 %v3622, 0.01
    %v3639 = vmul.f32 %v3623, 0.01
    %v3640 = vmul.f32 %v3624, 0.01
    %v3641 = vmul.f32 %v3625, 0.01
    %v3642 = vmul.f32 %v3626, 0.01
    %v3643 = vmul.f32 %v3627, 0.01
    %v3644 = vmul.f32 %v3628, 0.01
    %v3645 = vmax.f32 %v3613, %v3629
    %v3646 = vmax.f32 %v3614, %v3630
    %v3647 = vmax.f32 %v3615, %v3631
    %v3648 = vmax.f32 %v3616, %v3632
    %v3649 = vmax.f32 %v3617, %v3633
    %v3650 = vmax.f32 %v3618, %v3634
    %v3651 = vmax.f32 %v3619, %v3635
    %v3652 = vmax.f32 %v3620, %v3636
    %v3653 = vmax.f32 %v3621, %v3637
    %v3654 = vmax.f32 %v3622, %v3638
    %v3655 = vmax.f32 %v3623, %v3639
    %v3656 = vmax.f32 %v3624, %v3640
    %v3657 = vmax.f32 %v3625, %v3641
    %v3658 = vmax.f32 %v3626, %v3642
    %v3659 = vmax.f32 %v3627, %v3643
    %v3660 = vmax.f32 %v3628, %v3644
    %v3661 = vpack.c.bf16 %v3647, %v3645
    %v3662 = vpack.c.bf16 %v3648, %v3646
    %v3663 = vpack.c.bf16 %v3651, %v3649
    %v3664 = vpack.c.bf16 %v3652, %v3650
    %v3665 = vpack.c.bf16 %v3655, %v3653
    %v3666 = vpack.c.bf16 %v3656, %v3654
    %v3667 = vpack.c.bf16 %v3659, %v3657
    %v3668 = vpack.c.bf16 %v3660, %v3658
    %v3669 = vld [vmem:[#allocation8] sm:$0xff]
    %v3670 = vld [vmem:[#allocation8 + $0x8] sm:$0xff]
    %v3671 = vld [vmem:[#allocation8 + $0x10] sm:$0xff]
    %v3672 = vld [vmem:[#allocation8 + $0x18] sm:$0xff]
    %v3673 = vld [vmem:[#allocation8 + $0x20] sm:$0xff]
    %v3674 = vld [vmem:[#allocation8 + $0x28] sm:$0xff]
    %v3675 = vld [vmem:[#allocation8 + $0x30] sm:$0xff]
    %v3676 = vld [vmem:[#allocation8 + $0x38] sm:$0xff]
    %v3677 = vld [vmem:[#allocation8 + $0x40] sm:$0xff]
    %v3678 = vld [vmem:[#allocation8 + $0x48] sm:$0xff]
    %v3679 = vld [vmem:[#allocation8 + $0x50] sm:$0xff]
    %v3680 = vld [vmem:[#allocation8 + $0x58] sm:$0xff]
    %v3681 = vld [vmem:[#allocation8 + $0x60] sm:$0xff]
    %v3682 = vld [vmem:[#allocation8 + $0x68] sm:$0xff]
    %v3683 = vld [vmem:[#allocation8 + $0x70] sm:$0xff]
    %v3684 = vld [vmem:[#allocation8 + $0x78] sm:$0xff]
    %v3685 = vld [vmem:[#allocation8 + $0x80] sm:$0xff]
    %v3686 = vld [vmem:[#allocation8 + $0x88] sm:$0xff]
    %v3687 = vld [vmem:[#allocation8 + $0x90] sm:$0xff]
    %v3688 = vld [vmem:[#allocation8 + $0x98] sm:$0xff]
    %v3689 = vld [vmem:[#allocation8 + $0xa0] sm:$0xff]
    %v3690 = vld [vmem:[#allocation8 + $0xa8] sm:$0xff]
    %v3691 = vld [vmem:[#allocation8 + $0xb0] sm:$0xff]
    %v3692 = vld [vmem:[#allocation8 + $0xb8] sm:$0xff]
    %v3693 = vld [vmem:[#allocation8 + $0xc0] sm:$0xff]
    %v3694 = vld [vmem:[#allocation8 + $0xc8] sm:$0xff]
    %v3695 = vld [vmem:[#allocation8 + $0xd0] sm:$0xff]
    %v3696 = vld [vmem:[#allocation8 + $0xd8] sm:$0xff]
    %v3697 = vld [vmem:[#allocation8 + $0xe0] sm:$0xff]
    %v3698 = vld [vmem:[#allocation8 + $0xe8] sm:$0xff]
    %v3699 = vld [vmem:[#allocation8 + $0xf0] sm:$0xff]
    %v3700 = vld [vmem:[#allocation8 + $0xf8] sm:$0xff]
    %v3701 = vld [vmem:[#allocation8 + $0x100] sm:$0xff]
    %v3702 = vld [vmem:[#allocation8 + $0x108] sm:$0xff]
    %v3703 = vld [vmem:[#allocation8 + $0x110] sm:$0xff]
    %v3704 = vld [vmem:[#allocation8 + $0x118] sm:$0xff]
    %v3705 = vld [vmem:[#allocation8 + $0x120] sm:$0xff]
    %v3706 = vld [vmem:[#allocation8 + $0x128] sm:$0xff]
    %v3707 = vld [vmem:[#allocation8 + $0x130] sm:$0xff]
    %v3708 = vld [vmem:[#allocation8 + $0x138] sm:$0xff]
    %v3709 = vld [vmem:[#allocation8 + $0x140] sm:$0xff]
    %v3710 = vld [vmem:[#allocation8 + $0x148] sm:$0xff]
    %v3711 = vld [vmem:[#allocation8 + $0x150] sm:$0xff]
    %v3712 = vld [vmem:[#allocation8 + $0x158] sm:$0xff]
    %v3713 = vld [vmem:[#allocation8 + $0x160] sm:$0xff]
    %v3714 = vld [vmem:[#allocation8 + $0x168] sm:$0xff]
    %v3715 = vld [vmem:[#allocation8 + $0x170] sm:$0xff]
    %v3716 = vld [vmem:[#allocation8 + $0x178] sm:$0xff]
    %v3717 = vld [vmem:[#allocation8 + $0x180] sm:$0xff]
    %v3718 = vld [vmem:[#allocation8 + $0x188] sm:$0xff]
    %v3719 = vld [vmem:[#allocation8 + $0x190] sm:$0xff]
    %v3720 = vld [vmem:[#allocation8 + $0x198] sm:$0xff]
    %v3721 = vld [vmem:[#allocation8 + $0x1a0] sm:$0xff]
    %v3722 = vld [vmem:[#allocation8 + $0x1a8] sm:$0xff]
    %v3723 = vld [vmem:[#allocation8 + $0x1b0] sm:$0xff]
    %v3724 = vld [vmem:[#allocation8 + $0x1b8] sm:$0xff]
    %v3725 = vld [vmem:[#allocation8 + $0x1c0] sm:$0xff]
    %v3726 = vld [vmem:[#allocation8 + $0x1c8] sm:$0xff]
    %v3727 = vld [vmem:[#allocation8 + $0x1d0] sm:$0xff]
    %v3728 = vld [vmem:[#allocation8 + $0x1d8] sm:$0xff]
    %v3729 = vld [vmem:[#allocation8 + $0x1e0] sm:$0xff]
    %v3730 = vld [vmem:[#allocation8 + $0x1e8] sm:$0xff]
    %v3731 = vld [vmem:[#allocation8 + $0x1f0] sm:$0xff]
    %v3732 = vld [vmem:[#allocation8 + $0x1f8] sm:$0xff]
    %v3733 = vld [vmem:[%s8] sm:$0x77]
    %v3734 = vld [vmem:[%s8 + $0x8] sm:$0x77]
    %v3737 = vlaneseq
    %v3738 = vshrl.u32 %v3737, 7
    %v3739 = vsub.s32 0, %v3738
    %v3740 = vrot.slane %v3733, %v3739
    %v3741 = vlaneseq
    %v3742 = vshrl.u32 %v3741, 7
    %v3743 = vsub.s32 4, %v3742
    %v3744 = vrot.slane %v3733, %v3743
    %v3745 = vlaneseq
    %v3746 = vshrl.u32 %v3745, 7
    %v3747 = vsub.s32 0, %v3746
    %v3748 = vrot.slane %v3734, %v3747
    %v3749 = vlaneseq
    %v3750 = vshrl.u32 %v3749, 7
    %v3751 = vsub.s32 4, %v3750
    %v3752 = vrot.slane %v3734, %v3751
    %v3757 = vlaneseq
    %v3758 = vshrl.u32 %v3757, 7
    %v3759 = vsub.s32 0, %v3758
    %v3760 = vrot.slane %v3740, %v3759
    %v3761 = vlaneseq
    %v3762 = vshrl.u32 %v3761, 7
    %v3763 = vsub.s32 0, %v3762
    %v3764 = vrot.slane %v3744, %v3763
    %v3765 = vlaneseq
    %v3766 = vshrl.u32 %v3765, 7
    %v3767 = vsub.s32 0, %v3766
    %v3768 = vrot.slane %v3748, %v3767
    %v3769 = vlaneseq
    %v3770 = vshrl.u32 %v3769, 7
    %v3771 = vsub.s32 0, %v3770
    %v3772 = vrot.slane %v3752, %v3771
    %v3837 = vunpack.c.l.b16 %v3669
    %v3838 = vunpack.c.h.b16 %v3669
    %v3839 = vunpack.c.l.b16 %v3670
    %v3840 = vunpack.c.h.b16 %v3670
    %v3841 = vunpack.c.l.b16 %v3671
    %v3842 = vunpack.c.h.b16 %v3671
    %v3843 = vunpack.c.l.b16 %v3672
    %v3844 = vunpack.c.h.b16 %v3672
    %v3845 = vunpack.c.l.b16 %v3673
    %v3846 = vunpack.c.h.b16 %v3673
    %v3847 = vunpack.c.l.b16 %v3674
    %v3848 = vunpack.c.h.b16 %v3674
    %v3849 = vunpack.c.l.b16 %v3675
    %v3850 = vunpack.c.h.b16 %v3675
    %v3851 = vunpack.c.l.b16 %v3676
    %v3852 = vunpack.c.h.b16 %v3676
    %v3853 = vunpack.c.l.b16 %v3677
    %v3854 = vunpack.c.h.b16 %v3677
    %v3855 = vunpack.c.l.b16 %v3678
    %v3856 = vunpack.c.h.b16 %v3678
    %v3857 = vunpack.c.l.b16 %v3679
    %v3858 = vunpack.c.h.b16 %v3679
    %v3859 = vunpack.c.l.b16 %v3680
    %v3860 = vunpack.c.h.b16 %v3680
    %v3861 = vunpack.c.l.b16 %v3681
    %v3862 = vunpack.c.h.b16 %v3681
    %v3863 = vunpack.c.l.b16 %v3682
    %v3864 = vunpack.c.h.b16 %v3682
    %v3865 = vunpack.c.l.b16 %v3683
    %v3866 = vunpack.c.h.b16 %v3683
    %v3867 = vunpack.c.l.b16 %v3684
    %v3868 = vunpack.c.h.b16 %v3684
    %v3869 = vunpack.c.l.b16 %v3685
    %v3870 = vunpack.c.h.b16 %v3685
    %v3871 = vunpack.c.l.b16 %v3686
    %v3872 = vunpack.c.h.b16 %v3686
    %v3873 = vunpack.c.l.b16 %v3687
    %v3874 = vunpack.c.h.b16 %v3687
    %v3875 = vunpack.c.l.b16 %v3688
    %v3876 = vunpack.c.h.b16 %v3688
    %v3877 = vunpack.c.l.b16 %v3689
    %v3878 = vunpack.c.h.b16 %v3689
    %v3879 = vunpack.c.l.b16 %v3690
    %v3880 = vunpack.c.h.b16 %v3690
    %v3881 = vunpack.c.l.b16 %v3691
    %v3882 = vunpack.c.h.b16 %v3691
    %v3883 = vunpack.c.l.b16 %v3692
    %v3884 = vunpack.c.h.b16 %v3692
    %v3885 = vunpack.c.l.b16 %v3693
    %v3886 = vunpack.c.h.b16 %v3693
    %v3887 = vunpack.c.l.b16 %v3694
    %v3888 = vunpack.c.h.b16 %v3694
    %v3889 = vunpack.c.l.b16 %v3695
    %v3890 = vunpack.c.h.b16 %v3695
    %v3891 = vunpack.c.l.b16 %v3696
    %v3892 = vunpack.c.h.b16 %v3696
    %v3893 = vunpack.c.l.b16 %v3697
    %v3894 = vunpack.c.h.b16 %v3697
    %v3895 = vunpack.c.l.b16 %v3698
    %v3896 = vunpack.c.h.b16 %v3698
    %v3897 = vunpack.c.l.b16 %v3699
    %v3898 = vunpack.c.h.b16 %v3699
    %v3899 = vunpack.c.l.b16 %v3700
    %v3900 = vunpack.c.h.b16 %v3700
    %v3901 = vunpack.c.l.b16 %v3701
    %v3902 = vunpack.c.h.b16 %v3701
    %v3903 = vunpack.c.l.b16 %v3702
    %v3904 = vunpack.c.h.b16 %v3702
    %v3905 = vunpack.c.l.b16 %v3703
    %v3906 = vunpack.c.h.b16 %v3703
    %v3907 = vunpack.c.l.b16 %v3704
    %v3908 = vunpack.c.h.b16 %v3704
    %v3909 = vunpack.c.l.b16 %v3705
    %v3910 = vunpack.c.h.b16 %v3705
    %v3911 = vunpack.c.l.b16 %v3706
    %v3912 = vunpack.c.h.b16 %v3706
    %v3913 = vunpack.c.l.b16 %v3707
    %v3914 = vunpack.c.h.b16 %v3707
    %v3915 = vunpack.c.l.b16 %v3708
    %v3916 = vunpack.c.h.b16 %v3708
    %v3917 = vunpack.c.l.b16 %v3709
    %v3918 = vunpack.c.h.b16 %v3709
    %v3919 = vunpack.c.l.b16 %v3710
    %v3920 = vunpack.c.h.b16 %v3710
    %v3921 = vunpack.c.l.b16 %v3711
    %v3922 = vunpack.c.h.b16 %v3711
    %v3923 = vunpack.c.l.b16 %v3712
    %v3924 = vunpack.c.h.b16 %v3712
    %v3925 = vunpack.c.l.b16 %v3713
    %v3926 = vunpack.c.h.b16 %v3713
    %v3927 = vunpack.c.l.b16 %v3714
    %v3928 = vunpack.c.h.b16 %v3714
    %v3929 = vunpack.c.l.b16 %v3715
    %v3930 = vunpack.c.h.b16 %v3715
    %v3931 = vunpack.c.l.b16 %v3716
    %v3932 = vunpack.c.h.b16 %v3716
    %v3933 = vunpack.c.l.b16 %v3717
    %v3934 = vunpack.c.h.b16 %v3717
    %v3935 = vunpack.c.l.b16 %v3718
    %v3936 = vunpack.c.h.b16 %v3718
    %v3937 = vunpack.c.l.b16 %v3719
    %v3938 = vunpack.c.h.b16 %v3719
    %v3939 = vunpack.c.l.b16 %v3720
    %v3940 = vunpack.c.h.b16 %v3720
    %v3941 = vunpack.c.l.b16 %v3721
    %v3942 = vunpack.c.h.b16 %v3721
    %v3943 = vunpack.c.l.b16 %v3722
    %v3944 = vunpack.c.h.b16 %v3722
    %v3945 = vunpack.c.l.b16 %v3723
    %v3946 = vunpack.c.h.b16 %v3723
    %v3947 = vunpack.c.l.b16 %v3724
    %v3948 = vunpack.c.h.b16 %v3724
    %v3949 = vunpack.c.l.b16 %v3725
    %v3950 = vunpack.c.h.b16 %v3725
    %v3951 = vunpack.c.l.b16 %v3726
    %v3952 = vunpack.c.h.b16 %v3726
    %v3953 = vunpack.c.l.b16 %v3727
    %v3954 = vunpack.c.h.b16 %v3727
    %v3955 = vunpack.c.l.b16 %v3728
    %v3956 = vunpack.c.h.b16 %v3728
    %v3957 = vunpack.c.l.b16 %v3729
    %v3958 = vunpack.c.h.b16 %v3729
    %v3959 = vunpack.c.l.b16 %v3730
    %v3960 = vunpack.c.h.b16 %v3730
    %v3961 = vunpack.c.l.b16 %v3731
    %v3962 = vunpack.c.h.b16 %v3731
    %v3963 = vunpack.c.l.b16 %v3732
    %v3964 = vunpack.c.h.b16 %v3732
    %v3965 = vpack.c.b16 %v3841, %v3837
    %v3966 = vpack.c.b16 %v3842, %v3838
    %v3967 = vpack.c.b16 %v3843, %v3839
    %v3968 = vpack.c.b16 %v3844, %v3840
    %v3969 = vpack.c.b16 %v3849, %v3845
    %v3970 = vpack.c.b16 %v3850, %v3846
    %v3971 = vpack.c.b16 %v3851, %v3847
    %v3972 = vpack.c.b16 %v3852, %v3848
    %v3973 = vpack.c.b16 %v3857, %v3853
    %v3974 = vpack.c.b16 %v3858, %v3854
    %v3975 = vpack.c.b16 %v3859, %v3855
    %v3976 = vpack.c.b16 %v3860, %v3856
    %v3977 = vpack.c.b16 %v3865, %v3861
    %v3978 = vpack.c.b16 %v3866, %v3862
    %v3979 = vpack.c.b16 %v3867, %v3863
    %v3980 = vpack.c.b16 %v3868, %v3864
    %v3981 = vpack.c.b16 %v3873, %v3869
    %v3982 = vpack.c.b16 %v3874, %v3870
    %v3983 = vpack.c.b16 %v3875, %v3871
    %v3984 = vpack.c.b16 %v3876, %v3872
    %v3985 = vpack.c.b16 %v3881, %v3877
    %v3986 = vpack.c.b16 %v3882, %v3878
    %v3987 = vpack.c.b16 %v3883, %v3879
    %v3988 = vpack.c.b16 %v3884, %v3880
    %v3989 = vpack.c.b16 %v3889, %v3885
    %v3990 = vpack.c.b16 %v3890, %v3886
    %v3991 = vpack.c.b16 %v3891, %v3887
    %v3992 = vpack.c.b16 %v3892, %v3888
    %v3993 = vpack.c.b16 %v3897, %v3893
    %v3994 = vpack.c.b16 %v3898, %v3894
    %v3995 = vpack.c.b16 %v3899, %v3895
    %v3996 = vpack.c.b16 %v3900, %v3896
    %v3997 = vpack.c.b16 %v3905, %v3901
    %v3998 = vpack.c.b16 %v3906, %v3902
    %v3999 = vpack.c.b16 %v3907, %v3903
    %v4000 = vpack.c.b16 %v3908, %v3904
    %v4001 = vpack.c.b16 %v3913, %v3909
    %v4002 = vpack.c.b16 %v3914, %v3910
    %v4003 = vpack.c.b16 %v3915, %v3911
    %v4004 = vpack.c.b16 %v3916, %v3912
    %v4005 = vpack.c.b16 %v3921, %v3917
    %v4006 = vpack.c.b16 %v3922, %v3918
    %v4007 = vpack.c.b16 %v3923, %v3919
    %v4008 = vpack.c.b16 %v3924, %v3920
    %v4009 = vpack.c.b16 %v3929, %v3925
    %v4010 = vpack.c.b16 %v3930, %v3926
    %v4011 = vpack.c.b16 %v3931, %v3927
    %v4012 = vpack.c.b16 %v3932, %v3928
    %v4013 = vpack.c.b16 %v3937, %v3933
    %v4014 = vpack.c.b16 %v3938, %v3934
    %v4015 = vpack.c.b16 %v3939, %v3935
    %v4016 = vpack.c.b16 %v3940, %v3936
    %v4017 = vpack.c.b16 %v3945, %v3941
    %v4018 = vpack.c.b16 %v3946, %v3942
    %v4019 = vpack.c.b16 %v3947, %v3943
    %v4020 = vpack.c.b16 %v3948, %v3944
    %v4021 = vpack.c.b16 %v3953, %v3949
    %v4022 = vpack.c.b16 %v3954, %v3950
    %v4023 = vpack.c.b16 %v3955, %v3951
    %v4024 = vpack.c.b16 %v3956, %v3952
    %v4025 = vpack.c.b16 %v3961, %v3957
    %v4026 = vpack.c.b16 %v3962, %v3958
    %v4027 = vpack.c.b16 %v3963, %v3959
    %v4028 = vpack.c.b16 %v3964, %v3960
    %4093 = vmatprep.subr.bf16.mxu0 %v3994
    %4094 = vmatpush1.bf16.msra.mxu0 %v3993
    %4095 = vmatprep.subr.bf16.mxu0 %v3990
    %4096 = vmatpush1.bf16.msra.mxu0 %v3989
    %4097 = vmatprep.subr.bf16.mxu0 %v3986
    %4098 = vmatpush1.bf16.msra.mxu0 %v3985
    %4099 = vmatprep.subr.bf16.mxu0 %v3982
    %4100 = vmatpush1.bf16.msra.mxu0 %v3981
    %4101 = vmatprep.subr.bf16.mxu0 %v3978
    %4102 = vmatpush1.bf16.msra.mxu0 %v3977
    %4103 = vmatprep.subr.bf16.mxu0 %v3974
    %4104 = vmatpush1.bf16.msra.mxu0 %v3973
    %4105 = vmatprep.subr.bf16.mxu0 %v3970
    %4106 = vmatpush1.bf16.msra.mxu0 %v3969
    %4107 = vmatprep.subr.bf16.mxu0 %v3966
    %4108 = vmatpush1.bf16.msra.mxu0 %v3965
    %4109 = vmatprep.subr.bf16.mxu0 %v4026
    %4110 = vmatpush2.bf16.msra.mxu0 %v4025
    %4111 = vmatprep.subr.bf16.mxu0 %v4022
    %4112 = vmatpush2.bf16.msra.mxu0 %v4021
    %4113 = vmatprep.subr.bf16.mxu0 %v4018
    %4114 = vmatpush2.bf16.msra.mxu0 %v4017
    %4115 = vmatprep.subr.bf16.mxu0 %v4014
    %4116 = vmatpush2.bf16.msra.mxu0 %v4013
    %4117 = vmatprep.subr.bf16.mxu0 %v4010
    %4118 = vmatpush2.bf16.msra.mxu0 %v4009
    %4119 = vmatprep.subr.bf16.mxu0 %v4006
    %4120 = vmatpush2.bf16.msra.mxu0 %v4005
    %4121 = vmatprep.subr.bf16.mxu0 %v4002
    %4122 = vmatpush2.bf16.msra.mxu0 %v4001
    %4123 = vmatprep.subr.bf16.mxu0 %v3998
    %4124 = vmatpush2.bf16.msra.mxu0 %v3997
    %4125 = vmatprep.mubr.bf16.mxu0 %v3662
    %4126 = vmatmul.mubr.bf16.gmra.mxu0 %v3661
    %v4127 = vpop.f32.mrf.mxu0
    %v4128 = vadd.f32 %v3760, %v4127
    %v4129 = vpop.f32.mrf.mxu0
    %v4130 = vadd.f32 %v3764, %v4129
    %v4131 = vpop.f32.mrf.mxu0
    %v4132 = vadd.f32 %v3760, %v4131
    %v4133 = vpop.f32.mrf.mxu0
    %v4134 = vadd.f32 %v3764, %v4133
    %4135 = vmatprep.mubr.bf16.mxu0 %v3664
    %4136 = vmatmul.mubr.bf16.gmra.mxu0 %v3663
    %v4137 = vpop.f32.mrf.mxu0
    %v4138 = vadd.f32 %v3760, %v4137
    %v4139 = vpop.f32.mrf.mxu0
    %v4140 = vadd.f32 %v3764, %v4139
    %v4141 = vpop.f32.mrf.mxu0
    %v4142 = vadd.f32 %v3760, %v4141
    %v4143 = vpop.f32.mrf.mxu0
    %v4144 = vadd.f32 %v3764, %v4143
    %4145 = vmatprep.mubr.bf16.mxu0 %v3666
    %4146 = vmatmul.mubr.bf16.gmra.mxu0 %v3665
    %v4147 = vpop.f32.mrf.mxu0
    %v4148 = vadd.f32 %v3760, %v4147
    %v4149 = vpop.f32.mrf.mxu0
    %v4150 = vadd.f32 %v3764, %v4149
    %v4151 = vpop.f32.mrf.mxu0
    %v4152 = vadd.f32 %v3760, %v4151
    %v4153 = vpop.f32.mrf.mxu0
    %v4154 = vadd.f32 %v3764, %v4153
    %4155 = vmatprep.mubr.bf16.mxu0 %v3668
    %4156 = vmatmul.mubr.bf16.gmra.mxu0 %v3667
    %v4157 = vpop.f32.mrf.mxu0
    %v4158 = vadd.f32 %v3760, %v4157
    %v4159 = vpop.f32.mrf.mxu0
    %v4160 = vadd.f32 %v3764, %v4159
    %v4161 = vpop.f32.mrf.mxu0
    %v4162 = vadd.f32 %v3760, %v4161
    %v4163 = vpop.f32.mrf.mxu0
    %v4164 = vadd.f32 %v3764, %v4163
    %4165 = vdwg.mxu0
    %4166 = vmatprep.subr.bf16.mxu0 %v3996
    %4167 = vmatpush1.bf16.msra.mxu0 %v3995
    %4168 = vmatprep.subr.bf16.mxu0 %v3992
    %4169 = vmatpush1.bf16.msra.mxu0 %v3991
    %4170 = vmatprep.subr.bf16.mxu0 %v3988
    %4171 = vmatpush1.bf16.msra.mxu0 %v3987
    %4172 = vmatprep.subr.bf16.mxu0 %v3984
    %4173 = vmatpush1.bf16.msra.mxu0 %v3983
    %4174 = vmatprep.subr.bf16.mxu0 %v3980
    %4175 = vmatpush1.bf16.msra.mxu0 %v3979
    %4176 = vmatprep.subr.bf16.mxu0 %v3976
    %4177 = vmatpush1.bf16.msra.mxu0 %v3975
    %4178 = vmatprep.subr.bf16.mxu0 %v3972
    %4179 = vmatpush1.bf16.msra.mxu0 %v3971
    %4180 = vmatprep.subr.bf16.mxu0 %v3968
    %4181 = vmatpush1.bf16.msra.mxu0 %v3967
    %4182 = vmatprep.subr.bf16.mxu0 %v4028
    %4183 = vmatpush2.bf16.msra.mxu0 %v4027
    %4184 = vmatprep.subr.bf16.mxu0 %v4024
    %4185 = vmatpush2.bf16.msra.mxu0 %v4023
    %4186 = vmatprep.subr.bf16.mxu0 %v4020
    %4187 = vmatpush2.bf16.msra.mxu0 %v4019
    %4188 = vmatprep.subr.bf16.mxu0 %v4016
    %4189 = vmatpush2.bf16.msra.mxu0 %v4015
    %4190 = vmatprep.subr.bf16.mxu0 %v4012
    %4191 = vmatpush2.bf16.msra.mxu0 %v4011
    %4192 = vmatprep.subr.bf16.mxu0 %v4008
    %4193 = vmatpush2.bf16.msra.mxu0 %v4007
    %4194 = vmatprep.subr.bf16.mxu0 %v4004
    %4195 = vmatpush2.bf16.msra.mxu0 %v4003
    %4196 = vmatprep.subr.bf16.mxu0 %v4000
    %4197 = vmatpush2.bf16.msra.mxu0 %v3999
    %4198 = vmatprep.mubr.bf16.mxu0 %v3662
    %4199 = vmatmul.mubr.bf16.gmra.mxu0 %v3661
    %v4200 = vpop.f32.mrf.mxu0
    %v4201 = vadd.f32 %v3768, %v4200
    %v4202 = vpop.f32.mrf.mxu0
    %v4203 = vadd.f32 %v3772, %v4202
    %v4204 = vpop.f32.mrf.mxu0
    %v4205 = vadd.f32 %v3768, %v4204
    %v4206 = vpop.f32.mrf.mxu0
    %v4207 = vadd.f32 %v3772, %v4206
    %4208 = vmatprep.mubr.bf16.mxu0 %v3664
    %4209 = vmatmul.mubr.bf16.gmra.mxu0 %v3663
    %v4210 = vpop.f32.mrf.mxu0
    %v4211 = vadd.f32 %v3768, %v4210
    %v4212 = vpop.f32.mrf.mxu0
    %v4213 = vadd.f32 %v3772, %v4212
    %v4214 = vpop.f32.mrf.mxu0
    %v4215 = vadd.f32 %v3768, %v4214
    %v4216 = vpop.f32.mrf.mxu0
    %v4217 = vadd.f32 %v3772, %v4216
    %4218 = vmatprep.mubr.bf16.mxu0 %v3666
    %4219 = vmatmul.mubr.bf16.gmra.mxu0 %v3665
    %v4220 = vpop.f32.mrf.mxu0
    %v4221 = vadd.f32 %v3768, %v4220
    %v4222 = vpop.f32.mrf.mxu0
    %v4223 = vadd.f32 %v3772, %v4222
    %v4224 = vpop.f32.mrf.mxu0
    %v4225 = vadd.f32 %v3768, %v4224
    %v4226 = vpop.f32.mrf.mxu0
    %v4227 = vadd.f32 %v3772, %v4226
    %4228 = vmatprep.mubr.bf16.mxu0 %v3668
    %4229 = vmatmul.mubr.bf16.gmra.mxu0 %v3667
    %v4230 = vpop.f32.mrf.mxu0
    %v4231 = vadd.f32 %v3768, %v4230
    %v4232 = vpop.f32.mrf.mxu0
    %v4233 = vadd.f32 %v3772, %v4232
    %v4234 = vpop.f32.mrf.mxu0
    %v4235 = vadd.f32 %v3768, %v4234
    %v4236 = vpop.f32.mrf.mxu0
    %v4237 = vadd.f32 %v3772, %v4236
    %4238 = vdwg.mxu0
    %v4239 = vadd.f32 %v4128, %v4132
    %v4240 = vadd.f32 %v4239, %v4138
    %v4241 = vadd.f32 %v4240, %v4142
    %v4242 = vadd.f32 %v4241, %v4148
    %v4243 = vadd.f32 %v4242, %v4152
    %v4244 = vadd.f32 %v4243, %v4158
    %v4245 = vadd.f32 %v4244, %v4162
    %v4246 = vrot.slane %v4245, 4
    %v4247 = vadd.f32 %v4245, %v4246
    %v4248 = vrot.slane %v4247, 2
    %v4249 = vadd.f32 %v4247, %v4248
    %v4250 = vrot.slane %v4249, 1
    %v4251 = vadd.f32 %v4249, %v4250
    %v4252 = vadd.f32 %v4130, %v4134
    %v4253 = vadd.f32 %v4252, %v4140
    %v4254 = vadd.f32 %v4253, %v4144
    %v4255 = vadd.f32 %v4254, %v4150
    %v4256 = vadd.f32 %v4255, %v4154
    %v4257 = vadd.f32 %v4256, %v4160
    %v4258 = vadd.f32 %v4257, %v4164
    %v4259 = vrot.slane %v4258, 4
    %v4260 = vadd.f32 %v4258, %v4259
    %v4261 = vrot.slane %v4260, 2
    %v4262 = vadd.f32 %v4260, %v4261
    %v4263 = vrot.slane %v4262, 1
    %v4264 = vadd.f32 %v4262, %v4263
    %v4265 = vadd.f32 %v4201, %v4205
    %v4266 = vadd.f32 %v4265, %v4211
    %v4267 = vadd.f32 %v4266, %v4215
    %v4268 = vadd.f32 %v4267, %v4221
    %v4269 = vadd.f32 %v4268, %v4225
    %v4270 = vadd.f32 %v4269, %v4231
    %v4271 = vadd.f32 %v4270, %v4235
    %v4272 = vrot.slane %v4271, 4
    %v4273 = vadd.f32 %v4271, %v4272
    %v4274 = vrot.slane %v4273, 2
    %v4275 = vadd.f32 %v4273, %v4274
    %v4276 = vrot.slane %v4275, 1
    %v4277 = vadd.f32 %v4275, %v4276
    %v4278 = vadd.f32 %v4203, %v4207
    %v4279 = vadd.f32 %v4278, %v4213
    %v4280 = vadd.f32 %v4279, %v4217
    %v4281 = vadd.f32 %v4280, %v4223
    %v4282 = vadd.f32 %v4281, %v4227
    %v4283 = vadd.f32 %v4282, %v4233
    %v4284 = vadd.f32 %v4283, %v4237
    %v4285 = vrot.slane %v4284, 4
    %v4286 = vadd.f32 %v4284, %v4285
    %v4287 = vrot.slane %v4286, 2
    %v4288 = vadd.f32 %v4286, %v4287
    %v4289 = vrot.slane %v4288, 1
    %v4290 = vadd.f32 %v4288, %v4289
    %v4291 = vmul.f32 %v4128, %v4128
    %v4292 = vmul.f32 %v4130, %v4130
    %v4293 = vmul.f32 %v4201, %v4201
    %v4294 = vmul.f32 %v4203, %v4203
    %v4295 = vmul.f32 %v4132, %v4132
    %v4296 = vmul.f32 %v4134, %v4134
    %v4297 = vmul.f32 %v4205, %v4205
    %v4298 = vmul.f32 %v4207, %v4207
    %v4299 = vmul.f32 %v4138, %v4138
    %v4300 = vmul.f32 %v4140, %v4140
    %v4301 = vmul.f32 %v4211, %v4211
    %v4302 = vmul.f32 %v4213, %v4213
    %v4303 = vmul.f32 %v4142, %v4142
    %v4304 = vmul.f32 %v4144, %v4144
    %v4305 = vmul.f32 %v4215, %v4215
    %v4306 = vmul.f32 %v4217, %v4217
    %v4307 = vmul.f32 %v4148, %v4148
    %v4308 = vmul.f32 %v4150, %v4150
    %v4309 = vmul.f32 %v4221, %v4221
    %v4310 = vmul.f32 %v4223, %v4223
    %v4311 = vmul.f32 %v4152, %v4152
    %v4312 = vmul.f32 %v4154, %v4154
    %v4313 = vmul.f32 %v4225, %v4225
    %v4314 = vmul.f32 %v4227, %v4227
    %v4315 = vmul.f32 %v4158, %v4158
    %v4316 = vmul.f32 %v4160, %v4160
    %v4317 = vmul.f32 %v4231, %v4231
    %v4318 = vmul.f32 %v4233, %v4233
    %v4319 = vmul.f32 %v4162, %v4162
    %v4320 = vmul.f32 %v4164, %v4164
    %v4321 = vmul.f32 %v4235, %v4235
    %v4322 = vmul.f32 %v4237, %v4237
    %v4323 = vadd.f32 %v4291, %v4295
    %v4324 = vadd.f32 %v4323, %v4299
    %v4325 = vadd.f32 %v4324, %v4303
    %v4326 = vadd.f32 %v4325, %v4307
    %v4327 = vadd.f32 %v4326, %v4311
    %v4328 = vadd.f32 %v4327, %v4315
    %v4329 = vadd.f32 %v4328, %v4319
    %v4330 = vrot.slane %v4329, 4
    %v4331 = vadd.f32 %v4329, %v4330
    %v4332 = vrot.slane %v4331, 2
    %v4333 = vadd.f32 %v4331, %v4332
    %v4334 = vrot.slane %v4333, 1
    %v4335 = vadd.f32 %v4333, %v4334
    %v4336 = vadd.f32 %v4292, %v4296
    %v4337 = vadd.f32 %v4336, %v4300
    %v4338 = vadd.f32 %v4337, %v4304
    %v4339 = vadd.f32 %v4338, %v4308
    %v4340 = vadd.f32 %v4339, %v4312
    %v4341 = vadd.f32 %v4340, %v4316
    %v4342 = vadd.f32 %v4341, %v4320
    %v4343 = vrot.slane %v4342, 4
    %v4344 = vadd.f32 %v4342, %v4343
    %v4345 = vrot.slane %v4344, 2
    %v4346 = vadd.f32 %v4344, %v4345
    %v4347 = vrot.slane %v4346, 1
    %v4348 = vadd.f32 %v4346, %v4347
    %v4349 = vadd.f32 %v4293, %v4297
    %v4350 = vadd.f32 %v4349, %v4301
    %v4351 = vadd.f32 %v4350, %v4305
    %v4352 = vadd.f32 %v4351, %v4309
    %v4353 = vadd.f32 %v4352, %v4313
    %v4354 = vadd.f32 %v4353, %v4317
    %v4355 = vadd.f32 %v4354, %v4321
    %v4356 = vrot.slane %v4355, 4
    %v4357 = vadd.f32 %v4355, %v4356
    %v4358 = vrot.slane %v4357, 2
    %v4359 = vadd.f32 %v4357, %v4358
    %v4360 = vrot.slane %v4359, 1
    %v4361 = vadd.f32 %v4359, %v4360
    %v4362 = vadd.f32 %v4294, %v4298
    %v4363 = vadd.f32 %v4362, %v4302
    %v4364 = vadd.f32 %v4363, %v4306
    %v4365 = vadd.f32 %v4364, %v4310
    %v4366 = vadd.f32 %v4365, %v4314
    %v4367 = vadd.f32 %v4366, %v4318
    %v4368 = vadd.f32 %v4367, %v4322
    %v4369 = vrot.slane %v4368, 4
    %v4370 = vadd.f32 %v4368, %v4369
    %v4371 = vrot.slane %v4370, 2
    %v4372 = vadd.f32 %v4370, %v4371
    %v4373 = vrot.slane %v4372, 1
    %v4374 = vadd.f32 %v4372, %v4373
    %v4375 = vsel %vm337, %v4251, %v4335
    %v4376 = vsel %vm337, %v4264, %v4348
    %v4377 = vsel %vm337, %v4277, %v4361
    %v4378 = vsel %vm337, %v4290, %v4374
    %v4379 = vld [vmem:[#allocation9] sm:$0xff]
    %v4380 = vld [vmem:[#allocation9 + $0x8] sm:$0xff]
    %v4381 = vld [vmem:[#allocation9 + $0x10] sm:$0xff]
    %v4382 = vld [vmem:[#allocation9 + $0x18] sm:$0xff]
    %v4383 = vld [vmem:[#allocation9 + $0x20] sm:$0xff]
    %v4384 = vld [vmem:[#allocation9 + $0x28] sm:$0xff]
    %v4385 = vld [vmem:[#allocation9 + $0x30] sm:$0xff]
    %v4386 = vld [vmem:[#allocation9 + $0x38] sm:$0xff]
    %v4387 = vld [vmem:[#allocation9 + $0x40] sm:$0xff]
    %v4388 = vld [vmem:[#allocation9 + $0x48] sm:$0xff]
    %v4389 = vld [vmem:[#allocation9 + $0x50] sm:$0xff]
    %v4390 = vld [vmem:[#allocation9 + $0x58] sm:$0xff]
    %v4391 = vld [vmem:[#allocation9 + $0x60] sm:$0xff]
    %v4392 = vld [vmem:[#allocation9 + $0x68] sm:$0xff]
    %v4393 = vld [vmem:[#allocation9 + $0x70] sm:$0xff]
    %v4394 = vld [vmem:[#allocation9 + $0x78] sm:$0xff]
    %v4395 = vld [vmem:[#allocation9 + $0x80] sm:$0xff]
    %v4396 = vld [vmem:[#allocation9 + $0x88] sm:$0xff]
    %v4397 = vld [vmem:[#allocation9 + $0x90] sm:$0xff]
    %v4398 = vld [vmem:[#allocation9 + $0x98] sm:$0xff]
    %v4399 = vld [vmem:[#allocation9 + $0xa0] sm:$0xff]
    %v4400 = vld [vmem:[#allocation9 + $0xa8] sm:$0xff]
    %v4401 = vld [vmem:[#allocation9 + $0xb0] sm:$0xff]
    %v4402 = vld [vmem:[#allocation9 + $0xb8] sm:$0xff]
    %v4403 = vld [vmem:[#allocation9 + $0xc0] sm:$0xff]
    %v4404 = vld [vmem:[#allocation9 + $0xc8] sm:$0xff]
    %v4405 = vld [vmem:[#allocation9 + $0xd0] sm:$0xff]
    %v4406 = vld [vmem:[#allocation9 + $0xd8] sm:$0xff]
    %v4407 = vld [vmem:[#allocation9 + $0xe0] sm:$0xff]
    %v4408 = vld [vmem:[#allocation9 + $0xe8] sm:$0xff]
    %v4409 = vld [vmem:[#allocation9 + $0xf0] sm:$0xff]
    %v4410 = vld [vmem:[#allocation9 + $0xf8] sm:$0xff]
    %v4411 = vld [vmem:[#allocation9 + $0x100] sm:$0xff]
    %v4412 = vld [vmem:[#allocation9 + $0x108] sm:$0xff]
    %v4413 = vld [vmem:[#allocation9 + $0x110] sm:$0xff]
    %v4414 = vld [vmem:[#allocation9 + $0x118] sm:$0xff]
    %v4415 = vld [vmem:[#allocation9 + $0x120] sm:$0xff]
    %v4416 = vld [vmem:[#allocation9 + $0x128] sm:$0xff]
    %v4417 = vld [vmem:[#allocation9 + $0x130] sm:$0xff]
    %v4418 = vld [vmem:[#allocation9 + $0x138] sm:$0xff]
    %v4419 = vld [vmem:[#allocation9 + $0x140] sm:$0xff]
    %v4420 = vld [vmem:[#allocation9 + $0x148] sm:$0xff]
    %v4421 = vld [vmem:[#allocation9 + $0x150] sm:$0xff]
    %v4422 = vld [vmem:[#allocation9 + $0x158] sm:$0xff]
    %v4423 = vld [vmem:[#allocation9 + $0x160] sm:$0xff]
    %v4424 = vld [vmem:[#allocation9 + $0x168] sm:$0xff]
    %v4425 = vld [vmem:[#allocation9 + $0x170] sm:$0xff]
    %v4426 = vld [vmem:[#allocation9 + $0x178] sm:$0xff]
    %v4427 = vld [vmem:[#allocation9 + $0x180] sm:$0xff]
    %v4428 = vld [vmem:[#allocation9 + $0x188] sm:$0xff]
    %v4429 = vld [vmem:[#allocation9 + $0x190] sm:$0xff]
    %v4430 = vld [vmem:[#allocation9 + $0x198] sm:$0xff]
    %v4431 = vld [vmem:[#allocation9 + $0x1a0] sm:$0xff]
    %v4432 = vld [vmem:[#allocation9 + $0x1a8] sm:$0xff]
    %v4433 = vld [vmem:[#allocation9 + $0x1b0] sm:$0xff]
    %v4434 = vld [vmem:[#allocation9 + $0x1b8] sm:$0xff]
    %v4435 = vld [vmem:[#allocation9 + $0x1c0] sm:$0xff]
    %v4436 = vld [vmem:[#allocation9 + $0x1c8] sm:$0xff]
    %v4437 = vld [vmem:[#allocation9 + $0x1d0] sm:$0xff]
    %v4438 = vld [vmem:[#allocation9 + $0x1d8] sm:$0xff]
    %v4439 = vld [vmem:[#allocation9 + $0x1e0] sm:$0xff]
    %v4440 = vld [vmem:[#allocation9 + $0x1e8] sm:$0xff]
    %v4441 = vld [vmem:[#allocation9 + $0x1f0] sm:$0xff]
    %v4442 = vld [vmem:[#allocation9 + $0x1f8] sm:$0xff]
    %v4443 = vld [vmem:[#allocation9 + $0x200] sm:$0xff]
    %v4444 = vld [vmem:[#allocation9 + $0x208] sm:$0xff]
    %v4445 = vld [vmem:[#allocation9 + $0x210] sm:$0xff]
    %v4446 = vld [vmem:[#allocation9 + $0x218] sm:$0xff]
    %v4447 = vld [vmem:[#allocation9 + $0x220] sm:$0xff]
    %v4448 = vld [vmem:[#allocation9 + $0x228] sm:$0xff]
    %v4449 = vld [vmem:[#allocation9 + $0x230] sm:$0xff]
    %v4450 = vld [vmem:[#allocation9 + $0x238] sm:$0xff]
    %v4451 = vld [vmem:[#allocation9 + $0x240] sm:$0xff]
    %v4452 = vld [vmem:[#allocation9 + $0x248] sm:$0xff]
    %v4453 = vld [vmem:[#allocation9 + $0x250] sm:$0xff]
    %v4454 = vld [vmem:[#allocation9 + $0x258] sm:$0xff]
    %v4455 = vld [vmem:[#allocation9 + $0x260] sm:$0xff]
    %v4456 = vld [vmem:[#allocation9 + $0x268] sm:$0xff]
    %v4457 = vld [vmem:[#allocation9 + $0x270] sm:$0xff]
    %v4458 = vld [vmem:[#allocation9 + $0x278] sm:$0xff]
    %v4459 = vld [vmem:[#allocation9 + $0x280] sm:$0xff]
    %v4460 = vld [vmem:[#allocation9 + $0x288] sm:$0xff]
    %v4461 = vld [vmem:[#allocation9 + $0x290] sm:$0xff]
    %v4462 = vld [vmem:[#allocation9 + $0x298] sm:$0xff]
    %v4463 = vld [vmem:[#allocation9 + $0x2a0] sm:$0xff]
    %v4464 = vld [vmem:[#allocation9 + $0x2a8] sm:$0xff]
    %v4465 = vld [vmem:[#allocation9 + $0x2b0] sm:$0xff]
    %v4466 = vld [vmem:[#allocation9 + $0x2b8] sm:$0xff]
    %v4467 = vld [vmem:[#allocation9 + $0x2c0] sm:$0xff]
    %v4468 = vld [vmem:[#allocation9 + $0x2c8] sm:$0xff]
    %v4469 = vld [vmem:[#allocation9 + $0x2d0] sm:$0xff]
    %v4470 = vld [vmem:[#allocation9 + $0x2d8] sm:$0xff]
    %v4471 = vld [vmem:[#allocation9 + $0x2e0] sm:$0xff]
    %v4472 = vld [vmem:[#allocation9 + $0x2e8] sm:$0xff]
    %v4473 = vld [vmem:[#allocation9 + $0x2f0] sm:$0xff]
    %v4474 = vld [vmem:[#allocation9 + $0x2f8] sm:$0xff]
    %v4475 = vld [vmem:[#allocation9 + $0x300] sm:$0xff]
    %v4476 = vld [vmem:[#allocation9 + $0x308] sm:$0xff]
    %v4477 = vld [vmem:[#allocation9 + $0x310] sm:$0xff]
    %v4478 = vld [vmem:[#allocation9 + $0x318] sm:$0xff]
    %v4479 = vld [vmem:[#allocation9 + $0x320] sm:$0xff]
    %v4480 = vld [vmem:[#allocation9 + $0x328] sm:$0xff]
    %v4481 = vld [vmem:[#allocation9 + $0x330] sm:$0xff]
    %v4482 = vld [vmem:[#allocation9 + $0x338] sm:$0xff]
    %v4483 = vld [vmem:[#allocation9 + $0x340] sm:$0xff]
    %v4484 = vld [vmem:[#allocation9 + $0x348] sm:$0xff]
    %v4485 = vld [vmem:[#allocation9 + $0x350] sm:$0xff]
    %v4486 = vld [vmem:[#allocation9 + $0x358] sm:$0xff]
    %v4487 = vld [vmem:[#allocation9 + $0x360] sm:$0xff]
    %v4488 = vld [vmem:[#allocation9 + $0x368] sm:$0xff]
    %v4489 = vld [vmem:[#allocation9 + $0x370] sm:$0xff]
    %v4490 = vld [vmem:[#allocation9 + $0x378] sm:$0xff]
    %v4491 = vld [vmem:[#allocation9 + $0x380] sm:$0xff]
    %v4492 = vld [vmem:[#allocation9 + $0x388] sm:$0xff]
    %v4493 = vld [vmem:[#allocation9 + $0x390] sm:$0xff]
    %v4494 = vld [vmem:[#allocation9 + $0x398] sm:$0xff]
    %v4495 = vld [vmem:[#allocation9 + $0x3a0] sm:$0xff]
    %v4496 = vld [vmem:[#allocation9 + $0x3a8] sm:$0xff]
    %v4497 = vld [vmem:[#allocation9 + $0x3b0] sm:$0xff]
    %v4498 = vld [vmem:[#allocation9 + $0x3b8] sm:$0xff]
    %v4499 = vld [vmem:[#allocation9 + $0x3c0] sm:$0xff]
    %v4500 = vld [vmem:[#allocation9 + $0x3c8] sm:$0xff]
    %v4501 = vld [vmem:[#allocation9 + $0x3d0] sm:$0xff]
    %v4502 = vld [vmem:[#allocation9 + $0x3d8] sm:$0xff]
    %v4503 = vld [vmem:[#allocation9 + $0x3e0] sm:$0xff]
    %v4504 = vld [vmem:[#allocation9 + $0x3e8] sm:$0xff]
    %v4505 = vld [vmem:[#allocation9 + $0x3f0] sm:$0xff]
    %v4506 = vld [vmem:[#allocation9 + $0x3f8] sm:$0xff]
    %v4507 = vld [vmem:[#allocation9 + $0x400] sm:$0xff]
    %v4508 = vld [vmem:[#allocation9 + $0x408] sm:$0xff]
    %v4509 = vld [vmem:[#allocation9 + $0x410] sm:$0xff]
    %v4510 = vld [vmem:[#allocation9 + $0x418] sm:$0xff]
    %v4511 = vld [vmem:[#allocation9 + $0x420] sm:$0xff]
    %v4512 = vld [vmem:[#allocation9 + $0x428] sm:$0xff]
    %v4513 = vld [vmem:[#allocation9 + $0x430] sm:$0xff]
    %v4514 = vld [vmem:[#allocation9 + $0x438] sm:$0xff]
    %v4515 = vld [vmem:[#allocation9 + $0x440] sm:$0xff]
    %v4516 = vld [vmem:[#allocation9 + $0x448] sm:$0xff]
    %v4517 = vld [vmem:[#allocation9 + $0x450] sm:$0xff]
    %v4518 = vld [vmem:[#allocation9 + $0x458] sm:$0xff]
    %v4519 = vld [vmem:[#allocation9 + $0x460] sm:$0xff]
    %v4520 = vld [vmem:[#allocation9 + $0x468] sm:$0xff]
    %v4521 = vld [vmem:[#allocation9 + $0x470] sm:$0xff]
    %v4522 = vld [vmem:[#allocation9 + $0x478] sm:$0xff]
    %v4523 = vld [vmem:[#allocation9 + $0x480] sm:$0xff]
    %v4524 = vld [vmem:[#allocation9 + $0x488] sm:$0xff]
    %v4525 = vld [vmem:[#allocation9 + $0x490] sm:$0xff]
    %v4526 = vld [vmem:[#allocation9 + $0x498] sm:$0xff]
    %v4527 = vld [vmem:[#allocation9 + $0x4a0] sm:$0xff]
    %v4528 = vld [vmem:[#allocation9 + $0x4a8] sm:$0xff]
    %v4529 = vld [vmem:[#allocation9 + $0x4b0] sm:$0xff]
    %v4530 = vld [vmem:[#allocation9 + $0x4b8] sm:$0xff]
    %v4531 = vld [vmem:[#allocation9 + $0x4c0] sm:$0xff]
    %v4532 = vld [vmem:[#allocation9 + $0x4c8] sm:$0xff]
    %v4533 = vld [vmem:[#allocation9 + $0x4d0] sm:$0xff]
    %v4534 = vld [vmem:[#allocation9 + $0x4d8] sm:$0xff]
    %v4535 = vld [vmem:[#allocation9 + $0x4e0] sm:$0xff]
    %v4536 = vld [vmem:[#allocation9 + $0x4e8] sm:$0xff]
    %v4537 = vld [vmem:[#allocation9 + $0x4f0] sm:$0xff]
    %v4538 = vld [vmem:[#allocation9 + $0x4f8] sm:$0xff]
    %v4539 = vld [vmem:[#allocation9 + $0x500] sm:$0xff]
    %v4540 = vld [vmem:[#allocation9 + $0x508] sm:$0xff]
    %v4541 = vld [vmem:[#allocation9 + $0x510] sm:$0xff]
    %v4542 = vld [vmem:[#allocation9 + $0x518] sm:$0xff]
    %v4543 = vld [vmem:[#allocation9 + $0x520] sm:$0xff]
    %v4544 = vld [vmem:[#allocation9 + $0x528] sm:$0xff]
    %v4545 = vld [vmem:[#allocation9 + $0x530] sm:$0xff]
    %v4546 = vld [vmem:[#allocation9 + $0x538] sm:$0xff]
    %v4547 = vld [vmem:[#allocation9 + $0x540] sm:$0xff]
    %v4548 = vld [vmem:[#allocation9 + $0x548] sm:$0xff]
    %v4549 = vld [vmem:[#allocation9 + $0x550] sm:$0xff]
    %v4550 = vld [vmem:[#allocation9 + $0x558] sm:$0xff]
    %v4551 = vld [vmem:[#allocation9 + $0x560] sm:$0xff]
    %v4552 = vld [vmem:[#allocation9 + $0x568] sm:$0xff]
    %v4553 = vld [vmem:[#allocation9 + $0x570] sm:$0xff]
    %v4554 = vld [vmem:[#allocation9 + $0x578] sm:$0xff]
    %v4555 = vld [vmem:[#allocation9 + $0x580] sm:$0xff]
    %v4556 = vld [vmem:[#allocation9 + $0x588] sm:$0xff]
    %v4557 = vld [vmem:[#allocation9 + $0x590] sm:$0xff]
    %v4558 = vld [vmem:[#allocation9 + $0x598] sm:$0xff]
    %v4559 = vld [vmem:[#allocation9 + $0x5a0] sm:$0xff]
    %v4560 = vld [vmem:[#allocation9 + $0x5a8] sm:$0xff]
    %v4561 = vld [vmem:[#allocation9 + $0x5b0] sm:$0xff]
    %v4562 = vld [vmem:[#allocation9 + $0x5b8] sm:$0xff]
    %v4563 = vld [vmem:[#allocation9 + $0x5c0] sm:$0xff]
    %v4564 = vld [vmem:[#allocation9 + $0x5c8] sm:$0xff]
    %v4565 = vld [vmem:[#allocation9 + $0x5d0] sm:$0xff]
    %v4566 = vld [vmem:[#allocation9 + $0x5d8] sm:$0xff]
    %v4567 = vld [vmem:[#allocation9 + $0x5e0] sm:$0xff]
    %v4568 = vld [vmem:[#allocation9 + $0x5e8] sm:$0xff]
    %v4569 = vld [vmem:[#allocation9 + $0x5f0] sm:$0xff]
    %v4570 = vld [vmem:[#allocation9 + $0x5f8] sm:$0xff]
    %v4571 = vld [vmem:[#allocation9 + $0x600] sm:$0xff]
    %v4572 = vld [vmem:[#allocation9 + $0x608] sm:$0xff]
    %v4573 = vld [vmem:[#allocation9 + $0x610] sm:$0xff]
    %v4574 = vld [vmem:[#allocation9 + $0x618] sm:$0xff]
    %v4575 = vld [vmem:[#allocation9 + $0x620] sm:$0xff]
    %v4576 = vld [vmem:[#allocation9 + $0x628] sm:$0xff]
    %v4577 = vld [vmem:[#allocation9 + $0x630] sm:$0xff]
    %v4578 = vld [vmem:[#allocation9 + $0x638] sm:$0xff]
    %v4579 = vld [vmem:[#allocation9 + $0x640] sm:$0xff]
    %v4580 = vld [vmem:[#allocation9 + $0x648] sm:$0xff]
    %v4581 = vld [vmem:[#allocation9 + $0x650] sm:$0xff]
    %v4582 = vld [vmem:[#allocation9 + $0x658] sm:$0xff]
    %v4583 = vld [vmem:[#allocation9 + $0x660] sm:$0xff]
    %v4584 = vld [vmem:[#allocation9 + $0x668] sm:$0xff]
    %v4585 = vld [vmem:[#allocation9 + $0x670] sm:$0xff]
    %v4586 = vld [vmem:[#allocation9 + $0x678] sm:$0xff]
    %v4587 = vld [vmem:[#allocation9 + $0x680] sm:$0xff]
    %v4588 = vld [vmem:[#allocation9 + $0x688] sm:$0xff]
    %v4589 = vld [vmem:[#allocation9 + $0x690] sm:$0xff]
    %v4590 = vld [vmem:[#allocation9 + $0x698] sm:$0xff]
    %v4591 = vld [vmem:[#allocation9 + $0x6a0] sm:$0xff]
    %v4592 = vld [vmem:[#allocation9 + $0x6a8] sm:$0xff]
    %v4593 = vld [vmem:[#allocation9 + $0x6b0] sm:$0xff]
    %v4594 = vld [vmem:[#allocation9 + $0x6b8] sm:$0xff]
    %v4595 = vld [vmem:[#allocation9 + $0x6c0] sm:$0xff]
    %v4596 = vld [vmem:[#allocation9 + $0x6c8] sm:$0xff]
    %v4597 = vld [vmem:[#allocation9 + $0x6d0] sm:$0xff]
    %v4598 = vld [vmem:[#allocation9 + $0x6d8] sm:$0xff]
    %v4599 = vld [vmem:[#allocation9 + $0x6e0] sm:$0xff]
    %v4600 = vld [vmem:[#allocation9 + $0x6e8] sm:$0xff]
    %v4601 = vld [vmem:[#allocation9 + $0x6f0] sm:$0xff]
    %v4602 = vld [vmem:[#allocation9 + $0x6f8] sm:$0xff]
    %v4603 = vld [vmem:[#allocation9 + $0x700] sm:$0xff]
    %v4604 = vld [vmem:[#allocation9 + $0x708] sm:$0xff]
    %v4605 = vld [vmem:[#allocation9 + $0x710] sm:$0xff]
    %v4606 = vld [vmem:[#allocation9 + $0x718] sm:$0xff]
    %v4607 = vld [vmem:[#allocation9 + $0x720] sm:$0xff]
    %v4608 = vld [vmem:[#allocation9 + $0x728] sm:$0xff]
    %v4609 = vld [vmem:[#allocation9 + $0x730] sm:$0xff]
    %v4610 = vld [vmem:[#allocation9 + $0x738] sm:$0xff]
    %v4611 = vld [vmem:[#allocation9 + $0x740] sm:$0xff]
    %v4612 = vld [vmem:[#allocation9 + $0x748] sm:$0xff]
    %v4613 = vld [vmem:[#allocation9 + $0x750] sm:$0xff]
    %v4614 = vld [vmem:[#allocation9 + $0x758] sm:$0xff]
    %v4615 = vld [vmem:[#allocation9 + $0x760] sm:$0xff]
    %v4616 = vld [vmem:[#allocation9 + $0x768] sm:$0xff]
    %v4617 = vld [vmem:[#allocation9 + $0x770] sm:$0xff]
    %v4618 = vld [vmem:[#allocation9 + $0x778] sm:$0xff]
    %v4619 = vld [vmem:[#allocation9 + $0x780] sm:$0xff]
    %v4620 = vld [vmem:[#allocation9 + $0x788] sm:$0xff]
    %v4621 = vld [vmem:[#allocation9 + $0x790] sm:$0xff]
    %v4622 = vld [vmem:[#allocation9 + $0x798] sm:$0xff]
    %v4623 = vld [vmem:[#allocation9 + $0x7a0] sm:$0xff]
    %v4624 = vld [vmem:[#allocation9 + $0x7a8] sm:$0xff]
    %v4625 = vld [vmem:[#allocation9 + $0x7b0] sm:$0xff]
    %v4626 = vld [vmem:[#allocation9 + $0x7b8] sm:$0xff]
    %v4627 = vld [vmem:[#allocation9 + $0x7c0] sm:$0xff]
    %v4628 = vld [vmem:[#allocation9 + $0x7c8] sm:$0xff]
    %v4629 = vld [vmem:[#allocation9 + $0x7d0] sm:$0xff]
    %v4630 = vld [vmem:[#allocation9 + $0x7d8] sm:$0xff]
    %v4631 = vld [vmem:[#allocation9 + $0x7e0] sm:$0xff]
    %v4632 = vld [vmem:[#allocation9 + $0x7e8] sm:$0xff]
    %v4633 = vld [vmem:[#allocation9 + $0x7f0] sm:$0xff]
    %v4634 = vld [vmem:[#allocation9 + $0x7f8] sm:$0xff]
    %v4635 = vand.u32 %v4440, 4294901760
    %4636 = vmatprep.subr.mxu0 %v4635
    %v4637 = vand.u32 %v4439, 4294901760
    %4638 = vmatpush1.msra.mxu0 %v4637
    %v4639 = vand.u32 %v4436, 4294901760
    %4640 = vmatprep.subr.mxu0 %v4639
    %v4641 = vand.u32 %v4435, 4294901760
    %4642 = vmatpush1.msra.mxu0 %v4641
    %v4643 = vand.u32 %v4432, 4294901760
    %4644 = vmatprep.subr.mxu0 %v4643
    %v4645 = vand.u32 %v4431, 4294901760
    %4646 = vmatpush1.msra.mxu0 %v4645
    %v4647 = vand.u32 %v4428, 4294901760
    %4648 = vmatprep.subr.mxu0 %v4647
    %v4649 = vand.u32 %v4427, 4294901760
    %4650 = vmatpush1.msra.mxu0 %v4649
    %v4651 = vand.u32 %v4424, 4294901760
    %4652 = vmatprep.subr.mxu0 %v4651
    %v4653 = vand.u32 %v4423, 4294901760
    %4654 = vmatpush1.msra.mxu0 %v4653
    %v4655 = vand.u32 %v4420, 4294901760
    %4656 = vmatprep.subr.mxu0 %v4655
    %v4657 = vand.u32 %v4419, 4294901760
    %4658 = vmatpush1.msra.mxu0 %v4657
    %v4659 = vand.u32 %v4416, 4294901760
    %4660 = vmatprep.subr.mxu0 %v4659
    %v4661 = vand.u32 %v4415, 4294901760
    %4662 = vmatpush1.msra.mxu0 %v4661
    %v4663 = vand.u32 %v4412, 4294901760
    %4664 = vmatprep.subr.mxu0 %v4663
    %v4665 = vand.u32 %v4411, 4294901760
    %4666 = vmatpush1.msra.mxu0 %v4665
    %v4667 = vand.u32 %v4408, 4294901760
    %4668 = vmatprep.subr.mxu0 %v4667
    %v4669 = vand.u32 %v4407, 4294901760
    %4670 = vmatpush1.msra.mxu0 %v4669
    %v4671 = vand.u32 %v4404, 4294901760
    %4672 = vmatprep.subr.mxu0 %v4671
    %v4673 = vand.u32 %v4403, 4294901760
    %4674 = vmatpush1.msra.mxu0 %v4673
    %v4675 = vand.u32 %v4400, 4294901760
    %4676 = vmatprep.subr.mxu0 %v4675
    %v4677 = vand.u32 %v4399, 4294901760
    %4678 = vmatpush1.msra.mxu0 %v4677
    %v4679 = vand.u32 %v4396, 4294901760
    %4680 = vmatprep.subr.mxu0 %v4679
    %v4681 = vand.u32 %v4395, 4294901760
    %4682 = vmatpush1.msra.mxu0 %v4681
    %v4683 = vand.u32 %v4392, 4294901760
    %4684 = vmatprep.subr.mxu0 %v4683
    %v4685 = vand.u32 %v4391, 4294901760
    %4686 = vmatpush1.msra.mxu0 %v4685
    %v4687 = vand.u32 %v4388, 4294901760
    %4688 = vmatprep.subr.mxu0 %v4687
    %v4689 = vand.u32 %v4387, 4294901760
    %4690 = vmatpush1.msra.mxu0 %v4689
    %v4691 = vand.u32 %v4384, 4294901760
    %4692 = vmatprep.subr.mxu0 %v4691
    %v4693 = vand.u32 %v4383, 4294901760
    %4694 = vmatpush1.msra.mxu0 %v4693
    %v4695 = vand.u32 %v4380, 4294901760
    %4696 = vmatprep.subr.mxu0 %v4695
    %v4697 = vand.u32 %v4379, 4294901760
    %4698 = vmatpush1.msra.mxu0 %v4697
    %v4699 = vand.u32 %v4504, 4294901760
    %4700 = vmatprep.subr.mxu0 %v4699
    %v4701 = vand.u32 %v4503, 4294901760
    %4702 = vmatpush2.msra.mxu0 %v4701
    %v4703 = vand.u32 %v4500, 4294901760
    %4704 = vmatprep.subr.mxu0 %v4703
    %v4705 = vand.u32 %v4499, 4294901760
    %4706 = vmatpush2.msra.mxu0 %v4705
    %v4707 = vand.u32 %v4496, 4294901760
    %4708 = vmatprep.subr.mxu0 %v4707
    %v4709 = vand.u32 %v4495, 4294901760
    %4710 = vmatpush2.msra.mxu0 %v4709
    %v4711 = vand.u32 %v4492, 4294901760
    %4712 = vmatprep.subr.mxu0 %v4711
    %v4713 = vand.u32 %v4491, 4294901760
    %4714 = vmatpush2.msra.mxu0 %v4713
    %v4715 = vand.u32 %v4488, 4294901760
    %4716 = vmatprep.subr.mxu0 %v4715
    %v4717 = vand.u32 %v4487, 4294901760
    %4718 = vmatpush2.msra.mxu0 %v4717
    %v4719 = vand.u32 %v4484, 4294901760
    %4720 = vmatprep.subr.mxu0 %v4719
    %v4721 = vand.u32 %v4483, 4294901760
    %4722 = vmatpush2.msra.mxu0 %v4721
    %v4723 = vand.u32 %v4480, 4294901760
    %4724 = vmatprep.subr.mxu0 %v4723
    %v4725 = vand.u32 %v4479, 4294901760
    %4726 = vmatpush2.msra.mxu0 %v4725
    %v4727 = vand.u32 %v4476, 4294901760
    %4728 = vmatprep.subr.mxu0 %v4727
    %v4729 = vand.u32 %v4475, 4294901760
    %4730 = vmatpush2.msra.mxu0 %v4729
    %v4731 = vand.u32 %v4472, 4294901760
    %4732 = vmatprep.subr.mxu0 %v4731
    %v4733 = vand.u32 %v4471, 4294901760
    %4734 = vmatpush2.msra.mxu0 %v4733
    %v4735 = vand.u32 %v4468, 4294901760
    %4736 = vmatprep.subr.mxu0 %v4735
    %v4737 = vand.u32 %v4467, 4294901760
    %4738 = vmatpush2.msra.mxu0 %v4737
    %v4739 = vand.u32 %v4464, 4294901760
    %4740 = vmatprep.subr.mxu0 %v4739
    %v4741 = vand.u32 %v4463, 4294901760
    %4742 = vmatpush2.msra.mxu0 %v4741
    %v4743 = vand.u32 %v4460, 4294901760
    %4744 = vmatprep.subr.mxu0 %v4743
    %v4745 = vand.u32 %v4459, 4294901760
    %4746 = vmatpush2.msra.mxu0 %v4745
    %v4747 = vand.u32 %v4456, 4294901760
    %4748 = vmatprep.subr.mxu0 %v4747
    %v4749 = vand.u32 %v4455, 4294901760
    %4750 = vmatpush2.msra.mxu0 %v4749
    %v4751 = vand.u32 %v4452, 4294901760
    %4752 = vmatprep.subr.mxu0 %v4751
    %v4753 = vand.u32 %v4451, 4294901760
    %4754 = vmatpush2.msra.mxu0 %v4753
    %v4755 = vand.u32 %v4448, 4294901760
    %4756 = vmatprep.subr.mxu0 %v4755
    %v4757 = vand.u32 %v4447, 4294901760
    %4758 = vmatpush2.msra.mxu0 %v4757
    %v4759 = vand.u32 %v4444, 4294901760
    %4760 = vmatprep.subr.mxu0 %v4759
    %v4761 = vand.u32 %v4443, 4294901760
    %4762 = vmatpush2.msra.mxu0 %v4761
    %v4763 = vand.u32 %v4376, 4294901760
    %v4764 = vsub.f32 %v4376, %v4763
    %v4765 = vand.u32 %v4764, 4294901760
    %v4766 = vsub.f32 %v4764, %v4765
    %v4767 = vand.u32 %v4766, 4294901760
    %4768 = vmatprep.mubr.f32.mxu0 %v4767
    %v4769 = vand.u32 %v4375, 4294901760
    %v4770 = vsub.f32 %v4375, %v4769
    %v4771 = vand.u32 %v4770, 4294901760
    %v4772 = vsub.f32 %v4770, %v4771
    %v4773 = vand.u32 %v4772, 4294901760
    %4774 = vmatmul.mubr.f32.gmra.mxu0 %v4773
    %v4775 = vpop.f32.mrf.mxu0
    %v4776 = vadd.f32 0.0, %v4775
    %v4777 = vpop.f32.mrf.mxu0
    %v4778 = vadd.f32 0.0, %v4777
    %4779 = vdwg.mxu0
    %v4780 = vand.u32 %v4440, 4294901760
    %v4781 = vsub.f32 %v4440, %v4780
    %v4782 = vand.u32 %v4781, 4294901760
    %v4783 = vsub.f32 %v4781, %v4782
    %v4784 = vand.u32 %v4783, 4294901760
    %4785 = vmatprep.subr.mxu0 %v4784
    %v4786 = vand.u32 %v4439, 4294901760
    %v4787 = vsub.f32 %v4439, %v4786
    %v4788 = vand.u32 %v4787, 4294901760
    %v4789 = vsub.f32 %v4787, %v4788
    %v4790 = vand.u32 %v4789, 4294901760
    %4791 = vmatpush1.msra.mxu0 %v4790
    %v4792 = vand.u32 %v4436, 4294901760
    %v4793 = vsub.f32 %v4436, %v4792
    %v4794 = vand.u32 %v4793, 4294901760
    %v4795 = vsub.f32 %v4793, %v4794
    %v4796 = vand.u32 %v4795, 4294901760
    %4797 = vmatprep.subr.mxu0 %v4796
    %v4798 = vand.u32 %v4435, 4294901760
    %v4799 = vsub.f32 %v4435, %v4798
    %v4800 = vand.u32 %v4799, 4294901760
    %v4801 = vsub.f32 %v4799, %v4800
    %v4802 = vand.u32 %v4801, 4294901760
    %4803 = vmatpush1.msra.mxu0 %v4802
    %v4804 = vand.u32 %v4432, 4294901760
    %v4805 = vsub.f32 %v4432, %v4804
    %v4806 = vand.u32 %v4805, 4294901760
    %v4807 = vsub.f32 %v4805, %v4806
    %v4808 = vand.u32 %v4807, 4294901760
    %4809 = vmatprep.subr.mxu0 %v4808
    %v4810 = vand.u32 %v4431, 4294901760
    %v4811 = vsub.f32 %v4431, %v4810
    %v4812 = vand.u32 %v4811, 4294901760
    %v4813 = vsub.f32 %v4811, %v4812
    %v4814 = vand.u32 %v4813, 4294901760
    %4815 = vmatpush1.msra.mxu0 %v4814
    %v4816 = vand.u32 %v4428, 4294901760
    %v4817 = vsub.f32 %v4428, %v4816
    %v4818 = vand.u32 %v4817, 4294901760
    %v4819 = vsub.f32 %v4817, %v4818
    %v4820 = vand.u32 %v4819, 4294901760
    %4821 = vmatprep.subr.mxu0 %v4820
    %v4822 = vand.u32 %v4427, 4294901760
    %v4823 = vsub.f32 %v4427, %v4822
    %v4824 = vand.u32 %v4823, 4294901760
    %v4825 = vsub.f32 %v4823, %v4824
    %v4826 = vand.u32 %v4825, 4294901760
    %4827 = vmatpush1.msra.mxu0 %v4826
    %v4828 = vand.u32 %v4424, 4294901760
    %v4829 = vsub.f32 %v4424, %v4828
    %v4830 = vand.u32 %v4829, 4294901760
    %v4831 = vsub.f32 %v4829, %v4830
    %v4832 = vand.u32 %v4831, 4294901760
    %4833 = vmatprep.subr.mxu0 %v4832
    %v4834 = vand.u32 %v4423, 4294901760
    %v4835 = vsub.f32 %v4423, %v4834
    %v4836 = vand.u32 %v4835, 4294901760
    %v4837 = vsub.f32 %v4835, %v4836
    %v4838 = vand.u32 %v4837, 4294901760
    %4839 = vmatpush1.msra.mxu0 %v4838
    %v4840 = vand.u32 %v4420, 4294901760
    %v4841 = vsub.f32 %v4420, %v4840
    %v4842 = vand.u32 %v4841, 4294901760
    %v4843 = vsub.f32 %v4841, %v4842
    %v4844 = vand.u32 %v4843, 4294901760
    %4845 = vmatprep.subr.mxu0 %v4844
    %v4846 = vand.u32 %v4419, 4294901760
    %v4847 = vsub.f32 %v4419, %v4846
    %v4848 = vand.u32 %v4847, 4294901760
    %v4849 = vsub.f32 %v4847, %v4848
    %v4850 = vand.u32 %v4849, 4294901760
    %4851 = vmatpush1.msra.mxu0 %v4850
    %v4852 = vand.u32 %v4416, 4294901760
    %v4853 = vsub.f32 %v4416, %v4852
    %v4854 = vand.u32 %v4853, 4294901760
    %v4855 = vsub.f32 %v4853, %v4854
    %v4856 = vand.u32 %v4855, 4294901760
    %4857 = vmatprep.subr.mxu0 %v4856
    %v4858 = vand.u32 %v4415, 4294901760
    %v4859 = vsub.f32 %v4415, %v4858
    %v4860 = vand.u32 %v4859, 4294901760
    %v4861 = vsub.f32 %v4859, %v4860
    %v4862 = vand.u32 %v4861, 4294901760
    %4863 = vmatpush1.msra.mxu0 %v4862
    %v4864 = vand.u32 %v4412, 4294901760
    %v4865 = vsub.f32 %v4412, %v4864
    %v4866 = vand.u32 %v4865, 4294901760
    %v4867 = vsub.f32 %v4865, %v4866
    %v4868 = vand.u32 %v4867, 4294901760
    %4869 = vmatprep.subr.mxu0 %v4868
    %v4870 = vand.u32 %v4411, 4294901760
    %v4871 = vsub.f32 %v4411, %v4870
    %v4872 = vand.u32 %v4871, 4294901760
    %v4873 = vsub.f32 %v4871, %v4872
    %v4874 = vand.u32 %v4873, 4294901760
    %4875 = vmatpush1.msra.mxu0 %v4874
    %v4876 = vand.u32 %v4408, 4294901760
    %v4877 = vsub.f32 %v4408, %v4876
    %v4878 = vand.u32 %v4877, 4294901760
    %v4879 = vsub.f32 %v4877, %v4878
    %v4880 = vand.u32 %v4879, 4294901760
    %4881 = vmatprep.subr.mxu0 %v4880
    %v4882 = vand.u32 %v4407, 4294901760
    %v4883 = vsub.f32 %v4407, %v4882
    %v4884 = vand.u32 %v4883, 4294901760
    %v4885 = vsub.f32 %v4883, %v4884
    %v4886 = vand.u32 %v4885, 4294901760
    %4887 = vmatpush1.msra.mxu0 %v4886
    %v4888 = vand.u32 %v4404, 4294901760
    %v4889 = vsub.f32 %v4404, %v4888
    %v4890 = vand.u32 %v4889, 4294901760
    %v4891 = vsub.f32 %v4889, %v4890
    %v4892 = vand.u32 %v4891, 4294901760
    %4893 = vmatprep.subr.mxu0 %v4892
    %v4894 = vand.u32 %v4403, 4294901760
    %v4895 = vsub.f32 %v4403, %v4894
    %v4896 = vand.u32 %v4895, 4294901760
    %v4897 = vsub.f32 %v4895, %v4896
    %v4898 = vand.u32 %v4897, 4294901760
    %4899 = vmatpush1.msra.mxu0 %v4898
    %v4900 = vand.u32 %v4400, 4294901760
    %v4901 = vsub.f32 %v4400, %v4900
    %v4902 = vand.u32 %v4901, 4294901760
    %v4903 = vsub.f32 %v4901, %v4902
    %v4904 = vand.u32 %v4903, 4294901760
    %4905 = vmatprep.subr.mxu0 %v4904
    %v4906 = vand.u32 %v4399, 4294901760
    %v4907 = vsub.f32 %v4399, %v4906
    %v4908 = vand.u32 %v4907, 4294901760
    %v4909 = vsub.f32 %v4907, %v4908
    %v4910 = vand.u32 %v4909, 4294901760
    %4911 = vmatpush1.msra.mxu0 %v4910
    %v4912 = vand.u32 %v4396, 4294901760
    %v4913 = vsub.f32 %v4396, %v4912
    %v4914 = vand.u32 %v4913, 4294901760
    %v4915 = vsub.f32 %v4913, %v4914
    %v4916 = vand.u32 %v4915, 4294901760
    %4917 = vmatprep.subr.mxu0 %v4916
    %v4918 = vand.u32 %v4395, 4294901760
    %v4919 = vsub.f32 %v4395, %v4918
    %v4920 = vand.u32 %v4919, 4294901760
    %v4921 = vsub.f32 %v4919, %v4920
    %v4922 = vand.u32 %v4921, 4294901760
    %4923 = vmatpush1.msra.mxu0 %v4922
    %v4924 = vand.u32 %v4392, 4294901760
    %v4925 = vsub.f32 %v4392, %v4924
    %v4926 = vand.u32 %v4925, 4294901760
    %v4927 = vsub.f32 %v4925, %v4926
    %v4928 = vand.u32 %v4927, 4294901760
    %4929 = vmatprep.subr.mxu0 %v4928
    %v4930 = vand.u32 %v4391, 4294901760
    %v4931 = vsub.f32 %v4391, %v4930
    %v4932 = vand.u32 %v4931, 4294901760
    %v4933 = vsub.f32 %v4931, %v4932
    %v4934 = vand.u32 %v4933, 4294901760
    %4935 = vmatpush1.msra.mxu0 %v4934
    %v4936 = vand.u32 %v4388, 4294901760
    %v4937 = vsub.f32 %v4388, %v4936
    %v4938 = vand.u32 %v4937, 4294901760
    %v4939 = vsub.f32 %v4937, %v4938
    %v4940 = vand.u32 %v4939, 4294901760
    %4941 = vmatprep.subr.mxu0 %v4940
    %v4942 = vand.u32 %v4387, 4294901760
    %v4943 = vsub.f32 %v4387, %v4942
    %v4944 = vand.u32 %v4943, 4294901760
    %v4945 = vsub.f32 %v4943, %v4944
    %v4946 = vand.u32 %v4945, 4294901760
    %4947 = vmatpush1.msra.mxu0 %v4946
    %v4948 = vand.u32 %v4384, 4294901760
    %v4949 = vsub.f32 %v4384, %v4948
    %v4950 = vand.u32 %v4949, 4294901760
    %v4951 = vsub.f32 %v4949, %v4950
    %v4952 = vand.u32 %v4951, 4294901760
    %4953 = vmatprep.subr.mxu0 %v4952
    %v4954 = vand.u32 %v4383, 4294901760
    %v4955 = vsub.f32 %v4383, %v4954
    %v4956 = vand.u32 %v4955, 4294901760
    %v4957 = vsub.f32 %v4955, %v4956
    %v4958 = vand.u32 %v4957, 4294901760
    %4959 = vmatpush1.msra.mxu0 %v4958
    %v4960 = vand.u32 %v4380, 4294901760
    %v4961 = vsub.f32 %v4380, %v4960
    %v4962 = vand.u32 %v4961, 4294901760
    %v4963 = vsub.f32 %v4961, %v4962
    %v4964 = vand.u32 %v4963, 4294901760
    %4965 = vmatprep.subr.mxu0 %v4964
    %v4966 = vand.u32 %v4379, 4294901760
    %v4967 = vsub.f32 %v4379, %v4966
    %v4968 = vand.u32 %v4967, 4294901760
    %v4969 = vsub.f32 %v4967, %v4968
    %v4970 = vand.u32 %v4969, 4294901760
    %4971 = vmatpush1.msra.mxu0 %v4970
    %v4972 = vand.u32 %v4504, 4294901760
    %v4973 = vsub.f32 %v4504, %v4972
    %v4974 = vand.u32 %v4973, 4294901760
    %v4975 = vsub.f32 %v4973, %v4974
    %v4976 = vand.u32 %v4975, 4294901760
    %4977 = vmatprep.subr.mxu0 %v4976
    %v4978 = vand.u32 %v4503, 4294901760
    %v4979 = vsub.f32 %v4503, %v4978
    %v4980 = vand.u32 %v4979, 4294901760
    %v4981 = vsub.f32 %v4979, %v4980
    %v4982 = vand.u32 %v4981, 4294901760
    %4983 = vmatpush2.msra.mxu0 %v4982
    %v4984 = vand.u32 %v4500, 4294901760
    %v4985 = vsub.f32 %v4500, %v4984
    %v4986 = vand.u32 %v4985, 4294901760
    %v4987 = vsub.f32 %v4985, %v4986
    %v4988 = vand.u32 %v4987, 4294901760
    %4989 = vmatprep.subr.mxu0 %v4988
    %v4990 = vand.u32 %v4499, 4294901760
    %v4991 = vsub.f32 %v4499, %v4990
    %v4992 = vand.u32 %v4991, 4294901760
    %v4993 = vsub.f32 %v4991, %v4992
    %v4994 = vand.u32 %v4993, 4294901760
    %4995 = vmatpush2.msra.mxu0 %v4994
    %v4996 = vand.u32 %v4496, 4294901760
    %v4997 = vsub.f32 %v4496, %v4996
    %v4998 = vand.u32 %v4997, 4294901760
    %v4999 = vsub.f32 %v4997, %v4998
    %v5000 = vand.u32 %v4999, 4294901760
    %5001 = vmatprep.subr.mxu0 %v5000
    %v5002 = vand.u32 %v4495, 4294901760
    %v5003 = vsub.f32 %v4495, %v5002
    %v5004 = vand.u32 %v5003, 4294901760
    %v5005 = vsub.f32 %v5003, %v5004
    %v5006 = vand.u32 %v5005, 4294901760
    %5007 = vmatpush2.msra.mxu0 %v5006
    %v5008 = vand.u32 %v4492, 4294901760
    %v5009 = vsub.f32 %v4492, %v5008
    %v5010 = vand.u32 %v5009, 4294901760
    %v5011 = vsub.f32 %v5009, %v5010
    %v5012 = vand.u32 %v5011, 4294901760
    %5013 = vmatprep.subr.mxu0 %v5012
    %v5014 = vand.u32 %v4491, 4294901760
    %v5015 = vsub.f32 %v4491, %v5014
    %v5016 = vand.u32 %v5015, 4294901760
    %v5017 = vsub.f32 %v5015, %v5016
    %v5018 = vand.u32 %v5017, 4294901760
    %5019 = vmatpush2.msra.mxu0 %v5018
    %v5020 = vand.u32 %v4488, 4294901760
    %v5021 = vsub.f32 %v4488, %v5020
    %v5022 = vand.u32 %v5021, 4294901760
    %v5023 = vsub.f32 %v5021, %v5022
    %v5024 = vand.u32 %v5023, 4294901760
    %5025 = vmatprep.subr.mxu0 %v5024
    %v5026 = vand.u32 %v4487, 4294901760
    %v5027 = vsub.f32 %v4487, %v5026
    %v5028 = vand.u32 %v5027, 4294901760
    %v5029 = vsub.f32 %v5027, %v5028
    %v5030 = vand.u32 %v5029, 4294901760
    %5031 = vmatpush2.msra.mxu0 %v5030
    %v5032 = vand.u32 %v4484, 4294901760
    %v5033 = vsub.f32 %v4484, %v5032
    %v5034 = vand.u32 %v5033, 4294901760
    %v5035 = vsub.f32 %v5033, %v5034
    %v5036 = vand.u32 %v5035, 4294901760
    %5037 = vmatprep.subr.mxu0 %v5036
    %v5038 = vand.u32 %v4483, 4294901760
    %v5039 = vsub.f32 %v4483, %v5038
    %v5040 = vand.u32 %v5039, 4294901760
    %v5041 = vsub.f32 %v5039, %v5040
    %v5042 = vand.u32 %v5041, 4294901760
    %5043 = vmatpush2.msra.mxu0 %v5042
    %v5044 = vand.u32 %v4480, 4294901760
    %v5045 = vsub.f32 %v4480, %v5044
    %v5046 = vand.u32 %v5045, 4294901760
    %v5047 = vsub.f32 %v5045, %v5046
    %v5048 = vand.u32 %v5047, 4294901760
    %5049 = vmatprep.subr.mxu0 %v5048
    %v5050 = vand.u32 %v4479, 4294901760
    %v5051 = vsub.f32 %v4479, %v5050
    %v5052 = vand.u32 %v5051, 4294901760
    %v5053 = vsub.f32 %v5051, %v5052
    %v5054 = vand.u32 %v5053, 4294901760
    %5055 = vmatpush2.msra.mxu0 %v5054
    %v5056 = vand.u32 %v4476, 4294901760
    %v5057 = vsub.f32 %v4476, %v5056
    %v5058 = vand.u32 %v5057, 4294901760
    %v5059 = vsub.f32 %v5057, %v5058
    %v5060 = vand.u32 %v5059, 4294901760
    %5061 = vmatprep.subr.mxu0 %v5060
    %v5062 = vand.u32 %v4475, 4294901760
    %v5063 = vsub.f32 %v4475, %v5062
    %v5064 = vand.u32 %v5063, 4294901760
    %v5065 = vsub.f32 %v5063, %v5064
    %v5066 = vand.u32 %v5065, 4294901760
    %5067 = vmatpush2.msra.mxu0 %v5066
    %v5068 = vand.u32 %v4472, 4294901760
    %v5069 = vsub.f32 %v4472, %v5068
    %v5070 = vand.u32 %v5069, 4294901760
    %v5071 = vsub.f32 %v5069, %v5070
    %v5072 = vand.u32 %v5071, 4294901760
    %5073 = vmatprep.subr.mxu0 %v5072
    %v5074 = vand.u32 %v4471, 4294901760
    %v5075 = vsub.f32 %v4471, %v5074
    %v5076 = vand.u32 %v5075, 4294901760
    %v5077 = vsub.f32 %v5075, %v5076
    %v5078 = vand.u32 %v5077, 4294901760
    %5079 = vmatpush2.msra.mxu0 %v5078
    %v5080 = vand.u32 %v4468, 4294901760
    %v5081 = vsub.f32 %v4468, %v5080
    %v5082 = vand.u32 %v5081, 4294901760
    %v5083 = vsub.f32 %v5081, %v5082
    %v5084 = vand.u32 %v5083, 4294901760
    %5085 = vmatprep.subr.mxu0 %v5084
    %v5086 = vand.u32 %v4467, 4294901760
    %v5087 = vsub.f32 %v4467, %v5086
    %v5088 = vand.u32 %v5087, 4294901760
    %v5089 = vsub.f32 %v5087, %v5088
    %v5090 = vand.u32 %v5089, 4294901760
    %5091 = vmatpush2.msra.mxu0 %v5090
    %v5092 = vand.u32 %v4464, 4294901760
    %v5093 = vsub.f32 %v4464, %v5092
    %v5094 = vand.u32 %v5093, 4294901760
    %v5095 = vsub.f32 %v5093, %v5094
    %v5096 = vand.u32 %v5095, 4294901760
    %5097 = vmatprep.subr.mxu0 %v5096
    %v5098 = vand.u32 %v4463, 4294901760
    %v5099 = vsub.f32 %v4463, %v5098
    %v5100 = vand.u32 %v5099, 4294901760
    %v5101 = vsub.f32 %v5099, %v5100
    %v5102 = vand.u32 %v5101, 4294901760
    %5103 = vmatpush2.msra.mxu0 %v5102
    %v5104 = vand.u32 %v4460, 4294901760
    %v5105 = vsub.f32 %v4460, %v5104
    %v5106 = vand.u32 %v5105, 4294901760
    %v5107 = vsub.f32 %v5105, %v5106
    %v5108 = vand.u32 %v5107, 4294901760
    %5109 = vmatprep.subr.mxu0 %v5108
    %v5110 = vand.u32 %v4459, 4294901760
    %v5111 = vsub.f32 %v4459, %v5110
    %v5112 = vand.u32 %v5111, 4294901760
    %v5113 = vsub.f32 %v5111, %v5112
    %v5114 = vand.u32 %v5113, 4294901760
    %5115 = vmatpush2.msra.mxu0 %v5114
    %v5116 = vand.u32 %v4456, 4294901760
    %v5117 = vsub.f32 %v4456, %v5116
    %v5118 = vand.u32 %v5117, 4294901760
    %v5119 = vsub.f32 %v5117, %v5118
    %v5120 = vand.u32 %v5119, 4294901760
    %5121 = vmatprep.subr.mxu0 %v5120
    %v5122 = vand.u32 %v4455, 4294901760
    %v5123 = vsub.f32 %v4455, %v5122
    %v5124 = vand.u32 %v5123, 4294901760
    %v5125 = vsub.f32 %v5123, %v5124
    %v5126 = vand.u32 %v5125, 4294901760
    %5127 = vmatpush2.msra.mxu0 %v5126
    %v5128 = vand.u32 %v4452, 4294901760
    %v5129 = vsub.f32 %v4452, %v5128
    %v5130 = vand.u32 %v5129, 4294901760
    %v5131 = vsub.f32 %v5129, %v5130
    %v5132 = vand.u32 %v5131, 4294901760
    %5133 = vmatprep.subr.mxu0 %v5132
    %v5134 = vand.u32 %v4451, 4294901760
    %v5135 = vsub.f32 %v4451, %v5134
    %v5136 = vand.u32 %v5135, 4294901760
    %v5137 = vsub.f32 %v5135, %v5136
    %v5138 = vand.u32 %v5137, 4294901760
    %5139 = vmatpush2.msra.mxu0 %v5138
    %v5140 = vand.u32 %v4448, 4294901760
    %v5141 = vsub.f32 %v4448, %v5140
    %v5142 = vand.u32 %v5141, 4294901760
    %v5143 = vsub.f32 %v5141, %v5142
    %v5144 = vand.u32 %v5143, 4294901760
    %5145 = vmatprep.subr.mxu0 %v5144
    %v5146 = vand.u32 %v4447, 4294901760
    %v5147 = vsub.f32 %v4447, %v5146
    %v5148 = vand.u32 %v5147, 4294901760
    %v5149 = vsub.f32 %v5147, %v5148
    %v5150 = vand.u32 %v5149, 4294901760
    %5151 = vmatpush2.msra.mxu0 %v5150
    %v5152 = vand.u32 %v4444, 4294901760
    %v5153 = vsub.f32 %v4444, %v5152
    %v5154 = vand.u32 %v5153, 4294901760
    %v5155 = vsub.f32 %v5153, %v5154
    %v5156 = vand.u32 %v5155, 4294901760
    %5157 = vmatprep.subr.mxu0 %v5156
    %v5158 = vand.u32 %v4443, 4294901760
    %v5159 = vsub.f32 %v4443, %v5158
    %v5160 = vand.u32 %v5159, 4294901760
    %v5161 = vsub.f32 %v5159, %v5160
    %v5162 = vand.u32 %v5161, 4294901760
    %5163 = vmatpush2.msra.mxu0 %v5162
    %v5164 = vand.u32 %v4376, 4294901760
    %5165 = vmatprep.mubr.f32.mxu0 %v5164
    %v5166 = vand.u32 %v4375, 4294901760
    %5167 = vmatmul.mubr.f32.gmra.mxu0 %v5166
    %v5168 = vpop.f32.mrf.mxu0
    %v5169 = vadd.f32 %v4776, %v5168
    %v5170 = vpop.f32.mrf.mxu0
    %v5171 = vadd.f32 %v4778, %v5170
    %5172 = vdwg.mxu0
    %v5173 = vand.u32 %v4440, 4294901760
    %v5174 = vsub.f32 %v4440, %v5173
    %5175 = vmatprep.subr.mxu0 %v5174
    %v5176 = vand.u32 %v4439, 4294901760
    %v5177 = vsub.f32 %v4439, %v5176
    %5178 = vmatpush1.msra.mxu0 %v5177
    %v5179 = vand.u32 %v4436, 4294901760
    %v5180 = vsub.f32 %v4436, %v5179
    %5181 = vmatprep.subr.mxu0 %v5180
    %v5182 = vand.u32 %v4435, 4294901760
    %v5183 = vsub.f32 %v4435, %v5182
    %5184 = vmatpush1.msra.mxu0 %v5183
    %v5185 = vand.u32 %v4432, 4294901760
    %v5186 = vsub.f32 %v4432, %v5185
    %5187 = vmatprep.subr.mxu0 %v5186
    %v5188 = vand.u32 %v4431, 4294901760
    %v5189 = vsub.f32 %v4431, %v5188
    %5190 = vmatpush1.msra.mxu0 %v5189
    %v5191 = vand.u32 %v4428, 4294901760
    %v5192 = vsub.f32 %v4428, %v5191
    %5193 = vmatprep.subr.mxu0 %v5192
    %v5194 = vand.u32 %v4427, 4294901760
    %v5195 = vsub.f32 %v4427, %v5194
    %5196 = vmatpush1.msra.mxu0 %v5195
    %v5197 = vand.u32 %v4424, 4294901760
    %v5198 = vsub.f32 %v4424, %v5197
    %5199 = vmatprep.subr.mxu0 %v5198
    %v5200 = vand.u32 %v4423, 4294901760
    %v5201 = vsub.f32 %v4423, %v5200
    %5202 = vmatpush1.msra.mxu0 %v5201
    %v5203 = vand.u32 %v4420, 4294901760
    %v5204 = vsub.f32 %v4420, %v5203
    %5205 = vmatprep.subr.mxu0 %v5204
    %v5206 = vand.u32 %v4419, 4294901760
    %v5207 = vsub.f32 %v4419, %v5206
    %5208 = vmatpush1.msra.mxu0 %v5207
    %v5209 = vand.u32 %v4416, 4294901760
    %v5210 = vsub.f32 %v4416, %v5209
    %5211 = vmatprep.subr.mxu0 %v5210
    %v5212 = vand.u32 %v4415, 4294901760
    %v5213 = vsub.f32 %v4415, %v5212
    %5214 = vmatpush1.msra.mxu0 %v5213
    %v5215 = vand.u32 %v4412, 4294901760
    %v5216 = vsub.f32 %v4412, %v5215
    %5217 = vmatprep.subr.mxu0 %v5216
    %v5218 = vand.u32 %v4411, 4294901760
    %v5219 = vsub.f32 %v4411, %v5218
    %5220 = vmatpush1.msra.mxu0 %v5219
    %v5221 = vand.u32 %v4408, 4294901760
    %v5222 = vsub.f32 %v4408, %v5221
    %5223 = vmatprep.subr.mxu0 %v5222
    %v5224 = vand.u32 %v4407, 4294901760
    %v5225 = vsub.f32 %v4407, %v5224
    %5226 = vmatpush1.msra.mxu0 %v5225
    %v5227 = vand.u32 %v4404, 4294901760
    %v5228 = vsub.f32 %v4404, %v5227
    %5229 = vmatprep.subr.mxu0 %v5228
    %v5230 = vand.u32 %v4403, 4294901760
    %v5231 = vsub.f32 %v4403, %v5230
    %5232 = vmatpush1.msra.mxu0 %v5231
    %v5233 = vand.u32 %v4400, 4294901760
    %v5234 = vsub.f32 %v4400, %v5233
    %5235 = vmatprep.subr.mxu0 %v5234
    %v5236 = vand.u32 %v4399, 4294901760
    %v5237 = vsub.f32 %v4399, %v5236
    %5238 = vmatpush1.msra.mxu0 %v5237
    %v5239 = vand.u32 %v4396, 4294901760
    %v5240 = vsub.f32 %v4396, %v5239
    %5241 = vmatprep.subr.mxu0 %v5240
    %v5242 = vand.u32 %v4395, 4294901760
    %v5243 = vsub.f32 %v4395, %v5242
    %5244 = vmatpush1.msra.mxu0 %v5243
    %v5245 = vand.u32 %v4392, 4294901760
    %v5246 = vsub.f32 %v4392, %v5245
    %5247 = vmatprep.subr.mxu0 %v5246
    %v5248 = vand.u32 %v4391, 4294901760
    %v5249 = vsub.f32 %v4391, %v5248
    %5250 = vmatpush1.msra.mxu0 %v5249
    %v5251 = vand.u32 %v4388, 4294901760
    %v5252 = vsub.f32 %v4388, %v5251
    %5253 = vmatprep.subr.mxu0 %v5252
    %v5254 = vand.u32 %v4387, 4294901760
    %v5255 = vsub.f32 %v4387, %v5254
    %5256 = vmatpush1.msra.mxu0 %v5255
    %v5257 = vand.u32 %v4384, 4294901760
    %v5258 = vsub.f32 %v4384, %v5257
    %5259 = vmatprep.subr.mxu0 %v5258
    %v5260 = vand.u32 %v4383, 4294901760
    %v5261 = vsub.f32 %v4383, %v5260
    %5262 = vmatpush1.msra.mxu0 %v5261
    %v5263 = vand.u32 %v4380, 4294901760
    %v5264 = vsub.f32 %v4380, %v5263
    %5265 = vmatprep.subr.mxu0 %v5264
    %v5266 = vand.u32 %v4379, 4294901760
    %v5267 = vsub.f32 %v4379, %v5266
    %5268 = vmatpush1.msra.mxu0 %v5267
    %v5269 = vand.u32 %v4504, 4294901760
    %v5270 = vsub.f32 %v4504, %v5269
    %5271 = vmatprep.subr.mxu0 %v5270
    %v5272 = vand.u32 %v4503, 4294901760
    %v5273 = vsub.f32 %v4503, %v5272
    %5274 = vmatpush2.msra.mxu0 %v5273
    %v5275 = vand.u32 %v4500, 4294901760
    %v5276 = vsub.f32 %v4500, %v5275
    %5277 = vmatprep.subr.mxu0 %v5276
    %v5278 = vand.u32 %v4499, 4294901760
    %v5279 = vsub.f32 %v4499, %v5278
    %5280 = vmatpush2.msra.mxu0 %v5279
    %v5281 = vand.u32 %v4496, 4294901760
    %v5282 = vsub.f32 %v4496, %v5281
    %5283 = vmatprep.subr.mxu0 %v5282
    %v5284 = vand.u32 %v4495, 4294901760
    %v5285 = vsub.f32 %v4495, %v5284
    %5286 = vmatpush2.msra.mxu0 %v5285
    %v5287 = vand.u32 %v4492, 4294901760
    %v5288 = vsub.f32 %v4492, %v5287
    %5289 = vmatprep.subr.mxu0 %v5288
    %v5290 = vand.u32 %v4491, 4294901760
    %v5291 = vsub.f32 %v4491, %v5290
    %5292 = vmatpush2.msra.mxu0 %v5291
    %v5293 = vand.u32 %v4488, 4294901760
    %v5294 = vsub.f32 %v4488, %v5293
    %5295 = vmatprep.subr.mxu0 %v5294
    %v5296 = vand.u32 %v4487, 4294901760
    %v5297 = vsub.f32 %v4487, %v5296
    %5298 = vmatpush2.msra.mxu0 %v5297
    %v5299 = vand.u32 %v4484, 4294901760
    %v5300 = vsub.f32 %v4484, %v5299
    %5301 = vmatprep.subr.mxu0 %v5300
    %v5302 = vand.u32 %v4483, 4294901760
    %v5303 = vsub.f32 %v4483, %v5302
    %5304 = vmatpush2.msra.mxu0 %v5303
    %v5305 = vand.u32 %v4480, 4294901760
    %v5306 = vsub.f32 %v4480, %v5305
    %5307 = vmatprep.subr.mxu0 %v5306
    %v5308 = vand.u32 %v4479, 4294901760
    %v5309 = vsub.f32 %v4479, %v5308
    %5310 = vmatpush2.msra.mxu0 %v5309
    %v5311 = vand.u32 %v4476, 4294901760
    %v5312 = vsub.f32 %v4476, %v5311
    %5313 = vmatprep.subr.mxu0 %v5312
    %v5314 = vand.u32 %v4475, 4294901760
    %v5315 = vsub.f32 %v4475, %v5314
    %5316 = vmatpush2.msra.mxu0 %v5315
    %v5317 = vand.u32 %v4472, 4294901760
    %v5318 = vsub.f32 %v4472, %v5317
    %5319 = vmatprep.subr.mxu0 %v5318
    %v5320 = vand.u32 %v4471, 4294901760
    %v5321 = vsub.f32 %v4471, %v5320
    %5322 = vmatpush2.msra.mxu0 %v5321
    %v5323 = vand.u32 %v4468, 4294901760
    %v5324 = vsub.f32 %v4468, %v5323
    %5325 = vmatprep.subr.mxu0 %v5324
    %v5326 = vand.u32 %v4467, 4294901760
    %v5327 = vsub.f32 %v4467, %v5326
    %5328 = vmatpush2.msra.mxu0 %v5327
    %v5329 = vand.u32 %v4464, 4294901760
    %v5330 = vsub.f32 %v4464, %v5329
    %5331 = vmatprep.subr.mxu0 %v5330
    %v5332 = vand.u32 %v4463, 4294901760
    %v5333 = vsub.f32 %v4463, %v5332
    %5334 = vmatpush2.msra.mxu0 %v5333
    %v5335 = vand.u32 %v4460, 4294901760
    %v5336 = vsub.f32 %v4460, %v5335
    %5337 = vmatprep.subr.mxu0 %v5336
    %v5338 = vand.u32 %v4459, 4294901760
    %v5339 = vsub.f32 %v4459, %v5338
    %5340 = vmatpush2.msra.mxu0 %v5339
    %v5341 = vand.u32 %v4456, 4294901760
    %v5342 = vsub.f32 %v4456, %v5341
    %5343 = vmatprep.subr.mxu0 %v5342
    %v5344 = vand.u32 %v4455, 4294901760
    %v5345 = vsub.f32 %v4455, %v5344
    %5346 = vmatpush2.msra.mxu0 %v5345
    %v5347 = vand.u32 %v4452, 4294901760
    %v5348 = vsub.f32 %v4452, %v5347
    %5349 = vmatprep.subr.mxu0 %v5348
    %v5350 = vand.u32 %v4451, 4294901760
    %v5351 = vsub.f32 %v4451, %v5350
    %5352 = vmatpush2.msra.mxu0 %v5351
    %v5353 = vand.u32 %v4448, 4294901760
    %v5354 = vsub.f32 %v4448, %v5353
    %5355 = vmatprep.subr.mxu0 %v5354
    %v5356 = vand.u32 %v4447, 4294901760
    %v5357 = vsub.f32 %v4447, %v5356
    %5358 = vmatpush2.msra.mxu0 %v5357
    %v5359 = vand.u32 %v4444, 4294901760
    %v5360 = vsub.f32 %v4444, %v5359
    %5361 = vmatprep.subr.mxu0 %v5360
    %v5362 = vand.u32 %v4443, 4294901760
    %v5363 = vsub.f32 %v4443, %v5362
    %5364 = vmatpush2.msra.mxu0 %v5363
    %v5365 = vand.u32 %v4376, 4294901760
    %v5366 = vsub.f32 %v4376, %v5365
    %5367 = vmatprep.mubr.f32.mxu0 %v5366
    %v5368 = vand.u32 %v4375, 4294901760
    %v5369 = vsub.f32 %v4375, %v5368
    %5370 = vmatmul.mubr.f32.gmra.mxu0 %v5369
    %v5371 = vpop.f32.mrf.mxu0
    %v5372 = vadd.f32 %v5169, %v5371
    %v5373 = vpop.f32.mrf.mxu0
    %v5374 = vadd.f32 %v5171, %v5373
    %5375 = vdwg.mxu0
    %v5376 = vand.u32 %v4440, 4294901760
    %5377 = vmatprep.subr.mxu0 %v5376
    %v5378 = vand.u32 %v4439, 4294901760
    %5379 = vmatpush1.msra.mxu0 %v5378
    %v5380 = vand.u32 %v4436, 4294901760
    %5381 = vmatprep.subr.mxu0 %v5380
    %v5382 = vand.u32 %v4435, 4294901760
    %5383 = vmatpush1.msra.mxu0 %v5382
    %v5384 = vand.u32 %v4432, 4294901760
    %5385 = vmatprep.subr.mxu0 %v5384
    %v5386 = vand.u32 %v4431, 4294901760
    %5387 = vmatpush1.msra.mxu0 %v5386
    %v5388 = vand.u32 %v4428, 4294901760
    %5389 = vmatprep.subr.mxu0 %v5388
    %v5390 = vand.u32 %v4427, 4294901760
    %5391 = vmatpush1.msra.mxu0 %v5390
    %v5392 = vand.u32 %v4424, 4294901760
    %5393 = vmatprep.subr.mxu0 %v5392
    %v5394 = vand.u32 %v4423, 4294901760
    %5395 = vmatpush1.msra.mxu0 %v5394
    %v5396 = vand.u32 %v4420, 4294901760
    %5397 = vmatprep.subr.mxu0 %v5396
    %v5398 = vand.u32 %v4419, 4294901760
    %5399 = vmatpush1.msra.mxu0 %v5398
    %v5400 = vand.u32 %v4416, 4294901760
    %5401 = vmatprep.subr.mxu0 %v5400
    %v5402 = vand.u32 %v4415, 4294901760
    %5403 = vmatpush1.msra.mxu0 %v5402
    %v5404 = vand.u32 %v4412, 4294901760
    %5405 = vmatprep.subr.mxu0 %v5404
    %v5406 = vand.u32 %v4411, 4294901760
    %5407 = vmatpush1.msra.mxu0 %v5406
    %v5408 = vand.u32 %v4408, 4294901760
    %5409 = vmatprep.subr.mxu0 %v5408
    %v5410 = vand.u32 %v4407, 4294901760
    %5411 = vmatpush1.msra.mxu0 %v5410
    %v5412 = vand.u32 %v4404, 4294901760
    %5413 = vmatprep.subr.mxu0 %v5412
    %v5414 = vand.u32 %v4403, 4294901760
    %5415 = vmatpush1.msra.mxu0 %v5414
    %v5416 = vand.u32 %v4400, 4294901760
    %5417 = vmatprep.subr.mxu0 %v5416
    %v5418 = vand.u32 %v4399, 4294901760
    %5419 = vmatpush1.msra.mxu0 %v5418
    %v5420 = vand.u32 %v4396, 4294901760
    %5421 = vmatprep.subr.mxu0 %v5420
    %v5422 = vand.u32 %v4395, 4294901760
    %5423 = vmatpush1.msra.mxu0 %v5422
    %v5424 = vand.u32 %v4392, 4294901760
    %5425 = vmatprep.subr.mxu0 %v5424
    %v5426 = vand.u32 %v4391, 4294901760
    %5427 = vmatpush1.msra.mxu0 %v5426
    %v5428 = vand.u32 %v4388, 4294901760
    %5429 = vmatprep.subr.mxu0 %v5428
    %v5430 = vand.u32 %v4387, 4294901760
    %5431 = vmatpush1.msra.mxu0 %v5430
    %v5432 = vand.u32 %v4384, 4294901760
    %5433 = vmatprep.subr.mxu0 %v5432
    %v5434 = vand.u32 %v4383, 4294901760
    %5435 = vmatpush1.msra.mxu0 %v5434
    %v5436 = vand.u32 %v4380, 4294901760
    %5437 = vmatprep.subr.mxu0 %v5436
    %v5438 = vand.u32 %v4379, 4294901760
    %5439 = vmatpush1.msra.mxu0 %v5438
    %v5440 = vand.u32 %v4504, 4294901760
    %5441 = vmatprep.subr.mxu0 %v5440
    %v5442 = vand.u32 %v4503, 4294901760
    %5443 = vmatpush2.msra.mxu0 %v5442
    %v5444 = vand.u32 %v4500, 4294901760
    %5445 = vmatprep.subr.mxu0 %v5444
    %v5446 = vand.u32 %v4499, 4294901760
    %5447 = vmatpush2.msra.mxu0 %v5446
    %v5448 = vand.u32 %v4496, 4294901760
    %5449 = vmatprep.subr.mxu0 %v5448
    %v5450 = vand.u32 %v4495, 4294901760
    %5451 = vmatpush2.msra.mxu0 %v5450
    %v5452 = vand.u32 %v4492, 4294901760
    %5453 = vmatprep.subr.mxu0 %v5452
    %v5454 = vand.u32 %v4491, 4294901760
    %5455 = vmatpush2.msra.mxu0 %v5454
    %v5456 = vand.u32 %v4488, 4294901760
    %5457 = vmatprep.subr.mxu0 %v5456
    %v5458 = vand.u32 %v4487, 4294901760
    %5459 = vmatpush2.msra.mxu0 %v5458
    %v5460 = vand.u32 %v4484, 4294901760
    %5461 = vmatprep.subr.mxu0 %v5460
    %v5462 = vand.u32 %v4483, 4294901760
    %5463 = vmatpush2.msra.mxu0 %v5462
    %v5464 = vand.u32 %v4480, 4294901760
    %5465 = vmatprep.subr.mxu0 %v5464
    %v5466 = vand.u32 %v4479, 4294901760
    %5467 = vmatpush2.msra.mxu0 %v5466
    %v5468 = vand.u32 %v4476, 4294901760
    %5469 = vmatprep.subr.mxu0 %v5468
    %v5470 = vand.u32 %v4475, 4294901760
    %5471 = vmatpush2.msra.mxu0 %v5470
    %v5472 = vand.u32 %v4472, 4294901760
    %5473 = vmatprep.subr.mxu0 %v5472
    %v5474 = vand.u32 %v4471, 4294901760
    %5475 = vmatpush2.msra.mxu0 %v5474
    %v5476 = vand.u32 %v4468, 4294901760
    %5477 = vmatprep.subr.mxu0 %v5476
    %v5478 = vand.u32 %v4467, 4294901760
    %5479 = vmatpush2.msra.mxu0 %v5478
    %v5480 = vand.u32 %v4464, 4294901760
    %5481 = vmatprep.subr.mxu0 %v5480
    %v5482 = vand.u32 %v4463, 4294901760
    %5483 = vmatpush2.msra.mxu0 %v5482
    %v5484 = vand.u32 %v4460, 4294901760
    %5485 = vmatprep.subr.mxu0 %v5484
    %v5486 = vand.u32 %v4459, 4294901760
    %5487 = vmatpush2.msra.mxu0 %v5486
    %v5488 = vand.u32 %v4456, 4294901760
    %5489 = vmatprep.subr.mxu0 %v5488
    %v5490 = vand.u32 %v4455, 4294901760
    %5491 = vmatpush2.msra.mxu0 %v5490
    %v5492 = vand.u32 %v4452, 4294901760
    %5493 = vmatprep.subr.mxu0 %v5492
    %v5494 = vand.u32 %v4451, 4294901760
    %5495 = vmatpush2.msra.mxu0 %v5494
    %v5496 = vand.u32 %v4448, 4294901760
    %5497 = vmatprep.subr.mxu0 %v5496
    %v5498 = vand.u32 %v4447, 4294901760
    %5499 = vmatpush2.msra.mxu0 %v5498
    %v5500 = vand.u32 %v4444, 4294901760
    %5501 = vmatprep.subr.mxu0 %v5500
    %v5502 = vand.u32 %v4443, 4294901760
    %5503 = vmatpush2.msra.mxu0 %v5502
    %v5504 = vand.u32 %v4376, 4294901760
    %v5505 = vsub.f32 %v4376, %v5504
    %v5506 = vand.u32 %v5505, 4294901760
    %5507 = vmatprep.mubr.f32.mxu0 %v5506
    %v5508 = vand.u32 %v4375, 4294901760
    %v5509 = vsub.f32 %v4375, %v5508
    %v5510 = vand.u32 %v5509, 4294901760
    %5511 = vmatmul.mubr.f32.gmra.mxu0 %v5510
    %v5512 = vpop.f32.mrf.mxu0
    %v5513 = vadd.f32 %v5372, %v5512
    %v5514 = vpop.f32.mrf.mxu0
    %v5515 = vadd.f32 %v5374, %v5514
    %5516 = vdwg.mxu0
    %v5517 = vand.u32 %v4440, 4294901760
    %v5518 = vsub.f32 %v4440, %v5517
    %v5519 = vand.u32 %v5518, 4294901760
    %5520 = vmatprep.subr.mxu0 %v5519
    %v5521 = vand.u32 %v4439, 4294901760
    %v5522 = vsub.f32 %v4439, %v5521
    %v5523 = vand.u32 %v5522, 4294901760
    %5524 = vmatpush1.msra.mxu0 %v5523
    %v5525 = vand.u32 %v4436, 4294901760
    %v5526 = vsub.f32 %v4436, %v5525
    %v5527 = vand.u32 %v5526, 4294901760
    %5528 = vmatprep.subr.mxu0 %v5527
    %v5529 = vand.u32 %v4435, 4294901760
    %v5530 = vsub.f32 %v4435, %v5529
    %v5531 = vand.u32 %v5530, 4294901760
    %5532 = vmatpush1.msra.mxu0 %v5531
    %v5533 = vand.u32 %v4432, 4294901760
    %v5534 = vsub.f32 %v4432, %v5533
    %v5535 = vand.u32 %v5534, 4294901760
    %5536 = vmatprep.subr.mxu0 %v5535
    %v5537 = vand.u32 %v4431, 4294901760
    %v5538 = vsub.f32 %v4431, %v5537
    %v5539 = vand.u32 %v5538, 4294901760
    %5540 = vmatpush1.msra.mxu0 %v5539
    %v5541 = vand.u32 %v4428, 4294901760
    %v5542 = vsub.f32 %v4428, %v5541
    %v5543 = vand.u32 %v5542, 4294901760
    %5544 = vmatprep.subr.mxu0 %v5543
    %v5545 = vand.u32 %v4427, 4294901760
    %v5546 = vsub.f32 %v4427, %v5545
    %v5547 = vand.u32 %v5546, 4294901760
    %5548 = vmatpush1.msra.mxu0 %v5547
    %v5549 = vand.u32 %v4424, 4294901760
    %v5550 = vsub.f32 %v4424, %v5549
    %v5551 = vand.u32 %v5550, 4294901760
    %5552 = vmatprep.subr.mxu0 %v5551
    %v5553 = vand.u32 %v4423, 4294901760
    %v5554 = vsub.f32 %v4423, %v5553
    %v5555 = vand.u32 %v5554, 4294901760
    %5556 = vmatpush1.msra.mxu0 %v5555
    %v5557 = vand.u32 %v4420, 4294901760
    %v5558 = vsub.f32 %v4420, %v5557
    %v5559 = vand.u32 %v5558, 4294901760
    %5560 = vmatprep.subr.mxu0 %v5559
    %v5561 = vand.u32 %v4419, 4294901760
    %v5562 = vsub.f32 %v4419, %v5561
    %v5563 = vand.u32 %v5562, 4294901760
    %5564 = vmatpush1.msra.mxu0 %v5563
    %v5565 = vand.u32 %v4416, 4294901760
    %v5566 = vsub.f32 %v4416, %v5565
    %v5567 = vand.u32 %v5566, 4294901760
    %5568 = vmatprep.subr.mxu0 %v5567
    %v5569 = vand.u32 %v4415, 4294901760
    %v5570 = vsub.f32 %v4415, %v5569
    %v5571 = vand.u32 %v5570, 4294901760
    %5572 = vmatpush1.msra.mxu0 %v5571
    %v5573 = vand.u32 %v4412, 4294901760
    %v5574 = vsub.f32 %v4412, %v5573
    %v5575 = vand.u32 %v5574, 4294901760
    %5576 = vmatprep.subr.mxu0 %v5575
    %v5577 = vand.u32 %v4411, 4294901760
    %v5578 = vsub.f32 %v4411, %v5577
    %v5579 = vand.u32 %v5578, 4294901760
    %5580 = vmatpush1.msra.mxu0 %v5579
    %v5581 = vand.u32 %v4408, 4294901760
    %v5582 = vsub.f32 %v4408, %v5581
    %v5583 = vand.u32 %v5582, 4294901760
    %5584 = vmatprep.subr.mxu0 %v5583
    %v5585 = vand.u32 %v4407, 4294901760
    %v5586 = vsub.f32 %v4407, %v5585
    %v5587 = vand.u32 %v5586, 4294901760
    %5588 = vmatpush1.msra.mxu0 %v5587
    %v5589 = vand.u32 %v4404, 4294901760
    %v5590 = vsub.f32 %v4404, %v5589
    %v5591 = vand.u32 %v5590, 4294901760
    %5592 = vmatprep.subr.mxu0 %v5591
    %v5593 = vand.u32 %v4403, 4294901760
    %v5594 = vsub.f32 %v4403, %v5593
    %v5595 = vand.u32 %v5594, 4294901760
    %5596 = vmatpush1.msra.mxu0 %v5595
    %v5597 = vand.u32 %v4400, 4294901760
    %v5598 = vsub.f32 %v4400, %v5597
    %v5599 = vand.u32 %v5598, 4294901760
    %5600 = vmatprep.subr.mxu0 %v5599
    %v5601 = vand.u32 %v4399, 4294901760
    %v5602 = vsub.f32 %v4399, %v5601
    %v5603 = vand.u32 %v5602, 4294901760
    %5604 = vmatpush1.msra.mxu0 %v5603
    %v5605 = vand.u32 %v4396, 4294901760
    %v5606 = vsub.f32 %v4396, %v5605
    %v5607 = vand.u32 %v5606, 4294901760
    %5608 = vmatprep.subr.mxu0 %v5607
    %v5609 = vand.u32 %v4395, 4294901760
    %v5610 = vsub.f32 %v4395, %v5609
    %v5611 = vand.u32 %v5610, 4294901760
    %5612 = vmatpush1.msra.mxu0 %v5611
    %v5613 = vand.u32 %v4392, 4294901760
    %v5614 = vsub.f32 %v4392, %v5613
    %v5615 = vand.u32 %v5614, 4294901760
    %5616 = vmatprep.subr.mxu0 %v5615
    %v5617 = vand.u32 %v4391, 4294901760
    %v5618 = vsub.f32 %v4391, %v5617
    %v5619 = vand.u32 %v5618, 4294901760
    %5620 = vmatpush1.msra.mxu0 %v5619
    %v5621 = vand.u32 %v4388, 4294901760
    %v5622 = vsub.f32 %v4388, %v5621
    %v5623 = vand.u32 %v5622, 4294901760
    %5624 = vmatprep.subr.mxu0 %v5623
    %v5625 = vand.u32 %v4387, 4294901760
    %v5626 = vsub.f32 %v4387, %v5625
    %v5627 = vand.u32 %v5626, 4294901760
    %5628 = vmatpush1.msra.mxu0 %v5627
    %v5629 = vand.u32 %v4384, 4294901760
    %v5630 = vsub.f32 %v4384, %v5629
    %v5631 = vand.u32 %v5630, 4294901760
    %5632 = vmatprep.subr.mxu0 %v5631
    %v5633 = vand.u32 %v4383, 4294901760
    %v5634 = vsub.f32 %v4383, %v5633
    %v5635 = vand.u32 %v5634, 4294901760
    %5636 = vmatpush1.msra.mxu0 %v5635
    %v5637 = vand.u32 %v4380, 4294901760
    %v5638 = vsub.f32 %v4380, %v5637
    %v5639 = vand.u32 %v5638, 4294901760
    %5640 = vmatprep.subr.mxu0 %v5639
    %v5641 = vand.u32 %v4379, 4294901760
    %v5642 = vsub.f32 %v4379, %v5641
    %v5643 = vand.u32 %v5642, 4294901760
    %5644 = vmatpush1.msra.mxu0 %v5643
    %v5645 = vand.u32 %v4504, 4294901760
    %v5646 = vsub.f32 %v4504, %v5645
    %v5647 = vand.u32 %v5646, 4294901760
    %5648 = vmatprep.subr.mxu0 %v5647
    %v5649 = vand.u32 %v4503, 4294901760
    %v5650 = vsub.f32 %v4503, %v5649
    %v5651 = vand.u32 %v5650, 4294901760
    %5652 = vmatpush2.msra.mxu0 %v5651
    %v5653 = vand.u32 %v4500, 4294901760
    %v5654 = vsub.f32 %v4500, %v5653
    %v5655 = vand.u32 %v5654, 4294901760
    %5656 = vmatprep.subr.mxu0 %v5655
    %v5657 = vand.u32 %v4499, 4294901760
    %v5658 = vsub.f32 %v4499, %v5657
    %v5659 = vand.u32 %v5658, 4294901760
    %5660 = vmatpush2.msra.mxu0 %v5659
    %v5661 = vand.u32 %v4496, 4294901760
    %v5662 = vsub.f32 %v4496, %v5661
    %v5663 = vand.u32 %v5662, 4294901760
    %5664 = vmatprep.subr.mxu0 %v5663
    %v5665 = vand.u32 %v4495, 4294901760
    %v5666 = vsub.f32 %v4495, %v5665
    %v5667 = vand.u32 %v5666, 4294901760
    %5668 = vmatpush2.msra.mxu0 %v5667
    %v5669 = vand.u32 %v4492, 4294901760
    %v5670 = vsub.f32 %v4492, %v5669
    %v5671 = vand.u32 %v5670, 4294901760
    %5672 = vmatprep.subr.mxu0 %v5671
    %v5673 = vand.u32 %v4491, 4294901760
    %v5674 = vsub.f32 %v4491, %v5673
    %v5675 = vand.u32 %v5674, 4294901760
    %5676 = vmatpush2.msra.mxu0 %v5675
    %v5677 = vand.u32 %v4488, 4294901760
    %v5678 = vsub.f32 %v4488, %v5677
    %v5679 = vand.u32 %v5678, 4294901760
    %5680 = vmatprep.subr.mxu0 %v5679
    %v5681 = vand.u32 %v4487, 4294901760
    %v5682 = vsub.f32 %v4487, %v5681
    %v5683 = vand.u32 %v5682, 4294901760
    %5684 = vmatpush2.msra.mxu0 %v5683
    %v5685 = vand.u32 %v4484, 4294901760
    %v5686 = vsub.f32 %v4484, %v5685
    %v5687 = vand.u32 %v5686, 4294901760
    %5688 = vmatprep.subr.mxu0 %v5687
    %v5689 = vand.u32 %v4483, 4294901760
    %v5690 = vsub.f32 %v4483, %v5689
    %v5691 = vand.u32 %v5690, 4294901760
    %5692 = vmatpush2.msra.mxu0 %v5691
    %v5693 = vand.u32 %v4480, 4294901760
    %v5694 = vsub.f32 %v4480, %v5693
    %v5695 = vand.u32 %v5694, 4294901760
    %5696 = vmatprep.subr.mxu0 %v5695
    %v5697 = vand.u32 %v4479, 4294901760
    %v5698 = vsub.f32 %v4479, %v5697
    %v5699 = vand.u32 %v5698, 4294901760
    %5700 = vmatpush2.msra.mxu0 %v5699
    %v5701 = vand.u32 %v4476, 4294901760
    %v5702 = vsub.f32 %v4476, %v5701
    %v5703 = vand.u32 %v5702, 4294901760
    %5704 = vmatprep.subr.mxu0 %v5703
    %v5705 = vand.u32 %v4475, 4294901760
    %v5706 = vsub.f32 %v4475, %v5705
    %v5707 = vand.u32 %v5706, 4294901760
    %5708 = vmatpush2.msra.mxu0 %v5707
    %v5709 = vand.u32 %v4472, 4294901760
    %v5710 = vsub.f32 %v4472, %v5709
    %v5711 = vand.u32 %v5710, 4294901760
    %5712 = vmatprep.subr.mxu0 %v5711
    %v5713 = vand.u32 %v4471, 4294901760
    %v5714 = vsub.f32 %v4471, %v5713
    %v5715 = vand.u32 %v5714, 4294901760
    %5716 = vmatpush2.msra.mxu0 %v5715
    %v5717 = vand.u32 %v4468, 4294901760
    %v5718 = vsub.f32 %v4468, %v5717
    %v5719 = vand.u32 %v5718, 4294901760
    %5720 = vmatprep.subr.mxu0 %v5719
    %v5721 = vand.u32 %v4467, 4294901760
    %v5722 = vsub.f32 %v4467, %v5721
    %v5723 = vand.u32 %v5722, 4294901760
    %5724 = vmatpush2.msra.mxu0 %v5723
    %v5725 = vand.u32 %v4464, 4294901760
    %v5726 = vsub.f32 %v4464, %v5725
    %v5727 = vand.u32 %v5726, 4294901760
    %5728 = vmatprep.subr.mxu0 %v5727
    %v5729 = vand.u32 %v4463, 4294901760
    %v5730 = vsub.f32 %v4463, %v5729
    %v5731 = vand.u32 %v5730, 4294901760
    %5732 = vmatpush2.msra.mxu0 %v5731
    %v5733 = vand.u32 %v4460, 4294901760
    %v5734 = vsub.f32 %v4460, %v5733
    %v5735 = vand.u32 %v5734, 4294901760
    %5736 = vmatprep.subr.mxu0 %v5735
    %v5737 = vand.u32 %v4459, 4294901760
    %v5738 = vsub.f32 %v4459, %v5737
    %v5739 = vand.u32 %v5738, 4294901760
    %5740 = vmatpush2.msra.mxu0 %v5739
    %v5741 = vand.u32 %v4456, 4294901760
    %v5742 = vsub.f32 %v4456, %v5741
    %v5743 = vand.u32 %v5742, 4294901760
    %5744 = vmatprep.subr.mxu0 %v5743
    %v5745 = vand.u32 %v4455, 4294901760
    %v5746 = vsub.f32 %v4455, %v5745
    %v5747 = vand.u32 %v5746, 4294901760
    %5748 = vmatpush2.msra.mxu0 %v5747
    %v5749 = vand.u32 %v4452, 4294901760
    %v5750 = vsub.f32 %v4452, %v5749
    %v5751 = vand.u32 %v5750, 4294901760
    %5752 = vmatprep.subr.mxu0 %v5751
    %v5753 = vand.u32 %v4451, 4294901760
    %v5754 = vsub.f32 %v4451, %v5753
    %v5755 = vand.u32 %v5754, 4294901760
    %5756 = vmatpush2.msra.mxu0 %v5755
    %v5757 = vand.u32 %v4448, 4294901760
    %v5758 = vsub.f32 %v4448, %v5757
    %v5759 = vand.u32 %v5758, 4294901760
    %5760 = vmatprep.subr.mxu0 %v5759
    %v5761 = vand.u32 %v4447, 4294901760
    %v5762 = vsub.f32 %v4447, %v5761
    %v5763 = vand.u32 %v5762, 4294901760
    %5764 = vmatpush2.msra.mxu0 %v5763
    %v5765 = vand.u32 %v4444, 4294901760
    %v5766 = vsub.f32 %v4444, %v5765
    %v5767 = vand.u32 %v5766, 4294901760
    %5768 = vmatprep.subr.mxu0 %v5767
    %v5769 = vand.u32 %v4443, 4294901760
    %v5770 = vsub.f32 %v4443, %v5769
    %v5771 = vand.u32 %v5770, 4294901760
    %5772 = vmatpush2.msra.mxu0 %v5771
    %v5773 = vand.u32 %v4376, 4294901760
    %5774 = vmatprep.mubr.f32.mxu0 %v5773
    %v5775 = vand.u32 %v4375, 4294901760
    %5776 = vmatmul.mubr.f32.gmra.mxu0 %v5775
    %v5777 = vpop.f32.mrf.mxu0
    %v5778 = vadd.f32 %v5513, %v5777
    %v5779 = vpop.f32.mrf.mxu0
    %v5780 = vadd.f32 %v5515, %v5779
    %5781 = vdwg.mxu0
    %v5782 = vand.u32 %v4440, 4294901760
    %5783 = vmatprep.subr.mxu0 %v5782
    %v5784 = vand.u32 %v4439, 4294901760
    %5785 = vmatpush1.msra.mxu0 %v5784
    %v5786 = vand.u32 %v4436, 4294901760
    %5787 = vmatprep.subr.mxu0 %v5786
    %v5788 = vand.u32 %v4435, 4294901760
    %5789 = vmatpush1.msra.mxu0 %v5788
    %v5790 = vand.u32 %v4432, 4294901760
    %5791 = vmatprep.subr.mxu0 %v5790
    %v5792 = vand.u32 %v4431, 4294901760
    %5793 = vmatpush1.msra.mxu0 %v5792
    %v5794 = vand.u32 %v4428, 4294901760
    %5795 = vmatprep.subr.mxu0 %v5794
    %v5796 = vand.u32 %v4427, 4294901760
    %5797 = vmatpush1.msra.mxu0 %v5796
    %v5798 = vand.u32 %v4424, 4294901760
    %5799 = vmatprep.subr.mxu0 %v5798
    %v5800 = vand.u32 %v4423, 4294901760
    %5801 = vmatpush1.msra.mxu0 %v5800
    %v5802 = vand.u32 %v4420, 4294901760
    %5803 = vmatprep.subr.mxu0 %v5802
    %v5804 = vand.u32 %v4419, 4294901760
    %5805 = vmatpush1.msra.mxu0 %v5804
    %v5806 = vand.u32 %v4416, 4294901760
    %5807 = vmatprep.subr.mxu0 %v5806
    %v5808 = vand.u32 %v4415, 4294901760
    %5809 = vmatpush1.msra.mxu0 %v5808
    %v5810 = vand.u32 %v4412, 4294901760
    %5811 = vmatprep.subr.mxu0 %v5810
    %v5812 = vand.u32 %v4411, 4294901760
    %5813 = vmatpush1.msra.mxu0 %v5812
    %v5814 = vand.u32 %v4408, 4294901760
    %5815 = vmatprep.subr.mxu0 %v5814
    %v5816 = vand.u32 %v4407, 4294901760
    %5817 = vmatpush1.msra.mxu0 %v5816
    %v5818 = vand.u32 %v4404, 4294901760
    %5819 = vmatprep.subr.mxu0 %v5818
    %v5820 = vand.u32 %v4403, 4294901760
    %5821 = vmatpush1.msra.mxu0 %v5820
    %v5822 = vand.u32 %v4400, 4294901760
    %5823 = vmatprep.subr.mxu0 %v5822
    %v5824 = vand.u32 %v4399, 4294901760
    %5825 = vmatpush1.msra.mxu0 %v5824
    %v5826 = vand.u32 %v4396, 4294901760
    %5827 = vmatprep.subr.mxu0 %v5826
    %v5828 = vand.u32 %v4395, 4294901760
    %5829 = vmatpush1.msra.mxu0 %v5828
    %v5830 = vand.u32 %v4392, 4294901760
    %5831 = vmatprep.subr.mxu0 %v5830
    %v5832 = vand.u32 %v4391, 4294901760
    %5833 = vmatpush1.msra.mxu0 %v5832
    %v5834 = vand.u32 %v4388, 4294901760
    %5835 = vmatprep.subr.mxu0 %v5834
    %v5836 = vand.u32 %v4387, 4294901760
    %5837 = vmatpush1.msra.mxu0 %v5836
    %v5838 = vand.u32 %v4384, 4294901760
    %5839 = vmatprep.subr.mxu0 %v5838
    %v5840 = vand.u32 %v4383, 4294901760
    %5841 = vmatpush1.msra.mxu0 %v5840
    %v5842 = vand.u32 %v4380, 4294901760
    %5843 = vmatprep.subr.mxu0 %v5842
    %v5844 = vand.u32 %v4379, 4294901760
    %5845 = vmatpush1.msra.mxu0 %v5844
    %v5846 = vand.u32 %v4504, 4294901760
    %5847 = vmatprep.subr.mxu0 %v5846
    %v5848 = vand.u32 %v4503, 4294901760
    %5849 = vmatpush2.msra.mxu0 %v5848
    %v5850 = vand.u32 %v4500, 4294901760
    %5851 = vmatprep.subr.mxu0 %v5850
    %v5852 = vand.u32 %v4499, 4294901760
    %5853 = vmatpush2.msra.mxu0 %v5852
    %v5854 = vand.u32 %v4496, 4294901760
    %5855 = vmatprep.subr.mxu0 %v5854
    %v5856 = vand.u32 %v4495, 4294901760
    %5857 = vmatpush2.msra.mxu0 %v5856
    %v5858 = vand.u32 %v4492, 4294901760
    %5859 = vmatprep.subr.mxu0 %v5858
    %v5860 = vand.u32 %v4491, 4294901760
    %5861 = vmatpush2.msra.mxu0 %v5860
    %v5862 = vand.u32 %v4488, 4294901760
    %5863 = vmatprep.subr.mxu0 %v5862
    %v5864 = vand.u32 %v4487, 4294901760
    %5865 = vmatpush2.msra.mxu0 %v5864
    %v5866 = vand.u32 %v4484, 4294901760
    %5867 = vmatprep.subr.mxu0 %v5866
    %v5868 = vand.u32 %v4483, 4294901760
    %5869 = vmatpush2.msra.mxu0 %v5868
    %v5870 = vand.u32 %v4480, 4294901760
    %5871 = vmatprep.subr.mxu0 %v5870
    %v5872 = vand.u32 %v4479, 4294901760
    %5873 = vmatpush2.msra.mxu0 %v5872
    %v5874 = vand.u32 %v4476, 4294901760
    %5875 = vmatprep.subr.mxu0 %v5874
    %v5876 = vand.u32 %v4475, 4294901760
    %5877 = vmatpush2.msra.mxu0 %v5876
    %v5878 = vand.u32 %v4472, 4294901760
    %5879 = vmatprep.subr.mxu0 %v5878
    %v5880 = vand.u32 %v4471, 4294901760
    %5881 = vmatpush2.msra.mxu0 %v5880
    %v5882 = vand.u32 %v4468, 4294901760
    %5883 = vmatprep.subr.mxu0 %v5882
    %v5884 = vand.u32 %v4467, 4294901760
    %5885 = vmatpush2.msra.mxu0 %v5884
    %v5886 = vand.u32 %v4464, 4294901760
    %5887 = vmatprep.subr.mxu0 %v5886
    %v5888 = vand.u32 %v4463, 4294901760
    %5889 = vmatpush2.msra.mxu0 %v5888
    %v5890 = vand.u32 %v4460, 4294901760
    %5891 = vmatprep.subr.mxu0 %v5890
    %v5892 = vand.u32 %v4459, 4294901760
    %5893 = vmatpush2.msra.mxu0 %v5892
    %v5894 = vand.u32 %v4456, 4294901760
    %5895 = vmatprep.subr.mxu0 %v5894
    %v5896 = vand.u32 %v4455, 4294901760
    %5897 = vmatpush2.msra.mxu0 %v5896
    %v5898 = vand.u32 %v4452, 4294901760
    %5899 = vmatprep.subr.mxu0 %v5898
    %v5900 = vand.u32 %v4451, 4294901760
    %5901 = vmatpush2.msra.mxu0 %v5900
    %v5902 = vand.u32 %v4448, 4294901760
    %5903 = vmatprep.subr.mxu0 %v5902
    %v5904 = vand.u32 %v4447, 4294901760
    %5905 = vmatpush2.msra.mxu0 %v5904
    %v5906 = vand.u32 %v4444, 4294901760
    %5907 = vmatprep.subr.mxu0 %v5906
    %v5908 = vand.u32 %v4443, 4294901760
    %5909 = vmatpush2.msra.mxu0 %v5908
    %v5910 = vand.u32 %v4376, 4294901760
    %5911 = vmatprep.mubr.f32.mxu0 %v5910
    %v5912 = vand.u32 %v4375, 4294901760
    %5913 = vmatmul.mubr.f32.gmra.mxu0 %v5912
    %v5914 = vpop.f32.mrf.mxu0
    %v5915 = vadd.f32 %v5778, %v5914
    %v5916 = vpop.f32.mrf.mxu0
    %v5917 = vadd.f32 %v5780, %v5916
    %5918 = vdwg.mxu0
    %v5919 = vand.u32 %v4568, 4294901760
    %5920 = vmatprep.subr.mxu0 %v5919
    %v5921 = vand.u32 %v4567, 4294901760
    %5922 = vmatpush1.msra.mxu0 %v5921
    %v5923 = vand.u32 %v4564, 4294901760
    %5924 = vmatprep.subr.mxu0 %v5923
    %v5925 = vand.u32 %v4563, 4294901760
    %5926 = vmatpush1.msra.mxu0 %v5925
    %v5927 = vand.u32 %v4560, 4294901760
    %5928 = vmatprep.subr.mxu0 %v5927
    %v5929 = vand.u32 %v4559, 4294901760
    %5930 = vmatpush1.msra.mxu0 %v5929
    %v5931 = vand.u32 %v4556, 4294901760
    %5932 = vmatprep.subr.mxu0 %v5931
    %v5933 = vand.u32 %v4555, 4294901760
    %5934 = vmatpush1.msra.mxu0 %v5933
    %v5935 = vand.u32 %v4552, 4294901760
    %5936 = vmatprep.subr.mxu0 %v5935
    %v5937 = vand.u32 %v4551, 4294901760
    %5938 = vmatpush1.msra.mxu0 %v5937
    %v5939 = vand.u32 %v4548, 4294901760
    %5940 = vmatprep.subr.mxu0 %v5939
    %v5941 = vand.u32 %v4547, 4294901760
    %5942 = vmatpush1.msra.mxu0 %v5941
    %v5943 = vand.u32 %v4544, 4294901760
    %5944 = vmatprep.subr.mxu0 %v5943
    %v5945 = vand.u32 %v4543, 4294901760
    %5946 = vmatpush1.msra.mxu0 %v5945
    %v5947 = vand.u32 %v4540, 4294901760
    %5948 = vmatprep.subr.mxu0 %v5947
    %v5949 = vand.u32 %v4539, 4294901760
    %5950 = vmatpush1.msra.mxu0 %v5949
    %v5951 = vand.u32 %v4536, 4294901760
    %5952 = vmatprep.subr.mxu0 %v5951
    %v5953 = vand.u32 %v4535, 4294901760
    %5954 = vmatpush1.msra.mxu0 %v5953
    %v5955 = vand.u32 %v4532, 4294901760
    %5956 = vmatprep.subr.mxu0 %v5955
    %v5957 = vand.u32 %v4531, 4294901760
    %5958 = vmatpush1.msra.mxu0 %v5957
    %v5959 = vand.u32 %v4528, 4294901760
    %5960 = vmatprep.subr.mxu0 %v5959
    %v5961 = vand.u32 %v4527, 4294901760
    %5962 = vmatpush1.msra.mxu0 %v5961
    %v5963 = vand.u32 %v4524, 4294901760
    %5964 = vmatprep.subr.mxu0 %v5963
    %v5965 = vand.u32 %v4523, 4294901760
    %5966 = vmatpush1.msra.mxu0 %v5965
    %v5967 = vand.u32 %v4520, 4294901760
    %5968 = vmatprep.subr.mxu0 %v5967
    %v5969 = vand.u32 %v4519, 4294901760
    %5970 = vmatpush1.msra.mxu0 %v5969
    %v5971 = vand.u32 %v4516, 4294901760
    %5972 = vmatprep.subr.mxu0 %v5971
    %v5973 = vand.u32 %v4515, 4294901760
    %5974 = vmatpush1.msra.mxu0 %v5973
    %v5975 = vand.u32 %v4512, 4294901760
    %5976 = vmatprep.subr.mxu0 %v5975
    %v5977 = vand.u32 %v4511, 4294901760
    %5978 = vmatpush1.msra.mxu0 %v5977
    %v5979 = vand.u32 %v4508, 4294901760
    %5980 = vmatprep.subr.mxu0 %v5979
    %v5981 = vand.u32 %v4507, 4294901760
    %5982 = vmatpush1.msra.mxu0 %v5981
    %v5983 = vand.u32 %v4632, 4294901760
    %5984 = vmatprep.subr.mxu0 %v5983
    %v5985 = vand.u32 %v4631, 4294901760
    %5986 = vmatpush2.msra.mxu0 %v5985
    %v5987 = vand.u32 %v4628, 4294901760
    %5988 = vmatprep.subr.mxu0 %v5987
    %v5989 = vand.u32 %v4627, 4294901760
    %5990 = vmatpush2.msra.mxu0 %v5989
    %v5991 = vand.u32 %v4624, 4294901760
    %5992 = vmatprep.subr.mxu0 %v5991
    %v5993 = vand.u32 %v4623, 4294901760
    %5994 = vmatpush2.msra.mxu0 %v5993
    %v5995 = vand.u32 %v4620, 4294901760
    %5996 = vmatprep.subr.mxu0 %v5995
    %v5997 = vand.u32 %v4619, 4294901760
    %5998 = vmatpush2.msra.mxu0 %v5997
    %v5999 = vand.u32 %v4616, 4294901760
    %6000 = vmatprep.subr.mxu0 %v5999
    %v6001 = vand.u32 %v4615, 4294901760
    %6002 = vmatpush2.msra.mxu0 %v6001
    %v6003 = vand.u32 %v4612, 4294901760
    %6004 = vmatprep.subr.mxu0 %v6003
    %v6005 = vand.u32 %v4611, 4294901760
    %6006 = vmatpush2.msra.mxu0 %v6005
    %v6007 = vand.u32 %v4608, 4294901760
    %6008 = vmatprep.subr.mxu0 %v6007
    %v6009 = vand.u32 %v4607, 4294901760
    %6010 = vmatpush2.msra.mxu0 %v6009
    %v6011 = vand.u32 %v4604, 4294901760
    %6012 = vmatprep.subr.mxu0 %v6011
    %v6013 = vand.u32 %v4603, 4294901760
    %6014 = vmatpush2.msra.mxu0 %v6013
    %v6015 = vand.u32 %v4600, 4294901760
    %6016 = vmatprep.subr.mxu0 %v6015
    %v6017 = vand.u32 %v4599, 4294901760
    %6018 = vmatpush2.msra.mxu0 %v6017
    %v6019 = vand.u32 %v4596, 4294901760
    %6020 = vmatprep.subr.mxu0 %v6019
    %v6021 = vand.u32 %v4595, 4294901760
    %6022 = vmatpush2.msra.mxu0 %v6021
    %v6023 = vand.u32 %v4592, 4294901760
    %6024 = vmatprep.subr.mxu0 %v6023
    %v6025 = vand.u32 %v4591, 4294901760
    %6026 = vmatpush2.msra.mxu0 %v6025
    %v6027 = vand.u32 %v4588, 4294901760
    %6028 = vmatprep.subr.mxu0 %v6027
    %v6029 = vand.u32 %v4587, 4294901760
    %6030 = vmatpush2.msra.mxu0 %v6029
    %v6031 = vand.u32 %v4584, 4294901760
    %6032 = vmatprep.subr.mxu0 %v6031
    %v6033 = vand.u32 %v4583, 4294901760
    %6034 = vmatpush2.msra.mxu0 %v6033
    %v6035 = vand.u32 %v4580, 4294901760
    %6036 = vmatprep.subr.mxu0 %v6035
    %v6037 = vand.u32 %v4579, 4294901760
    %6038 = vmatpush2.msra.mxu0 %v6037
    %v6039 = vand.u32 %v4576, 4294901760
    %6040 = vmatprep.subr.mxu0 %v6039
    %v6041 = vand.u32 %v4575, 4294901760
    %6042 = vmatpush2.msra.mxu0 %v6041
    %v6043 = vand.u32 %v4572, 4294901760
    %6044 = vmatprep.subr.mxu0 %v6043
    %v6045 = vand.u32 %v4571, 4294901760
    %6046 = vmatpush2.msra.mxu0 %v6045
    %v6047 = vand.u32 %v4378, 4294901760
    %v6048 = vsub.f32 %v4378, %v6047
    %v6049 = vand.u32 %v6048, 4294901760
    %v6050 = vsub.f32 %v6048, %v6049
    %v6051 = vand.u32 %v6050, 4294901760
    %6052 = vmatprep.mubr.f32.mxu0 %v6051
    %v6053 = vand.u32 %v4377, 4294901760
    %v6054 = vsub.f32 %v4377, %v6053
    %v6055 = vand.u32 %v6054, 4294901760
    %v6056 = vsub.f32 %v6054, %v6055
    %v6057 = vand.u32 %v6056, 4294901760
    %6058 = vmatmul.mubr.f32.gmra.mxu0 %v6057
    %v6059 = vpop.f32.mrf.mxu0
    %v6060 = vadd.f32 %v5915, %v6059
    %v6061 = vpop.f32.mrf.mxu0
    %v6062 = vadd.f32 %v5917, %v6061
    %6063 = vdwg.mxu0
    %v6064 = vand.u32 %v4568, 4294901760
    %v6065 = vsub.f32 %v4568, %v6064
    %v6066 = vand.u32 %v6065, 4294901760
    %v6067 = vsub.f32 %v6065, %v6066
    %v6068 = vand.u32 %v6067, 4294901760
    %6069 = vmatprep.subr.mxu0 %v6068
    %v6070 = vand.u32 %v4567, 4294901760
    %v6071 = vsub.f32 %v4567, %v6070
    %v6072 = vand.u32 %v6071, 4294901760
    %v6073 = vsub.f32 %v6071, %v6072
    %v6074 = vand.u32 %v6073, 4294901760
    %6075 = vmatpush1.msra.mxu0 %v6074
    %v6076 = vand.u32 %v4564, 4294901760
    %v6077 = vsub.f32 %v4564, %v6076
    %v6078 = vand.u32 %v6077, 4294901760
    %v6079 = vsub.f32 %v6077, %v6078
    %v6080 = vand.u32 %v6079, 4294901760
    %6081 = vmatprep.subr.mxu0 %v6080
    %v6082 = vand.u32 %v4563, 4294901760
    %v6083 = vsub.f32 %v4563, %v6082
    %v6084 = vand.u32 %v6083, 4294901760
    %v6085 = vsub.f32 %v6083, %v6084
    %v6086 = vand.u32 %v6085, 4294901760
    %6087 = vmatpush1.msra.mxu0 %v6086
    %v6088 = vand.u32 %v4560, 4294901760
    %v6089 = vsub.f32 %v4560, %v6088
    %v6090 = vand.u32 %v6089, 4294901760
    %v6091 = vsub.f32 %v6089, %v6090
    %v6092 = vand.u32 %v6091, 4294901760
    %6093 = vmatprep.subr.mxu0 %v6092
    %v6094 = vand.u32 %v4559, 4294901760
    %v6095 = vsub.f32 %v4559, %v6094
    %v6096 = vand.u32 %v6095, 4294901760
    %v6097 = vsub.f32 %v6095, %v6096
    %v6098 = vand.u32 %v6097, 4294901760
    %6099 = vmatpush1.msra.mxu0 %v6098
    %v6100 = vand.u32 %v4556, 4294901760
    %v6101 = vsub.f32 %v4556, %v6100
    %v6102 = vand.u32 %v6101, 4294901760
    %v6103 = vsub.f32 %v6101, %v6102
    %v6104 = vand.u32 %v6103, 4294901760
    %6105 = vmatprep.subr.mxu0 %v6104
    %v6106 = vand.u32 %v4555, 4294901760
    %v6107 = vsub.f32 %v4555, %v6106
    %v6108 = vand.u32 %v6107, 4294901760
    %v6109 = vsub.f32 %v6107, %v6108
    %v6110 = vand.u32 %v6109, 4294901760
    %6111 = vmatpush1.msra.mxu0 %v6110
    %v6112 = vand.u32 %v4552, 4294901760
    %v6113 = vsub.f32 %v4552, %v6112
    %v6114 = vand.u32 %v6113, 4294901760
    %v6115 = vsub.f32 %v6113, %v6114
    %v6116 = vand.u32 %v6115, 4294901760
    %6117 = vmatprep.subr.mxu0 %v6116
    %v6118 = vand.u32 %v4551, 4294901760
    %v6119 = vsub.f32 %v4551, %v6118
    %v6120 = vand.u32 %v6119, 4294901760
    %v6121 = vsub.f32 %v6119, %v6120
    %v6122 = vand.u32 %v6121, 4294901760
    %6123 = vmatpush1.msra.mxu0 %v6122
    %v6124 = vand.u32 %v4548, 4294901760
    %v6125 = vsub.f32 %v4548, %v6124
    %v6126 = vand.u32 %v6125, 4294901760
    %v6127 = vsub.f32 %v6125, %v6126
    %v6128 = vand.u32 %v6127, 4294901760
    %6129 = vmatprep.subr.mxu0 %v6128
    %v6130 = vand.u32 %v4547, 4294901760
    %v6131 = vsub.f32 %v4547, %v6130
    %v6132 = vand.u32 %v6131, 4294901760
    %v6133 = vsub.f32 %v6131, %v6132
    %v6134 = vand.u32 %v6133, 4294901760
    %6135 = vmatpush1.msra.mxu0 %v6134
    %v6136 = vand.u32 %v4544, 4294901760
    %v6137 = vsub.f32 %v4544, %v6136
    %v6138 = vand.u32 %v6137, 4294901760
    %v6139 = vsub.f32 %v6137, %v6138
    %v6140 = vand.u32 %v6139, 4294901760
    %6141 = vmatprep.subr.mxu0 %v6140
    %v6142 = vand.u32 %v4543, 4294901760
    %v6143 = vsub.f32 %v4543, %v6142
    %v6144 = vand.u32 %v6143, 4294901760
    %v6145 = vsub.f32 %v6143, %v6144
    %v6146 = vand.u32 %v6145, 4294901760
    %6147 = vmatpush1.msra.mxu0 %v6146
    %v6148 = vand.u32 %v4540, 4294901760
    %v6149 = vsub.f32 %v4540, %v6148
    %v6150 = vand.u32 %v6149, 4294901760
    %v6151 = vsub.f32 %v6149, %v6150
    %v6152 = vand.u32 %v6151, 4294901760
    %6153 = vmatprep.subr.mxu0 %v6152
    %v6154 = vand.u32 %v4539, 4294901760
    %v6155 = vsub.f32 %v4539, %v6154
    %v6156 = vand.u32 %v6155, 4294901760
    %v6157 = vsub.f32 %v6155, %v6156
    %v6158 = vand.u32 %v6157, 4294901760
    %6159 = vmatpush1.msra.mxu0 %v6158
    %v6160 = vand.u32 %v4536, 4294901760
    %v6161 = vsub.f32 %v4536, %v6160
    %v6162 = vand.u32 %v6161, 4294901760
    %v6163 = vsub.f32 %v6161, %v6162
    %v6164 = vand.u32 %v6163, 4294901760
    %6165 = vmatprep.subr.mxu0 %v6164
    %v6166 = vand.u32 %v4535, 4294901760
    %v6167 = vsub.f32 %v4535, %v6166
    %v6168 = vand.u32 %v6167, 4294901760
    %v6169 = vsub.f32 %v6167, %v6168
    %v6170 = vand.u32 %v6169, 4294901760
    %6171 = vmatpush1.msra.mxu0 %v6170
    %v6172 = vand.u32 %v4532, 4294901760
    %v6173 = vsub.f32 %v4532, %v6172
    %v6174 = vand.u32 %v6173, 4294901760
    %v6175 = vsub.f32 %v6173, %v6174
    %v6176 = vand.u32 %v6175, 4294901760
    %6177 = vmatprep.subr.mxu0 %v6176
    %v6178 = vand.u32 %v4531, 4294901760
    %v6179 = vsub.f32 %v4531, %v6178
    %v6180 = vand.u32 %v6179, 4294901760
    %v6181 = vsub.f32 %v6179, %v6180
    %v6182 = vand.u32 %v6181, 4294901760
    %6183 = vmatpush1.msra.mxu0 %v6182
    %v6184 = vand.u32 %v4528, 4294901760
    %v6185 = vsub.f32 %v4528, %v6184
    %v6186 = vand.u32 %v6185, 4294901760
    %v6187 = vsub.f32 %v6185, %v6186
    %v6188 = vand.u32 %v6187, 4294901760
    %6189 = vmatprep.subr.mxu0 %v6188
    %v6190 = vand.u32 %v4527, 4294901760
    %v6191 = vsub.f32 %v4527, %v6190
    %v6192 = vand.u32 %v6191, 4294901760
    %v6193 = vsub.f32 %v6191, %v6192
    %v6194 = vand.u32 %v6193, 4294901760
    %6195 = vmatpush1.msra.mxu0 %v6194
    %v6196 = vand.u32 %v4524, 4294901760
    %v6197 = vsub.f32 %v4524, %v6196
    %v6198 = vand.u32 %v6197, 4294901760
    %v6199 = vsub.f32 %v6197, %v6198
    %v6200 = vand.u32 %v6199, 4294901760
    %6201 = vmatprep.subr.mxu0 %v6200
    %v6202 = vand.u32 %v4523, 4294901760
    %v6203 = vsub.f32 %v4523, %v6202
    %v6204 = vand.u32 %v6203, 4294901760
    %v6205 = vsub.f32 %v6203, %v6204
    %v6206 = vand.u32 %v6205, 4294901760
    %6207 = vmatpush1.msra.mxu0 %v6206
    %v6208 = vand.u32 %v4520, 4294901760
    %v6209 = vsub.f32 %v4520, %v6208
    %v6210 = vand.u32 %v6209, 4294901760
    %v6211 = vsub.f32 %v6209, %v6210
    %v6212 = vand.u32 %v6211, 4294901760
    %6213 = vmatprep.subr.mxu0 %v6212
    %v6214 = vand.u32 %v4519, 4294901760
    %v6215 = vsub.f32 %v4519, %v6214
    %v6216 = vand.u32 %v6215, 4294901760
    %v6217 = vsub.f32 %v6215, %v6216
    %v6218 = vand.u32 %v6217, 4294901760
    %6219 = vmatpush1.msra.mxu0 %v6218
    %v6220 = vand.u32 %v4516, 4294901760
    %v6221 = vsub.f32 %v4516, %v6220
    %v6222 = vand.u32 %v6221, 4294901760
    %v6223 = vsub.f32 %v6221, %v6222
    %v6224 = vand.u32 %v6223, 4294901760
    %6225 = vmatprep.subr.mxu0 %v6224
    %v6226 = vand.u32 %v4515, 4294901760
    %v6227 = vsub.f32 %v4515, %v6226
    %v6228 = vand.u32 %v6227, 4294901760
    %v6229 = vsub.f32 %v6227, %v6228
    %v6230 = vand.u32 %v6229, 4294901760
    %6231 = vmatpush1.msra.mxu0 %v6230
    %v6232 = vand.u32 %v4512, 4294901760
    %v6233 = vsub.f32 %v4512, %v6232
    %v6234 = vand.u32 %v6233, 4294901760
    %v6235 = vsub.f32 %v6233, %v6234
    %v6236 = vand.u32 %v6235, 4294901760
    %6237 = vmatprep.subr.mxu0 %v6236
    %v6238 = vand.u32 %v4511, 4294901760
    %v6239 = vsub.f32 %v4511, %v6238
    %v6240 = vand.u32 %v6239, 4294901760
    %v6241 = vsub.f32 %v6239, %v6240
    %v6242 = vand.u32 %v6241, 4294901760
    %6243 = vmatpush1.msra.mxu0 %v6242
    %v6244 = vand.u32 %v4508, 4294901760
    %v6245 = vsub.f32 %v4508, %v6244
    %v6246 = vand.u32 %v6245, 4294901760
    %v6247 = vsub.f32 %v6245, %v6246
    %v6248 = vand.u32 %v6247, 4294901760
    %6249 = vmatprep.subr.mxu0 %v6248
    %v6250 = vand.u32 %v4507, 4294901760
    %v6251 = vsub.f32 %v4507, %v6250
    %v6252 = vand.u32 %v6251, 4294901760
    %v6253 = vsub.f32 %v6251, %v6252
    %v6254 = vand.u32 %v6253, 4294901760
    %6255 = vmatpush1.msra.mxu0 %v6254
    %v6256 = vand.u32 %v4632, 4294901760
    %v6257 = vsub.f32 %v4632, %v6256
    %v6258 = vand.u32 %v6257, 4294901760
    %v6259 = vsub.f32 %v6257, %v6258
    %v6260 = vand.u32 %v6259, 4294901760
    %6261 = vmatprep.subr.mxu0 %v6260
    %v6262 = vand.u32 %v4631, 4294901760
    %v6263 = vsub.f32 %v4631, %v6262
    %v6264 = vand.u32 %v6263, 4294901760
    %v6265 = vsub.f32 %v6263, %v6264
    %v6266 = vand.u32 %v6265, 4294901760
    %6267 = vmatpush2.msra.mxu0 %v6266
    %v6268 = vand.u32 %v4628, 4294901760
    %v6269 = vsub.f32 %v4628, %v6268
    %v6270 = vand.u32 %v6269, 4294901760
    %v6271 = vsub.f32 %v6269, %v6270
    %v6272 = vand.u32 %v6271, 4294901760
    %6273 = vmatprep.subr.mxu0 %v6272
    %v6274 = vand.u32 %v4627, 4294901760
    %v6275 = vsub.f32 %v4627, %v6274
    %v6276 = vand.u32 %v6275, 4294901760
    %v6277 = vsub.f32 %v6275, %v6276
    %v6278 = vand.u32 %v6277, 4294901760
    %6279 = vmatpush2.msra.mxu0 %v6278
    %v6280 = vand.u32 %v4624, 4294901760
    %v6281 = vsub.f32 %v4624, %v6280
    %v6282 = vand.u32 %v6281, 4294901760
    %v6283 = vsub.f32 %v6281, %v6282
    %v6284 = vand.u32 %v6283, 4294901760
    %6285 = vmatprep.subr.mxu0 %v6284
    %v6286 = vand.u32 %v4623, 4294901760
    %v6287 = vsub.f32 %v4623, %v6286
    %v6288 = vand.u32 %v6287, 4294901760
    %v6289 = vsub.f32 %v6287, %v6288
    %v6290 = vand.u32 %v6289, 4294901760
    %6291 = vmatpush2.msra.mxu0 %v6290
    %v6292 = vand.u32 %v4620, 4294901760
    %v6293 = vsub.f32 %v4620, %v6292
    %v6294 = vand.u32 %v6293, 4294901760
    %v6295 = vsub.f32 %v6293, %v6294
    %v6296 = vand.u32 %v6295, 4294901760
    %6297 = vmatprep.subr.mxu0 %v6296
    %v6298 = vand.u32 %v4619, 4294901760
    %v6299 = vsub.f32 %v4619, %v6298
    %v6300 = vand.u32 %v6299, 4294901760
    %v6301 = vsub.f32 %v6299, %v6300
    %v6302 = vand.u32 %v6301, 4294901760
    %6303 = vmatpush2.msra.mxu0 %v6302
    %v6304 = vand.u32 %v4616, 4294901760
    %v6305 = vsub.f32 %v4616, %v6304
    %v6306 = vand.u32 %v6305, 4294901760
    %v6307 = vsub.f32 %v6305, %v6306
    %v6308 = vand.u32 %v6307, 4294901760
    %6309 = vmatprep.subr.mxu0 %v6308
    %v6310 = vand.u32 %v4615, 4294901760
    %v6311 = vsub.f32 %v4615, %v6310
    %v6312 = vand.u32 %v6311, 4294901760
    %v6313 = vsub.f32 %v6311, %v6312
    %v6314 = vand.u32 %v6313, 4294901760
    %6315 = vmatpush2.msra.mxu0 %v6314
    %v6316 = vand.u32 %v4612, 4294901760
    %v6317 = vsub.f32 %v4612, %v6316
    %v6318 = vand.u32 %v6317, 4294901760
    %v6319 = vsub.f32 %v6317, %v6318
    %v6320 = vand.u32 %v6319, 4294901760
    %6321 = vmatprep.subr.mxu0 %v6320
    %v6322 = vand.u32 %v4611, 4294901760
    %v6323 = vsub.f32 %v4611, %v6322
    %v6324 = vand.u32 %v6323, 4294901760
    %v6325 = vsub.f32 %v6323, %v6324
    %v6326 = vand.u32 %v6325, 4294901760
    %6327 = vmatpush2.msra.mxu0 %v6326
    %v6328 = vand.u32 %v4608, 4294901760
    %v6329 = vsub.f32 %v4608, %v6328
    %v6330 = vand.u32 %v6329, 4294901760
    %v6331 = vsub.f32 %v6329, %v6330
    %v6332 = vand.u32 %v6331, 4294901760
    %6333 = vmatprep.subr.mxu0 %v6332
    %v6334 = vand.u32 %v4607, 4294901760
    %v6335 = vsub.f32 %v4607, %v6334
    %v6336 = vand.u32 %v6335, 4294901760
    %v6337 = vsub.f32 %v6335, %v6336
    %v6338 = vand.u32 %v6337, 4294901760
    %6339 = vmatpush2.msra.mxu0 %v6338
    %v6340 = vand.u32 %v4604, 4294901760
    %v6341 = vsub.f32 %v4604, %v6340
    %v6342 = vand.u32 %v6341, 4294901760
    %v6343 = vsub.f32 %v6341, %v6342
    %v6344 = vand.u32 %v6343, 4294901760
    %6345 = vmatprep.subr.mxu0 %v6344
    %v6346 = vand.u32 %v4603, 4294901760
    %v6347 = vsub.f32 %v4603, %v6346
    %v6348 = vand.u32 %v6347, 4294901760
    %v6349 = vsub.f32 %v6347, %v6348
    %v6350 = vand.u32 %v6349, 4294901760
    %6351 = vmatpush2.msra.mxu0 %v6350
    %v6352 = vand.u32 %v4600, 4294901760
    %v6353 = vsub.f32 %v4600, %v6352
    %v6354 = vand.u32 %v6353, 4294901760
    %v6355 = vsub.f32 %v6353, %v6354
    %v6356 = vand.u32 %v6355, 4294901760
    %6357 = vmatprep.subr.mxu0 %v6356
    %v6358 = vand.u32 %v4599, 4294901760
    %v6359 = vsub.f32 %v4599, %v6358
    %v6360 = vand.u32 %v6359, 4294901760
    %v6361 = vsub.f32 %v6359, %v6360
    %v6362 = vand.u32 %v6361, 4294901760
    %6363 = vmatpush2.msra.mxu0 %v6362
    %v6364 = vand.u32 %v4596, 4294901760
    %v6365 = vsub.f32 %v4596, %v6364
    %v6366 = vand.u32 %v6365, 4294901760
    %v6367 = vsub.f32 %v6365, %v6366
    %v6368 = vand.u32 %v6367, 4294901760
    %6369 = vmatprep.subr.mxu0 %v6368
    %v6370 = vand.u32 %v4595, 4294901760
    %v6371 = vsub.f32 %v4595, %v6370
    %v6372 = vand.u32 %v6371, 4294901760
    %v6373 = vsub.f32 %v6371, %v6372
    %v6374 = vand.u32 %v6373, 4294901760
    %6375 = vmatpush2.msra.mxu0 %v6374
    %v6376 = vand.u32 %v4592, 4294901760
    %v6377 = vsub.f32 %v4592, %v6376
    %v6378 = vand.u32 %v6377, 4294901760
    %v6379 = vsub.f32 %v6377, %v6378
    %v6380 = vand.u32 %v6379, 4294901760
    %6381 = vmatprep.subr.mxu0 %v6380
    %v6382 = vand.u32 %v4591, 4294901760
    %v6383 = vsub.f32 %v4591, %v6382
    %v6384 = vand.u32 %v6383, 4294901760
    %v6385 = vsub.f32 %v6383, %v6384
    %v6386 = vand.u32 %v6385, 4294901760
    %6387 = vmatpush2.msra.mxu0 %v6386
    %v6388 = vand.u32 %v4588, 4294901760
    %v6389 = vsub.f32 %v4588, %v6388
    %v6390 = vand.u32 %v6389, 4294901760
    %v6391 = vsub.f32 %v6389, %v6390
    %v6392 = vand.u32 %v6391, 4294901760
    %6393 = vmatprep.subr.mxu0 %v6392
    %v6394 = vand.u32 %v4587, 4294901760
    %v6395 = vsub.f32 %v4587, %v6394
    %v6396 = vand.u32 %v6395, 4294901760
    %v6397 = vsub.f32 %v6395, %v6396
    %v6398 = vand.u32 %v6397, 4294901760
    %6399 = vmatpush2.msra.mxu0 %v6398
    %v6400 = vand.u32 %v4584, 4294901760
    %v6401 = vsub.f32 %v4584, %v6400
    %v6402 = vand.u32 %v6401, 4294901760
    %v6403 = vsub.f32 %v6401, %v6402
    %v6404 = vand.u32 %v6403, 4294901760
    %6405 = vmatprep.subr.mxu0 %v6404
    %v6406 = vand.u32 %v4583, 4294901760
    %v6407 = vsub.f32 %v4583, %v6406
    %v6408 = vand.u32 %v6407, 4294901760
    %v6409 = vsub.f32 %v6407, %v6408
    %v6410 = vand.u32 %v6409, 4294901760
    %6411 = vmatpush2.msra.mxu0 %v6410
    %v6412 = vand.u32 %v4580, 4294901760
    %v6413 = vsub.f32 %v4580, %v6412
    %v6414 = vand.u32 %v6413, 4294901760
    %v6415 = vsub.f32 %v6413, %v6414
    %v6416 = vand.u32 %v6415, 4294901760
    %6417 = vmatprep.subr.mxu0 %v6416
    %v6418 = vand.u32 %v4579, 4294901760
    %v6419 = vsub.f32 %v4579, %v6418
    %v6420 = vand.u32 %v6419, 4294901760
    %v6421 = vsub.f32 %v6419, %v6420
    %v6422 = vand.u32 %v6421, 4294901760
    %6423 = vmatpush2.msra.mxu0 %v6422
    %v6424 = vand.u32 %v4576, 4294901760
    %v6425 = vsub.f32 %v4576, %v6424
    %v6426 = vand.u32 %v6425, 4294901760
    %v6427 = vsub.f32 %v6425, %v6426
    %v6428 = vand.u32 %v6427, 4294901760
    %6429 = vmatprep.subr.mxu0 %v6428
    %v6430 = vand.u32 %v4575, 4294901760
    %v6431 = vsub.f32 %v4575, %v6430
    %v6432 = vand.u32 %v6431, 4294901760
    %v6433 = vsub.f32 %v6431, %v6432
    %v6434 = vand.u32 %v6433, 4294901760
    %6435 = vmatpush2.msra.mxu0 %v6434
    %v6436 = vand.u32 %v4572, 4294901760
    %v6437 = vsub.f32 %v4572, %v6436
    %v6438 = vand.u32 %v6437, 4294901760
    %v6439 = vsub.f32 %v6437, %v6438
    %v6440 = vand.u32 %v6439, 4294901760
    %6441 = vmatprep.subr.mxu0 %v6440
    %v6442 = vand.u32 %v4571, 4294901760
    %v6443 = vsub.f32 %v4571, %v6442
    %v6444 = vand.u32 %v6443, 4294901760
    %v6445 = vsub.f32 %v6443, %v6444
    %v6446 = vand.u32 %v6445, 4294901760
    %6447 = vmatpush2.msra.mxu0 %v6446
    %v6448 = vand.u32 %v4378, 4294901760
    %6449 = vmatprep.mubr.f32.mxu0 %v6448
    %v6450 = vand.u32 %v4377, 4294901760
    %6451 = vmatmul.mubr.f32.gmra.mxu0 %v6450
    %v6452 = vpop.f32.mrf.mxu0
    %v6453 = vadd.f32 %v6060, %v6452
    %v6454 = vpop.f32.mrf.mxu0
    %v6455 = vadd.f32 %v6062, %v6454
    %6456 = vdwg.mxu0
    %v6457 = vand.u32 %v4568, 4294901760
    %v6458 = vsub.f32 %v4568, %v6457
    %6459 = vmatprep.subr.mxu0 %v6458
    %v6460 = vand.u32 %v4567, 4294901760
    %v6461 = vsub.f32 %v4567, %v6460
    %6462 = vmatpush1.msra.mxu0 %v6461
    %v6463 = vand.u32 %v4564, 4294901760
    %v6464 = vsub.f32 %v4564, %v6463
    %6465 = vmatprep.subr.mxu0 %v6464
    %v6466 = vand.u32 %v4563, 4294901760
    %v6467 = vsub.f32 %v4563, %v6466
    %6468 = vmatpush1.msra.mxu0 %v6467
    %v6469 = vand.u32 %v4560, 4294901760
    %v6470 = vsub.f32 %v4560, %v6469
    %6471 = vmatprep.subr.mxu0 %v6470
    %v6472 = vand.u32 %v4559, 4294901760
    %v6473 = vsub.f32 %v4559, %v6472
    %6474 = vmatpush1.msra.mxu0 %v6473
    %v6475 = vand.u32 %v4556, 4294901760
    %v6476 = vsub.f32 %v4556, %v6475
    %6477 = vmatprep.subr.mxu0 %v6476
    %v6478 = vand.u32 %v4555, 4294901760
    %v6479 = vsub.f32 %v4555, %v6478
    %6480 = vmatpush1.msra.mxu0 %v6479
    %v6481 = vand.u32 %v4552, 4294901760
    %v6482 = vsub.f32 %v4552, %v6481
    %6483 = vmatprep.subr.mxu0 %v6482
    %v6484 = vand.u32 %v4551, 4294901760
    %v6485 = vsub.f32 %v4551, %v6484
    %6486 = vmatpush1.msra.mxu0 %v6485
    %v6487 = vand.u32 %v4548, 4294901760
    %v6488 = vsub.f32 %v4548, %v6487
    %6489 = vmatprep.subr.mxu0 %v6488
    %v6490 = vand.u32 %v4547, 4294901760
    %v6491 = vsub.f32 %v4547, %v6490
    %6492 = vmatpush1.msra.mxu0 %v6491
    %v6493 = vand.u32 %v4544, 4294901760
    %v6494 = vsub.f32 %v4544, %v6493
    %6495 = vmatprep.subr.mxu0 %v6494
    %v6496 = vand.u32 %v4543, 4294901760
    %v6497 = vsub.f32 %v4543, %v6496
    %6498 = vmatpush1.msra.mxu0 %v6497
    %v6499 = vand.u32 %v4540, 4294901760
    %v6500 = vsub.f32 %v4540, %v6499
    %6501 = vmatprep.subr.mxu0 %v6500
    %v6502 = vand.u32 %v4539, 4294901760
    %v6503 = vsub.f32 %v4539, %v6502
    %6504 = vmatpush1.msra.mxu0 %v6503
    %v6505 = vand.u32 %v4536, 4294901760
    %v6506 = vsub.f32 %v4536, %v6505
    %6507 = vmatprep.subr.mxu0 %v6506
    %v6508 = vand.u32 %v4535, 4294901760
    %v6509 = vsub.f32 %v4535, %v6508
    %6510 = vmatpush1.msra.mxu0 %v6509
    %v6511 = vand.u32 %v4532, 4294901760
    %v6512 = vsub.f32 %v4532, %v6511
    %6513 = vmatprep.subr.mxu0 %v6512
    %v6514 = vand.u32 %v4531, 4294901760
    %v6515 = vsub.f32 %v4531, %v6514
    %6516 = vmatpush1.msra.mxu0 %v6515
    %v6517 = vand.u32 %v4528, 4294901760
    %v6518 = vsub.f32 %v4528, %v6517
    %6519 = vmatprep.subr.mxu0 %v6518
    %v6520 = vand.u32 %v4527, 4294901760
    %v6521 = vsub.f32 %v4527, %v6520
    %6522 = vmatpush1.msra.mxu0 %v6521
    %v6523 = vand.u32 %v4524, 4294901760
    %v6524 = vsub.f32 %v4524, %v6523
    %6525 = vmatprep.subr.mxu0 %v6524
    %v6526 = vand.u32 %v4523, 4294901760
    %v6527 = vsub.f32 %v4523, %v6526
    %6528 = vmatpush1.msra.mxu0 %v6527
    %v6529 = vand.u32 %v4520, 4294901760
    %v6530 = vsub.f32 %v4520, %v6529
    %6531 = vmatprep.subr.mxu0 %v6530
    %v6532 = vand.u32 %v4519, 4294901760
    %v6533 = vsub.f32 %v4519, %v6532
    %6534 = vmatpush1.msra.mxu0 %v6533
    %v6535 = vand.u32 %v4516, 4294901760
    %v6536 = vsub.f32 %v4516, %v6535
    %6537 = vmatprep.subr.mxu0 %v6536
    %v6538 = vand.u32 %v4515, 4294901760
    %v6539 = vsub.f32 %v4515, %v6538
    %6540 = vmatpush1.msra.mxu0 %v6539
    %v6541 = vand.u32 %v4512, 4294901760
    %v6542 = vsub.f32 %v4512, %v6541
    %6543 = vmatprep.subr.mxu0 %v6542
    %v6544 = vand.u32 %v4511, 4294901760
    %v6545 = vsub.f32 %v4511, %v6544
    %6546 = vmatpush1.msra.mxu0 %v6545
    %v6547 = vand.u32 %v4508, 4294901760
    %v6548 = vsub.f32 %v4508, %v6547
    %6549 = vmatprep.subr.mxu0 %v6548
    %v6550 = vand.u32 %v4507, 4294901760
    %v6551 = vsub.f32 %v4507, %v6550
    %6552 = vmatpush1.msra.mxu0 %v6551
    %v6553 = vand.u32 %v4632, 4294901760
    %v6554 = vsub.f32 %v4632, %v6553
    %6555 = vmatprep.subr.mxu0 %v6554
    %v6556 = vand.u32 %v4631, 4294901760
    %v6557 = vsub.f32 %v4631, %v6556
    %6558 = vmatpush2.msra.mxu0 %v6557
    %v6559 = vand.u32 %v4628, 4294901760
    %v6560 = vsub.f32 %v4628, %v6559
    %6561 = vmatprep.subr.mxu0 %v6560
    %v6562 = vand.u32 %v4627, 4294901760
    %v6563 = vsub.f32 %v4627, %v6562
    %6564 = vmatpush2.msra.mxu0 %v6563
    %v6565 = vand.u32 %v4624, 4294901760
    %v6566 = vsub.f32 %v4624, %v6565
    %6567 = vmatprep.subr.mxu0 %v6566
    %v6568 = vand.u32 %v4623, 4294901760
    %v6569 = vsub.f32 %v4623, %v6568
    %6570 = vmatpush2.msra.mxu0 %v6569
    %v6571 = vand.u32 %v4620, 4294901760
    %v6572 = vsub.f32 %v4620, %v6571
    %6573 = vmatprep.subr.mxu0 %v6572
    %v6574 = vand.u32 %v4619, 4294901760
    %v6575 = vsub.f32 %v4619, %v6574
    %6576 = vmatpush2.msra.mxu0 %v6575
    %v6577 = vand.u32 %v4616, 4294901760
    %v6578 = vsub.f32 %v4616, %v6577
    %6579 = vmatprep.subr.mxu0 %v6578
    %v6580 = vand.u32 %v4615, 4294901760
    %v6581 = vsub.f32 %v4615, %v6580
    %6582 = vmatpush2.msra.mxu0 %v6581
    %v6583 = vand.u32 %v4612, 4294901760
    %v6584 = vsub.f32 %v4612, %v6583
    %6585 = vmatprep.subr.mxu0 %v6584
    %v6586 = vand.u32 %v4611, 4294901760
    %v6587 = vsub.f32 %v4611, %v6586
    %6588 = vmatpush2.msra.mxu0 %v6587
    %v6589 = vand.u32 %v4608, 4294901760
    %v6590 = vsub.f32 %v4608, %v6589
    %6591 = vmatprep.subr.mxu0 %v6590
    %v6592 = vand.u32 %v4607, 4294901760
    %v6593 = vsub.f32 %v4607, %v6592
    %6594 = vmatpush2.msra.mxu0 %v6593
    %v6595 = vand.u32 %v4604, 4294901760
    %v6596 = vsub.f32 %v4604, %v6595
    %6597 = vmatprep.subr.mxu0 %v6596
    %v6598 = vand.u32 %v4603, 4294901760
    %v6599 = vsub.f32 %v4603, %v6598
    %6600 = vmatpush2.msra.mxu0 %v6599
    %v6601 = vand.u32 %v4600, 4294901760
    %v6602 = vsub.f32 %v4600, %v6601
    %6603 = vmatprep.subr.mxu0 %v6602
    %v6604 = vand.u32 %v4599, 4294901760
    %v6605 = vsub.f32 %v4599, %v6604
    %6606 = vmatpush2.msra.mxu0 %v6605
    %v6607 = vand.u32 %v4596, 4294901760
    %v6608 = vsub.f32 %v4596, %v6607
    %6609 = vmatprep.subr.mxu0 %v6608
    %v6610 = vand.u32 %v4595, 4294901760
    %v6611 = vsub.f32 %v4595, %v6610
    %6612 = vmatpush2.msra.mxu0 %v6611
    %v6613 = vand.u32 %v4592, 4294901760
    %v6614 = vsub.f32 %v4592, %v6613
    %6615 = vmatprep.subr.mxu0 %v6614
    %v6616 = vand.u32 %v4591, 4294901760
    %v6617 = vsub.f32 %v4591, %v6616
    %6618 = vmatpush2.msra.mxu0 %v6617
    %v6619 = vand.u32 %v4588, 4294901760
    %v6620 = vsub.f32 %v4588, %v6619
    %6621 = vmatprep.subr.mxu0 %v6620
    %v6622 = vand.u32 %v4587, 4294901760
    %v6623 = vsub.f32 %v4587, %v6622
    %6624 = vmatpush2.msra.mxu0 %v6623
    %v6625 = vand.u32 %v4584, 4294901760
    %v6626 = vsub.f32 %v4584, %v6625
    %6627 = vmatprep.subr.mxu0 %v6626
    %v6628 = vand.u32 %v4583, 4294901760
    %v6629 = vsub.f32 %v4583, %v6628
    %6630 = vmatpush2.msra.mxu0 %v6629
    %v6631 = vand.u32 %v4580, 4294901760
    %v6632 = vsub.f32 %v4580, %v6631
    %6633 = vmatprep.subr.mxu0 %v6632
    %v6634 = vand.u32 %v4579, 4294901760
    %v6635 = vsub.f32 %v4579, %v6634
    %6636 = vmatpush2.msra.mxu0 %v6635
    %v6637 = vand.u32 %v4576, 4294901760
    %v6638 = vsub.f32 %v4576, %v6637
    %6639 = vmatprep.subr.mxu0 %v6638
    %v6640 = vand.u32 %v4575, 4294901760
    %v6641 = vsub.f32 %v4575, %v6640
    %6642 = vmatpush2.msra.mxu0 %v6641
    %v6643 = vand.u32 %v4572, 4294901760
    %v6644 = vsub.f32 %v4572, %v6643
    %6645 = vmatprep.subr.mxu0 %v6644
    %v6646 = vand.u32 %v4571, 4294901760
    %v6647 = vsub.f32 %v4571, %v6646
    %6648 = vmatpush2.msra.mxu0 %v6647
    %v6649 = vand.u32 %v4378, 4294901760
    %v6650 = vsub.f32 %v4378, %v6649
    %6651 = vmatprep.mubr.f32.mxu0 %v6650
    %v6652 = vand.u32 %v4377, 4294901760
    %v6653 = vsub.f32 %v4377, %v6652
    %6654 = vmatmul.mubr.f32.gmra.mxu0 %v6653
    %v6655 = vpop.f32.mrf.mxu0
    %v6656 = vadd.f32 %v6453, %v6655
    %v6657 = vpop.f32.mrf.mxu0
    %v6658 = vadd.f32 %v6455, %v6657
    %6659 = vdwg.mxu0
    %v6660 = vand.u32 %v4568, 4294901760
    %6661 = vmatprep.subr.mxu0 %v6660
    %v6662 = vand.u32 %v4567, 4294901760
    %6663 = vmatpush1.msra.mxu0 %v6662
    %v6664 = vand.u32 %v4564, 4294901760
    %6665 = vmatprep.subr.mxu0 %v6664
    %v6666 = vand.u32 %v4563, 4294901760
    %6667 = vmatpush1.msra.mxu0 %v6666
    %v6668 = vand.u32 %v4560, 4294901760
    %6669 = vmatprep.subr.mxu0 %v6668
    %v6670 = vand.u32 %v4559, 4294901760
    %6671 = vmatpush1.msra.mxu0 %v6670
    %v6672 = vand.u32 %v4556, 4294901760
    %6673 = vmatprep.subr.mxu0 %v6672
    %v6674 = vand.u32 %v4555, 4294901760
    %6675 = vmatpush1.msra.mxu0 %v6674
    %v6676 = vand.u32 %v4552, 4294901760
    %6677 = vmatprep.subr.mxu0 %v6676
    %v6678 = vand.u32 %v4551, 4294901760
    %6679 = vmatpush1.msra.mxu0 %v6678
    %v6680 = vand.u32 %v4548, 4294901760
    %6681 = vmatprep.subr.mxu0 %v6680
    %v6682 = vand.u32 %v4547, 4294901760
    %6683 = vmatpush1.msra.mxu0 %v6682
    %v6684 = vand.u32 %v4544, 4294901760
    %6685 = vmatprep.subr.mxu0 %v6684
    %v6686 = vand.u32 %v4543, 4294901760
    %6687 = vmatpush1.msra.mxu0 %v6686
    %v6688 = vand.u32 %v4540, 4294901760
    %6689 = vmatprep.subr.mxu0 %v6688
    %v6690 = vand.u32 %v4539, 4294901760
    %6691 = vmatpush1.msra.mxu0 %v6690
    %v6692 = vand.u32 %v4536, 4294901760
    %6693 = vmatprep.subr.mxu0 %v6692
    %v6694 = vand.u32 %v4535, 4294901760
    %6695 = vmatpush1.msra.mxu0 %v6694
    %v6696 = vand.u32 %v4532, 4294901760
    %6697 = vmatprep.subr.mxu0 %v6696
    %v6698 = vand.u32 %v4531, 4294901760
    %6699 = vmatpush1.msra.mxu0 %v6698
    %v6700 = vand.u32 %v4528, 4294901760
    %6701 = vmatprep.subr.mxu0 %v6700
    %v6702 = vand.u32 %v4527, 4294901760
    %6703 = vmatpush1.msra.mxu0 %v6702
    %v6704 = vand.u32 %v4524, 4294901760
    %6705 = vmatprep.subr.mxu0 %v6704
    %v6706 = vand.u32 %v4523, 4294901760
    %6707 = vmatpush1.msra.mxu0 %v6706
    %v6708 = vand.u32 %v4520, 4294901760
    %6709 = vmatprep.subr.mxu0 %v6708
    %v6710 = vand.u32 %v4519, 4294901760
    %6711 = vmatpush1.msra.mxu0 %v6710
    %v6712 = vand.u32 %v4516, 4294901760
    %6713 = vmatprep.subr.mxu0 %v6712
    %v6714 = vand.u32 %v4515, 4294901760
    %6715 = vmatpush1.msra.mxu0 %v6714
    %v6716 = vand.u32 %v4512, 4294901760
    %6717 = vmatprep.subr.mxu0 %v6716
    %v6718 = vand.u32 %v4511, 4294901760
    %6719 = vmatpush1.msra.mxu0 %v6718
    %v6720 = vand.u32 %v4508, 4294901760
    %6721 = vmatprep.subr.mxu0 %v6720
    %v6722 = vand.u32 %v4507, 4294901760
    %6723 = vmatpush1.msra.mxu0 %v6722
    %v6724 = vand.u32 %v4632, 4294901760
    %6725 = vmatprep.subr.mxu0 %v6724
    %v6726 = vand.u32 %v4631, 4294901760
    %6727 = vmatpush2.msra.mxu0 %v6726
    %v6728 = vand.u32 %v4628, 4294901760
    %6729 = vmatprep.subr.mxu0 %v6728
    %v6730 = vand.u32 %v4627, 4294901760
    %6731 = vmatpush2.msra.mxu0 %v6730
    %v6732 = vand.u32 %v4624, 4294901760
    %6733 = vmatprep.subr.mxu0 %v6732
    %v6734 = vand.u32 %v4623, 4294901760
    %6735 = vmatpush2.msra.mxu0 %v6734
    %v6736 = vand.u32 %v4620, 4294901760
    %6737 = vmatprep.subr.mxu0 %v6736
    %v6738 = vand.u32 %v4619, 4294901760
    %6739 = vmatpush2.msra.mxu0 %v6738
    %v6740 = vand.u32 %v4616, 4294901760
    %6741 = vmatprep.subr.mxu0 %v6740
    %v6742 = vand.u32 %v4615, 4294901760
    %6743 = vmatpush2.msra.mxu0 %v6742
    %v6744 = vand.u32 %v4612, 4294901760
    %6745 = vmatprep.subr.mxu0 %v6744
    %v6746 = vand.u32 %v4611, 4294901760
    %6747 = vmatpush2.msra.mxu0 %v6746
    %v6748 = vand.u32 %v4608, 4294901760
    %6749 = vmatprep.subr.mxu0 %v6748
    %v6750 = vand.u32 %v4607, 4294901760
    %6751 = vmatpush2.msra.mxu0 %v6750
    %v6752 = vand.u32 %v4604, 4294901760
    %6753 = vmatprep.subr.mxu0 %v6752
    %v6754 = vand.u32 %v4603, 4294901760
    %6755 = vmatpush2.msra.mxu0 %v6754
    %v6756 = vand.u32 %v4600, 4294901760
    %6757 = vmatprep.subr.mxu0 %v6756
    %v6758 = vand.u32 %v4599, 4294901760
    %6759 = vmatpush2.msra.mxu0 %v6758
    %v6760 = vand.u32 %v4596, 4294901760
    %6761 = vmatprep.subr.mxu0 %v6760
    %v6762 = vand.u32 %v4595, 4294901760
    %6763 = vmatpush2.msra.mxu0 %v6762
    %v6764 = vand.u32 %v4592, 4294901760
    %6765 = vmatprep.subr.mxu0 %v6764
    %v6766 = vand.u32 %v4591, 4294901760
    %6767 = vmatpush2.msra.mxu0 %v6766
    %v6768 = vand.u32 %v4588, 4294901760
    %6769 = vmatprep.subr.mxu0 %v6768
    %v6770 = vand.u32 %v4587, 4294901760
    %6771 = vmatpush2.msra.mxu0 %v6770
    %v6772 = vand.u32 %v4584, 4294901760
    %6773 = vmatprep.subr.mxu0 %v6772
    %v6774 = vand.u32 %v4583, 4294901760
    %6775 = vmatpush2.msra.mxu0 %v6774
    %v6776 = vand.u32 %v4580, 4294901760
    %6777 = vmatprep.subr.mxu0 %v6776
    %v6778 = vand.u32 %v4579, 4294901760
    %6779 = vmatpush2.msra.mxu0 %v6778
    %v6780 = vand.u32 %v4576, 4294901760
    %6781 = vmatprep.subr.mxu0 %v6780
    %v6782 = vand.u32 %v4575, 4294901760
    %6783 = vmatpush2.msra.mxu0 %v6782
    %v6784 = vand.u32 %v4572, 4294901760
    %6785 = vmatprep.subr.mxu0 %v6784
    %v6786 = vand.u32 %v4571, 4294901760
    %6787 = vmatpush2.msra.mxu0 %v6786
    %v6788 = vand.u32 %v4378, 4294901760
    %v6789 = vsub.f32 %v4378, %v6788
    %v6790 = vand.u32 %v6789, 4294901760
    %6791 = vmatprep.mubr.f32.mxu0 %v6790
    %v6792 = vand.u32 %v4377, 4294901760
    %v6793 = vsub.f32 %v4377, %v6792
    %v6794 = vand.u32 %v6793, 4294901760
    %6795 = vmatmul.mubr.f32.gmra.mxu0 %v6794
    %v6796 = vpop.f32.mrf.mxu0
    %v6797 = vadd.f32 %v6656, %v6796
    %v6798 = vpop.f32.mrf.mxu0
    %v6799 = vadd.f32 %v6658, %v6798
    %6800 = vdwg.mxu0
    %v6801 = vand.u32 %v4568, 4294901760
    %v6802 = vsub.f32 %v4568, %v6801
    %v6803 = vand.u32 %v6802, 4294901760
    %6804 = vmatprep.subr.mxu0 %v6803
    %v6805 = vand.u32 %v4567, 4294901760
    %v6806 = vsub.f32 %v4567, %v6805
    %v6807 = vand.u32 %v6806, 4294901760
    %6808 = vmatpush1.msra.mxu0 %v6807
    %v6809 = vand.u32 %v4564, 4294901760
    %v6810 = vsub.f32 %v4564, %v6809
    %v6811 = vand.u32 %v6810, 4294901760
    %6812 = vmatprep.subr.mxu0 %v6811
    %v6813 = vand.u32 %v4563, 4294901760
    %v6814 = vsub.f32 %v4563, %v6813
    %v6815 = vand.u32 %v6814, 4294901760
    %6816 = vmatpush1.msra.mxu0 %v6815
    %v6817 = vand.u32 %v4560, 4294901760
    %v6818 = vsub.f32 %v4560, %v6817
    %v6819 = vand.u32 %v6818, 4294901760
    %6820 = vmatprep.subr.mxu0 %v6819
    %v6821 = vand.u32 %v4559, 4294901760
    %v6822 = vsub.f32 %v4559, %v6821
    %v6823 = vand.u32 %v6822, 4294901760
    %6824 = vmatpush1.msra.mxu0 %v6823
    %v6825 = vand.u32 %v4556, 4294901760
    %v6826 = vsub.f32 %v4556, %v6825
    %v6827 = vand.u32 %v6826, 4294901760
    %6828 = vmatprep.subr.mxu0 %v6827
    %v6829 = vand.u32 %v4555, 4294901760
    %v6830 = vsub.f32 %v4555, %v6829
    %v6831 = vand.u32 %v6830, 4294901760
    %6832 = vmatpush1.msra.mxu0 %v6831
    %v6833 = vand.u32 %v4552, 4294901760
    %v6834 = vsub.f32 %v4552, %v6833
    %v6835 = vand.u32 %v6834, 4294901760
    %6836 = vmatprep.subr.mxu0 %v6835
    %v6837 = vand.u32 %v4551, 4294901760
    %v6838 = vsub.f32 %v4551, %v6837
    %v6839 = vand.u32 %v6838, 4294901760
    %6840 = vmatpush1.msra.mxu0 %v6839
    %v6841 = vand.u32 %v4548, 4294901760
    %v6842 = vsub.f32 %v4548, %v6841
    %v6843 = vand.u32 %v6842, 4294901760
    %6844 = vmatprep.subr.mxu0 %v6843
    %v6845 = vand.u32 %v4547, 4294901760
    %v6846 = vsub.f32 %v4547, %v6845
    %v6847 = vand.u32 %v6846, 4294901760
    %6848 = vmatpush1.msra.mxu0 %v6847
    %v6849 = vand.u32 %v4544, 4294901760
    %v6850 = vsub.f32 %v4544, %v6849
    %v6851 = vand.u32 %v6850, 4294901760
    %6852 = vmatprep.subr.mxu0 %v6851
    %v6853 = vand.u32 %v4543, 4294901760
    %v6854 = vsub.f32 %v4543, %v6853
    %v6855 = vand.u32 %v6854, 4294901760
    %6856 = vmatpush1.msra.mxu0 %v6855
    %v6857 = vand.u32 %v4540, 4294901760
    %v6858 = vsub.f32 %v4540, %v6857
    %v6859 = vand.u32 %v6858, 4294901760
    %6860 = vmatprep.subr.mxu0 %v6859
    %v6861 = vand.u32 %v4539, 4294901760
    %v6862 = vsub.f32 %v4539, %v6861
    %v6863 = vand.u32 %v6862, 4294901760
    %6864 = vmatpush1.msra.mxu0 %v6863
    %v6865 = vand.u32 %v4536, 4294901760
    %v6866 = vsub.f32 %v4536, %v6865
    %v6867 = vand.u32 %v6866, 4294901760
    %6868 = vmatprep.subr.mxu0 %v6867
    %v6869 = vand.u32 %v4535, 4294901760
    %v6870 = vsub.f32 %v4535, %v6869
    %v6871 = vand.u32 %v6870, 4294901760
    %6872 = vmatpush1.msra.mxu0 %v6871
    %v6873 = vand.u32 %v4532, 4294901760
    %v6874 = vsub.f32 %v4532, %v6873
    %v6875 = vand.u32 %v6874, 4294901760
    %6876 = vmatprep.subr.mxu0 %v6875
    %v6877 = vand.u32 %v4531, 4294901760
    %v6878 = vsub.f32 %v4531, %v6877
    %v6879 = vand.u32 %v6878, 4294901760
    %6880 = vmatpush1.msra.mxu0 %v6879
    %v6881 = vand.u32 %v4528, 4294901760
    %v6882 = vsub.f32 %v4528, %v6881
    %v6883 = vand.u32 %v6882, 4294901760
    %6884 = vmatprep.subr.mxu0 %v6883
    %v6885 = vand.u32 %v4527, 4294901760
    %v6886 = vsub.f32 %v4527, %v6885
    %v6887 = vand.u32 %v6886, 4294901760
    %6888 = vmatpush1.msra.mxu0 %v6887
    %v6889 = vand.u32 %v4524, 4294901760
    %v6890 = vsub.f32 %v4524, %v6889
    %v6891 = vand.u32 %v6890, 4294901760
    %6892 = vmatprep.subr.mxu0 %v6891
    %v6893 = vand.u32 %v4523, 4294901760
    %v6894 = vsub.f32 %v4523, %v6893
    %v6895 = vand.u32 %v6894, 4294901760
    %6896 = vmatpush1.msra.mxu0 %v6895
    %v6897 = vand.u32 %v4520, 4294901760
    %v6898 = vsub.f32 %v4520, %v6897
    %v6899 = vand.u32 %v6898, 4294901760
    %6900 = vmatprep.subr.mxu0 %v6899
    %v6901 = vand.u32 %v4519, 4294901760
    %v6902 = vsub.f32 %v4519, %v6901
    %v6903 = vand.u32 %v6902, 4294901760
    %6904 = vmatpush1.msra.mxu0 %v6903
    %v6905 = vand.u32 %v4516, 4294901760
    %v6906 = vsub.f32 %v4516, %v6905
    %v6907 = vand.u32 %v6906, 4294901760
    %6908 = vmatprep.subr.mxu0 %v6907
    %v6909 = vand.u32 %v4515, 4294901760
    %v6910 = vsub.f32 %v4515, %v6909
    %v6911 = vand.u32 %v6910, 4294901760
    %6912 = vmatpush1.msra.mxu0 %v6911
    %v6913 = vand.u32 %v4512, 4294901760
    %v6914 = vsub.f32 %v4512, %v6913
    %v6915 = vand.u32 %v6914, 4294901760
    %6916 = vmatprep.subr.mxu0 %v6915
    %v6917 = vand.u32 %v4511, 4294901760
    %v6918 = vsub.f32 %v4511, %v6917
    %v6919 = vand.u32 %v6918, 4294901760
    %6920 = vmatpush1.msra.mxu0 %v6919
    %v6921 = vand.u32 %v4508, 4294901760
    %v6922 = vsub.f32 %v4508, %v6921
    %v6923 = vand.u32 %v6922, 4294901760
    %6924 = vmatprep.subr.mxu0 %v6923
    %v6925 = vand.u32 %v4507, 4294901760
    %v6926 = vsub.f32 %v4507, %v6925
    %v6927 = vand.u32 %v6926, 4294901760
    %6928 = vmatpush1.msra.mxu0 %v6927
    %v6929 = vand.u32 %v4632, 4294901760
    %v6930 = vsub.f32 %v4632, %v6929
    %v6931 = vand.u32 %v6930, 4294901760
    %6932 = vmatprep.subr.mxu0 %v6931
    %v6933 = vand.u32 %v4631, 4294901760
    %v6934 = vsub.f32 %v4631, %v6933
    %v6935 = vand.u32 %v6934, 4294901760
    %6936 = vmatpush2.msra.mxu0 %v6935
    %v6937 = vand.u32 %v4628, 4294901760
    %v6938 = vsub.f32 %v4628, %v6937
    %v6939 = vand.u32 %v6938, 4294901760
    %6940 = vmatprep.subr.mxu0 %v6939
    %v6941 = vand.u32 %v4627, 4294901760
    %v6942 = vsub.f32 %v4627, %v6941
    %v6943 = vand.u32 %v6942, 4294901760
    %6944 = vmatpush2.msra.mxu0 %v6943
    %v6945 = vand.u32 %v4624, 4294901760
    %v6946 = vsub.f32 %v4624, %v6945
    %v6947 = vand.u32 %v6946, 4294901760
    %6948 = vmatprep.subr.mxu0 %v6947
    %v6949 = vand.u32 %v4623, 4294901760
    %v6950 = vsub.f32 %v4623, %v6949
    %v6951 = vand.u32 %v6950, 4294901760
    %6952 = vmatpush2.msra.mxu0 %v6951
    %v6953 = vand.u32 %v4620, 4294901760
    %v6954 = vsub.f32 %v4620, %v6953
    %v6955 = vand.u32 %v6954, 4294901760
    %6956 = vmatprep.subr.mxu0 %v6955
    %v6957 = vand.u32 %v4619, 4294901760
    %v6958 = vsub.f32 %v4619, %v6957
    %v6959 = vand.u32 %v6958, 4294901760
    %6960 = vmatpush2.msra.mxu0 %v6959
    %v6961 = vand.u32 %v4616, 4294901760
    %v6962 = vsub.f32 %v4616, %v6961
    %v6963 = vand.u32 %v6962, 4294901760
    %6964 = vmatprep.subr.mxu0 %v6963
    %v6965 = vand.u32 %v4615, 4294901760
    %v6966 = vsub.f32 %v4615, %v6965
    %v6967 = vand.u32 %v6966, 4294901760
    %6968 = vmatpush2.msra.mxu0 %v6967
    %v6969 = vand.u32 %v4612, 4294901760
    %v6970 = vsub.f32 %v4612, %v6969
    %v6971 = vand.u32 %v6970, 4294901760
    %6972 = vmatprep.subr.mxu0 %v6971
    %v6973 = vand.u32 %v4611, 4294901760
    %v6974 = vsub.f32 %v4611, %v6973
    %v6975 = vand.u32 %v6974, 4294901760
    %6976 = vmatpush2.msra.mxu0 %v6975
    %v6977 = vand.u32 %v4608, 4294901760
    %v6978 = vsub.f32 %v4608, %v6977
    %v6979 = vand.u32 %v6978, 4294901760
    %6980 = vmatprep.subr.mxu0 %v6979
    %v6981 = vand.u32 %v4607, 4294901760
    %v6982 = vsub.f32 %v4607, %v6981
    %v6983 = vand.u32 %v6982, 4294901760
    %6984 = vmatpush2.msra.mxu0 %v6983
    %v6985 = vand.u32 %v4604, 4294901760
    %v6986 = vsub.f32 %v4604, %v6985
    %v6987 = vand.u32 %v6986, 4294901760
    %6988 = vmatprep.subr.mxu0 %v6987
    %v6989 = vand.u32 %v4603, 4294901760
    %v6990 = vsub.f32 %v4603, %v6989
    %v6991 = vand.u32 %v6990, 4294901760
    %6992 = vmatpush2.msra.mxu0 %v6991
    %v6993 = vand.u32 %v4600, 4294901760
    %v6994 = vsub.f32 %v4600, %v6993
    %v6995 = vand.u32 %v6994, 4294901760
    %6996 = vmatprep.subr.mxu0 %v6995
    %v6997 = vand.u32 %v4599, 4294901760
    %v6998 = vsub.f32 %v4599, %v6997
    %v6999 = vand.u32 %v6998, 4294901760
    %7000 = vmatpush2.msra.mxu0 %v6999
    %v7001 = vand.u32 %v4596, 4294901760
    %v7002 = vsub.f32 %v4596, %v7001
    %v7003 = vand.u32 %v7002, 4294901760
    %7004 = vmatprep.subr.mxu0 %v7003
    %v7005 = vand.u32 %v4595, 4294901760
    %v7006 = vsub.f32 %v4595, %v7005
    %v7007 = vand.u32 %v7006, 4294901760
    %7008 = vmatpush2.msra.mxu0 %v7007
    %v7009 = vand.u32 %v4592, 4294901760
    %v7010 = vsub.f32 %v4592, %v7009
    %v7011 = vand.u32 %v7010, 4294901760
    %7012 = vmatprep.subr.mxu0 %v7011
    %v7013 = vand.u32 %v4591, 4294901760
    %v7014 = vsub.f32 %v4591, %v7013
    %v7015 = vand.u32 %v7014, 4294901760
    %7016 = vmatpush2.msra.mxu0 %v7015
    %v7017 = vand.u32 %v4588, 4294901760
    %v7018 = vsub.f32 %v4588, %v7017
    %v7019 = vand.u32 %v7018, 4294901760
    %7020 = vmatprep.subr.mxu0 %v7019
    %v7021 = vand.u32 %v4587, 4294901760
    %v7022 = vsub.f32 %v4587, %v7021
    %v7023 = vand.u32 %v7022, 4294901760
    %7024 = vmatpush2.msra.mxu0 %v7023
    %v7025 = vand.u32 %v4584, 4294901760
    %v7026 = vsub.f32 %v4584, %v7025
    %v7027 = vand.u32 %v7026, 4294901760
    %7028 = vmatprep.subr.mxu0 %v7027
    %v7029 = vand.u32 %v4583, 4294901760
    %v7030 = vsub.f32 %v4583, %v7029
    %v7031 = vand.u32 %v7030, 4294901760
    %7032 = vmatpush2.msra.mxu0 %v7031
    %v7033 = vand.u32 %v4580, 4294901760
    %v7034 = vsub.f32 %v4580, %v7033
    %v7035 = vand.u32 %v7034, 4294901760
    %7036 = vmatprep.subr.mxu0 %v7035
    %v7037 = vand.u32 %v4579, 4294901760
    %v7038 = vsub.f32 %v4579, %v7037
    %v7039 = vand.u32 %v7038, 4294901760
    %7040 = vmatpush2.msra.mxu0 %v7039
    %v7041 = vand.u32 %v4576, 4294901760
    %v7042 = vsub.f32 %v4576, %v7041
    %v7043 = vand.u32 %v7042, 4294901760
    %7044 = vmatprep.subr.mxu0 %v7043
    %v7045 = vand.u32 %v4575, 4294901760
    %v7046 = vsub.f32 %v4575, %v7045
    %v7047 = vand.u32 %v7046, 4294901760
    %7048 = vmatpush2.msra.mxu0 %v7047
    %v7049 = vand.u32 %v4572, 4294901760
    %v7050 = vsub.f32 %v4572, %v7049
    %v7051 = vand.u32 %v7050, 4294901760
    %7052 = vmatprep.subr.mxu0 %v7051
    %v7053 = vand.u32 %v4571, 4294901760
    %v7054 = vsub.f32 %v4571, %v7053
    %v7055 = vand.u32 %v7054, 4294901760
    %7056 = vmatpush2.msra.mxu0 %v7055
    %v7057 = vand.u32 %v4378, 4294901760
    %7058 = vmatprep.mubr.f32.mxu0 %v7057
    %v7059 = vand.u32 %v4377, 4294901760
    %7060 = vmatmul.mubr.f32.gmra.mxu0 %v7059
    %v7061 = vpop.f32.mrf.mxu0
    %v7062 = vadd.f32 %v6797, %v7061
    %v7063 = vpop.f32.mrf.mxu0
    %v7064 = vadd.f32 %v6799, %v7063
    %7065 = vdwg.mxu0
    %v7066 = vand.u32 %v4568, 4294901760
    %7067 = vmatprep.subr.mxu0 %v7066
    %v7068 = vand.u32 %v4567, 4294901760
    %7069 = vmatpush1.msra.mxu0 %v7068
    %v7070 = vand.u32 %v4564, 4294901760
    %7071 = vmatprep.subr.mxu0 %v7070
    %v7072 = vand.u32 %v4563, 4294901760
    %7073 = vmatpush1.msra.mxu0 %v7072
    %v7074 = vand.u32 %v4560, 4294901760
    %7075 = vmatprep.subr.mxu0 %v7074
    %v7076 = vand.u32 %v4559, 4294901760
    %7077 = vmatpush1.msra.mxu0 %v7076
    %v7078 = vand.u32 %v4556, 4294901760
    %7079 = vmatprep.subr.mxu0 %v7078
    %v7080 = vand.u32 %v4555, 4294901760
    %7081 = vmatpush1.msra.mxu0 %v7080
    %v7082 = vand.u32 %v4552, 4294901760
    %7083 = vmatprep.subr.mxu0 %v7082
    %v7084 = vand.u32 %v4551, 4294901760
    %7085 = vmatpush1.msra.mxu0 %v7084
    %v7086 = vand.u32 %v4548, 4294901760
    %7087 = vmatprep.subr.mxu0 %v7086
    %v7088 = vand.u32 %v4547, 4294901760
    %7089 = vmatpush1.msra.mxu0 %v7088
    %v7090 = vand.u32 %v4544, 4294901760
    %7091 = vmatprep.subr.mxu0 %v7090
    %v7092 = vand.u32 %v4543, 4294901760
    %7093 = vmatpush1.msra.mxu0 %v7092
    %v7094 = vand.u32 %v4540, 4294901760
    %7095 = vmatprep.subr.mxu0 %v7094
    %v7096 = vand.u32 %v4539, 4294901760
    %7097 = vmatpush1.msra.mxu0 %v7096
    %v7098 = vand.u32 %v4536, 4294901760
    %7099 = vmatprep.subr.mxu0 %v7098
    %v7100 = vand.u32 %v4535, 4294901760
    %7101 = vmatpush1.msra.mxu0 %v7100
    %v7102 = vand.u32 %v4532, 4294901760
    %7103 = vmatprep.subr.mxu0 %v7102
    %v7104 = vand.u32 %v4531, 4294901760
    %7105 = vmatpush1.msra.mxu0 %v7104
    %v7106 = vand.u32 %v4528, 4294901760
    %7107 = vmatprep.subr.mxu0 %v7106
    %v7108 = vand.u32 %v4527, 4294901760
    %7109 = vmatpush1.msra.mxu0 %v7108
    %v7110 = vand.u32 %v4524, 4294901760
    %7111 = vmatprep.subr.mxu0 %v7110
    %v7112 = vand.u32 %v4523, 4294901760
    %7113 = vmatpush1.msra.mxu0 %v7112
    %v7114 = vand.u32 %v4520, 4294901760
    %7115 = vmatprep.subr.mxu0 %v7114
    %v7116 = vand.u32 %v4519, 4294901760
    %7117 = vmatpush1.msra.mxu0 %v7116
    %v7118 = vand.u32 %v4516, 4294901760
    %7119 = vmatprep.subr.mxu0 %v7118
    %v7120 = vand.u32 %v4515, 4294901760
    %7121 = vmatpush1.msra.mxu0 %v7120
    %v7122 = vand.u32 %v4512, 4294901760
    %7123 = vmatprep.subr.mxu0 %v7122
    %v7124 = vand.u32 %v4511, 4294901760
    %7125 = vmatpush1.msra.mxu0 %v7124
    %v7126 = vand.u32 %v4508, 4294901760
    %7127 = vmatprep.subr.mxu0 %v7126
    %v7128 = vand.u32 %v4507, 4294901760
    %7129 = vmatpush1.msra.mxu0 %v7128
    %v7130 = vand.u32 %v4632, 4294901760
    %7131 = vmatprep.subr.mxu0 %v7130
    %v7132 = vand.u32 %v4631, 4294901760
    %7133 = vmatpush2.msra.mxu0 %v7132
    %v7134 = vand.u32 %v4628, 4294901760
    %7135 = vmatprep.subr.mxu0 %v7134
    %v7136 = vand.u32 %v4627, 4294901760
    %7137 = vmatpush2.msra.mxu0 %v7136
    %v7138 = vand.u32 %v4624, 4294901760
    %7139 = vmatprep.subr.mxu0 %v7138
    %v7140 = vand.u32 %v4623, 4294901760
    %7141 = vmatpush2.msra.mxu0 %v7140
    %v7142 = vand.u32 %v4620, 4294901760
    %7143 = vmatprep.subr.mxu0 %v7142
    %v7144 = vand.u32 %v4619, 4294901760
    %7145 = vmatpush2.msra.mxu0 %v7144
    %v7146 = vand.u32 %v4616, 4294901760
    %7147 = vmatprep.subr.mxu0 %v7146
    %v7148 = vand.u32 %v4615, 4294901760
    %7149 = vmatpush2.msra.mxu0 %v7148
    %v7150 = vand.u32 %v4612, 4294901760
    %7151 = vmatprep.subr.mxu0 %v7150
    %v7152 = vand.u32 %v4611, 4294901760
    %7153 = vmatpush2.msra.mxu0 %v7152
    %v7154 = vand.u32 %v4608, 4294901760
    %7155 = vmatprep.subr.mxu0 %v7154
    %v7156 = vand.u32 %v4607, 4294901760
    %7157 = vmatpush2.msra.mxu0 %v7156
    %v7158 = vand.u32 %v4604, 4294901760
    %7159 = vmatprep.subr.mxu0 %v7158
    %v7160 = vand.u32 %v4603, 4294901760
    %7161 = vmatpush2.msra.mxu0 %v7160
    %v7162 = vand.u32 %v4600, 4294901760
    %7163 = vmatprep.subr.mxu0 %v7162
    %v7164 = vand.u32 %v4599, 4294901760
    %7165 = vmatpush2.msra.mxu0 %v7164
    %v7166 = vand.u32 %v4596, 4294901760
    %7167 = vmatprep.subr.mxu0 %v7166
    %v7168 = vand.u32 %v4595, 4294901760
    %7169 = vmatpush2.msra.mxu0 %v7168
    %v7170 = vand.u32 %v4592, 4294901760
    %7171 = vmatprep.subr.mxu0 %v7170
    %v7172 = vand.u32 %v4591, 4294901760
    %7173 = vmatpush2.msra.mxu0 %v7172
    %v7174 = vand.u32 %v4588, 4294901760
    %7175 = vmatprep.subr.mxu0 %v7174
    %v7176 = vand.u32 %v4587, 4294901760
    %7177 = vmatpush2.msra.mxu0 %v7176
    %v7178 = vand.u32 %v4584, 4294901760
    %7179 = vmatprep.subr.mxu0 %v7178
    %v7180 = vand.u32 %v4583, 4294901760
    %7181 = vmatpush2.msra.mxu0 %v7180
    %v7182 = vand.u32 %v4580, 4294901760
    %7183 = vmatprep.subr.mxu0 %v7182
    %v7184 = vand.u32 %v4579, 4294901760
    %7185 = vmatpush2.msra.mxu0 %v7184
    %v7186 = vand.u32 %v4576, 4294901760
    %7187 = vmatprep.subr.mxu0 %v7186
    %v7188 = vand.u32 %v4575, 4294901760
    %7189 = vmatpush2.msra.mxu0 %v7188
    %v7190 = vand.u32 %v4572, 4294901760
    %7191 = vmatprep.subr.mxu0 %v7190
    %v7192 = vand.u32 %v4571, 4294901760
    %7193 = vmatpush2.msra.mxu0 %v7192
    %v7194 = vand.u32 %v4378, 4294901760
    %7195 = vmatprep.mubr.f32.mxu0 %v7194
    %v7196 = vand.u32 %v4377, 4294901760
    %7197 = vmatmul.mubr.f32.gmra.mxu0 %v7196
    %v7198 = vpop.f32.mrf.mxu0
    %v7199 = vadd.f32 %v7062, %v7198
    %v7200 = vpop.f32.mrf.mxu0
    %v7201 = vadd.f32 %v7064, %v7200
    %7202 = vdwg.mxu0
    %v7203 = vand.u32 %v4442, 4294901760
    %7204 = vmatprep.subr.mxu0 %v7203
    %v7205 = vand.u32 %v4441, 4294901760
    %7206 = vmatpush1.msra.mxu0 %v7205
    %v7207 = vand.u32 %v4438, 4294901760
    %7208 = vmatprep.subr.mxu0 %v7207
    %v7209 = vand.u32 %v4437, 4294901760
    %7210 = vmatpush1.msra.mxu0 %v7209
    %v7211 = vand.u32 %v4434, 4294901760
    %7212 = vmatprep.subr.mxu0 %v7211
    %v7213 = vand.u32 %v4433, 4294901760
    %7214 = vmatpush1.msra.mxu0 %v7213
    %v7215 = vand.u32 %v4430, 4294901760
    %7216 = vmatprep.subr.mxu0 %v7215
    %v7217 = vand.u32 %v4429, 4294901760
    %7218 = vmatpush1.msra.mxu0 %v7217
    %v7219 = vand.u32 %v4426, 4294901760
    %7220 = vmatprep.subr.mxu0 %v7219
    %v7221 = vand.u32 %v4425, 4294901760
    %7222 = vmatpush1.msra.mxu0 %v7221
    %v7223 = vand.u32 %v4422, 4294901760
    %7224 = vmatprep.subr.mxu0 %v7223
    %v7225 = vand.u32 %v4421, 4294901760
    %7226 = vmatpush1.msra.mxu0 %v7225
    %v7227 = vand.u32 %v4418, 4294901760
    %7228 = vmatprep.subr.mxu0 %v7227
    %v7229 = vand.u32 %v4417, 4294901760
    %7230 = vmatpush1.msra.mxu0 %v7229
    %v7231 = vand.u32 %v4414, 4294901760
    %7232 = vmatprep.subr.mxu0 %v7231
    %v7233 = vand.u32 %v4413, 4294901760
    %7234 = vmatpush1.msra.mxu0 %v7233
    %v7235 = vand.u32 %v4410, 4294901760
    %7236 = vmatprep.subr.mxu0 %v7235
    %v7237 = vand.u32 %v4409, 4294901760
    %7238 = vmatpush1.msra.mxu0 %v7237
    %v7239 = vand.u32 %v4406, 4294901760
    %7240 = vmatprep.subr.mxu0 %v7239
    %v7241 = vand.u32 %v4405, 4294901760
    %7242 = vmatpush1.msra.mxu0 %v7241
    %v7243 = vand.u32 %v4402, 4294901760
    %7244 = vmatprep.subr.mxu0 %v7243
    %v7245 = vand.u32 %v4401, 4294901760
    %7246 = vmatpush1.msra.mxu0 %v7245
    %v7247 = vand.u32 %v4398, 4294901760
    %7248 = vmatprep.subr.mxu0 %v7247
    %v7249 = vand.u32 %v4397, 4294901760
    %7250 = vmatpush1.msra.mxu0 %v7249
    %v7251 = vand.u32 %v4394, 4294901760
    %7252 = vmatprep.subr.mxu0 %v7251
    %v7253 = vand.u32 %v4393, 4294901760
    %7254 = vmatpush1.msra.mxu0 %v7253
    %v7255 = vand.u32 %v4390, 4294901760
    %7256 = vmatprep.subr.mxu0 %v7255
    %v7257 = vand.u32 %v4389, 4294901760
    %7258 = vmatpush1.msra.mxu0 %v7257
    %v7259 = vand.u32 %v4386, 4294901760
    %7260 = vmatprep.subr.mxu0 %v7259
    %v7261 = vand.u32 %v4385, 4294901760
    %7262 = vmatpush1.msra.mxu0 %v7261
    %v7263 = vand.u32 %v4382, 4294901760
    %7264 = vmatprep.subr.mxu0 %v7263
    %v7265 = vand.u32 %v4381, 4294901760
    %7266 = vmatpush1.msra.mxu0 %v7265
    %v7267 = vand.u32 %v4506, 4294901760
    %7268 = vmatprep.subr.mxu0 %v7267
    %v7269 = vand.u32 %v4505, 4294901760
    %7270 = vmatpush2.msra.mxu0 %v7269
    %v7271 = vand.u32 %v4502, 4294901760
    %7272 = vmatprep.subr.mxu0 %v7271
    %v7273 = vand.u32 %v4501, 4294901760
    %7274 = vmatpush2.msra.mxu0 %v7273
    %v7275 = vand.u32 %v4498, 4294901760
    %7276 = vmatprep.subr.mxu0 %v7275
    %v7277 = vand.u32 %v4497, 4294901760
    %7278 = vmatpush2.msra.mxu0 %v7277
    %v7279 = vand.u32 %v4494, 4294901760
    %7280 = vmatprep.subr.mxu0 %v7279
    %v7281 = vand.u32 %v4493, 4294901760
    %7282 = vmatpush2.msra.mxu0 %v7281
    %v7283 = vand.u32 %v4490, 4294901760
    %7284 = vmatprep.subr.mxu0 %v7283
    %v7285 = vand.u32 %v4489, 4294901760
    %7286 = vmatpush2.msra.mxu0 %v7285
    %v7287 = vand.u32 %v4486, 4294901760
    %7288 = vmatprep.subr.mxu0 %v7287
    %v7289 = vand.u32 %v4485, 4294901760
    %7290 = vmatpush2.msra.mxu0 %v7289
    %v7291 = vand.u32 %v4482, 4294901760
    %7292 = vmatprep.subr.mxu0 %v7291
    %v7293 = vand.u32 %v4481, 4294901760
    %7294 = vmatpush2.msra.mxu0 %v7293
    %v7295 = vand.u32 %v4478, 4294901760
    %7296 = vmatprep.subr.mxu0 %v7295
    %v7297 = vand.u32 %v4477, 4294901760
    %7298 = vmatpush2.msra.mxu0 %v7297
    %v7299 = vand.u32 %v4474, 4294901760
    %7300 = vmatprep.subr.mxu0 %v7299
    %v7301 = vand.u32 %v4473, 4294901760
    %7302 = vmatpush2.msra.mxu0 %v7301
    %v7303 = vand.u32 %v4470, 4294901760
    %7304 = vmatprep.subr.mxu0 %v7303
    %v7305 = vand.u32 %v4469, 4294901760
    %7306 = vmatpush2.msra.mxu0 %v7305
    %v7307 = vand.u32 %v4466, 4294901760
    %7308 = vmatprep.subr.mxu0 %v7307
    %v7309 = vand.u32 %v4465, 4294901760
    %7310 = vmatpush2.msra.mxu0 %v7309
    %v7311 = vand.u32 %v4462, 4294901760
    %7312 = vmatprep.subr.mxu0 %v7311
    %v7313 = vand.u32 %v4461, 4294901760
    %7314 = vmatpush2.msra.mxu0 %v7313
    %v7315 = vand.u32 %v4458, 4294901760
    %7316 = vmatprep.subr.mxu0 %v7315
    %v7317 = vand.u32 %v4457, 4294901760
    %7318 = vmatpush2.msra.mxu0 %v7317
    %v7319 = vand.u32 %v4454, 4294901760
    %7320 = vmatprep.subr.mxu0 %v7319
    %v7321 = vand.u32 %v4453, 4294901760
    %7322 = vmatpush2.msra.mxu0 %v7321
    %v7323 = vand.u32 %v4450, 4294901760
    %7324 = vmatprep.subr.mxu0 %v7323
    %v7325 = vand.u32 %v4449, 4294901760
    %7326 = vmatpush2.msra.mxu0 %v7325
    %v7327 = vand.u32 %v4446, 4294901760
    %7328 = vmatprep.subr.mxu0 %v7327
    %v7329 = vand.u32 %v4445, 4294901760
    %7330 = vmatpush2.msra.mxu0 %v7329
    %v7331 = vand.u32 %v4376, 4294901760
    %v7332 = vsub.f32 %v4376, %v7331
    %v7333 = vand.u32 %v7332, 4294901760
    %v7334 = vsub.f32 %v7332, %v7333
    %v7335 = vand.u32 %v7334, 4294901760
    %7336 = vmatprep.mubr.f32.mxu0 %v7335
    %v7337 = vand.u32 %v4375, 4294901760
    %v7338 = vsub.f32 %v4375, %v7337
    %v7339 = vand.u32 %v7338, 4294901760
    %v7340 = vsub.f32 %v7338, %v7339
    %v7341 = vand.u32 %v7340, 4294901760
    %7342 = vmatmul.mubr.f32.gmra.mxu0 %v7341
    %v7343 = vpop.f32.mrf.mxu0
    %v7344 = vadd.f32 0.0, %v7343
    %v7345 = vpop.f32.mrf.mxu0
    %v7346 = vadd.f32 0.0, %v7345
    %7347 = vdwg.mxu0
    %v7348 = vand.u32 %v4442, 4294901760
    %v7349 = vsub.f32 %v4442, %v7348
    %v7350 = vand.u32 %v7349, 4294901760
    %v7351 = vsub.f32 %v7349, %v7350
    %v7352 = vand.u32 %v7351, 4294901760
    %7353 = vmatprep.subr.mxu0 %v7352
    %v7354 = vand.u32 %v4441, 4294901760
    %v7355 = vsub.f32 %v4441, %v7354
    %v7356 = vand.u32 %v7355, 4294901760
    %v7357 = vsub.f32 %v7355, %v7356
    %v7358 = vand.u32 %v7357, 4294901760
    %7359 = vmatpush1.msra.mxu0 %v7358
    %v7360 = vand.u32 %v4438, 4294901760
    %v7361 = vsub.f32 %v4438, %v7360
    %v7362 = vand.u32 %v7361, 4294901760
    %v7363 = vsub.f32 %v7361, %v7362
    %v7364 = vand.u32 %v7363, 4294901760
    %7365 = vmatprep.subr.mxu0 %v7364
    %v7366 = vand.u32 %v4437, 4294901760
    %v7367 = vsub.f32 %v4437, %v7366
    %v7368 = vand.u32 %v7367, 4294901760
    %v7369 = vsub.f32 %v7367, %v7368
    %v7370 = vand.u32 %v7369, 4294901760
    %7371 = vmatpush1.msra.mxu0 %v7370
    %v7372 = vand.u32 %v4434, 4294901760
    %v7373 = vsub.f32 %v4434, %v7372
    %v7374 = vand.u32 %v7373, 4294901760
    %v7375 = vsub.f32 %v7373, %v7374
    %v7376 = vand.u32 %v7375, 4294901760
    %7377 = vmatprep.subr.mxu0 %v7376
    %v7378 = vand.u32 %v4433, 4294901760
    %v7379 = vsub.f32 %v4433, %v7378
    %v7380 = vand.u32 %v7379, 4294901760
    %v7381 = vsub.f32 %v7379, %v7380
    %v7382 = vand.u32 %v7381, 4294901760
    %7383 = vmatpush1.msra.mxu0 %v7382
    %v7384 = vand.u32 %v4430, 4294901760
    %v7385 = vsub.f32 %v4430, %v7384
    %v7386 = vand.u32 %v7385, 4294901760
    %v7387 = vsub.f32 %v7385, %v7386
    %v7388 = vand.u32 %v7387, 4294901760
    %7389 = vmatprep.subr.mxu0 %v7388
    %v7390 = vand.u32 %v4429, 4294901760
    %v7391 = vsub.f32 %v4429, %v7390
    %v7392 = vand.u32 %v7391, 4294901760
    %v7393 = vsub.f32 %v7391, %v7392
    %v7394 = vand.u32 %v7393, 4294901760
    %7395 = vmatpush1.msra.mxu0 %v7394
    %v7396 = vand.u32 %v4426, 4294901760
    %v7397 = vsub.f32 %v4426, %v7396
    %v7398 = vand.u32 %v7397, 4294901760
    %v7399 = vsub.f32 %v7397, %v7398
    %v7400 = vand.u32 %v7399, 4294901760
    %7401 = vmatprep.subr.mxu0 %v7400
    %v7402 = vand.u32 %v4425, 4294901760
    %v7403 = vsub.f32 %v4425, %v7402
    %v7404 = vand.u32 %v7403, 4294901760
    %v7405 = vsub.f32 %v7403, %v7404
    %v7406 = vand.u32 %v7405, 4294901760
    %7407 = vmatpush1.msra.mxu0 %v7406
    %v7408 = vand.u32 %v4422, 4294901760
    %v7409 = vsub.f32 %v4422, %v7408
    %v7410 = vand.u32 %v7409, 4294901760
    %v7411 = vsub.f32 %v7409, %v7410
    %v7412 = vand.u32 %v7411, 4294901760
    %7413 = vmatprep.subr.mxu0 %v7412
    %v7414 = vand.u32 %v4421, 4294901760
    %v7415 = vsub.f32 %v4421, %v7414
    %v7416 = vand.u32 %v7415, 4294901760
    %v7417 = vsub.f32 %v7415, %v7416
    %v7418 = vand.u32 %v7417, 4294901760
    %7419 = vmatpush1.msra.mxu0 %v7418
    %v7420 = vand.u32 %v4418, 4294901760
    %v7421 = vsub.f32 %v4418, %v7420
    %v7422 = vand.u32 %v7421, 4294901760
    %v7423 = vsub.f32 %v7421, %v7422
    %v7424 = vand.u32 %v7423, 4294901760
    %7425 = vmatprep.subr.mxu0 %v7424
    %v7426 = vand.u32 %v4417, 4294901760
    %v7427 = vsub.f32 %v4417, %v7426
    %v7428 = vand.u32 %v7427, 4294901760
    %v7429 = vsub.f32 %v7427, %v7428
    %v7430 = vand.u32 %v7429, 4294901760
    %7431 = vmatpush1.msra.mxu0 %v7430
    %v7432 = vand.u32 %v4414, 4294901760
    %v7433 = vsub.f32 %v4414, %v7432
    %v7434 = vand.u32 %v7433, 4294901760
    %v7435 = vsub.f32 %v7433, %v7434
    %v7436 = vand.u32 %v7435, 4294901760
    %7437 = vmatprep.subr.mxu0 %v7436
    %v7438 = vand.u32 %v4413, 4294901760
    %v7439 = vsub.f32 %v4413, %v7438
    %v7440 = vand.u32 %v7439, 4294901760
    %v7441 = vsub.f32 %v7439, %v7440
    %v7442 = vand.u32 %v7441, 4294901760
    %7443 = vmatpush1.msra.mxu0 %v7442
    %v7444 = vand.u32 %v4410, 4294901760
    %v7445 = vsub.f32 %v4410, %v7444
    %v7446 = vand.u32 %v7445, 4294901760
    %v7447 = vsub.f32 %v7445, %v7446
    %v7448 = vand.u32 %v7447, 4294901760
    %7449 = vmatprep.subr.mxu0 %v7448
    %v7450 = vand.u32 %v4409, 4294901760
    %v7451 = vsub.f32 %v4409, %v7450
    %v7452 = vand.u32 %v7451, 4294901760
    %v7453 = vsub.f32 %v7451, %v7452
    %v7454 = vand.u32 %v7453, 4294901760
    %7455 = vmatpush1.msra.mxu0 %v7454
    %v7456 = vand.u32 %v4406, 4294901760
    %v7457 = vsub.f32 %v4406, %v7456
    %v7458 = vand.u32 %v7457, 4294901760
    %v7459 = vsub.f32 %v7457, %v7458
    %v7460 = vand.u32 %v7459, 4294901760
    %7461 = vmatprep.subr.mxu0 %v7460
    %v7462 = vand.u32 %v4405, 4294901760
    %v7463 = vsub.f32 %v4405, %v7462
    %v7464 = vand.u32 %v7463, 4294901760
    %v7465 = vsub.f32 %v7463, %v7464
    %v7466 = vand.u32 %v7465, 4294901760
    %7467 = vmatpush1.msra.mxu0 %v7466
    %v7468 = vand.u32 %v4402, 4294901760
    %v7469 = vsub.f32 %v4402, %v7468
    %v7470 = vand.u32 %v7469, 4294901760
    %v7471 = vsub.f32 %v7469, %v7470
    %v7472 = vand.u32 %v7471, 4294901760
    %7473 = vmatprep.subr.mxu0 %v7472
    %v7474 = vand.u32 %v4401, 4294901760
    %v7475 = vsub.f32 %v4401, %v7474
    %v7476 = vand.u32 %v7475, 4294901760
    %v7477 = vsub.f32 %v7475, %v7476
    %v7478 = vand.u32 %v7477, 4294901760
    %7479 = vmatpush1.msra.mxu0 %v7478
    %v7480 = vand.u32 %v4398, 4294901760
    %v7481 = vsub.f32 %v4398, %v7480
    %v7482 = vand.u32 %v7481, 4294901760
    %v7483 = vsub.f32 %v7481, %v7482
    %v7484 = vand.u32 %v7483, 4294901760
    %7485 = vmatprep.subr.mxu0 %v7484
    %v7486 = vand.u32 %v4397, 4294901760
    %v7487 = vsub.f32 %v4397, %v7486
    %v7488 = vand.u32 %v7487, 4294901760
    %v7489 = vsub.f32 %v7487, %v7488
    %v7490 = vand.u32 %v7489, 4294901760
    %7491 = vmatpush1.msra.mxu0 %v7490
    %v7492 = vand.u32 %v4394, 4294901760
    %v7493 = vsub.f32 %v4394, %v7492
    %v7494 = vand.u32 %v7493, 4294901760
    %v7495 = vsub.f32 %v7493, %v7494
    %v7496 = vand.u32 %v7495, 4294901760
    %7497 = vmatprep.subr.mxu0 %v7496
    %v7498 = vand.u32 %v4393, 4294901760
    %v7499 = vsub.f32 %v4393, %v7498
    %v7500 = vand.u32 %v7499, 4294901760
    %v7501 = vsub.f32 %v7499, %v7500
    %v7502 = vand.u32 %v7501, 4294901760
    %7503 = vmatpush1.msra.mxu0 %v7502
    %v7504 = vand.u32 %v4390, 4294901760
    %v7505 = vsub.f32 %v4390, %v7504
    %v7506 = vand.u32 %v7505, 4294901760
    %v7507 = vsub.f32 %v7505, %v7506
    %v7508 = vand.u32 %v7507, 4294901760
    %7509 = vmatprep.subr.mxu0 %v7508
    %v7510 = vand.u32 %v4389, 4294901760
    %v7511 = vsub.f32 %v4389, %v7510
    %v7512 = vand.u32 %v7511, 4294901760
    %v7513 = vsub.f32 %v7511, %v7512
    %v7514 = vand.u32 %v7513, 4294901760
    %7515 = vmatpush1.msra.mxu0 %v7514
    %v7516 = vand.u32 %v4386, 4294901760
    %v7517 = vsub.f32 %v4386, %v7516
    %v7518 = vand.u32 %v7517, 4294901760
    %v7519 = vsub.f32 %v7517, %v7518
    %v7520 = vand.u32 %v7519, 4294901760
    %7521 = vmatprep.subr.mxu0 %v7520
    %v7522 = vand.u32 %v4385, 4294901760
    %v7523 = vsub.f32 %v4385, %v7522
    %v7524 = vand.u32 %v7523, 4294901760
    %v7525 = vsub.f32 %v7523, %v7524
    %v7526 = vand.u32 %v7525, 4294901760
    %7527 = vmatpush1.msra.mxu0 %v7526
    %v7528 = vand.u32 %v4382, 4294901760
    %v7529 = vsub.f32 %v4382, %v7528
    %v7530 = vand.u32 %v7529, 4294901760
    %v7531 = vsub.f32 %v7529, %v7530
    %v7532 = vand.u32 %v7531, 4294901760
    %7533 = vmatprep.subr.mxu0 %v7532
    %v7534 = vand.u32 %v4381, 4294901760
    %v7535 = vsub.f32 %v4381, %v7534
    %v7536 = vand.u32 %v7535, 4294901760
    %v7537 = vsub.f32 %v7535, %v7536
    %v7538 = vand.u32 %v7537, 4294901760
    %7539 = vmatpush1.msra.mxu0 %v7538
    %v7540 = vand.u32 %v4506, 4294901760
    %v7541 = vsub.f32 %v4506, %v7540
    %v7542 = vand.u32 %v7541, 4294901760
    %v7543 = vsub.f32 %v7541, %v7542
    %v7544 = vand.u32 %v7543, 4294901760
    %7545 = vmatprep.subr.mxu0 %v7544
    %v7546 = vand.u32 %v4505, 4294901760
    %v7547 = vsub.f32 %v4505, %v7546
    %v7548 = vand.u32 %v7547, 4294901760
    %v7549 = vsub.f32 %v7547, %v7548
    %v7550 = vand.u32 %v7549, 4294901760
    %7551 = vmatpush2.msra.mxu0 %v7550
    %v7552 = vand.u32 %v4502, 4294901760
    %v7553 = vsub.f32 %v4502, %v7552
    %v7554 = vand.u32 %v7553, 4294901760
    %v7555 = vsub.f32 %v7553, %v7554
    %v7556 = vand.u32 %v7555, 4294901760
    %7557 = vmatprep.subr.mxu0 %v7556
    %v7558 = vand.u32 %v4501, 4294901760
    %v7559 = vsub.f32 %v4501, %v7558
    %v7560 = vand.u32 %v7559, 4294901760
    %v7561 = vsub.f32 %v7559, %v7560
    %v7562 = vand.u32 %v7561, 4294901760
    %7563 = vmatpush2.msra.mxu0 %v7562
    %v7564 = vand.u32 %v4498, 4294901760
    %v7565 = vsub.f32 %v4498, %v7564
    %v7566 = vand.u32 %v7565, 4294901760
    %v7567 = vsub.f32 %v7565, %v7566
    %v7568 = vand.u32 %v7567, 4294901760
    %7569 = vmatprep.subr.mxu0 %v7568
    %v7570 = vand.u32 %v4497, 4294901760
    %v7571 = vsub.f32 %v4497, %v7570
    %v7572 = vand.u32 %v7571, 4294901760
    %v7573 = vsub.f32 %v7571, %v7572
    %v7574 = vand.u32 %v7573, 4294901760
    %7575 = vmatpush2.msra.mxu0 %v7574
    %v7576 = vand.u32 %v4494, 4294901760
    %v7577 = vsub.f32 %v4494, %v7576
    %v7578 = vand.u32 %v7577, 4294901760
    %v7579 = vsub.f32 %v7577, %v7578
    %v7580 = vand.u32 %v7579, 4294901760
    %7581 = vmatprep.subr.mxu0 %v7580
    %v7582 = vand.u32 %v4493, 4294901760
    %v7583 = vsub.f32 %v4493, %v7582
    %v7584 = vand.u32 %v7583, 4294901760
    %v7585 = vsub.f32 %v7583, %v7584
    %v7586 = vand.u32 %v7585, 4294901760
    %7587 = vmatpush2.msra.mxu0 %v7586
    %v7588 = vand.u32 %v4490, 4294901760
    %v7589 = vsub.f32 %v4490, %v7588
    %v7590 = vand.u32 %v7589, 4294901760
    %v7591 = vsub.f32 %v7589, %v7590
    %v7592 = vand.u32 %v7591, 4294901760
    %7593 = vmatprep.subr.mxu0 %v7592
    %v7594 = vand.u32 %v4489, 4294901760
    %v7595 = vsub.f32 %v4489, %v7594
    %v7596 = vand.u32 %v7595, 4294901760
    %v7597 = vsub.f32 %v7595, %v7596
    %v7598 = vand.u32 %v7597, 4294901760
    %7599 = vmatpush2.msra.mxu0 %v7598
    %v7600 = vand.u32 %v4486, 4294901760
    %v7601 = vsub.f32 %v4486, %v7600
    %v7602 = vand.u32 %v7601, 4294901760
    %v7603 = vsub.f32 %v7601, %v7602
    %v7604 = vand.u32 %v7603, 4294901760
    %7605 = vmatprep.subr.mxu0 %v7604
    %v7606 = vand.u32 %v4485, 4294901760
    %v7607 = vsub.f32 %v4485, %v7606
    %v7608 = vand.u32 %v7607, 4294901760
    %v7609 = vsub.f32 %v7607, %v7608
    %v7610 = vand.u32 %v7609, 4294901760
    %7611 = vmatpush2.msra.mxu0 %v7610
    %v7612 = vand.u32 %v4482, 4294901760
    %v7613 = vsub.f32 %v4482, %v7612
    %v7614 = vand.u32 %v7613, 4294901760
    %v7615 = vsub.f32 %v7613, %v7614
    %v7616 = vand.u32 %v7615, 4294901760
    %7617 = vmatprep.subr.mxu0 %v7616
    %v7618 = vand.u32 %v4481, 4294901760
    %v7619 = vsub.f32 %v4481, %v7618
    %v7620 = vand.u32 %v7619, 4294901760
    %v7621 = vsub.f32 %v7619, %v7620
    %v7622 = vand.u32 %v7621, 4294901760
    %7623 = vmatpush2.msra.mxu0 %v7622
    %v7624 = vand.u32 %v4478, 4294901760
    %v7625 = vsub.f32 %v4478, %v7624
    %v7626 = vand.u32 %v7625, 4294901760
    %v7627 = vsub.f32 %v7625, %v7626
    %v7628 = vand.u32 %v7627, 4294901760
    %7629 = vmatprep.subr.mxu0 %v7628
    %v7630 = vand.u32 %v4477, 4294901760
    %v7631 = vsub.f32 %v4477, %v7630
    %v7632 = vand.u32 %v7631, 4294901760
    %v7633 = vsub.f32 %v7631, %v7632
    %v7634 = vand.u32 %v7633, 4294901760
    %7635 = vmatpush2.msra.mxu0 %v7634
    %v7636 = vand.u32 %v4474, 4294901760
    %v7637 = vsub.f32 %v4474, %v7636
    %v7638 = vand.u32 %v7637, 4294901760
    %v7639 = vsub.f32 %v7637, %v7638
    %v7640 = vand.u32 %v7639, 4294901760
    %7641 = vmatprep.subr.mxu0 %v7640
    %v7642 = vand.u32 %v4473, 4294901760
    %v7643 = vsub.f32 %v4473, %v7642
    %v7644 = vand.u32 %v7643, 4294901760
    %v7645 = vsub.f32 %v7643, %v7644
    %v7646 = vand.u32 %v7645, 4294901760
    %7647 = vmatpush2.msra.mxu0 %v7646
    %v7648 = vand.u32 %v4470, 4294901760
    %v7649 = vsub.f32 %v4470, %v7648
    %v7650 = vand.u32 %v7649, 4294901760
    %v7651 = vsub.f32 %v7649, %v7650
    %v7652 = vand.u32 %v7651, 4294901760
    %7653 = vmatprep.subr.mxu0 %v7652
    %v7654 = vand.u32 %v4469, 4294901760
    %v7655 = vsub.f32 %v4469, %v7654
    %v7656 = vand.u32 %v7655, 4294901760
    %v7657 = vsub.f32 %v7655, %v7656
    %v7658 = vand.u32 %v7657, 4294901760
    %7659 = vmatpush2.msra.mxu0 %v7658
    %v7660 = vand.u32 %v4466, 4294901760
    %v7661 = vsub.f32 %v4466, %v7660
    %v7662 = vand.u32 %v7661, 4294901760
    %v7663 = vsub.f32 %v7661, %v7662
    %v7664 = vand.u32 %v7663, 4294901760
    %7665 = vmatprep.subr.mxu0 %v7664
    %v7666 = vand.u32 %v4465, 4294901760
    %v7667 = vsub.f32 %v4465, %v7666
    %v7668 = vand.u32 %v7667, 4294901760
    %v7669 = vsub.f32 %v7667, %v7668
    %v7670 = vand.u32 %v7669, 4294901760
    %7671 = vmatpush2.msra.mxu0 %v7670
    %v7672 = vand.u32 %v4462, 4294901760
    %v7673 = vsub.f32 %v4462, %v7672
    %v7674 = vand.u32 %v7673, 4294901760
    %v7675 = vsub.f32 %v7673, %v7674
    %v7676 = vand.u32 %v7675, 4294901760
    %7677 = vmatprep.subr.mxu0 %v7676
    %v7678 = vand.u32 %v4461, 4294901760
    %v7679 = vsub.f32 %v4461, %v7678
    %v7680 = vand.u32 %v7679, 4294901760
    %v7681 = vsub.f32 %v7679, %v7680
    %v7682 = vand.u32 %v7681, 4294901760
    %7683 = vmatpush2.msra.mxu0 %v7682
    %v7684 = vand.u32 %v4458, 4294901760
    %v7685 = vsub.f32 %v4458, %v7684
    %v7686 = vand.u32 %v7685, 4294901760
    %v7687 = vsub.f32 %v7685, %v7686
    %v7688 = vand.u32 %v7687, 4294901760
    %7689 = vmatprep.subr.mxu0 %v7688
    %v7690 = vand.u32 %v4457, 4294901760
    %v7691 = vsub.f32 %v4457, %v7690
    %v7692 = vand.u32 %v7691, 4294901760
    %v7693 = vsub.f32 %v7691, %v7692
    %v7694 = vand.u32 %v7693, 4294901760
    %7695 = vmatpush2.msra.mxu0 %v7694
    %v7696 = vand.u32 %v4454, 4294901760
    %v7697 = vsub.f32 %v4454, %v7696
    %v7698 = vand.u32 %v7697, 4294901760
    %v7699 = vsub.f32 %v7697, %v7698
    %v7700 = vand.u32 %v7699, 4294901760
    %7701 = vmatprep.subr.mxu0 %v7700
    %v7702 = vand.u32 %v4453, 4294901760
    %v7703 = vsub.f32 %v4453, %v7702
    %v7704 = vand.u32 %v7703, 4294901760
    %v7705 = vsub.f32 %v7703, %v7704
    %v7706 = vand.u32 %v7705, 4294901760
    %7707 = vmatpush2.msra.mxu0 %v7706
    %v7708 = vand.u32 %v4450, 4294901760
    %v7709 = vsub.f32 %v4450, %v7708
    %v7710 = vand.u32 %v7709, 4294901760
    %v7711 = vsub.f32 %v7709, %v7710
    %v7712 = vand.u32 %v7711, 4294901760
    %7713 = vmatprep.subr.mxu0 %v7712
    %v7714 = vand.u32 %v4449, 4294901760
    %v7715 = vsub.f32 %v4449, %v7714
    %v7716 = vand.u32 %v7715, 4294901760
    %v7717 = vsub.f32 %v7715, %v7716
    %v7718 = vand.u32 %v7717, 4294901760
    %7719 = vmatpush2.msra.mxu0 %v7718
    %v7720 = vand.u32 %v4446, 4294901760
    %v7721 = vsub.f32 %v4446, %v7720
    %v7722 = vand.u32 %v7721, 4294901760
    %v7723 = vsub.f32 %v7721, %v7722
    %v7724 = vand.u32 %v7723, 4294901760
    %7725 = vmatprep.subr.mxu0 %v7724
    %v7726 = vand.u32 %v4445, 4294901760
    %v7727 = vsub.f32 %v4445, %v7726
    %v7728 = vand.u32 %v7727, 4294901760
    %v7729 = vsub.f32 %v7727, %v7728
    %v7730 = vand.u32 %v7729, 4294901760
    %7731 = vmatpush2.msra.mxu0 %v7730
    %v7732 = vand.u32 %v4376, 4294901760
    %7733 = vmatprep.mubr.f32.mxu0 %v7732
    %v7734 = vand.u32 %v4375, 4294901760
    %7735 = vmatmul.mubr.f32.gmra.mxu0 %v7734
    %v7736 = vpop.f32.mrf.mxu0
    %v7737 = vadd.f32 %v7344, %v7736
    %v7738 = vpop.f32.mrf.mxu0
    %v7739 = vadd.f32 %v7346, %v7738
    %7740 = vdwg.mxu0
    %v7741 = vand.u32 %v4442, 4294901760
    %v7742 = vsub.f32 %v4442, %v7741
    %7743 = vmatprep.subr.mxu0 %v7742
    %v7744 = vand.u32 %v4441, 4294901760
    %v7745 = vsub.f32 %v4441, %v7744
    %7746 = vmatpush1.msra.mxu0 %v7745
    %v7747 = vand.u32 %v4438, 4294901760
    %v7748 = vsub.f32 %v4438, %v7747
    %7749 = vmatprep.subr.mxu0 %v7748
    %v7750 = vand.u32 %v4437, 4294901760
    %v7751 = vsub.f32 %v4437, %v7750
    %7752 = vmatpush1.msra.mxu0 %v7751
    %v7753 = vand.u32 %v4434, 4294901760
    %v7754 = vsub.f32 %v4434, %v7753
    %7755 = vmatprep.subr.mxu0 %v7754
    %v7756 = vand.u32 %v4433, 4294901760
    %v7757 = vsub.f32 %v4433, %v7756
    %7758 = vmatpush1.msra.mxu0 %v7757
    %v7759 = vand.u32 %v4430, 4294901760
    %v7760 = vsub.f32 %v4430, %v7759
    %7761 = vmatprep.subr.mxu0 %v7760
    %v7762 = vand.u32 %v4429, 4294901760
    %v7763 = vsub.f32 %v4429, %v7762
    %7764 = vmatpush1.msra.mxu0 %v7763
    %v7765 = vand.u32 %v4426, 4294901760
    %v7766 = vsub.f32 %v4426, %v7765
    %7767 = vmatprep.subr.mxu0 %v7766
    %v7768 = vand.u32 %v4425, 4294901760
    %v7769 = vsub.f32 %v4425, %v7768
    %7770 = vmatpush1.msra.mxu0 %v7769
    %v7771 = vand.u32 %v4422, 4294901760
    %v7772 = vsub.f32 %v4422, %v7771
    %7773 = vmatprep.subr.mxu0 %v7772
    %v7774 = vand.u32 %v4421, 4294901760
    %v7775 = vsub.f32 %v4421, %v7774
    %7776 = vmatpush1.msra.mxu0 %v7775
    %v7777 = vand.u32 %v4418, 4294901760
    %v7778 = vsub.f32 %v4418, %v7777
    %7779 = vmatprep.subr.mxu0 %v7778
    %v7780 = vand.u32 %v4417, 4294901760
    %v7781 = vsub.f32 %v4417, %v7780
    %7782 = vmatpush1.msra.mxu0 %v7781
    %v7783 = vand.u32 %v4414, 4294901760
    %v7784 = vsub.f32 %v4414, %v7783
    %7785 = vmatprep.subr.mxu0 %v7784
    %v7786 = vand.u32 %v4413, 4294901760
    %v7787 = vsub.f32 %v4413, %v7786
    %7788 = vmatpush1.msra.mxu0 %v7787
    %v7789 = vand.u32 %v4410, 4294901760
    %v7790 = vsub.f32 %v4410, %v7789
    %7791 = vmatprep.subr.mxu0 %v7790
    %v7792 = vand.u32 %v4409, 4294901760
    %v7793 = vsub.f32 %v4409, %v7792
    %7794 = vmatpush1.msra.mxu0 %v7793
    %v7795 = vand.u32 %v4406, 4294901760
    %v7796 = vsub.f32 %v4406, %v7795
    %7797 = vmatprep.subr.mxu0 %v7796
    %v7798 = vand.u32 %v4405, 4294901760
    %v7799 = vsub.f32 %v4405, %v7798
    %7800 = vmatpush1.msra.mxu0 %v7799
    %v7801 = vand.u32 %v4402, 4294901760
    %v7802 = vsub.f32 %v4402, %v7801
    %7803 = vmatprep.subr.mxu0 %v7802
    %v7804 = vand.u32 %v4401, 4294901760
    %v7805 = vsub.f32 %v4401, %v7804
    %7806 = vmatpush1.msra.mxu0 %v7805
    %v7807 = vand.u32 %v4398, 4294901760
    %v7808 = vsub.f32 %v4398, %v7807
    %7809 = vmatprep.subr.mxu0 %v7808
    %v7810 = vand.u32 %v4397, 4294901760
    %v7811 = vsub.f32 %v4397, %v7810
    %7812 = vmatpush1.msra.mxu0 %v7811
    %v7813 = vand.u32 %v4394, 4294901760
    %v7814 = vsub.f32 %v4394, %v7813
    %7815 = vmatprep.subr.mxu0 %v7814
    %v7816 = vand.u32 %v4393, 4294901760
    %v7817 = vsub.f32 %v4393, %v7816
    %7818 = vmatpush1.msra.mxu0 %v7817
    %v7819 = vand.u32 %v4390, 4294901760
    %v7820 = vsub.f32 %v4390, %v7819
    %7821 = vmatprep.subr.mxu0 %v7820
    %v7822 = vand.u32 %v4389, 4294901760
    %v7823 = vsub.f32 %v4389, %v7822
    %7824 = vmatpush1.msra.mxu0 %v7823
    %v7825 = vand.u32 %v4386, 4294901760
    %v7826 = vsub.f32 %v4386, %v7825
    %7827 = vmatprep.subr.mxu0 %v7826
    %v7828 = vand.u32 %v4385, 4294901760
    %v7829 = vsub.f32 %v4385, %v7828
    %7830 = vmatpush1.msra.mxu0 %v7829
    %v7831 = vand.u32 %v4382, 4294901760
    %v7832 = vsub.f32 %v4382, %v7831
    %7833 = vmatprep.subr.mxu0 %v7832
    %v7834 = vand.u32 %v4381, 4294901760
    %v7835 = vsub.f32 %v4381, %v7834
    %7836 = vmatpush1.msra.mxu0 %v7835
    %v7837 = vand.u32 %v4506, 4294901760
    %v7838 = vsub.f32 %v4506, %v7837
    %7839 = vmatprep.subr.mxu0 %v7838
    %v7840 = vand.u32 %v4505, 4294901760
    %v7841 = vsub.f32 %v4505, %v7840
    %7842 = vmatpush2.msra.mxu0 %v7841
    %v7843 = vand.u32 %v4502, 4294901760
    %v7844 = vsub.f32 %v4502, %v7843
    %7845 = vmatprep.subr.mxu0 %v7844
    %v7846 = vand.u32 %v4501, 4294901760
    %v7847 = vsub.f32 %v4501, %v7846
    %7848 = vmatpush2.msra.mxu0 %v7847
    %v7849 = vand.u32 %v4498, 4294901760
    %v7850 = vsub.f32 %v4498, %v7849
    %7851 = vmatprep.subr.mxu0 %v7850
    %v7852 = vand.u32 %v4497, 4294901760
    %v7853 = vsub.f32 %v4497, %v7852
    %7854 = vmatpush2.msra.mxu0 %v7853
    %v7855 = vand.u32 %v4494, 4294901760
    %v7856 = vsub.f32 %v4494, %v7855
    %7857 = vmatprep.subr.mxu0 %v7856
    %v7858 = vand.u32 %v4493, 4294901760
    %v7859 = vsub.f32 %v4493, %v7858
    %7860 = vmatpush2.msra.mxu0 %v7859
    %v7861 = vand.u32 %v4490, 4294901760
    %v7862 = vsub.f32 %v4490, %v7861
    %7863 = vmatprep.subr.mxu0 %v7862
    %v7864 = vand.u32 %v4489, 4294901760
    %v7865 = vsub.f32 %v4489, %v7864
    %7866 = vmatpush2.msra.mxu0 %v7865
    %v7867 = vand.u32 %v4486, 4294901760
    %v7868 = vsub.f32 %v4486, %v7867
    %7869 = vmatprep.subr.mxu0 %v7868
    %v7870 = vand.u32 %v4485, 4294901760
    %v7871 = vsub.f32 %v4485, %v7870
    %7872 = vmatpush2.msra.mxu0 %v7871
    %v7873 = vand.u32 %v4482, 4294901760
    %v7874 = vsub.f32 %v4482, %v7873
    %7875 = vmatprep.subr.mxu0 %v7874
    %v7876 = vand.u32 %v4481, 4294901760
    %v7877 = vsub.f32 %v4481, %v7876
    %7878 = vmatpush2.msra.mxu0 %v7877
    %v7879 = vand.u32 %v4478, 4294901760
    %v7880 = vsub.f32 %v4478, %v7879
    %7881 = vmatprep.subr.mxu0 %v7880
    %v7882 = vand.u32 %v4477, 4294901760
    %v7883 = vsub.f32 %v4477, %v7882
    %7884 = vmatpush2.msra.mxu0 %v7883
    %v7885 = vand.u32 %v4474, 4294901760
    %v7886 = vsub.f32 %v4474, %v7885
    %7887 = vmatprep.subr.mxu0 %v7886
    %v7888 = vand.u32 %v4473, 4294901760
    %v7889 = vsub.f32 %v4473, %v7888
    %7890 = vmatpush2.msra.mxu0 %v7889
    %v7891 = vand.u32 %v4470, 4294901760
    %v7892 = vsub.f32 %v4470, %v7891
    %7893 = vmatprep.subr.mxu0 %v7892
    %v7894 = vand.u32 %v4469, 4294901760
    %v7895 = vsub.f32 %v4469, %v7894
    %7896 = vmatpush2.msra.mxu0 %v7895
    %v7897 = vand.u32 %v4466, 4294901760
    %v7898 = vsub.f32 %v4466, %v7897
    %7899 = vmatprep.subr.mxu0 %v7898
    %v7900 = vand.u32 %v4465, 4294901760
    %v7901 = vsub.f32 %v4465, %v7900
    %7902 = vmatpush2.msra.mxu0 %v7901
    %v7903 = vand.u32 %v4462, 4294901760
    %v7904 = vsub.f32 %v4462, %v7903
    %7905 = vmatprep.subr.mxu0 %v7904
    %v7906 = vand.u32 %v4461, 4294901760
    %v7907 = vsub.f32 %v4461, %v7906
    %7908 = vmatpush2.msra.mxu0 %v7907
    %v7909 = vand.u32 %v4458, 4294901760
    %v7910 = vsub.f32 %v4458, %v7909
    %7911 = vmatprep.subr.mxu0 %v7910
    %v7912 = vand.u32 %v4457, 4294901760
    %v7913 = vsub.f32 %v4457, %v7912
    %7914 = vmatpush2.msra.mxu0 %v7913
    %v7915 = vand.u32 %v4454, 4294901760
    %v7916 = vsub.f32 %v4454, %v7915
    %7917 = vmatprep.subr.mxu0 %v7916
    %v7918 = vand.u32 %v4453, 4294901760
    %v7919 = vsub.f32 %v4453, %v7918
    %7920 = vmatpush2.msra.mxu0 %v7919
    %v7921 = vand.u32 %v4450, 4294901760
    %v7922 = vsub.f32 %v4450, %v7921
    %7923 = vmatprep.subr.mxu0 %v7922
    %v7924 = vand.u32 %v4449, 4294901760
    %v7925 = vsub.f32 %v4449, %v7924
    %7926 = vmatpush2.msra.mxu0 %v7925
    %v7927 = vand.u32 %v4446, 4294901760
    %v7928 = vsub.f32 %v4446, %v7927
    %7929 = vmatprep.subr.mxu0 %v7928
    %v7930 = vand.u32 %v4445, 4294901760
    %v7931 = vsub.f32 %v4445, %v7930
    %7932 = vmatpush2.msra.mxu0 %v7931
    %v7933 = vand.u32 %v4376, 4294901760
    %v7934 = vsub.f32 %v4376, %v7933
    %7935 = vmatprep.mubr.f32.mxu0 %v7934
    %v7936 = vand.u32 %v4375, 4294901760
    %v7937 = vsub.f32 %v4375, %v7936
    %7938 = vmatmul.mubr.f32.gmra.mxu0 %v7937
    %v7939 = vpop.f32.mrf.mxu0
    %v7940 = vadd.f32 %v7737, %v7939
    %v7941 = vpop.f32.mrf.mxu0
    %v7942 = vadd.f32 %v7739, %v7941
    %7943 = vdwg.mxu0
    %v7944 = vand.u32 %v4442, 4294901760
    %7945 = vmatprep.subr.mxu0 %v7944
    %v7946 = vand.u32 %v4441, 4294901760
    %7947 = vmatpush1.msra.mxu0 %v7946
    %v7948 = vand.u32 %v4438, 4294901760
    %7949 = vmatprep.subr.mxu0 %v7948
    %v7950 = vand.u32 %v4437, 4294901760
    %7951 = vmatpush1.msra.mxu0 %v7950
    %v7952 = vand.u32 %v4434, 4294901760
    %7953 = vmatprep.subr.mxu0 %v7952
    %v7954 = vand.u32 %v4433, 4294901760
    %7955 = vmatpush1.msra.mxu0 %v7954
    %v7956 = vand.u32 %v4430, 4294901760
    %7957 = vmatprep.subr.mxu0 %v7956
    %v7958 = vand.u32 %v4429, 4294901760
    %7959 = vmatpush1.msra.mxu0 %v7958
    %v7960 = vand.u32 %v4426, 4294901760
    %7961 = vmatprep.subr.mxu0 %v7960
    %v7962 = vand.u32 %v4425, 4294901760
    %7963 = vmatpush1.msra.mxu0 %v7962
    %v7964 = vand.u32 %v4422, 4294901760
    %7965 = vmatprep.subr.mxu0 %v7964
    %v7966 = vand.u32 %v4421, 4294901760
    %7967 = vmatpush1.msra.mxu0 %v7966
    %v7968 = vand.u32 %v4418, 4294901760
    %7969 = vmatprep.subr.mxu0 %v7968
    %v7970 = vand.u32 %v4417, 4294901760
    %7971 = vmatpush1.msra.mxu0 %v7970
    %v7972 = vand.u32 %v4414, 4294901760
    %7973 = vmatprep.subr.mxu0 %v7972
    %v7974 = vand.u32 %v4413, 4294901760
    %7975 = vmatpush1.msra.mxu0 %v7974
    %v7976 = vand.u32 %v4410, 4294901760
    %7977 = vmatprep.subr.mxu0 %v7976
    %v7978 = vand.u32 %v4409, 4294901760
    %7979 = vmatpush1.msra.mxu0 %v7978
    %v7980 = vand.u32 %v4406, 4294901760
    %7981 = vmatprep.subr.mxu0 %v7980
    %v7982 = vand.u32 %v4405, 4294901760
    %7983 = vmatpush1.msra.mxu0 %v7982
    %v7984 = vand.u32 %v4402, 4294901760
    %7985 = vmatprep.subr.mxu0 %v7984
    %v7986 = vand.u32 %v4401, 4294901760
    %7987 = vmatpush1.msra.mxu0 %v7986
    %v7988 = vand.u32 %v4398, 4294901760
    %7989 = vmatprep.subr.mxu0 %v7988
    %v7990 = vand.u32 %v4397, 4294901760
    %7991 = vmatpush1.msra.mxu0 %v7990
    %v7992 = vand.u32 %v4394, 4294901760
    %7993 = vmatprep.subr.mxu0 %v7992
    %v7994 = vand.u32 %v4393, 4294901760
    %7995 = vmatpush1.msra.mxu0 %v7994
    %v7996 = vand.u32 %v4390, 4294901760
    %7997 = vmatprep.subr.mxu0 %v7996
    %v7998 = vand.u32 %v4389, 4294901760
    %7999 = vmatpush1.msra.mxu0 %v7998
    %v8000 = vand.u32 %v4386, 4294901760
    %8001 = vmatprep.subr.mxu0 %v8000
    %v8002 = vand.u32 %v4385, 4294901760
    %8003 = vmatpush1.msra.mxu0 %v8002
    %v8004 = vand.u32 %v4382, 4294901760
    %8005 = vmatprep.subr.mxu0 %v8004
    %v8006 = vand.u32 %v4381, 4294901760
    %8007 = vmatpush1.msra.mxu0 %v8006
    %v8008 = vand.u32 %v4506, 4294901760
    %8009 = vmatprep.subr.mxu0 %v8008
    %v8010 = vand.u32 %v4505, 4294901760
    %8011 = vmatpush2.msra.mxu0 %v8010
    %v8012 = vand.u32 %v4502, 4294901760
    %8013 = vmatprep.subr.mxu0 %v8012
    %v8014 = vand.u32 %v4501, 4294901760
    %8015 = vmatpush2.msra.mxu0 %v8014
    %v8016 = vand.u32 %v4498, 4294901760
    %8017 = vmatprep.subr.mxu0 %v8016
    %v8018 = vand.u32 %v4497, 4294901760
    %8019 = vmatpush2.msra.mxu0 %v8018
    %v8020 = vand.u32 %v4494, 4294901760
    %8021 = vmatprep.subr.mxu0 %v8020
    %v8022 = vand.u32 %v4493, 4294901760
    %8023 = vmatpush2.msra.mxu0 %v8022
    %v8024 = vand.u32 %v4490, 4294901760
    %8025 = vmatprep.subr.mxu0 %v8024
    %v8026 = vand.u32 %v4489, 4294901760
    %8027 = vmatpush2.msra.mxu0 %v8026
    %v8028 = vand.u32 %v4486, 4294901760
    %8029 = vmatprep.subr.mxu0 %v8028
    %v8030 = vand.u32 %v4485, 4294901760
    %8031 = vmatpush2.msra.mxu0 %v8030
    %v8032 = vand.u32 %v4482, 4294901760
    %8033 = vmatprep.subr.mxu0 %v8032
    %v8034 = vand.u32 %v4481, 4294901760
    %8035 = vmatpush2.msra.mxu0 %v8034
    %v8036 = vand.u32 %v4478, 4294901760
    %8037 = vmatprep.subr.mxu0 %v8036
    %v8038 = vand.u32 %v4477, 4294901760
    %8039 = vmatpush2.msra.mxu0 %v8038
    %v8040 = vand.u32 %v4474, 4294901760
    %8041 = vmatprep.subr.mxu0 %v8040
    %v8042 = vand.u32 %v4473, 4294901760
    %8043 = vmatpush2.msra.mxu0 %v8042
    %v8044 = vand.u32 %v4470, 4294901760
    %8045 = vmatprep.subr.mxu0 %v8044
    %v8046 = vand.u32 %v4469, 4294901760
    %8047 = vmatpush2.msra.mxu0 %v8046
    %v8048 = vand.u32 %v4466, 4294901760
    %8049 = vmatprep.subr.mxu0 %v8048
    %v8050 = vand.u32 %v4465, 4294901760
    %8051 = vmatpush2.msra.mxu0 %v8050
    %v8052 = vand.u32 %v4462, 4294901760
    %8053 = vmatprep.subr.mxu0 %v8052
    %v8054 = vand.u32 %v4461, 4294901760
    %8055 = vmatpush2.msra.mxu0 %v8054
    %v8056 = vand.u32 %v4458, 4294901760
    %8057 = vmatprep.subr.mxu0 %v8056
    %v8058 = vand.u32 %v4457, 4294901760
    %8059 = vmatpush2.msra.mxu0 %v8058
    %v8060 = vand.u32 %v4454, 4294901760
    %8061 = vmatprep.subr.mxu0 %v8060
    %v8062 = vand.u32 %v4453, 4294901760
    %8063 = vmatpush2.msra.mxu0 %v8062
    %v8064 = vand.u32 %v4450, 4294901760
    %8065 = vmatprep.subr.mxu0 %v8064
    %v8066 = vand.u32 %v4449, 4294901760
    %8067 = vmatpush2.msra.mxu0 %v8066
    %v8068 = vand.u32 %v4446, 4294901760
    %8069 = vmatprep.subr.mxu0 %v8068
    %v8070 = vand.u32 %v4445, 4294901760
    %8071 = vmatpush2.msra.mxu0 %v8070
    %v8072 = vand.u32 %v4376, 4294901760
    %v8073 = vsub.f32 %v4376, %v8072
    %v8074 = vand.u32 %v8073, 4294901760
    %8075 = vmatprep.mubr.f32.mxu0 %v8074
    %v8076 = vand.u32 %v4375, 4294901760
    %v8077 = vsub.f32 %v4375, %v8076
    %v8078 = vand.u32 %v8077, 4294901760
    %8079 = vmatmul.mubr.f32.gmra.mxu0 %v8078
    %v8080 = vpop.f32.mrf.mxu0
    %v8081 = vadd.f32 %v7940, %v8080
    %v8082 = vpop.f32.mrf.mxu0
    %v8083 = vadd.f32 %v7942, %v8082
    %8084 = vdwg.mxu0
    %v8085 = vand.u32 %v4442, 4294901760
    %v8086 = vsub.f32 %v4442, %v8085
    %v8087 = vand.u32 %v8086, 4294901760
    %8088 = vmatprep.subr.mxu0 %v8087
    %v8089 = vand.u32 %v4441, 4294901760
    %v8090 = vsub.f32 %v4441, %v8089
    %v8091 = vand.u32 %v8090, 4294901760
    %8092 = vmatpush1.msra.mxu0 %v8091
    %v8093 = vand.u32 %v4438, 4294901760
    %v8094 = vsub.f32 %v4438, %v8093
    %v8095 = vand.u32 %v8094, 4294901760
    %8096 = vmatprep.subr.mxu0 %v8095
    %v8097 = vand.u32 %v4437, 4294901760
    %v8098 = vsub.f32 %v4437, %v8097
    %v8099 = vand.u32 %v8098, 4294901760
    %8100 = vmatpush1.msra.mxu0 %v8099
    %v8101 = vand.u32 %v4434, 4294901760
    %v8102 = vsub.f32 %v4434, %v8101
    %v8103 = vand.u32 %v8102, 4294901760
    %8104 = vmatprep.subr.mxu0 %v8103
    %v8105 = vand.u32 %v4433, 4294901760
    %v8106 = vsub.f32 %v4433, %v8105
    %v8107 = vand.u32 %v8106, 4294901760
    %8108 = vmatpush1.msra.mxu0 %v8107
    %v8109 = vand.u32 %v4430, 4294901760
    %v8110 = vsub.f32 %v4430, %v8109
    %v8111 = vand.u32 %v8110, 4294901760
    %8112 = vmatprep.subr.mxu0 %v8111
    %v8113 = vand.u32 %v4429, 4294901760
    %v8114 = vsub.f32 %v4429, %v8113
    %v8115 = vand.u32 %v8114, 4294901760
    %8116 = vmatpush1.msra.mxu0 %v8115
    %v8117 = vand.u32 %v4426, 4294901760
    %v8118 = vsub.f32 %v4426, %v8117
    %v8119 = vand.u32 %v8118, 4294901760
    %8120 = vmatprep.subr.mxu0 %v8119
    %v8121 = vand.u32 %v4425, 4294901760
    %v8122 = vsub.f32 %v4425, %v8121
    %v8123 = vand.u32 %v8122, 4294901760
    %8124 = vmatpush1.msra.mxu0 %v8123
    %v8125 = vand.u32 %v4422, 4294901760
    %v8126 = vsub.f32 %v4422, %v8125
    %v8127 = vand.u32 %v8126, 4294901760
    %8128 = vmatprep.subr.mxu0 %v8127
    %v8129 = vand.u32 %v4421, 4294901760
    %v8130 = vsub.f32 %v4421, %v8129
    %v8131 = vand.u32 %v8130, 4294901760
    %8132 = vmatpush1.msra.mxu0 %v8131
    %v8133 = vand.u32 %v4418, 4294901760
    %v8134 = vsub.f32 %v4418, %v8133
    %v8135 = vand.u32 %v8134, 4294901760
    %8136 = vmatprep.subr.mxu0 %v8135
    %v8137 = vand.u32 %v4417, 4294901760
    %v8138 = vsub.f32 %v4417, %v8137
    %v8139 = vand.u32 %v8138, 4294901760
    %8140 = vmatpush1.msra.mxu0 %v8139
    %v8141 = vand.u32 %v4414, 4294901760
    %v8142 = vsub.f32 %v4414, %v8141
    %v8143 = vand.u32 %v8142, 4294901760
    %8144 = vmatprep.subr.mxu0 %v8143
    %v8145 = vand.u32 %v4413, 4294901760
    %v8146 = vsub.f32 %v4413, %v8145
    %v8147 = vand.u32 %v8146, 4294901760
    %8148 = vmatpush1.msra.mxu0 %v8147
    %v8149 = vand.u32 %v4410, 4294901760
    %v8150 = vsub.f32 %v4410, %v8149
    %v8151 = vand.u32 %v8150, 4294901760
    %8152 = vmatprep.subr.mxu0 %v8151
    %v8153 = vand.u32 %v4409, 4294901760
    %v8154 = vsub.f32 %v4409, %v8153
    %v8155 = vand.u32 %v8154, 4294901760
    %8156 = vmatpush1.msra.mxu0 %v8155
    %v8157 = vand.u32 %v4406, 4294901760
    %v8158 = vsub.f32 %v4406, %v8157
    %v8159 = vand.u32 %v8158, 4294901760
    %8160 = vmatprep.subr.mxu0 %v8159
    %v8161 = vand.u32 %v4405, 4294901760
    %v8162 = vsub.f32 %v4405, %v8161
    %v8163 = vand.u32 %v8162, 4294901760
    %8164 = vmatpush1.msra.mxu0 %v8163
    %v8165 = vand.u32 %v4402, 4294901760
    %v8166 = vsub.f32 %v4402, %v8165
    %v8167 = vand.u32 %v8166, 4294901760
    %8168 = vmatprep.subr.mxu0 %v8167
    %v8169 = vand.u32 %v4401, 4294901760
    %v8170 = vsub.f32 %v4401, %v8169
    %v8171 = vand.u32 %v8170, 4294901760
    %8172 = vmatpush1.msra.mxu0 %v8171
    %v8173 = vand.u32 %v4398, 4294901760
    %v8174 = vsub.f32 %v4398, %v8173
    %v8175 = vand.u32 %v8174, 4294901760
    %8176 = vmatprep.subr.mxu0 %v8175
    %v8177 = vand.u32 %v4397, 4294901760
    %v8178 = vsub.f32 %v4397, %v8177
    %v8179 = vand.u32 %v8178, 4294901760
    %8180 = vmatpush1.msra.mxu0 %v8179
    %v8181 = vand.u32 %v4394, 4294901760
    %v8182 = vsub.f32 %v4394, %v8181
    %v8183 = vand.u32 %v8182, 4294901760
    %8184 = vmatprep.subr.mxu0 %v8183
    %v8185 = vand.u32 %v4393, 4294901760
    %v8186 = vsub.f32 %v4393, %v8185
    %v8187 = vand.u32 %v8186, 4294901760
    %8188 = vmatpush1.msra.mxu0 %v8187
    %v8189 = vand.u32 %v4390, 4294901760
    %v8190 = vsub.f32 %v4390, %v8189
    %v8191 = vand.u32 %v8190, 4294901760
    %8192 = vmatprep.subr.mxu0 %v8191
    %v8193 = vand.u32 %v4389, 4294901760
    %v8194 = vsub.f32 %v4389, %v8193
    %v8195 = vand.u32 %v8194, 4294901760
    %8196 = vmatpush1.msra.mxu0 %v8195
    %v8197 = vand.u32 %v4386, 4294901760
    %v8198 = vsub.f32 %v4386, %v8197
    %v8199 = vand.u32 %v8198, 4294901760
    %8200 = vmatprep.subr.mxu0 %v8199
    %v8201 = vand.u32 %v4385, 4294901760
    %v8202 = vsub.f32 %v4385, %v8201
    %v8203 = vand.u32 %v8202, 4294901760
    %8204 = vmatpush1.msra.mxu0 %v8203
    %v8205 = vand.u32 %v4382, 4294901760
    %v8206 = vsub.f32 %v4382, %v8205
    %v8207 = vand.u32 %v8206, 4294901760
    %8208 = vmatprep.subr.mxu0 %v8207
    %v8209 = vand.u32 %v4381, 4294901760
    %v8210 = vsub.f32 %v4381, %v8209
    %v8211 = vand.u32 %v8210, 4294901760
    %8212 = vmatpush1.msra.mxu0 %v8211
    %v8213 = vand.u32 %v4506, 4294901760
    %v8214 = vsub.f32 %v4506, %v8213
    %v8215 = vand.u32 %v8214, 4294901760
    %8216 = vmatprep.subr.mxu0 %v8215
    %v8217 = vand.u32 %v4505, 4294901760
    %v8218 = vsub.f32 %v4505, %v8217
    %v8219 = vand.u32 %v8218, 4294901760
    %8220 = vmatpush2.msra.mxu0 %v8219
    %v8221 = vand.u32 %v4502, 4294901760
    %v8222 = vsub.f32 %v4502, %v8221
    %v8223 = vand.u32 %v8222, 4294901760
    %8224 = vmatprep.subr.mxu0 %v8223
    %v8225 = vand.u32 %v4501, 4294901760
    %v8226 = vsub.f32 %v4501, %v8225
    %v8227 = vand.u32 %v8226, 4294901760
    %8228 = vmatpush2.msra.mxu0 %v8227
    %v8229 = vand.u32 %v4498, 4294901760
    %v8230 = vsub.f32 %v4498, %v8229
    %v8231 = vand.u32 %v8230, 4294901760
    %8232 = vmatprep.subr.mxu0 %v8231
    %v8233 = vand.u32 %v4497, 4294901760
    %v8234 = vsub.f32 %v4497, %v8233
    %v8235 = vand.u32 %v8234, 4294901760
    %8236 = vmatpush2.msra.mxu0 %v8235
    %v8237 = vand.u32 %v4494, 4294901760
    %v8238 = vsub.f32 %v4494, %v8237
    %v8239 = vand.u32 %v8238, 4294901760
    %8240 = vmatprep.subr.mxu0 %v8239
    %v8241 = vand.u32 %v4493, 4294901760
    %v8242 = vsub.f32 %v4493, %v8241
    %v8243 = vand.u32 %v8242, 4294901760
    %8244 = vmatpush2.msra.mxu0 %v8243
    %v8245 = vand.u32 %v4490, 4294901760
    %v8246 = vsub.f32 %v4490, %v8245
    %v8247 = vand.u32 %v8246, 4294901760
    %8248 = vmatprep.subr.mxu0 %v8247
    %v8249 = vand.u32 %v4489, 4294901760
    %v8250 = vsub.f32 %v4489, %v8249
    %v8251 = vand.u32 %v8250, 4294901760
    %8252 = vmatpush2.msra.mxu0 %v8251
    %v8253 = vand.u32 %v4486, 4294901760
    %v8254 = vsub.f32 %v4486, %v8253
    %v8255 = vand.u32 %v8254, 4294901760
    %8256 = vmatprep.subr.mxu0 %v8255
    %v8257 = vand.u32 %v4485, 4294901760
    %v8258 = vsub.f32 %v4485, %v8257
    %v8259 = vand.u32 %v8258, 4294901760
    %8260 = vmatpush2.msra.mxu0 %v8259
    %v8261 = vand.u32 %v4482, 4294901760
    %v8262 = vsub.f32 %v4482, %v8261
    %v8263 = vand.u32 %v8262, 4294901760
    %8264 = vmatprep.subr.mxu0 %v8263
    %v8265 = vand.u32 %v4481, 4294901760
    %v8266 = vsub.f32 %v4481, %v8265
    %v8267 = vand.u32 %v8266, 4294901760
    %8268 = vmatpush2.msra.mxu0 %v8267
    %v8269 = vand.u32 %v4478, 4294901760
    %v8270 = vsub.f32 %v4478, %v8269
    %v8271 = vand.u32 %v8270, 4294901760
    %8272 = vmatprep.subr.mxu0 %v8271
    %v8273 = vand.u32 %v4477, 4294901760
    %v8274 = vsub.f32 %v4477, %v8273
    %v8275 = vand.u32 %v8274, 4294901760
    %8276 = vmatpush2.msra.mxu0 %v8275
    %v8277 = vand.u32 %v4474, 4294901760
    %v8278 = vsub.f32 %v4474, %v8277
    %v8279 = vand.u32 %v8278, 4294901760
    %8280 = vmatprep.subr.mxu0 %v8279
    %v8281 = vand.u32 %v4473, 4294901760
    %v8282 = vsub.f32 %v4473, %v8281
    %v8283 = vand.u32 %v8282, 4294901760
    %8284 = vmatpush2.msra.mxu0 %v8283
    %v8285 = vand.u32 %v4470, 4294901760
    %v8286 = vsub.f32 %v4470, %v8285
    %v8287 = vand.u32 %v8286, 4294901760
    %8288 = vmatprep.subr.mxu0 %v8287
    %v8289 = vand.u32 %v4469, 4294901760
    %v8290 = vsub.f32 %v4469, %v8289
    %v8291 = vand.u32 %v8290, 4294901760
    %8292 = vmatpush2.msra.mxu0 %v8291
    %v8293 = vand.u32 %v4466, 4294901760
    %v8294 = vsub.f32 %v4466, %v8293
    %v8295 = vand.u32 %v8294, 4294901760
    %8296 = vmatprep.subr.mxu0 %v8295
    %v8297 = vand.u32 %v4465, 4294901760
    %v8298 = vsub.f32 %v4465, %v8297
    %v8299 = vand.u32 %v8298, 4294901760
    %8300 = vmatpush2.msra.mxu0 %v8299
    %v8301 = vand.u32 %v4462, 4294901760
    %v8302 = vsub.f32 %v4462, %v8301
    %v8303 = vand.u32 %v8302, 4294901760
    %8304 = vmatprep.subr.mxu0 %v8303
    %v8305 = vand.u32 %v4461, 4294901760
    %v8306 = vsub.f32 %v4461, %v8305
    %v8307 = vand.u32 %v8306, 4294901760
    %8308 = vmatpush2.msra.mxu0 %v8307
    %v8309 = vand.u32 %v4458, 4294901760
    %v8310 = vsub.f32 %v4458, %v8309
    %v8311 = vand.u32 %v8310, 4294901760
    %8312 = vmatprep.subr.mxu0 %v8311
    %v8313 = vand.u32 %v4457, 4294901760
    %v8314 = vsub.f32 %v4457, %v8313
    %v8315 = vand.u32 %v8314, 4294901760
    %8316 = vmatpush2.msra.mxu0 %v8315
    %v8317 = vand.u32 %v4454, 4294901760
    %v8318 = vsub.f32 %v4454, %v8317
    %v8319 = vand.u32 %v8318, 4294901760
    %8320 = vmatprep.subr.mxu0 %v8319
    %v8321 = vand.u32 %v4453, 4294901760
    %v8322 = vsub.f32 %v4453, %v8321
    %v8323 = vand.u32 %v8322, 4294901760
    %8324 = vmatpush2.msra.mxu0 %v8323
    %v8325 = vand.u32 %v4450, 4294901760
    %v8326 = vsub.f32 %v4450, %v8325
    %v8327 = vand.u32 %v8326, 4294901760
    %8328 = vmatprep.subr.mxu0 %v8327
    %v8329 = vand.u32 %v4449, 4294901760
    %v8330 = vsub.f32 %v4449, %v8329
    %v8331 = vand.u32 %v8330, 4294901760
    %8332 = vmatpush2.msra.mxu0 %v8331
    %v8333 = vand.u32 %v4446, 4294901760
    %v8334 = vsub.f32 %v4446, %v8333
    %v8335 = vand.u32 %v8334, 4294901760
    %8336 = vmatprep.subr.mxu0 %v8335
    %v8337 = vand.u32 %v4445, 4294901760
    %v8338 = vsub.f32 %v4445, %v8337
    %v8339 = vand.u32 %v8338, 4294901760
    %8340 = vmatpush2.msra.mxu0 %v8339
    %v8341 = vand.u32 %v4376, 4294901760
    %8342 = vmatprep.mubr.f32.mxu0 %v8341
    %v8343 = vand.u32 %v4375, 4294901760
    %8344 = vmatmul.mubr.f32.gmra.mxu0 %v8343
    %v8345 = vpop.f32.mrf.mxu0
    %v8346 = vadd.f32 %v8081, %v8345
    %v8347 = vpop.f32.mrf.mxu0
    %v8348 = vadd.f32 %v8083, %v8347
    %8349 = vdwg.mxu0
    %v8350 = vand.u32 %v4442, 4294901760
    %8351 = vmatprep.subr.mxu0 %v8350
    %v8352 = vand.u32 %v4441, 4294901760
    %8353 = vmatpush1.msra.mxu0 %v8352
    %v8354 = vand.u32 %v4438, 4294901760
    %8355 = vmatprep.subr.mxu0 %v8354
    %v8356 = vand.u32 %v4437, 4294901760
    %8357 = vmatpush1.msra.mxu0 %v8356
    %v8358 = vand.u32 %v4434, 4294901760
    %8359 = vmatprep.subr.mxu0 %v8358
    %v8360 = vand.u32 %v4433, 4294901760
    %8361 = vmatpush1.msra.mxu0 %v8360
    %v8362 = vand.u32 %v4430, 4294901760
    %8363 = vmatprep.subr.mxu0 %v8362
    %v8364 = vand.u32 %v4429, 4294901760
    %8365 = vmatpush1.msra.mxu0 %v8364
    %v8366 = vand.u32 %v4426, 4294901760
    %8367 = vmatprep.subr.mxu0 %v8366
    %v8368 = vand.u32 %v4425, 4294901760
    %8369 = vmatpush1.msra.mxu0 %v8368
    %v8370 = vand.u32 %v4422, 4294901760
    %8371 = vmatprep.subr.mxu0 %v8370
    %v8372 = vand.u32 %v4421, 4294901760
    %8373 = vmatpush1.msra.mxu0 %v8372
    %v8374 = vand.u32 %v4418, 4294901760
    %8375 = vmatprep.subr.mxu0 %v8374
    %v8376 = vand.u32 %v4417, 4294901760
    %8377 = vmatpush1.msra.mxu0 %v8376
    %v8378 = vand.u32 %v4414, 4294901760
    %8379 = vmatprep.subr.mxu0 %v8378
    %v8380 = vand.u32 %v4413, 4294901760
    %8381 = vmatpush1.msra.mxu0 %v8380
    %v8382 = vand.u32 %v4410, 4294901760
    %8383 = vmatprep.subr.mxu0 %v8382
    %v8384 = vand.u32 %v4409, 4294901760
    %8385 = vmatpush1.msra.mxu0 %v8384
    %v8386 = vand.u32 %v4406, 4294901760
    %8387 = vmatprep.subr.mxu0 %v8386
    %v8388 = vand.u32 %v4405, 4294901760
    %8389 = vmatpush1.msra.mxu0 %v8388
    %v8390 = vand.u32 %v4402, 4294901760
    %8391 = vmatprep.subr.mxu0 %v8390
    %v8392 = vand.u32 %v4401, 4294901760
    %8393 = vmatpush1.msra.mxu0 %v8392
    %v8394 = vand.u32 %v4398, 4294901760
    %8395 = vmatprep.subr.mxu0 %v8394
    %v8396 = vand.u32 %v4397, 4294901760
    %8397 = vmatpush1.msra.mxu0 %v8396
    %v8398 = vand.u32 %v4394, 4294901760
    %8399 = vmatprep.subr.mxu0 %v8398
    %v8400 = vand.u32 %v4393, 4294901760
    %8401 = vmatpush1.msra.mxu0 %v8400
    %v8402 = vand.u32 %v4390, 4294901760
    %8403 = vmatprep.subr.mxu0 %v8402
    %v8404 = vand.u32 %v4389, 4294901760
    %8405 = vmatpush1.msra.mxu0 %v8404
    %v8406 = vand.u32 %v4386, 4294901760
    %8407 = vmatprep.subr.mxu0 %v8406
    %v8408 = vand.u32 %v4385, 4294901760
    %8409 = vmatpush1.msra.mxu0 %v8408
    %v8410 = vand.u32 %v4382, 4294901760
    %8411 = vmatprep.subr.mxu0 %v8410
    %v8412 = vand.u32 %v4381, 4294901760
    %8413 = vmatpush1.msra.mxu0 %v8412
    %v8414 = vand.u32 %v4506, 4294901760
    %8415 = vmatprep.subr.mxu0 %v8414
    %v8416 = vand.u32 %v4505, 4294901760
    %8417 = vmatpush2.msra.mxu0 %v8416
    %v8418 = vand.u32 %v4502, 4294901760
    %8419 = vmatprep.subr.mxu0 %v8418
    %v8420 = vand.u32 %v4501, 4294901760
    %8421 = vmatpush2.msra.mxu0 %v8420
    %v8422 = vand.u32 %v4498, 4294901760
    %8423 = vmatprep.subr.mxu0 %v8422
    %v8424 = vand.u32 %v4497, 4294901760
    %8425 = vmatpush2.msra.mxu0 %v8424
    %v8426 = vand.u32 %v4494, 4294901760
    %8427 = vmatprep.subr.mxu0 %v8426
    %v8428 = vand.u32 %v4493, 4294901760
    %8429 = vmatpush2.msra.mxu0 %v8428
    %v8430 = vand.u32 %v4490, 4294901760
    %8431 = vmatprep.subr.mxu0 %v8430
    %v8432 = vand.u32 %v4489, 4294901760
    %8433 = vmatpush2.msra.mxu0 %v8432
    %v8434 = vand.u32 %v4486, 4294901760
    %8435 = vmatprep.subr.mxu0 %v8434
    %v8436 = vand.u32 %v4485, 4294901760
    %8437 = vmatpush2.msra.mxu0 %v8436
    %v8438 = vand.u32 %v4482, 4294901760
    %8439 = vmatprep.subr.mxu0 %v8438
    %v8440 = vand.u32 %v4481, 4294901760
    %8441 = vmatpush2.msra.mxu0 %v8440
    %v8442 = vand.u32 %v4478, 4294901760
    %8443 = vmatprep.subr.mxu0 %v8442
    %v8444 = vand.u32 %v4477, 4294901760
    %8445 = vmatpush2.msra.mxu0 %v8444
    %v8446 = vand.u32 %v4474, 4294901760
    %8447 = vmatprep.subr.mxu0 %v8446
    %v8448 = vand.u32 %v4473, 4294901760
    %8449 = vmatpush2.msra.mxu0 %v8448
    %v8450 = vand.u32 %v4470, 4294901760
    %8451 = vmatprep.subr.mxu0 %v8450
    %v8452 = vand.u32 %v4469, 4294901760
    %8453 = vmatpush2.msra.mxu0 %v8452
    %v8454 = vand.u32 %v4466, 4294901760
    %8455 = vmatprep.subr.mxu0 %v8454
    %v8456 = vand.u32 %v4465, 4294901760
    %8457 = vmatpush2.msra.mxu0 %v8456
    %v8458 = vand.u32 %v4462, 4294901760
    %8459 = vmatprep.subr.mxu0 %v8458
    %v8460 = vand.u32 %v4461, 4294901760
    %8461 = vmatpush2.msra.mxu0 %v8460
    %v8462 = vand.u32 %v4458, 4294901760
    %8463 = vmatprep.subr.mxu0 %v8462
    %v8464 = vand.u32 %v4457, 4294901760
    %8465 = vmatpush2.msra.mxu0 %v8464
    %v8466 = vand.u32 %v4454, 4294901760
    %8467 = vmatprep.subr.mxu0 %v8466
    %v8468 = vand.u32 %v4453, 4294901760
    %8469 = vmatpush2.msra.mxu0 %v8468
    %v8470 = vand.u32 %v4450, 4294901760
    %8471 = vmatprep.subr.mxu0 %v8470
    %v8472 = vand.u32 %v4449, 4294901760
    %8473 = vmatpush2.msra.mxu0 %v8472
    %v8474 = vand.u32 %v4446, 4294901760
    %8475 = vmatprep.subr.mxu0 %v8474
    %v8476 = vand.u32 %v4445, 4294901760
    %8477 = vmatpush2.msra.mxu0 %v8476
    %v8478 = vand.u32 %v4376, 4294901760
    %8479 = vmatprep.mubr.f32.mxu0 %v8478
    %v8480 = vand.u32 %v4375, 4294901760
    %8481 = vmatmul.mubr.f32.gmra.mxu0 %v8480
    %v8482 = vpop.f32.mrf.mxu0
    %v8483 = vadd.f32 %v8346, %v8482
    %v8484 = vpop.f32.mrf.mxu0
    %v8485 = vadd.f32 %v8348, %v8484
    %8486 = vdwg.mxu0
    %v8487 = vand.u32 %v4570, 4294901760
    %8488 = vmatprep.subr.mxu0 %v8487
    %v8489 = vand.u32 %v4569, 4294901760
    %8490 = vmatpush1.msra.mxu0 %v8489
    %v8491 = vand.u32 %v4566, 4294901760
    %8492 = vmatprep.subr.mxu0 %v8491
    %v8493 = vand.u32 %v4565, 4294901760
    %8494 = vmatpush1.msra.mxu0 %v8493
    %v8495 = vand.u32 %v4562, 4294901760
    %8496 = vmatprep.subr.mxu0 %v8495
    %v8497 = vand.u32 %v4561, 4294901760
    %8498 = vmatpush1.msra.mxu0 %v8497
    %v8499 = vand.u32 %v4558, 4294901760
    %8500 = vmatprep.subr.mxu0 %v8499
    %v8501 = vand.u32 %v4557, 4294901760
    %8502 = vmatpush1.msra.mxu0 %v8501
    %v8503 = vand.u32 %v4554, 4294901760
    %8504 = vmatprep.subr.mxu0 %v8503
    %v8505 = vand.u32 %v4553, 4294901760
    %8506 = vmatpush1.msra.mxu0 %v8505
    %v8507 = vand.u32 %v4550, 4294901760
    %8508 = vmatprep.subr.mxu0 %v8507
    %v8509 = vand.u32 %v4549, 4294901760
    %8510 = vmatpush1.msra.mxu0 %v8509
    %v8511 = vand.u32 %v4546, 4294901760
    %8512 = vmatprep.subr.mxu0 %v8511
    %v8513 = vand.u32 %v4545, 4294901760
    %8514 = vmatpush1.msra.mxu0 %v8513
    %v8515 = vand.u32 %v4542, 4294901760
    %8516 = vmatprep.subr.mxu0 %v8515
    %v8517 = vand.u32 %v4541, 4294901760
    %8518 = vmatpush1.msra.mxu0 %v8517
    %v8519 = vand.u32 %v4538, 4294901760
    %8520 = vmatprep.subr.mxu0 %v8519
    %v8521 = vand.u32 %v4537, 4294901760
    %8522 = vmatpush1.msra.mxu0 %v8521
    %v8523 = vand.u32 %v4534, 4294901760
    %8524 = vmatprep.subr.mxu0 %v8523
    %v8525 = vand.u32 %v4533, 4294901760
    %8526 = vmatpush1.msra.mxu0 %v8525
    %v8527 = vand.u32 %v4530, 4294901760
    %8528 = vmatprep.subr.mxu0 %v8527
    %v8529 = vand.u32 %v4529, 4294901760
    %8530 = vmatpush1.msra.mxu0 %v8529
    %v8531 = vand.u32 %v4526, 4294901760
    %8532 = vmatprep.subr.mxu0 %v8531
    %v8533 = vand.u32 %v4525, 4294901760
    %8534 = vmatpush1.msra.mxu0 %v8533
    %v8535 = vand.u32 %v4522, 4294901760
    %8536 = vmatprep.subr.mxu0 %v8535
    %v8537 = vand.u32 %v4521, 4294901760
    %8538 = vmatpush1.msra.mxu0 %v8537
    %v8539 = vand.u32 %v4518, 4294901760
    %8540 = vmatprep.subr.mxu0 %v8539
    %v8541 = vand.u32 %v4517, 4294901760
    %8542 = vmatpush1.msra.mxu0 %v8541
    %v8543 = vand.u32 %v4514, 4294901760
    %8544 = vmatprep.subr.mxu0 %v8543
    %v8545 = vand.u32 %v4513, 4294901760
    %8546 = vmatpush1.msra.mxu0 %v8545
    %v8547 = vand.u32 %v4510, 4294901760
    %8548 = vmatprep.subr.mxu0 %v8547
    %v8549 = vand.u32 %v4509, 4294901760
    %8550 = vmatpush1.msra.mxu0 %v8549
    %v8551 = vand.u32 %v4634, 4294901760
    %8552 = vmatprep.subr.mxu0 %v8551
    %v8553 = vand.u32 %v4633, 4294901760
    %8554 = vmatpush2.msra.mxu0 %v8553
    %v8555 = vand.u32 %v4630, 4294901760
    %8556 = vmatprep.subr.mxu0 %v8555
    %v8557 = vand.u32 %v4629, 4294901760
    %8558 = vmatpush2.msra.mxu0 %v8557
    %v8559 = vand.u32 %v4626, 4294901760
    %8560 = vmatprep.subr.mxu0 %v8559
    %v8561 = vand.u32 %v4625, 4294901760
    %8562 = vmatpush2.msra.mxu0 %v8561
    %v8563 = vand.u32 %v4622, 4294901760
    %8564 = vmatprep.subr.mxu0 %v8563
    %v8565 = vand.u32 %v4621, 4294901760
    %8566 = vmatpush2.msra.mxu0 %v8565
    %v8567 = vand.u32 %v4618, 4294901760
    %8568 = vmatprep.subr.mxu0 %v8567
    %v8569 = vand.u32 %v4617, 4294901760
    %8570 = vmatpush2.msra.mxu0 %v8569
    %v8571 = vand.u32 %v4614, 4294901760
    %8572 = vmatprep.subr.mxu0 %v8571
    %v8573 = vand.u32 %v4613, 4294901760
    %8574 = vmatpush2.msra.mxu0 %v8573
    %v8575 = vand.u32 %v4610, 4294901760
    %8576 = vmatprep.subr.mxu0 %v8575
    %v8577 = vand.u32 %v4609, 4294901760
    %8578 = vmatpush2.msra.mxu0 %v8577
    %v8579 = vand.u32 %v4606, 4294901760
    %8580 = vmatprep.subr.mxu0 %v8579
    %v8581 = vand.u32 %v4605, 4294901760
    %8582 = vmatpush2.msra.mxu0 %v8581
    %v8583 = vand.u32 %v4602, 4294901760
    %8584 = vmatprep.subr.mxu0 %v8583
    %v8585 = vand.u32 %v4601, 4294901760
    %8586 = vmatpush2.msra.mxu0 %v8585
    %v8587 = vand.u32 %v4598, 4294901760
    %8588 = vmatprep.subr.mxu0 %v8587
    %v8589 = vand.u32 %v4597, 4294901760
    %8590 = vmatpush2.msra.mxu0 %v8589
    %v8591 = vand.u32 %v4594, 4294901760
    %8592 = vmatprep.subr.mxu0 %v8591
    %v8593 = vand.u32 %v4593, 4294901760
    %8594 = vmatpush2.msra.mxu0 %v8593
    %v8595 = vand.u32 %v4590, 4294901760
    %8596 = vmatprep.subr.mxu0 %v8595
    %v8597 = vand.u32 %v4589, 4294901760
    %8598 = vmatpush2.msra.mxu0 %v8597
    %v8599 = vand.u32 %v4586, 4294901760
    %8600 = vmatprep.subr.mxu0 %v8599
    %v8601 = vand.u32 %v4585, 4294901760
    %8602 = vmatpush2.msra.mxu0 %v8601
    %v8603 = vand.u32 %v4582, 4294901760
    %8604 = vmatprep.subr.mxu0 %v8603
    %v8605 = vand.u32 %v4581, 4294901760
    %8606 = vmatpush2.msra.mxu0 %v8605
    %v8607 = vand.u32 %v4578, 4294901760
    %8608 = vmatprep.subr.mxu0 %v8607
    %v8609 = vand.u32 %v4577, 4294901760
    %8610 = vmatpush2.msra.mxu0 %v8609
    %v8611 = vand.u32 %v4574, 4294901760
    %8612 = vmatprep.subr.mxu0 %v8611
    %v8613 = vand.u32 %v4573, 4294901760
    %8614 = vmatpush2.msra.mxu0 %v8613
    %v8615 = vand.u32 %v4378, 4294901760
    %v8616 = vsub.f32 %v4378, %v8615
    %v8617 = vand.u32 %v8616, 4294901760
    %v8618 = vsub.f32 %v8616, %v8617
    %v8619 = vand.u32 %v8618, 4294901760
    %8620 = vmatprep.mubr.f32.mxu0 %v8619
    %v8621 = vand.u32 %v4377, 4294901760
    %v8622 = vsub.f32 %v4377, %v8621
    %v8623 = vand.u32 %v8622, 4294901760
    %v8624 = vsub.f32 %v8622, %v8623
    %v8625 = vand.u32 %v8624, 4294901760
    %8626 = vmatmul.mubr.f32.gmra.mxu0 %v8625
    %v8627 = vpop.f32.mrf.mxu0
    %v8628 = vadd.f32 %v8483, %v8627
    %v8629 = vpop.f32.mrf.mxu0
    %v8630 = vadd.f32 %v8485, %v8629
    %8631 = vdwg.mxu0
    %v8632 = vand.u32 %v4570, 4294901760
    %v8633 = vsub.f32 %v4570, %v8632
    %v8634 = vand.u32 %v8633, 4294901760
    %v8635 = vsub.f32 %v8633, %v8634
    %v8636 = vand.u32 %v8635, 4294901760
    %8637 = vmatprep.subr.mxu0 %v8636
    %v8638 = vand.u32 %v4569, 4294901760
    %v8639 = vsub.f32 %v4569, %v8638
    %v8640 = vand.u32 %v8639, 4294901760
    %v8641 = vsub.f32 %v8639, %v8640
    %v8642 = vand.u32 %v8641, 4294901760
    %8643 = vmatpush1.msra.mxu0 %v8642
    %v8644 = vand.u32 %v4566, 4294901760
    %v8645 = vsub.f32 %v4566, %v8644
    %v8646 = vand.u32 %v8645, 4294901760
    %v8647 = vsub.f32 %v8645, %v8646
    %v8648 = vand.u32 %v8647, 4294901760
    %8649 = vmatprep.subr.mxu0 %v8648
    %v8650 = vand.u32 %v4565, 4294901760
    %v8651 = vsub.f32 %v4565, %v8650
    %v8652 = vand.u32 %v8651, 4294901760
    %v8653 = vsub.f32 %v8651, %v8652
    %v8654 = vand.u32 %v8653, 4294901760
    %8655 = vmatpush1.msra.mxu0 %v8654
    %v8656 = vand.u32 %v4562, 4294901760
    %v8657 = vsub.f32 %v4562, %v8656
    %v8658 = vand.u32 %v8657, 4294901760
    %v8659 = vsub.f32 %v8657, %v8658
    %v8660 = vand.u32 %v8659, 4294901760
    %8661 = vmatprep.subr.mxu0 %v8660
    %v8662 = vand.u32 %v4561, 4294901760
    %v8663 = vsub.f32 %v4561, %v8662
    %v8664 = vand.u32 %v8663, 4294901760
    %v8665 = vsub.f32 %v8663, %v8664
    %v8666 = vand.u32 %v8665, 4294901760
    %8667 = vmatpush1.msra.mxu0 %v8666
    %v8668 = vand.u32 %v4558, 4294901760
    %v8669 = vsub.f32 %v4558, %v8668
    %v8670 = vand.u32 %v8669, 4294901760
    %v8671 = vsub.f32 %v8669, %v8670
    %v8672 = vand.u32 %v8671, 4294901760
    %8673 = vmatprep.subr.mxu0 %v8672
    %v8674 = vand.u32 %v4557, 4294901760
    %v8675 = vsub.f32 %v4557, %v8674
    %v8676 = vand.u32 %v8675, 4294901760
    %v8677 = vsub.f32 %v8675, %v8676
    %v8678 = vand.u32 %v8677, 4294901760
    %8679 = vmatpush1.msra.mxu0 %v8678
    %v8680 = vand.u32 %v4554, 4294901760
    %v8681 = vsub.f32 %v4554, %v8680
    %v8682 = vand.u32 %v8681, 4294901760
    %v8683 = vsub.f32 %v8681, %v8682
    %v8684 = vand.u32 %v8683, 4294901760
    %8685 = vmatprep.subr.mxu0 %v8684
    %v8686 = vand.u32 %v4553, 4294901760
    %v8687 = vsub.f32 %v4553, %v8686
    %v8688 = vand.u32 %v8687, 4294901760
    %v8689 = vsub.f32 %v8687, %v8688
    %v8690 = vand.u32 %v8689, 4294901760
    %8691 = vmatpush1.msra.mxu0 %v8690
    %v8692 = vand.u32 %v4550, 4294901760
    %v8693 = vsub.f32 %v4550, %v8692
    %v8694 = vand.u32 %v8693, 4294901760
    %v8695 = vsub.f32 %v8693, %v8694
    %v8696 = vand.u32 %v8695, 4294901760
    %8697 = vmatprep.subr.mxu0 %v8696
    %v8698 = vand.u32 %v4549, 4294901760
    %v8699 = vsub.f32 %v4549, %v8698
    %v8700 = vand.u32 %v8699, 4294901760
    %v8701 = vsub.f32 %v8699, %v8700
    %v8702 = vand.u32 %v8701, 4294901760
    %8703 = vmatpush1.msra.mxu0 %v8702
    %v8704 = vand.u32 %v4546, 4294901760
    %v8705 = vsub.f32 %v4546, %v8704
    %v8706 = vand.u32 %v8705, 4294901760
    %v8707 = vsub.f32 %v8705, %v8706
    %v8708 = vand.u32 %v8707, 4294901760
    %8709 = vmatprep.subr.mxu0 %v8708
    %v8710 = vand.u32 %v4545, 4294901760
    %v8711 = vsub.f32 %v4545, %v8710
    %v8712 = vand.u32 %v8711, 4294901760
    %v8713 = vsub.f32 %v8711, %v8712
    %v8714 = vand.u32 %v8713, 4294901760
    %8715 = vmatpush1.msra.mxu0 %v8714
    %v8716 = vand.u32 %v4542, 4294901760
    %v8717 = vsub.f32 %v4542, %v8716
    %v8718 = vand.u32 %v8717, 4294901760
    %v8719 = vsub.f32 %v8717, %v8718
    %v8720 = vand.u32 %v8719, 4294901760
    %8721 = vmatprep.subr.mxu0 %v8720
    %v8722 = vand.u32 %v4541, 4294901760
    %v8723 = vsub.f32 %v4541, %v8722
    %v8724 = vand.u32 %v8723, 4294901760
    %v8725 = vsub.f32 %v8723, %v8724
    %v8726 = vand.u32 %v8725, 4294901760
    %8727 = vmatpush1.msra.mxu0 %v8726
    %v8728 = vand.u32 %v4538, 4294901760
    %v8729 = vsub.f32 %v4538, %v8728
    %v8730 = vand.u32 %v8729, 4294901760
    %v8731 = vsub.f32 %v8729, %v8730
    %v8732 = vand.u32 %v8731, 4294901760
    %8733 = vmatprep.subr.mxu0 %v8732
    %v8734 = vand.u32 %v4537, 4294901760
    %v8735 = vsub.f32 %v4537, %v8734
    %v8736 = vand.u32 %v8735, 4294901760
    %v8737 = vsub.f32 %v8735, %v8736
    %v8738 = vand.u32 %v8737, 4294901760
    %8739 = vmatpush1.msra.mxu0 %v8738
    %v8740 = vand.u32 %v4534, 4294901760
    %v8741 = vsub.f32 %v4534, %v8740
    %v8742 = vand.u32 %v8741, 4294901760
    %v8743 = vsub.f32 %v8741, %v8742
    %v8744 = vand.u32 %v8743, 4294901760
    %8745 = vmatprep.subr.mxu0 %v8744
    %v8746 = vand.u32 %v4533, 4294901760
    %v8747 = vsub.f32 %v4533, %v8746
    %v8748 = vand.u32 %v8747, 4294901760
    %v8749 = vsub.f32 %v8747, %v8748
    %v8750 = vand.u32 %v8749, 4294901760
    %8751 = vmatpush1.msra.mxu0 %v8750
    %v8752 = vand.u32 %v4530, 4294901760
    %v8753 = vsub.f32 %v4530, %v8752
    %v8754 = vand.u32 %v8753, 4294901760
    %v8755 = vsub.f32 %v8753, %v8754
    %v8756 = vand.u32 %v8755, 4294901760
    %8757 = vmatprep.subr.mxu0 %v8756
    %v8758 = vand.u32 %v4529, 4294901760
    %v8759 = vsub.f32 %v4529, %v8758
    %v8760 = vand.u32 %v8759, 4294901760
    %v8761 = vsub.f32 %v8759, %v8760
    %v8762 = vand.u32 %v8761, 4294901760
    %8763 = vmatpush1.msra.mxu0 %v8762
    %v8764 = vand.u32 %v4526, 4294901760
    %v8765 = vsub.f32 %v4526, %v8764
    %v8766 = vand.u32 %v8765, 4294901760
    %v8767 = vsub.f32 %v8765, %v8766
    %v8768 = vand.u32 %v8767, 4294901760
    %8769 = vmatprep.subr.mxu0 %v8768
    %v8770 = vand.u32 %v4525, 4294901760
    %v8771 = vsub.f32 %v4525, %v8770
    %v8772 = vand.u32 %v8771, 4294901760
    %v8773 = vsub.f32 %v8771, %v8772
    %v8774 = vand.u32 %v8773, 4294901760
    %8775 = vmatpush1.msra.mxu0 %v8774
    %v8776 = vand.u32 %v4522, 4294901760
    %v8777 = vsub.f32 %v4522, %v8776
    %v8778 = vand.u32 %v8777, 4294901760
    %v8779 = vsub.f32 %v8777, %v8778
    %v8780 = vand.u32 %v8779, 4294901760
    %8781 = vmatprep.subr.mxu0 %v8780
    %v8782 = vand.u32 %v4521, 4294901760
    %v8783 = vsub.f32 %v4521, %v8782
    %v8784 = vand.u32 %v8783, 4294901760
    %v8785 = vsub.f32 %v8783, %v8784
    %v8786 = vand.u32 %v8785, 4294901760
    %8787 = vmatpush1.msra.mxu0 %v8786
    %v8788 = vand.u32 %v4518, 4294901760
    %v8789 = vsub.f32 %v4518, %v8788
    %v8790 = vand.u32 %v8789, 4294901760
    %v8791 = vsub.f32 %v8789, %v8790
    %v8792 = vand.u32 %v8791, 4294901760
    %8793 = vmatprep.subr.mxu0 %v8792
    %v8794 = vand.u32 %v4517, 4294901760
    %v8795 = vsub.f32 %v4517, %v8794
    %v8796 = vand.u32 %v8795, 4294901760
    %v8797 = vsub.f32 %v8795, %v8796
    %v8798 = vand.u32 %v8797, 4294901760
    %8799 = vmatpush1.msra.mxu0 %v8798
    %v8800 = vand.u32 %v4514, 4294901760
    %v8801 = vsub.f32 %v4514, %v8800
    %v8802 = vand.u32 %v8801, 4294901760
    %v8803 = vsub.f32 %v8801, %v8802
    %v8804 = vand.u32 %v8803, 4294901760
    %8805 = vmatprep.subr.mxu0 %v8804
    %v8806 = vand.u32 %v4513, 4294901760
    %v8807 = vsub.f32 %v4513, %v8806
    %v8808 = vand.u32 %v8807, 4294901760
    %v8809 = vsub.f32 %v8807, %v8808
    %v8810 = vand.u32 %v8809, 4294901760
    %8811 = vmatpush1.msra.mxu0 %v8810
    %v8812 = vand.u32 %v4510, 4294901760
    %v8813 = vsub.f32 %v4510, %v8812
    %v8814 = vand.u32 %v8813, 4294901760
    %v8815 = vsub.f32 %v8813, %v8814
    %v8816 = vand.u32 %v8815, 4294901760
    %8817 = vmatprep.subr.mxu0 %v8816
    %v8818 = vand.u32 %v4509, 4294901760
    %v8819 = vsub.f32 %v4509, %v8818
    %v8820 = vand.u32 %v8819, 4294901760
    %v8821 = vsub.f32 %v8819, %v8820
    %v8822 = vand.u32 %v8821, 4294901760
    %8823 = vmatpush1.msra.mxu0 %v8822
    %v8824 = vand.u32 %v4634, 4294901760
    %v8825 = vsub.f32 %v4634, %v8824
    %v8826 = vand.u32 %v8825, 4294901760
    %v8827 = vsub.f32 %v8825, %v8826
    %v8828 = vand.u32 %v8827, 4294901760
    %8829 = vmatprep.subr.mxu0 %v8828
    %v8830 = vand.u32 %v4633, 4294901760
    %v8831 = vsub.f32 %v4633, %v8830
    %v8832 = vand.u32 %v8831, 4294901760
    %v8833 = vsub.f32 %v8831, %v8832
    %v8834 = vand.u32 %v8833, 4294901760
    %8835 = vmatpush2.msra.mxu0 %v8834
    %v8836 = vand.u32 %v4630, 4294901760
    %v8837 = vsub.f32 %v4630, %v8836
    %v8838 = vand.u32 %v8837, 4294901760
    %v8839 = vsub.f32 %v8837, %v8838
    %v8840 = vand.u32 %v8839, 4294901760
    %8841 = vmatprep.subr.mxu0 %v8840
    %v8842 = vand.u32 %v4629, 4294901760
    %v8843 = vsub.f32 %v4629, %v8842
    %v8844 = vand.u32 %v8843, 4294901760
    %v8845 = vsub.f32 %v8843, %v8844
    %v8846 = vand.u32 %v8845, 4294901760
    %8847 = vmatpush2.msra.mxu0 %v8846
    %v8848 = vand.u32 %v4626, 4294901760
    %v8849 = vsub.f32 %v4626, %v8848
    %v8850 = vand.u32 %v8849, 4294901760
    %v8851 = vsub.f32 %v8849, %v8850
    %v8852 = vand.u32 %v8851, 4294901760
    %8853 = vmatprep.subr.mxu0 %v8852
    %v8854 = vand.u32 %v4625, 4294901760
    %v8855 = vsub.f32 %v4625, %v8854
    %v8856 = vand.u32 %v8855, 4294901760
    %v8857 = vsub.f32 %v8855, %v8856
    %v8858 = vand.u32 %v8857, 4294901760
    %8859 = vmatpush2.msra.mxu0 %v8858
    %v8860 = vand.u32 %v4622, 4294901760
    %v8861 = vsub.f32 %v4622, %v8860
    %v8862 = vand.u32 %v8861, 4294901760
    %v8863 = vsub.f32 %v8861, %v8862
    %v8864 = vand.u32 %v8863, 4294901760
    %8865 = vmatprep.subr.mxu0 %v8864
    %v8866 = vand.u32 %v4621, 4294901760
    %v8867 = vsub.f32 %v4621, %v8866
    %v8868 = vand.u32 %v8867, 4294901760
    %v8869 = vsub.f32 %v8867, %v8868
    %v8870 = vand.u32 %v8869, 4294901760
    %8871 = vmatpush2.msra.mxu0 %v8870
    %v8872 = vand.u32 %v4618, 4294901760
    %v8873 = vsub.f32 %v4618, %v8872
    %v8874 = vand.u32 %v8873, 4294901760
    %v8875 = vsub.f32 %v8873, %v8874
    %v8876 = vand.u32 %v8875, 4294901760
    %8877 = vmatprep.subr.mxu0 %v8876
    %v8878 = vand.u32 %v4617, 4294901760
    %v8879 = vsub.f32 %v4617, %v8878
    %v8880 = vand.u32 %v8879, 4294901760
    %v8881 = vsub.f32 %v8879, %v8880
    %v8882 = vand.u32 %v8881, 4294901760
    %8883 = vmatpush2.msra.mxu0 %v8882
    %v8884 = vand.u32 %v4614, 4294901760
    %v8885 = vsub.f32 %v4614, %v8884
    %v8886 = vand.u32 %v8885, 4294901760
    %v8887 = vsub.f32 %v8885, %v8886
    %v8888 = vand.u32 %v8887, 4294901760
    %8889 = vmatprep.subr.mxu0 %v8888
    %v8890 = vand.u32 %v4613, 4294901760
    %v8891 = vsub.f32 %v4613, %v8890
    %v8892 = vand.u32 %v8891, 4294901760
    %v8893 = vsub.f32 %v8891, %v8892
    %v8894 = vand.u32 %v8893, 4294901760
    %8895 = vmatpush2.msra.mxu0 %v8894
    %v8896 = vand.u32 %v4610, 4294901760
    %v8897 = vsub.f32 %v4610, %v8896
    %v8898 = vand.u32 %v8897, 4294901760
    %v8899 = vsub.f32 %v8897, %v8898
    %v8900 = vand.u32 %v8899, 4294901760
    %8901 = vmatprep.subr.mxu0 %v8900
    %v8902 = vand.u32 %v4609, 4294901760
    %v8903 = vsub.f32 %v4609, %v8902
    %v8904 = vand.u32 %v8903, 4294901760
    %v8905 = vsub.f32 %v8903, %v8904
    %v8906 = vand.u32 %v8905, 4294901760
    %8907 = vmatpush2.msra.mxu0 %v8906
    %v8908 = vand.u32 %v4606, 4294901760
    %v8909 = vsub.f32 %v4606, %v8908
    %v8910 = vand.u32 %v8909, 4294901760
    %v8911 = vsub.f32 %v8909, %v8910
    %v8912 = vand.u32 %v8911, 4294901760
    %8913 = vmatprep.subr.mxu0 %v8912
    %v8914 = vand.u32 %v4605, 4294901760
    %v8915 = vsub.f32 %v4605, %v8914
    %v8916 = vand.u32 %v8915, 4294901760
    %v8917 = vsub.f32 %v8915, %v8916
    %v8918 = vand.u32 %v8917, 4294901760
    %8919 = vmatpush2.msra.mxu0 %v8918
    %v8920 = vand.u32 %v4602, 4294901760
    %v8921 = vsub.f32 %v4602, %v8920
    %v8922 = vand.u32 %v8921, 4294901760
    %v8923 = vsub.f32 %v8921, %v8922
    %v8924 = vand.u32 %v8923, 4294901760
    %8925 = vmatprep.subr.mxu0 %v8924
    %v8926 = vand.u32 %v4601, 4294901760
    %v8927 = vsub.f32 %v4601, %v8926
    %v8928 = vand.u32 %v8927, 4294901760
    %v8929 = vsub.f32 %v8927, %v8928
    %v8930 = vand.u32 %v8929, 4294901760
    %8931 = vmatpush2.msra.mxu0 %v8930
    %v8932 = vand.u32 %v4598, 4294901760
    %v8933 = vsub.f32 %v4598, %v8932
    %v8934 = vand.u32 %v8933, 4294901760
    %v8935 = vsub.f32 %v8933, %v8934
    %v8936 = vand.u32 %v8935, 4294901760
    %8937 = vmatprep.subr.mxu0 %v8936
    %v8938 = vand.u32 %v4597, 4294901760
    %v8939 = vsub.f32 %v4597, %v8938
    %v8940 = vand.u32 %v8939, 4294901760
    %v8941 = vsub.f32 %v8939, %v8940
    %v8942 = vand.u32 %v8941, 4294901760
    %8943 = vmatpush2.msra.mxu0 %v8942
    %v8944 = vand.u32 %v4594, 4294901760
    %v8945 = vsub.f32 %v4594, %v8944
    %v8946 = vand.u32 %v8945, 4294901760
    %v8947 = vsub.f32 %v8945, %v8946
    %v8948 = vand.u32 %v8947, 4294901760
    %8949 = vmatprep.subr.mxu0 %v8948
    %v8950 = vand.u32 %v4593, 4294901760
    %v8951 = vsub.f32 %v4593, %v8950
    %v8952 = vand.u32 %v8951, 4294901760
    %v8953 = vsub.f32 %v8951, %v8952
    %v8954 = vand.u32 %v8953, 4294901760
    %8955 = vmatpush2.msra.mxu0 %v8954
    %v8956 = vand.u32 %v4590, 4294901760
    %v8957 = vsub.f32 %v4590, %v8956
    %v8958 = vand.u32 %v8957, 4294901760
    %v8959 = vsub.f32 %v8957, %v8958
    %v8960 = vand.u32 %v8959, 4294901760
    %8961 = vmatprep.subr.mxu0 %v8960
    %v8962 = vand.u32 %v4589, 4294901760
    %v8963 = vsub.f32 %v4589, %v8962
    %v8964 = vand.u32 %v8963, 4294901760
    %v8965 = vsub.f32 %v8963, %v8964
    %v8966 = vand.u32 %v8965, 4294901760
    %8967 = vmatpush2.msra.mxu0 %v8966
    %v8968 = vand.u32 %v4586, 4294901760
    %v8969 = vsub.f32 %v4586, %v8968
    %v8970 = vand.u32 %v8969, 4294901760
    %v8971 = vsub.f32 %v8969, %v8970
    %v8972 = vand.u32 %v8971, 4294901760
    %8973 = vmatprep.subr.mxu0 %v8972
    %v8974 = vand.u32 %v4585, 4294901760
    %v8975 = vsub.f32 %v4585, %v8974
    %v8976 = vand.u32 %v8975, 4294901760
    %v8977 = vsub.f32 %v8975, %v8976
    %v8978 = vand.u32 %v8977, 4294901760
    %8979 = vmatpush2.msra.mxu0 %v8978
    %v8980 = vand.u32 %v4582, 4294901760
    %v8981 = vsub.f32 %v4582, %v8980
    %v8982 = vand.u32 %v8981, 4294901760
    %v8983 = vsub.f32 %v8981, %v8982
    %v8984 = vand.u32 %v8983, 4294901760
    %8985 = vmatprep.subr.mxu0 %v8984
    %v8986 = vand.u32 %v4581, 4294901760
    %v8987 = vsub.f32 %v4581, %v8986
    %v8988 = vand.u32 %v8987, 4294901760
    %v8989 = vsub.f32 %v8987, %v8988
    %v8990 = vand.u32 %v8989, 4294901760
    %8991 = vmatpush2.msra.mxu0 %v8990
    %v8992 = vand.u32 %v4578, 4294901760
    %v8993 = vsub.f32 %v4578, %v8992
    %v8994 = vand.u32 %v8993, 4294901760
    %v8995 = vsub.f32 %v8993, %v8994
    %v8996 = vand.u32 %v8995, 4294901760
    %8997 = vmatprep.subr.mxu0 %v8996
    %v8998 = vand.u32 %v4577, 4294901760
    %v8999 = vsub.f32 %v4577, %v8998
    %v9000 = vand.u32 %v8999, 4294901760
    %v9001 = vsub.f32 %v8999, %v9000
    %v9002 = vand.u32 %v9001, 4294901760
    %9003 = vmatpush2.msra.mxu0 %v9002
    %v9004 = vand.u32 %v4574, 4294901760
    %v9005 = vsub.f32 %v4574, %v9004
    %v9006 = vand.u32 %v9005, 4294901760
    %v9007 = vsub.f32 %v9005, %v9006
    %v9008 = vand.u32 %v9007, 4294901760
    %9009 = vmatprep.subr.mxu0 %v9008
    %v9010 = vand.u32 %v4573, 4294901760
    %v9011 = vsub.f32 %v4573, %v9010
    %v9012 = vand.u32 %v9011, 4294901760
    %v9013 = vsub.f32 %v9011, %v9012
    %v9014 = vand.u32 %v9013, 4294901760
    %9015 = vmatpush2.msra.mxu0 %v9014
    %v9016 = vand.u32 %v4378, 4294901760
    %9017 = vmatprep.mubr.f32.mxu0 %v9016
    %v9018 = vand.u32 %v4377, 4294901760
    %9019 = vmatmul.mubr.f32.gmra.mxu0 %v9018
    %v9020 = vpop.f32.mrf.mxu0
    %v9021 = vadd.f32 %v8628, %v9020
    %v9022 = vpop.f32.mrf.mxu0
    %v9023 = vadd.f32 %v8630, %v9022
    %9024 = vdwg.mxu0
    %v9025 = vand.u32 %v4570, 4294901760
    %v9026 = vsub.f32 %v4570, %v9025
    %9027 = vmatprep.subr.mxu0 %v9026
    %v9028 = vand.u32 %v4569, 4294901760
    %v9029 = vsub.f32 %v4569, %v9028
    %9030 = vmatpush1.msra.mxu0 %v9029
    %v9031 = vand.u32 %v4566, 4294901760
    %v9032 = vsub.f32 %v4566, %v9031
    %9033 = vmatprep.subr.mxu0 %v9032
    %v9034 = vand.u32 %v4565, 4294901760
    %v9035 = vsub.f32 %v4565, %v9034
    %9036 = vmatpush1.msra.mxu0 %v9035
    %v9037 = vand.u32 %v4562, 4294901760
    %v9038 = vsub.f32 %v4562, %v9037
    %9039 = vmatprep.subr.mxu0 %v9038
    %v9040 = vand.u32 %v4561, 4294901760
    %v9041 = vsub.f32 %v4561, %v9040
    %9042 = vmatpush1.msra.mxu0 %v9041
    %v9043 = vand.u32 %v4558, 4294901760
    %v9044 = vsub.f32 %v4558, %v9043
    %9045 = vmatprep.subr.mxu0 %v9044
    %v9046 = vand.u32 %v4557, 4294901760
    %v9047 = vsub.f32 %v4557, %v9046
    %9048 = vmatpush1.msra.mxu0 %v9047
    %v9049 = vand.u32 %v4554, 4294901760
    %v9050 = vsub.f32 %v4554, %v9049
    %9051 = vmatprep.subr.mxu0 %v9050
    %v9052 = vand.u32 %v4553, 4294901760
    %v9053 = vsub.f32 %v4553, %v9052
    %9054 = vmatpush1.msra.mxu0 %v9053
    %v9055 = vand.u32 %v4550, 4294901760
    %v9056 = vsub.f32 %v4550, %v9055
    %9057 = vmatprep.subr.mxu0 %v9056
    %v9058 = vand.u32 %v4549, 4294901760
    %v9059 = vsub.f32 %v4549, %v9058
    %9060 = vmatpush1.msra.mxu0 %v9059
    %v9061 = vand.u32 %v4546, 4294901760
    %v9062 = vsub.f32 %v4546, %v9061
    %9063 = vmatprep.subr.mxu0 %v9062
    %v9064 = vand.u32 %v4545, 4294901760
    %v9065 = vsub.f32 %v4545, %v9064
    %9066 = vmatpush1.msra.mxu0 %v9065
    %v9067 = vand.u32 %v4542, 4294901760
    %v9068 = vsub.f32 %v4542, %v9067
    %9069 = vmatprep.subr.mxu0 %v9068
    %v9070 = vand.u32 %v4541, 4294901760
    %v9071 = vsub.f32 %v4541, %v9070
    %9072 = vmatpush1.msra.mxu0 %v9071
    %v9073 = vand.u32 %v4538, 4294901760
    %v9074 = vsub.f32 %v4538, %v9073
    %9075 = vmatprep.subr.mxu0 %v9074
    %v9076 = vand.u32 %v4537, 4294901760
    %v9077 = vsub.f32 %v4537, %v9076
    %9078 = vmatpush1.msra.mxu0 %v9077
    %v9079 = vand.u32 %v4534, 4294901760
    %v9080 = vsub.f32 %v4534, %v9079
    %9081 = vmatprep.subr.mxu0 %v9080
    %v9082 = vand.u32 %v4533, 4294901760
    %v9083 = vsub.f32 %v4533, %v9082
    %9084 = vmatpush1.msra.mxu0 %v9083
    %v9085 = vand.u32 %v4530, 4294901760
    %v9086 = vsub.f32 %v4530, %v9085
    %9087 = vmatprep.subr.mxu0 %v9086
    %v9088 = vand.u32 %v4529, 4294901760
    %v9089 = vsub.f32 %v4529, %v9088
    %9090 = vmatpush1.msra.mxu0 %v9089
    %v9091 = vand.u32 %v4526, 4294901760
    %v9092 = vsub.f32 %v4526, %v9091
    %9093 = vmatprep.subr.mxu0 %v9092
    %v9094 = vand.u32 %v4525, 4294901760
    %v9095 = vsub.f32 %v4525, %v9094
    %9096 = vmatpush1.msra.mxu0 %v9095
    %v9097 = vand.u32 %v4522, 4294901760
    %v9098 = vsub.f32 %v4522, %v9097
    %9099 = vmatprep.subr.mxu0 %v9098
    %v9100 = vand.u32 %v4521, 4294901760
    %v9101 = vsub.f32 %v4521, %v9100
    %9102 = vmatpush1.msra.mxu0 %v9101
    %v9103 = vand.u32 %v4518, 4294901760
    %v9104 = vsub.f32 %v4518, %v9103
    %9105 = vmatprep.subr.mxu0 %v9104
    %v9106 = vand.u32 %v4517, 4294901760
    %v9107 = vsub.f32 %v4517, %v9106
    %9108 = vmatpush1.msra.mxu0 %v9107
    %v9109 = vand.u32 %v4514, 4294901760
    %v9110 = vsub.f32 %v4514, %v9109
    %9111 = vmatprep.subr.mxu0 %v9110
    %v9112 = vand.u32 %v4513, 4294901760
    %v9113 = vsub.f32 %v4513, %v9112
    %9114 = vmatpush1.msra.mxu0 %v9113
    %v9115 = vand.u32 %v4510, 4294901760
    %v9116 = vsub.f32 %v4510, %v9115
    %9117 = vmatprep.subr.mxu0 %v9116
    %v9118 = vand.u32 %v4509, 4294901760
    %v9119 = vsub.f32 %v4509, %v9118
    %9120 = vmatpush1.msra.mxu0 %v9119
    %v9121 = vand.u32 %v4634, 4294901760
    %v9122 = vsub.f32 %v4634, %v9121
    %9123 = vmatprep.subr.mxu0 %v9122
    %v9124 = vand.u32 %v4633, 4294901760
    %v9125 = vsub.f32 %v4633, %v9124
    %9126 = vmatpush2.msra.mxu0 %v9125
    %v9127 = vand.u32 %v4630, 4294901760
    %v9128 = vsub.f32 %v4630, %v9127
    %9129 = vmatprep.subr.mxu0 %v9128
    %v9130 = vand.u32 %v4629, 4294901760
    %v9131 = vsub.f32 %v4629, %v9130
    %9132 = vmatpush2.msra.mxu0 %v9131
    %v9133 = vand.u32 %v4626, 4294901760
    %v9134 = vsub.f32 %v4626, %v9133
    %9135 = vmatprep.subr.mxu0 %v9134
    %v9136 = vand.u32 %v4625, 4294901760
    %v9137 = vsub.f32 %v4625, %v9136
    %9138 = vmatpush2.msra.mxu0 %v9137
    %v9139 = vand.u32 %v4622, 4294901760
    %v9140 = vsub.f32 %v4622, %v9139
    %9141 = vmatprep.subr.mxu0 %v9140
    %v9142 = vand.u32 %v4621, 4294901760
    %v9143 = vsub.f32 %v4621, %v9142
    %9144 = vmatpush2.msra.mxu0 %v9143
    %v9145 = vand.u32 %v4618, 4294901760
    %v9146 = vsub.f32 %v4618, %v9145
    %9147 = vmatprep.subr.mxu0 %v9146
    %v9148 = vand.u32 %v4617, 4294901760
    %v9149 = vsub.f32 %v4617, %v9148
    %9150 = vmatpush2.msra.mxu0 %v9149
    %v9151 = vand.u32 %v4614, 4294901760
    %v9152 = vsub.f32 %v4614, %v9151
    %9153 = vmatprep.subr.mxu0 %v9152
    %v9154 = vand.u32 %v4613, 4294901760
    %v9155 = vsub.f32 %v4613, %v9154
    %9156 = vmatpush2.msra.mxu0 %v9155
    %v9157 = vand.u32 %v4610, 4294901760
    %v9158 = vsub.f32 %v4610, %v9157
    %9159 = vmatprep.subr.mxu0 %v9158
    %v9160 = vand.u32 %v4609, 4294901760
    %v9161 = vsub.f32 %v4609, %v9160
    %9162 = vmatpush2.msra.mxu0 %v9161
    %v9163 = vand.u32 %v4606, 4294901760
    %v9164 = vsub.f32 %v4606, %v9163
    %9165 = vmatprep.subr.mxu0 %v9164
    %v9166 = vand.u32 %v4605, 4294901760
    %v9167 = vsub.f32 %v4605, %v9166
    %9168 = vmatpush2.msra.mxu0 %v9167
    %v9169 = vand.u32 %v4602, 4294901760
    %v9170 = vsub.f32 %v4602, %v9169
    %9171 = vmatprep.subr.mxu0 %v9170
    %v9172 = vand.u32 %v4601, 4294901760
    %v9173 = vsub.f32 %v4601, %v9172
    %9174 = vmatpush2.msra.mxu0 %v9173
    %v9175 = vand.u32 %v4598, 4294901760
    %v9176 = vsub.f32 %v4598, %v9175
    %9177 = vmatprep.subr.mxu0 %v9176
    %v9178 = vand.u32 %v4597, 4294901760
    %v9179 = vsub.f32 %v4597, %v9178
    %9180 = vmatpush2.msra.mxu0 %v9179
    %v9181 = vand.u32 %v4594, 4294901760
    %v9182 = vsub.f32 %v4594, %v9181
    %9183 = vmatprep.subr.mxu0 %v9182
    %v9184 = vand.u32 %v4593, 4294901760
    %v9185 = vsub.f32 %v4593, %v9184
    %9186 = vmatpush2.msra.mxu0 %v9185
    %v9187 = vand.u32 %v4590, 4294901760
    %v9188 = vsub.f32 %v4590, %v9187
    %9189 = vmatprep.subr.mxu0 %v9188
    %v9190 = vand.u32 %v4589, 4294901760
    %v9191 = vsub.f32 %v4589, %v9190
    %9192 = vmatpush2.msra.mxu0 %v9191
    %v9193 = vand.u32 %v4586, 4294901760
    %v9194 = vsub.f32 %v4586, %v9193
    %9195 = vmatprep.subr.mxu0 %v9194
    %v9196 = vand.u32 %v4585, 4294901760
    %v9197 = vsub.f32 %v4585, %v9196
    %9198 = vmatpush2.msra.mxu0 %v9197
    %v9199 = vand.u32 %v4582, 4294901760
    %v9200 = vsub.f32 %v4582, %v9199
    %9201 = vmatprep.subr.mxu0 %v9200
    %v9202 = vand.u32 %v4581, 4294901760
    %v9203 = vsub.f32 %v4581, %v9202
    %9204 = vmatpush2.msra.mxu0 %v9203
    %v9205 = vand.u32 %v4578, 4294901760
    %v9206 = vsub.f32 %v4578, %v9205
    %9207 = vmatprep.subr.mxu0 %v9206
    %v9208 = vand.u32 %v4577, 4294901760
    %v9209 = vsub.f32 %v4577, %v9208
    %9210 = vmatpush2.msra.mxu0 %v9209
    %v9211 = vand.u32 %v4574, 4294901760
    %v9212 = vsub.f32 %v4574, %v9211
    %9213 = vmatprep.subr.mxu0 %v9212
    %v9214 = vand.u32 %v4573, 4294901760
    %v9215 = vsub.f32 %v4573, %v9214
    %9216 = vmatpush2.msra.mxu0 %v9215
    %v9217 = vand.u32 %v4378, 4294901760
    %v9218 = vsub.f32 %v4378, %v9217
    %9219 = vmatprep.mubr.f32.mxu0 %v9218
    %v9220 = vand.u32 %v4377, 4294901760
    %v9221 = vsub.f32 %v4377, %v9220
    %9222 = vmatmul.mubr.f32.gmra.mxu0 %v9221
    %v9223 = vpop.f32.mrf.mxu0
    %v9224 = vadd.f32 %v9021, %v9223
    %v9225 = vpop.f32.mrf.mxu0
    %v9226 = vadd.f32 %v9023, %v9225
    %9227 = vdwg.mxu0
    %v9228 = vand.u32 %v4570, 4294901760
    %9229 = vmatprep.subr.mxu0 %v9228
    %v9230 = vand.u32 %v4569, 4294901760
    %9231 = vmatpush1.msra.mxu0 %v9230
    %v9232 = vand.u32 %v4566, 4294901760
    %9233 = vmatprep.subr.mxu0 %v9232
    %v9234 = vand.u32 %v4565, 4294901760
    %9235 = vmatpush1.msra.mxu0 %v9234
    %v9236 = vand.u32 %v4562, 4294901760
    %9237 = vmatprep.subr.mxu0 %v9236
    %v9238 = vand.u32 %v4561, 4294901760
    %9239 = vmatpush1.msra.mxu0 %v9238
    %v9240 = vand.u32 %v4558, 4294901760
    %9241 = vmatprep.subr.mxu0 %v9240
    %v9242 = vand.u32 %v4557, 4294901760
    %9243 = vmatpush1.msra.mxu0 %v9242
    %v9244 = vand.u32 %v4554, 4294901760
    %9245 = vmatprep.subr.mxu0 %v9244
    %v9246 = vand.u32 %v4553, 4294901760
    %9247 = vmatpush1.msra.mxu0 %v9246
    %v9248 = vand.u32 %v4550, 4294901760
    %9249 = vmatprep.subr.mxu0 %v9248
    %v9250 = vand.u32 %v4549, 4294901760
    %9251 = vmatpush1.msra.mxu0 %v9250
    %v9252 = vand.u32 %v4546, 4294901760
    %9253 = vmatprep.subr.mxu0 %v9252
    %v9254 = vand.u32 %v4545, 4294901760
    %9255 = vmatpush1.msra.mxu0 %v9254
    %v9256 = vand.u32 %v4542, 4294901760
    %9257 = vmatprep.subr.mxu0 %v9256
    %v9258 = vand.u32 %v4541, 4294901760
    %9259 = vmatpush1.msra.mxu0 %v9258
    %v9260 = vand.u32 %v4538, 4294901760
    %9261 = vmatprep.subr.mxu0 %v9260
    %v9262 = vand.u32 %v4537, 4294901760
    %9263 = vmatpush1.msra.mxu0 %v9262
    %v9264 = vand.u32 %v4534, 4294901760
    %9265 = vmatprep.subr.mxu0 %v9264
    %v9266 = vand.u32 %v4533, 4294901760
    %9267 = vmatpush1.msra.mxu0 %v9266
    %v9268 = vand.u32 %v4530, 4294901760
    %9269 = vmatprep.subr.mxu0 %v9268
    %v9270 = vand.u32 %v4529, 4294901760
    %9271 = vmatpush1.msra.mxu0 %v9270
    %v9272 = vand.u32 %v4526, 4294901760
    %9273 = vmatprep.subr.mxu0 %v9272
    %v9274 = vand.u32 %v4525, 4294901760
    %9275 = vmatpush1.msra.mxu0 %v9274
    %v9276 = vand.u32 %v4522, 4294901760
    %9277 = vmatprep.subr.mxu0 %v9276
    %v9278 = vand.u32 %v4521, 4294901760
    %9279 = vmatpush1.msra.mxu0 %v9278
    %v9280 = vand.u32 %v4518, 4294901760
    %9281 = vmatprep.subr.mxu0 %v9280
    %v9282 = vand.u32 %v4517, 4294901760
    %9283 = vmatpush1.msra.mxu0 %v9282
    %v9284 = vand.u32 %v4514, 4294901760
    %9285 = vmatprep.subr.mxu0 %v9284
    %v9286 = vand.u32 %v4513, 4294901760
    %9287 = vmatpush1.msra.mxu0 %v9286
    %v9288 = vand.u32 %v4510, 4294901760
    %9289 = vmatprep.subr.mxu0 %v9288
    %v9290 = vand.u32 %v4509, 4294901760
    %9291 = vmatpush1.msra.mxu0 %v9290
    %v9292 = vand.u32 %v4634, 4294901760
    %9293 = vmatprep.subr.mxu0 %v9292
    %v9294 = vand.u32 %v4633, 4294901760
    %9295 = vmatpush2.msra.mxu0 %v9294
    %v9296 = vand.u32 %v4630, 4294901760
    %9297 = vmatprep.subr.mxu0 %v9296
    %v9298 = vand.u32 %v4629, 4294901760
    %9299 = vmatpush2.msra.mxu0 %v9298
    %v9300 = vand.u32 %v4626, 4294901760
    %9301 = vmatprep.subr.mxu0 %v9300
    %v9302 = vand.u32 %v4625, 4294901760
    %9303 = vmatpush2.msra.mxu0 %v9302
    %v9304 = vand.u32 %v4622, 4294901760
    %9305 = vmatprep.subr.mxu0 %v9304
    %v9306 = vand.u32 %v4621, 4294901760
    %9307 = vmatpush2.msra.mxu0 %v9306
    %v9308 = vand.u32 %v4618, 4294901760
    %9309 = vmatprep.subr.mxu0 %v9308
    %v9310 = vand.u32 %v4617, 4294901760
    %9311 = vmatpush2.msra.mxu0 %v9310
    %v9312 = vand.u32 %v4614, 4294901760
    %9313 = vmatprep.subr.mxu0 %v9312
    %v9314 = vand.u32 %v4613, 4294901760
    %9315 = vmatpush2.msra.mxu0 %v9314
    %v9316 = vand.u32 %v4610, 4294901760
    %9317 = vmatprep.subr.mxu0 %v9316
    %v9318 = vand.u32 %v4609, 4294901760
    %9319 = vmatpush2.msra.mxu0 %v9318
    %v9320 = vand.u32 %v4606, 4294901760
    %9321 = vmatprep.subr.mxu0 %v9320
    %v9322 = vand.u32 %v4605, 4294901760
    %9323 = vmatpush2.msra.mxu0 %v9322
    %v9324 = vand.u32 %v4602, 4294901760
    %9325 = vmatprep.subr.mxu0 %v9324
    %v9326 = vand.u32 %v4601, 4294901760
    %9327 = vmatpush2.msra.mxu0 %v9326
    %v9328 = vand.u32 %v4598, 4294901760
    %9329 = vmatprep.subr.mxu0 %v9328
    %v9330 = vand.u32 %v4597, 4294901760
    %9331 = vmatpush2.msra.mxu0 %v9330
    %v9332 = vand.u32 %v4594, 4294901760
    %9333 = vmatprep.subr.mxu0 %v9332
    %v9334 = vand.u32 %v4593, 4294901760
    %9335 = vmatpush2.msra.mxu0 %v9334
    %v9336 = vand.u32 %v4590, 4294901760
    %9337 = vmatprep.subr.mxu0 %v9336
    %v9338 = vand.u32 %v4589, 4294901760
    %9339 = vmatpush2.msra.mxu0 %v9338
    %v9340 = vand.u32 %v4586, 4294901760
    %9341 = vmatprep.subr.mxu0 %v9340
    %v9342 = vand.u32 %v4585, 4294901760
    %9343 = vmatpush2.msra.mxu0 %v9342
    %v9344 = vand.u32 %v4582, 4294901760
    %9345 = vmatprep.subr.mxu0 %v9344
    %v9346 = vand.u32 %v4581, 4294901760
    %9347 = vmatpush2.msra.mxu0 %v9346
    %v9348 = vand.u32 %v4578, 4294901760
    %9349 = vmatprep.subr.mxu0 %v9348
    %v9350 = vand.u32 %v4577, 4294901760
    %9351 = vmatpush2.msra.mxu0 %v9350
    %v9352 = vand.u32 %v4574, 4294901760
    %9353 = vmatprep.subr.mxu0 %v9352
    %v9354 = vand.u32 %v4573, 4294901760
    %9355 = vmatpush2.msra.mxu0 %v9354
    %v9356 = vand.u32 %v4378, 4294901760
    %v9357 = vsub.f32 %v4378, %v9356
    %v9358 = vand.u32 %v9357, 4294901760
    %9359 = vmatprep.mubr.f32.mxu0 %v9358
    %v9360 = vand.u32 %v4377, 4294901760
    %v9361 = vsub.f32 %v4377, %v9360
    %v9362 = vand.u32 %v9361, 4294901760
    %9363 = vmatmul.mubr.f32.gmra.mxu0 %v9362
    %v9364 = vpop.f32.mrf.mxu0
    %v9365 = vadd.f32 %v9224, %v9364
    %v9366 = vpop.f32.mrf.mxu0
    %v9367 = vadd.f32 %v9226, %v9366
    %9368 = vdwg.mxu0
    %v9369 = vand.u32 %v4570, 4294901760
    %v9370 = vsub.f32 %v4570, %v9369
    %v9371 = vand.u32 %v9370, 4294901760
    %9372 = vmatprep.subr.mxu0 %v9371
    %v9373 = vand.u32 %v4569, 4294901760
    %v9374 = vsub.f32 %v4569, %v9373
    %v9375 = vand.u32 %v9374, 4294901760
    %9376 = vmatpush1.msra.mxu0 %v9375
    %v9377 = vand.u32 %v4566, 4294901760
    %v9378 = vsub.f32 %v4566, %v9377
    %v9379 = vand.u32 %v9378, 4294901760
    %9380 = vmatprep.subr.mxu0 %v9379
    %v9381 = vand.u32 %v4565, 4294901760
    %v9382 = vsub.f32 %v4565, %v9381
    %v9383 = vand.u32 %v9382, 4294901760
    %9384 = vmatpush1.msra.mxu0 %v9383
    %v9385 = vand.u32 %v4562, 4294901760
    %v9386 = vsub.f32 %v4562, %v9385
    %v9387 = vand.u32 %v9386, 4294901760
    %9388 = vmatprep.subr.mxu0 %v9387
    %v9389 = vand.u32 %v4561, 4294901760
    %v9390 = vsub.f32 %v4561, %v9389
    %v9391 = vand.u32 %v9390, 4294901760
    %9392 = vmatpush1.msra.mxu0 %v9391
    %v9393 = vand.u32 %v4558, 4294901760
    %v9394 = vsub.f32 %v4558, %v9393
    %v9395 = vand.u32 %v9394, 4294901760
    %9396 = vmatprep.subr.mxu0 %v9395
    %v9397 = vand.u32 %v4557, 4294901760
    %v9398 = vsub.f32 %v4557, %v9397
    %v9399 = vand.u32 %v9398, 4294901760
    %9400 = vmatpush1.msra.mxu0 %v9399
    %v9401 = vand.u32 %v4554, 4294901760
    %v9402 = vsub.f32 %v4554, %v9401
    %v9403 = vand.u32 %v9402, 4294901760
    %9404 = vmatprep.subr.mxu0 %v9403
    %v9405 = vand.u32 %v4553, 4294901760
    %v9406 = vsub.f32 %v4553, %v9405
    %v9407 = vand.u32 %v9406, 4294901760
    %9408 = vmatpush1.msra.mxu0 %v9407
    %v9409 = vand.u32 %v4550, 4294901760
    %v9410 = vsub.f32 %v4550, %v9409
    %v9411 = vand.u32 %v9410, 4294901760
    %9412 = vmatprep.subr.mxu0 %v9411
    %v9413 = vand.u32 %v4549, 4294901760
    %v9414 = vsub.f32 %v4549, %v9413
    %v9415 = vand.u32 %v9414, 4294901760
    %9416 = vmatpush1.msra.mxu0 %v9415
    %v9417 = vand.u32 %v4546, 4294901760
    %v9418 = vsub.f32 %v4546, %v9417
    %v9419 = vand.u32 %v9418, 4294901760
    %9420 = vmatprep.subr.mxu0 %v9419
    %v9421 = vand.u32 %v4545, 4294901760
    %v9422 = vsub.f32 %v4545, %v9421
    %v9423 = vand.u32 %v9422, 4294901760
    %9424 = vmatpush1.msra.mxu0 %v9423
    %v9425 = vand.u32 %v4542, 4294901760
    %v9426 = vsub.f32 %v4542, %v9425
    %v9427 = vand.u32 %v9426, 4294901760
    %9428 = vmatprep.subr.mxu0 %v9427
    %v9429 = vand.u32 %v4541, 4294901760
    %v9430 = vsub.f32 %v4541, %v9429
    %v9431 = vand.u32 %v9430, 4294901760
    %9432 = vmatpush1.msra.mxu0 %v9431
    %v9433 = vand.u32 %v4538, 4294901760
    %v9434 = vsub.f32 %v4538, %v9433
    %v9435 = vand.u32 %v9434, 4294901760
    %9436 = vmatprep.subr.mxu0 %v9435
    %v9437 = vand.u32 %v4537, 4294901760
    %v9438 = vsub.f32 %v4537, %v9437
    %v9439 = vand.u32 %v9438, 4294901760
    %9440 = vmatpush1.msra.mxu0 %v9439
    %v9441 = vand.u32 %v4534, 4294901760
    %v9442 = vsub.f32 %v4534, %v9441
    %v9443 = vand.u32 %v9442, 4294901760
    %9444 = vmatprep.subr.mxu0 %v9443
    %v9445 = vand.u32 %v4533, 4294901760
    %v9446 = vsub.f32 %v4533, %v9445
    %v9447 = vand.u32 %v9446, 4294901760
    %9448 = vmatpush1.msra.mxu0 %v9447
    %v9449 = vand.u32 %v4530, 4294901760
    %v9450 = vsub.f32 %v4530, %v9449
    %v9451 = vand.u32 %v9450, 4294901760
    %9452 = vmatprep.subr.mxu0 %v9451
    %v9453 = vand.u32 %v4529, 4294901760
    %v9454 = vsub.f32 %v4529, %v9453
    %v9455 = vand.u32 %v9454, 4294901760
    %9456 = vmatpush1.msra.mxu0 %v9455
    %v9457 = vand.u32 %v4526, 4294901760
    %v9458 = vsub.f32 %v4526, %v9457
    %v9459 = vand.u32 %v9458, 4294901760
    %9460 = vmatprep.subr.mxu0 %v9459
    %v9461 = vand.u32 %v4525, 4294901760
    %v9462 = vsub.f32 %v4525, %v9461
    %v9463 = vand.u32 %v9462, 4294901760
    %9464 = vmatpush1.msra.mxu0 %v9463
    %v9465 = vand.u32 %v4522, 4294901760
    %v9466 = vsub.f32 %v4522, %v9465
    %v9467 = vand.u32 %v9466, 4294901760
    %9468 = vmatprep.subr.mxu0 %v9467
    %v9469 = vand.u32 %v4521, 4294901760
    %v9470 = vsub.f32 %v4521, %v9469
    %v9471 = vand.u32 %v9470, 4294901760
    %9472 = vmatpush1.msra.mxu0 %v9471
    %v9473 = vand.u32 %v4518, 4294901760
    %v9474 = vsub.f32 %v4518, %v9473
    %v9475 = vand.u32 %v9474, 4294901760
    %9476 = vmatprep.subr.mxu0 %v9475
    %v9477 = vand.u32 %v4517, 4294901760
    %v9478 = vsub.f32 %v4517, %v9477
    %v9479 = vand.u32 %v9478, 4294901760
    %9480 = vmatpush1.msra.mxu0 %v9479
    %v9481 = vand.u32 %v4514, 4294901760
    %v9482 = vsub.f32 %v4514, %v9481
    %v9483 = vand.u32 %v9482, 4294901760
    %9484 = vmatprep.subr.mxu0 %v9483
    %v9485 = vand.u32 %v4513, 4294901760
    %v9486 = vsub.f32 %v4513, %v9485
    %v9487 = vand.u32 %v9486, 4294901760
    %9488 = vmatpush1.msra.mxu0 %v9487
    %v9489 = vand.u32 %v4510, 4294901760
    %v9490 = vsub.f32 %v4510, %v9489
    %v9491 = vand.u32 %v9490, 4294901760
    %9492 = vmatprep.subr.mxu0 %v9491
    %v9493 = vand.u32 %v4509, 4294901760
    %v9494 = vsub.f32 %v4509, %v9493
    %v9495 = vand.u32 %v9494, 4294901760
    %9496 = vmatpush1.msra.mxu0 %v9495
    %v9497 = vand.u32 %v4634, 4294901760
    %v9498 = vsub.f32 %v4634, %v9497
    %v9499 = vand.u32 %v9498, 4294901760
    %9500 = vmatprep.subr.mxu0 %v9499
    %v9501 = vand.u32 %v4633, 4294901760
    %v9502 = vsub.f32 %v4633, %v9501
    %v9503 = vand.u32 %v9502, 4294901760
    %9504 = vmatpush2.msra.mxu0 %v9503
    %v9505 = vand.u32 %v4630, 4294901760
    %v9506 = vsub.f32 %v4630, %v9505
    %v9507 = vand.u32 %v9506, 4294901760
    %9508 = vmatprep.subr.mxu0 %v9507
    %v9509 = vand.u32 %v4629, 4294901760
    %v9510 = vsub.f32 %v4629, %v9509
    %v9511 = vand.u32 %v9510, 4294901760
    %9512 = vmatpush2.msra.mxu0 %v9511
    %v9513 = vand.u32 %v4626, 4294901760
    %v9514 = vsub.f32 %v4626, %v9513
    %v9515 = vand.u32 %v9514, 4294901760
    %9516 = vmatprep.subr.mxu0 %v9515
    %v9517 = vand.u32 %v4625, 4294901760
    %v9518 = vsub.f32 %v4625, %v9517
    %v9519 = vand.u32 %v9518, 4294901760
    %9520 = vmatpush2.msra.mxu0 %v9519
    %v9521 = vand.u32 %v4622, 4294901760
    %v9522 = vsub.f32 %v4622, %v9521
    %v9523 = vand.u32 %v9522, 4294901760
    %9524 = vmatprep.subr.mxu0 %v9523
    %v9525 = vand.u32 %v4621, 4294901760
    %v9526 = vsub.f32 %v4621, %v9525
    %v9527 = vand.u32 %v9526, 4294901760
    %9528 = vmatpush2.msra.mxu0 %v9527
    %v9529 = vand.u32 %v4618, 4294901760
    %v9530 = vsub.f32 %v4618, %v9529
    %v9531 = vand.u32 %v9530, 4294901760
    %9532 = vmatprep.subr.mxu0 %v9531
    %v9533 = vand.u32 %v4617, 4294901760
    %v9534 = vsub.f32 %v4617, %v9533
    %v9535 = vand.u32 %v9534, 4294901760
    %9536 = vmatpush2.msra.mxu0 %v9535
    %v9537 = vand.u32 %v4614, 4294901760
    %v9538 = vsub.f32 %v4614, %v9537
    %v9539 = vand.u32 %v9538, 4294901760
    %9540 = vmatprep.subr.mxu0 %v9539
    %v9541 = vand.u32 %v4613, 4294901760
    %v9542 = vsub.f32 %v4613, %v9541
    %v9543 = vand.u32 %v9542, 4294901760
    %9544 = vmatpush2.msra.mxu0 %v9543
    %v9545 = vand.u32 %v4610, 4294901760
    %v9546 = vsub.f32 %v4610, %v9545
    %v9547 = vand.u32 %v9546, 4294901760
    %9548 = vmatprep.subr.mxu0 %v9547
    %v9549 = vand.u32 %v4609, 4294901760
    %v9550 = vsub.f32 %v4609, %v9549
    %v9551 = vand.u32 %v9550, 4294901760
    %9552 = vmatpush2.msra.mxu0 %v9551
    %v9553 = vand.u32 %v4606, 4294901760
    %v9554 = vsub.f32 %v4606, %v9553
    %v9555 = vand.u32 %v9554, 4294901760
    %9556 = vmatprep.subr.mxu0 %v9555
    %v9557 = vand.u32 %v4605, 4294901760
    %v9558 = vsub.f32 %v4605, %v9557
    %v9559 = vand.u32 %v9558, 4294901760
    %9560 = vmatpush2.msra.mxu0 %v9559
    %v9561 = vand.u32 %v4602, 4294901760
    %v9562 = vsub.f32 %v4602, %v9561
    %v9563 = vand.u32 %v9562, 4294901760
    %9564 = vmatprep.subr.mxu0 %v9563
    %v9565 = vand.u32 %v4601, 4294901760
    %v9566 = vsub.f32 %v4601, %v9565
    %v9567 = vand.u32 %v9566, 4294901760
    %9568 = vmatpush2.msra.mxu0 %v9567
    %v9569 = vand.u32 %v4598, 4294901760
    %v9570 = vsub.f32 %v4598, %v9569
    %v9571 = vand.u32 %v9570, 4294901760
    %9572 = vmatprep.subr.mxu0 %v9571
    %v9573 = vand.u32 %v4597, 4294901760
    %v9574 = vsub.f32 %v4597, %v9573
    %v9575 = vand.u32 %v9574, 4294901760
    %9576 = vmatpush2.msra.mxu0 %v9575
    %v9577 = vand.u32 %v4594, 4294901760
    %v9578 = vsub.f32 %v4594, %v9577
    %v9579 = vand.u32 %v9578, 4294901760
    %9580 = vmatprep.subr.mxu0 %v9579
    %v9581 = vand.u32 %v4593, 4294901760
    %v9582 = vsub.f32 %v4593, %v9581
    %v9583 = vand.u32 %v9582, 4294901760
    %9584 = vmatpush2.msra.mxu0 %v9583
    %v9585 = vand.u32 %v4590, 4294901760
    %v9586 = vsub.f32 %v4590, %v9585
    %v9587 = vand.u32 %v9586, 4294901760
    %9588 = vmatprep.subr.mxu0 %v9587
    %v9589 = vand.u32 %v4589, 4294901760
    %v9590 = vsub.f32 %v4589, %v9589
    %v9591 = vand.u32 %v9590, 4294901760
    %9592 = vmatpush2.msra.mxu0 %v9591
    %v9593 = vand.u32 %v4586, 4294901760
    %v9594 = vsub.f32 %v4586, %v9593
    %v9595 = vand.u32 %v9594, 4294901760
    %9596 = vmatprep.subr.mxu0 %v9595
    %v9597 = vand.u32 %v4585, 4294901760
    %v9598 = vsub.f32 %v4585, %v9597
    %v9599 = vand.u32 %v9598, 4294901760
    %9600 = vmatpush2.msra.mxu0 %v9599
    %v9601 = vand.u32 %v4582, 4294901760
    %v9602 = vsub.f32 %v4582, %v9601
    %v9603 = vand.u32 %v9602, 4294901760
    %9604 = vmatprep.subr.mxu0 %v9603
    %v9605 = vand.u32 %v4581, 4294901760
    %v9606 = vsub.f32 %v4581, %v9605
    %v9607 = vand.u32 %v9606, 4294901760
    %9608 = vmatpush2.msra.mxu0 %v9607
    %v9609 = vand.u32 %v4578, 4294901760
    %v9610 = vsub.f32 %v4578, %v9609
    %v9611 = vand.u32 %v9610, 4294901760
    %9612 = vmatprep.subr.mxu0 %v9611
    %v9613 = vand.u32 %v4577, 4294901760
    %v9614 = vsub.f32 %v4577, %v9613
    %v9615 = vand.u32 %v9614, 4294901760
    %9616 = vmatpush2.msra.mxu0 %v9615
    %v9617 = vand.u32 %v4574, 4294901760
    %v9618 = vsub.f32 %v4574, %v9617
    %v9619 = vand.u32 %v9618, 4294901760
    %9620 = vmatprep.subr.mxu0 %v9619
    %v9621 = vand.u32 %v4573, 4294901760
    %v9622 = vsub.f32 %v4573, %v9621
    %v9623 = vand.u32 %v9622, 4294901760
    %9624 = vmatpush2.msra.mxu0 %v9623
    %v9625 = vand.u32 %v4378, 4294901760
    %9626 = vmatprep.mubr.f32.mxu0 %v9625
    %v9627 = vand.u32 %v4377, 4294901760
    %9628 = vmatmul.mubr.f32.gmra.mxu0 %v9627
    %v9629 = vpop.f32.mrf.mxu0
    %v9630 = vadd.f32 %v9365, %v9629
    %v9631 = vpop.f32.mrf.mxu0
    %v9632 = vadd.f32 %v9367, %v9631
    %9633 = vdwg.mxu0
    %v9634 = vand.u32 %v4570, 4294901760
    %9635 = vmatprep.subr.mxu0 %v9634
    %v9636 = vand.u32 %v4569, 4294901760
    %9637 = vmatpush1.msra.mxu0 %v9636
    %v9638 = vand.u32 %v4566, 4294901760
    %9639 = vmatprep.subr.mxu0 %v9638
    %v9640 = vand.u32 %v4565, 4294901760
    %9641 = vmatpush1.msra.mxu0 %v9640
    %v9642 = vand.u32 %v4562, 4294901760
    %9643 = vmatprep.subr.mxu0 %v9642
    %v9644 = vand.u32 %v4561, 4294901760
    %9645 = vmatpush1.msra.mxu0 %v9644
    %v9646 = vand.u32 %v4558, 4294901760
    %9647 = vmatprep.subr.mxu0 %v9646
    %v9648 = vand.u32 %v4557, 4294901760
    %9649 = vmatpush1.msra.mxu0 %v9648
    %v9650 = vand.u32 %v4554, 4294901760
    %9651 = vmatprep.subr.mxu0 %v9650
    %v9652 = vand.u32 %v4553, 4294901760
    %9653 = vmatpush1.msra.mxu0 %v9652
    %v9654 = vand.u32 %v4550, 4294901760
    %9655 = vmatprep.subr.mxu0 %v9654
    %v9656 = vand.u32 %v4549, 4294901760
    %9657 = vmatpush1.msra.mxu0 %v9656
    %v9658 = vand.u32 %v4546, 4294901760
    %9659 = vmatprep.subr.mxu0 %v9658
    %v9660 = vand.u32 %v4545, 4294901760
    %9661 = vmatpush1.msra.mxu0 %v9660
    %v9662 = vand.u32 %v4542, 4294901760
    %9663 = vmatprep.subr.mxu0 %v9662
    %v9664 = vand.u32 %v4541, 4294901760
    %9665 = vmatpush1.msra.mxu0 %v9664
    %v9666 = vand.u32 %v4538, 4294901760
    %9667 = vmatprep.subr.mxu0 %v9666
    %v9668 = vand.u32 %v4537, 4294901760
    %9669 = vmatpush1.msra.mxu0 %v9668
    %v9670 = vand.u32 %v4534, 4294901760
    %9671 = vmatprep.subr.mxu0 %v9670
    %v9672 = vand.u32 %v4533, 4294901760
    %9673 = vmatpush1.msra.mxu0 %v9672
    %v9674 = vand.u32 %v4530, 4294901760
    %9675 = vmatprep.subr.mxu0 %v9674
    %v9676 = vand.u32 %v4529, 4294901760
    %9677 = vmatpush1.msra.mxu0 %v9676
    %v9678 = vand.u32 %v4526, 4294901760
    %9679 = vmatprep.subr.mxu0 %v9678
    %v9680 = vand.u32 %v4525, 4294901760
    %9681 = vmatpush1.msra.mxu0 %v9680
    %v9682 = vand.u32 %v4522, 4294901760
    %9683 = vmatprep.subr.mxu0 %v9682
    %v9684 = vand.u32 %v4521, 4294901760
    %9685 = vmatpush1.msra.mxu0 %v9684
    %v9686 = vand.u32 %v4518, 4294901760
    %9687 = vmatprep.subr.mxu0 %v9686
    %v9688 = vand.u32 %v4517, 4294901760
    %9689 = vmatpush1.msra.mxu0 %v9688
    %v9690 = vand.u32 %v4514, 4294901760
    %9691 = vmatprep.subr.mxu0 %v9690
    %v9692 = vand.u32 %v4513, 4294901760
    %9693 = vmatpush1.msra.mxu0 %v9692
    %v9694 = vand.u32 %v4510, 4294901760
    %9695 = vmatprep.subr.mxu0 %v9694
    %v9696 = vand.u32 %v4509, 4294901760
    %9697 = vmatpush1.msra.mxu0 %v9696
    %v9698 = vand.u32 %v4634, 4294901760
    %9699 = vmatprep.subr.mxu0 %v9698
    %v9700 = vand.u32 %v4633, 4294901760
    %9701 = vmatpush2.msra.mxu0 %v9700
    %v9702 = vand.u32 %v4630, 4294901760
    %9703 = vmatprep.subr.mxu0 %v9702
    %v9704 = vand.u32 %v4629, 4294901760
    %9705 = vmatpush2.msra.mxu0 %v9704
    %v9706 = vand.u32 %v4626, 4294901760
    %9707 = vmatprep.subr.mxu0 %v9706
    %v9708 = vand.u32 %v4625, 4294901760
    %9709 = vmatpush2.msra.mxu0 %v9708
    %v9710 = vand.u32 %v4622, 4294901760
    %9711 = vmatprep.subr.mxu0 %v9710
    %v9712 = vand.u32 %v4621, 4294901760
    %9713 = vmatpush2.msra.mxu0 %v9712
    %v9714 = vand.u32 %v4618, 4294901760
    %9715 = vmatprep.subr.mxu0 %v9714
    %v9716 = vand.u32 %v4617, 4294901760
    %9717 = vmatpush2.msra.mxu0 %v9716
    %v9718 = vand.u32 %v4614, 4294901760
    %9719 = vmatprep.subr.mxu0 %v9718
    %v9720 = vand.u32 %v4613, 4294901760
    %9721 = vmatpush2.msra.mxu0 %v9720
    %v9722 = vand.u32 %v4610, 4294901760
    %9723 = vmatprep.subr.mxu0 %v9722
    %v9724 = vand.u32 %v4609, 4294901760
    %9725 = vmatpush2.msra.mxu0 %v9724
    %v9726 = vand.u32 %v4606, 4294901760
    %9727 = vmatprep.subr.mxu0 %v9726
    %v9728 = vand.u32 %v4605, 4294901760
    %9729 = vmatpush2.msra.mxu0 %v9728
    %v9730 = vand.u32 %v4602, 4294901760
    %9731 = vmatprep.subr.mxu0 %v9730
    %v9732 = vand.u32 %v4601, 4294901760
    %9733 = vmatpush2.msra.mxu0 %v9732
    %v9734 = vand.u32 %v4598, 4294901760
    %9735 = vmatprep.subr.mxu0 %v9734
    %v9736 = vand.u32 %v4597, 4294901760
    %9737 = vmatpush2.msra.mxu0 %v9736
    %v9738 = vand.u32 %v4594, 4294901760
    %9739 = vmatprep.subr.mxu0 %v9738
    %v9740 = vand.u32 %v4593, 4294901760
    %9741 = vmatpush2.msra.mxu0 %v9740
    %v9742 = vand.u32 %v4590, 4294901760
    %9743 = vmatprep.subr.mxu0 %v9742
    %v9744 = vand.u32 %v4589, 4294901760
    %9745 = vmatpush2.msra.mxu0 %v9744
    %v9746 = vand.u32 %v4586, 4294901760
    %9747 = vmatprep.subr.mxu0 %v9746
    %v9748 = vand.u32 %v4585, 4294901760
    %9749 = vmatpush2.msra.mxu0 %v9748
    %v9750 = vand.u32 %v4582, 4294901760
    %9751 = vmatprep.subr.mxu0 %v9750
    %v9752 = vand.u32 %v4581, 4294901760
    %9753 = vmatpush2.msra.mxu0 %v9752
    %v9754 = vand.u32 %v4578, 4294901760
    %9755 = vmatprep.subr.mxu0 %v9754
    %v9756 = vand.u32 %v4577, 4294901760
    %9757 = vmatpush2.msra.mxu0 %v9756
    %v9758 = vand.u32 %v4574, 4294901760
    %9759 = vmatprep.subr.mxu0 %v9758
    %v9760 = vand.u32 %v4573, 4294901760
    %9761 = vmatpush2.msra.mxu0 %v9760
    %v9762 = vand.u32 %v4378, 4294901760
    %9763 = vmatprep.mubr.f32.mxu0 %v9762
    %v9764 = vand.u32 %v4377, 4294901760
    %9765 = vmatmul.mubr.f32.gmra.mxu0 %v9764
    %v9766 = vpop.f32.mrf.mxu0
    %v9767 = vadd.f32 %v9630, %v9766
    %v9768 = vpop.f32.mrf.mxu0
    %v9769 = vadd.f32 %v9632, %v9768
    %9770 = vdwg.mxu0
    %v9771 = vmul.f32 %v7199, %v7199
    %v9772 = vmul.f32 %v7201, %v7201
    %v9773 = vmul.f32 %v9767, %v9767
    %v9774 = vmul.f32 %v9769, %v9769
    %v9779 = vrot.slane %v9771, 7
    %v9780 = vrot.slane %v9772, 7
    %v9781 = vrot.slane %v9773, 7
    %v9782 = vrot.slane %v9774, 7
    %v9787 = vsub.f32 %v7199, %v9779
    %v9788 = vsub.f32 %v7201, %v9780
    %v9789 = vsub.f32 %v9767, %v9781
    %v9790 = vsub.f32 %v9769, %v9782
    %v9791 = vadd.f32 %v9787, 1e-05
    %v9792 = vadd.f32 %v9788, 1e-05
    %v9793 = vadd.f32 %v9789, 1e-05
    %v9794 = vadd.f32 %v9790, 1e-05
    %v9795 = vrsqrt.pop %v9791
    %v9796 = vrsqrt.pop %v9792
    %v9797 = vrsqrt.pop %v9793
    %v9798 = vrsqrt.pop %v9794
    %v9799 = vlaneseq
    %v9800 = vshrl.u32 %v9799, 7
    %v9801 = vsub.s32 1, %v9800
    %v9802 = vrot.slane %v3733, %v9801
    %v9803 = vlaneseq
    %v9804 = vshrl.u32 %v9803, 7
    %v9805 = vsub.s32 5, %v9804
    %v9806 = vrot.slane %v3733, %v9805
    %v9807 = vlaneseq
    %v9808 = vshrl.u32 %v9807, 7
    %v9809 = vsub.s32 1, %v9808
    %v9810 = vrot.slane %v3734, %v9809
    %v9811 = vlaneseq
    %v9812 = vshrl.u32 %v9811, 7
    %v9813 = vsub.s32 5, %v9812
    %v9814 = vrot.slane %v3734, %v9813
    %v9819 = vmul.f32 %v9795, %v9802
    %v9820 = vmul.f32 %v9796, %v9806
    %v9821 = vmul.f32 %v9797, %v9810
    %v9822 = vmul.f32 %v9798, %v9814
    %v9827 = vrot.slane %v9819, 1
    %v9828 = vrot.slane %v9820, 1
    %v9829 = vrot.slane %v9821, 1
    %v9830 = vrot.slane %v9822, 1
    %v9835 = vmul.f32 %v7199, %v9827
    %v9836 = vmul.f32 %v7201, %v9828
    %v9837 = vmul.f32 %v9767, %v9829
    %v9838 = vmul.f32 %v9769, %v9830
    %v9843 = vcombine.low %v9835, %v9836
    %v9844 = vcombine.low %v9837, %v9838
    %v9845 = vrot.slane %v9843, 6
    %v9846 = vrot.slane %v9844, 6
    %v9849 = vsub.f32 %v3733, %v9845
    %v9850 = vsub.f32 %v3734, %v9846
    %v9851 = vlaneseq
    %v9852 = vshrl.u32 %v9851, 7
    %v9853 = vsub.s32 1, %v9852
    %v9854 = vrot.slane %v9819, %v9853
    %v9855 = vlaneseq
    %v9856 = vshrl.u32 %v9855, 7
    %v9857 = vsub.s32 1, %v9856
    %v9858 = vrot.slane %v9820, %v9857
    %v9859 = vlaneseq
    %v9860 = vshrl.u32 %v9859, 7
    %v9861 = vsub.s32 1, %v9860
    %v9862 = vrot.slane %v9821, %v9861
    %v9863 = vlaneseq
    %v9864 = vshrl.u32 %v9863, 7
    %v9865 = vsub.s32 1, %v9864
    %v9866 = vrot.slane %v9822, %v9865
    %v9867 = vmul.f32 %v4128, %v9854
    %v9868 = vmul.f32 %v4130, %v9858
    %v9869 = vmul.f32 %v4201, %v9862
    %v9870 = vmul.f32 %v4203, %v9866
    %v9871 = vmul.f32 %v4132, %v9854
    %v9872 = vmul.f32 %v4134, %v9858
    %v9873 = vmul.f32 %v4205, %v9862
    %v9874 = vmul.f32 %v4207, %v9866
    %v9875 = vmul.f32 %v4138, %v9854
    %v9876 = vmul.f32 %v4140, %v9858
    %v9877 = vmul.f32 %v4211, %v9862
    %v9878 = vmul.f32 %v4213, %v9866
    %v9879 = vmul.f32 %v4142, %v9854
    %v9880 = vmul.f32 %v4144, %v9858
    %v9881 = vmul.f32 %v4215, %v9862
    %v9882 = vmul.f32 %v4217, %v9866
    %v9883 = vmul.f32 %v4148, %v9854
    %v9884 = vmul.f32 %v4150, %v9858
    %v9885 = vmul.f32 %v4221, %v9862
    %v9886 = vmul.f32 %v4223, %v9866
    %v9887 = vmul.f32 %v4152, %v9854
    %v9888 = vmul.f32 %v4154, %v9858
    %v9889 = vmul.f32 %v4225, %v9862
    %v9890 = vmul.f32 %v4227, %v9866
    %v9891 = vmul.f32 %v4158, %v9854
    %v9892 = vmul.f32 %v4160, %v9858
    %v9893 = vmul.f32 %v4231, %v9862
    %v9894 = vmul.f32 %v4233, %v9866
    %v9895 = vmul.f32 %v4162, %v9854
    %v9896 = vmul.f32 %v4164, %v9858
    %v9897 = vmul.f32 %v4235, %v9862
    %v9898 = vmul.f32 %v4237, %v9866
    %v9901 = vlaneseq
    %v9902 = vshrl.u32 %v9901, 7
    %v9903 = vsub.s32 2, %v9902
    %v9904 = vrot.slane %v9849, %v9903
    %v9905 = vlaneseq
    %v9906 = vshrl.u32 %v9905, 7
    %v9907 = vsub.s32 6, %v9906
    %v9908 = vrot.slane %v9849, %v9907
    %v9909 = vlaneseq
    %v9910 = vshrl.u32 %v9909, 7
    %v9911 = vsub.s32 2, %v9910
    %v9912 = vrot.slane %v9850, %v9911
    %v9913 = vlaneseq
    %v9914 = vshrl.u32 %v9913, 7
    %v9915 = vsub.s32 6, %v9914
    %v9916 = vrot.slane %v9850, %v9915
    %v9921 = vlaneseq
    %v9922 = vshrl.u32 %v9921, 7
    %v9923 = vsub.s32 2, %v9922
    %v9924 = vrot.slane %v9904, %v9923
    %v9925 = vlaneseq
    %v9926 = vshrl.u32 %v9925, 7
    %v9927 = vsub.s32 2, %v9926
    %v9928 = vrot.slane %v9908, %v9927
    %v9929 = vlaneseq
    %v9930 = vshrl.u32 %v9929, 7
    %v9931 = vsub.s32 2, %v9930
    %v9932 = vrot.slane %v9912, %v9931
    %v9933 = vlaneseq
    %v9934 = vshrl.u32 %v9933, 7
    %v9935 = vsub.s32 2, %v9934
    %v9936 = vrot.slane %v9916, %v9935
    %v9937 = vadd.f32 %v9867, %v9924
    %v9938 = vadd.f32 %v9868, %v9928
    %v9939 = vadd.f32 %v9869, %v9932
    %v9940 = vadd.f32 %v9870, %v9936
    %v9941 = vadd.f32 %v9871, %v9924
    %v9942 = vadd.f32 %v9872, %v9928
    %v9943 = vadd.f32 %v9873, %v9932
    %v9944 = vadd.f32 %v9874, %v9936
    %v9945 = vadd.f32 %v9875, %v9924
    %v9946 = vadd.f32 %v9876, %v9928
    %v9947 = vadd.f32 %v9877, %v9932
    %v9948 = vadd.f32 %v9878, %v9936
    %v9949 = vadd.f32 %v9879, %v9924
    %v9950 = vadd.f32 %v9880, %v9928
    %v9951 = vadd.f32 %v9881, %v9932
    %v9952 = vadd.f32 %v9882, %v9936
    %v9953 = vadd.f32 %v9883, %v9924
    %v9954 = vadd.f32 %v9884, %v9928
    %v9955 = vadd.f32 %v9885, %v9932
    %v9956 = vadd.f32 %v9886, %v9936
    %v9957 = vadd.f32 %v9887, %v9924
    %v9958 = vadd.f32 %v9888, %v9928
    %v9959 = vadd.f32 %v9889, %v9932
    %v9960 = vadd.f32 %v9890, %v9936
    %v9961 = vadd.f32 %v9891, %v9924
    %v9962 = vadd.f32 %v9892, %v9928
    %v9963 = vadd.f32 %v9893, %v9932
    %v9964 = vadd.f32 %v9894, %v9936
    %v9965 = vadd.f32 %v9895, %v9924
    %v9966 = vadd.f32 %v9896, %v9928
    %v9967 = vadd.f32 %v9897, %v9932
    %v9968 = vadd.f32 %v9898, %v9936
    %v9969 = vmul.f32 %v9937, 0.01
    %v9970 = vmul.f32 %v9938, 0.01
    %v9971 = vmul.f32 %v9939, 0.01
    %v9972 = vmul.f32 %v9940, 0.01
    %v9973 = vmul.f32 %v9941, 0.01
    %v9974 = vmul.f32 %v9942, 0.01
    %v9975 = vmul.f32 %v9943, 0.01
    %v9976 = vmul.f32 %v9944, 0.01
    %v9977 = vmul.f32 %v9945, 0.01
    %v9978 = vmul.f32 %v9946, 0.01
    %v9979 = vmul.f32 %v9947, 0.01
    %v9980 = vmul.f32 %v9948, 0.01
    %v9981 = vmul.f32 %v9949, 0.01
    %v9982 = vmul.f32 %v9950, 0.01
    %v9983 = vmul.f32 %v9951, 0.01
    %v9984 = vmul.f32 %v9952, 0.01
    %v9985 = vmul.f32 %v9953, 0.01
    %v9986 = vmul.f32 %v9954, 0.01
    %v9987 = vmul.f32 %v9955, 0.01
    %v9988 = vmul.f32 %v9956, 0.01
    %v9989 = vmul.f32 %v9957, 0.01
    %v9990 = vmul.f32 %v9958, 0.01
    %v9991 = vmul.f32 %v9959, 0.01
    %v9992 = vmul.f32 %v9960, 0.01
    %v9993 = vmul.f32 %v9961, 0.01
    %v9994 = vmul.f32 %v9962, 0.01
    %v9995 = vmul.f32 %v9963, 0.01
    %v9996 = vmul.f32 %v9964, 0.01
    %v9997 = vmul.f32 %v9965, 0.01
    %v9998 = vmul.f32 %v9966, 0.01
    %v9999 = vmul.f32 %v9967, 0.01
    %v10000 = vmul.f32 %v9968, 0.01
    %v10001 = vmax.f32 %v9937, %v9969
    %v10002 = vmax.f32 %v9938, %v9970
    %v10003 = vmax.f32 %v9939, %v9971
    %v10004 = vmax.f32 %v9940, %v9972
    %v10005 = vmax.f32 %v9941, %v9973
    %v10006 = vmax.f32 %v9942, %v9974
    %v10007 = vmax.f32 %v9943, %v9975
    %v10008 = vmax.f32 %v9944, %v9976
    %v10009 = vmax.f32 %v9945, %v9977
    %v10010 = vmax.f32 %v9946, %v9978
    %v10011 = vmax.f32 %v9947, %v9979
    %v10012 = vmax.f32 %v9948, %v9980
    %v10013 = vmax.f32 %v9949, %v9981
    %v10014 = vmax.f32 %v9950, %v9982
    %v10015 = vmax.f32 %v9951, %v9983
    %v10016 = vmax.f32 %v9952, %v9984
    %v10017 = vmax.f32 %v9953, %v9985
    %v10018 = vmax.f32 %v9954, %v9986
    %v10019 = vmax.f32 %v9955, %v9987
    %v10020 = vmax.f32 %v9956, %v9988
    %v10021 = vmax.f32 %v9957, %v9989
    %v10022 = vmax.f32 %v9958, %v9990
    %v10023 = vmax.f32 %v9959, %v9991
    %v10024 = vmax.f32 %v9960, %v9992
    %v10025 = vmax.f32 %v9961, %v9993
    %v10026 = vmax.f32 %v9962, %v9994
    %v10027 = vmax.f32 %v9963, %v9995
    %v10028 = vmax.f32 %v9964, %v9996
    %v10029 = vmax.f32 %v9965, %v9997
    %v10030 = vmax.f32 %v9966, %v9998
    %v10031 = vmax.f32 %v9967, %v9999
    %v10032 = vmax.f32 %v9968, %v10000
    %v10033 = vpack.c.bf16 %v10005, %v10001
    %v10034 = vpack.c.bf16 %v10006, %v10002
    %v10035 = vpack.c.bf16 %v10007, %v10003
    %v10036 = vpack.c.bf16 %v10008, %v10004
    %v10037 = vpack.c.bf16 %v10013, %v10009
    %v10038 = vpack.c.bf16 %v10014, %v10010
    %v10039 = vpack.c.bf16 %v10015, %v10011
    %v10040 = vpack.c.bf16 %v10016, %v10012
    %v10041 = vpack.c.bf16 %v10021, %v10017
    %v10042 = vpack.c.bf16 %v10022, %v10018
    %v10043 = vpack.c.bf16 %v10023, %v10019
    %v10044 = vpack.c.bf16 %v10024, %v10020
    %v10045 = vpack.c.bf16 %v10029, %v10025
    %v10046 = vpack.c.bf16 %v10030, %v10026
    %v10047 = vpack.c.bf16 %v10031, %v10027
    %v10048 = vpack.c.bf16 %v10032, %v10028
    %v10049 = vld [vmem:[%s10] sm:$0xf]
    %v10050 = vld [vmem:[%s10 + $0x4] sm:$0xf]
    %v10051 = vld [vmem:[%s10 + $0x8] sm:$0xf]
    %v10052 = vld [vmem:[%s10 + $0xc] sm:$0xf]
    %v10053 = vld [vmem:[%s10 + $0x10] sm:$0xf]
    %v10054 = vld [vmem:[%s10 + $0x14] sm:$0xf]
    %v10055 = vld [vmem:[%s10 + $0x18] sm:$0xf]
    %v10056 = vld [vmem:[%s10 + $0x1c] sm:$0xf]
    %v10057 = vld [vmem:[%s10 + $0x20] sm:$0xf]
    %v10058 = vld [vmem:[%s10 + $0x24] sm:$0xf]
    %v10059 = vld [vmem:[%s10 + $0x28] sm:$0xf]
    %v10060 = vld [vmem:[%s10 + $0x2c] sm:$0xf]
    %v10061 = vld [vmem:[%s10 + $0x30] sm:$0xf]
    %v10062 = vld [vmem:[%s10 + $0x34] sm:$0xf]
    %v10063 = vld [vmem:[%s10 + $0x38] sm:$0xf]
    %v10064 = vld [vmem:[%s10 + $0x3c] sm:$0xf]
    %v10065 = vld [vmem:[%s10 + $0x40] sm:$0xf]
    %v10066 = vld [vmem:[%s10 + $0x44] sm:$0xf]
    %v10067 = vld [vmem:[%s10 + $0x48] sm:$0xf]
    %v10068 = vld [vmem:[%s10 + $0x4c] sm:$0xf]
    %v10069 = vld [vmem:[%s10 + $0x50] sm:$0xf]
    %v10070 = vld [vmem:[%s10 + $0x54] sm:$0xf]
    %v10071 = vld [vmem:[%s10 + $0x58] sm:$0xf]
    %v10072 = vld [vmem:[%s10 + $0x5c] sm:$0xf]
    %v10073 = vld [vmem:[%s10 + $0x60] sm:$0xf]
    %v10074 = vld [vmem:[%s10 + $0x64] sm:$0xf]
    %v10075 = vld [vmem:[%s10 + $0x68] sm:$0xf]
    %v10076 = vld [vmem:[%s10 + $0x6c] sm:$0xf]
    %v10077 = vld [vmem:[%s10 + $0x70] sm:$0xf]
    %v10078 = vld [vmem:[%s10 + $0x74] sm:$0xf]
    %v10079 = vld [vmem:[%s10 + $0x78] sm:$0xf]
    %v10080 = vld [vmem:[%s10 + $0x7c] sm:$0xf]
    %v10081 = vld [vmem:[%s10 + $0x80] sm:$0xf]
    %v10082 = vld [vmem:[%s10 + $0x84] sm:$0xf]
    %v10083 = vld [vmem:[%s10 + $0x88] sm:$0xf]
    %v10084 = vld [vmem:[%s10 + $0x8c] sm:$0xf]
    %v10085 = vld [vmem:[%s10 + $0x90] sm:$0xf]
    %v10086 = vld [vmem:[%s10 + $0x94] sm:$0xf]
    %v10087 = vld [vmem:[%s10 + $0x98] sm:$0xf]
    %v10088 = vld [vmem:[%s10 + $0x9c] sm:$0xf]
    %v10089 = vld [vmem:[%s10 + $0xa0] sm:$0xf]
    %v10090 = vld [vmem:[%s10 + $0xa4] sm:$0xf]
    %v10091 = vld [vmem:[%s10 + $0xa8] sm:$0xf]
    %v10092 = vld [vmem:[%s10 + $0xac] sm:$0xf]
    %v10093 = vld [vmem:[%s10 + $0xb0] sm:$0xf]
    %v10094 = vld [vmem:[%s10 + $0xb4] sm:$0xf]
    %v10095 = vld [vmem:[%s10 + $0xb8] sm:$0xf]
    %v10096 = vld [vmem:[%s10 + $0xbc] sm:$0xf]
    %v10097 = vld [vmem:[%s10 + $0xc0] sm:$0xf]
    %v10098 = vld [vmem:[%s10 + $0xc4] sm:$0xf]
    %v10099 = vld [vmem:[%s10 + $0xc8] sm:$0xf]
    %v10100 = vld [vmem:[%s10 + $0xcc] sm:$0xf]
    %v10101 = vld [vmem:[%s10 + $0xd0] sm:$0xf]
    %v10102 = vld [vmem:[%s10 + $0xd4] sm:$0xf]
    %v10103 = vld [vmem:[%s10 + $0xd8] sm:$0xf]
    %v10104 = vld [vmem:[%s10 + $0xdc] sm:$0xf]
    %v10105 = vld [vmem:[%s10 + $0xe0] sm:$0xf]
    %v10106 = vld [vmem:[%s10 + $0xe4] sm:$0xf]
    %v10107 = vld [vmem:[%s10 + $0xe8] sm:$0xf]
    %v10108 = vld [vmem:[%s10 + $0xec] sm:$0xf]
    %v10109 = vld [vmem:[%s10 + $0xf0] sm:$0xf]
    %v10110 = vld [vmem:[%s10 + $0xf4] sm:$0xf]
    %v10111 = vld [vmem:[%s10 + $0xf8] sm:$0xf]
    %v10112 = vld [vmem:[%s10 + $0xfc] sm:$0xf]
    %s10113 = sld [smem:[#allocation11]]
    %v10114 = vstv %s10113
    %v10179 = vunpack.c.l.b16 %v10049
    %v10180 = vunpack.c.l.b16 %v10050
    %v10181 = vunpack.c.l.b16 %v10051
    %v10182 = vunpack.c.l.b16 %v10052
    %v10183 = vunpack.c.l.b16 %v10053
    %v10184 = vunpack.c.l.b16 %v10054
    %v10185 = vunpack.c.l.b16 %v10055
    %v10186 = vunpack.c.l.b16 %v10056
    %v10187 = vunpack.c.l.b16 %v10057
    %v10188 = vunpack.c.l.b16 %v10058
    %v10189 = vunpack.c.l.b16 %v10059
    %v10190 = vunpack.c.l.b16 %v10060
    %v10191 = vunpack.c.l.b16 %v10061
    %v10192 = vunpack.c.l.b16 %v10062
    %v10193 = vunpack.c.l.b16 %v10063
    %v10194 = vunpack.c.l.b16 %v10064
    %v10195 = vunpack.c.l.b16 %v10065
    %v10196 = vunpack.c.l.b16 %v10066
    %v10197 = vunpack.c.l.b16 %v10067
    %v10198 = vunpack.c.l.b16 %v10068
    %v10199 = vunpack.c.l.b16 %v10069
    %v10200 = vunpack.c.l.b16 %v10070
    %v10201 = vunpack.c.l.b16 %v10071
    %v10202 = vunpack.c.l.b16 %v10072
    %v10203 = vunpack.c.l.b16 %v10073
    %v10204 = vunpack.c.l.b16 %v10074
    %v10205 = vunpack.c.l.b16 %v10075
    %v10206 = vunpack.c.l.b16 %v10076
    %v10207 = vunpack.c.l.b16 %v10077
    %v10208 = vunpack.c.l.b16 %v10078
    %v10209 = vunpack.c.l.b16 %v10079
    %v10210 = vunpack.c.l.b16 %v10080
    %v10211 = vunpack.c.l.b16 %v10081
    %v10212 = vunpack.c.l.b16 %v10082
    %v10213 = vunpack.c.l.b16 %v10083
    %v10214 = vunpack.c.l.b16 %v10084
    %v10215 = vunpack.c.l.b16 %v10085
    %v10216 = vunpack.c.l.b16 %v10086
    %v10217 = vunpack.c.l.b16 %v10087
    %v10218 = vunpack.c.l.b16 %v10088
    %v10219 = vunpack.c.l.b16 %v10089
    %v10220 = vunpack.c.l.b16 %v10090
    %v10221 = vunpack.c.l.b16 %v10091
    %v10222 = vunpack.c.l.b16 %v10092
    %v10223 = vunpack.c.l.b16 %v10093
    %v10224 = vunpack.c.l.b16 %v10094
    %v10225 = vunpack.c.l.b16 %v10095
    %v10226 = vunpack.c.l.b16 %v10096
    %v10227 = vunpack.c.l.b16 %v10097
    %v10228 = vunpack.c.l.b16 %v10098
    %v10229 = vunpack.c.l.b16 %v10099
    %v10230 = vunpack.c.l.b16 %v10100
    %v10231 = vunpack.c.l.b16 %v10101
    %v10232 = vunpack.c.l.b16 %v10102
    %v10233 = vunpack.c.l.b16 %v10103
    %v10234 = vunpack.c.l.b16 %v10104
    %v10235 = vunpack.c.l.b16 %v10105
    %v10236 = vunpack.c.l.b16 %v10106
    %v10237 = vunpack.c.l.b16 %v10107
    %v10238 = vunpack.c.l.b16 %v10108
    %v10239 = vunpack.c.l.b16 %v10109
    %v10240 = vunpack.c.l.b16 %v10110
    %v10241 = vunpack.c.l.b16 %v10111
    %v10242 = vunpack.c.l.b16 %v10112
    %v10243 = vpack.c.b16 %v10180, %v10179
    %v10244 = vpack.c.b16 %v10182, %v10181
    %v10245 = vpack.c.b16 %v10184, %v10183
    %v10246 = vpack.c.b16 %v10186, %v10185
    %v10247 = vpack.c.b16 %v10188, %v10187
    %v10248 = vpack.c.b16 %v10190, %v10189
    %v10249 = vpack.c.b16 %v10192, %v10191
    %v10250 = vpack.c.b16 %v10194, %v10193
    %v10251 = vpack.c.b16 %v10196, %v10195
    %v10252 = vpack.c.b16 %v10198, %v10197
    %v10253 = vpack.c.b16 %v10200, %v10199
    %v10254 = vpack.c.b16 %v10202, %v10201
    %v10255 = vpack.c.b16 %v10204, %v10203
    %v10256 = vpack.c.b16 %v10206, %v10205
    %v10257 = vpack.c.b16 %v10208, %v10207
    %v10258 = vpack.c.b16 %v10210, %v10209
    %v10259 = vpack.c.b16 %v10212, %v10211
    %v10260 = vpack.c.b16 %v10214, %v10213
    %v10261 = vpack.c.b16 %v10216, %v10215
    %v10262 = vpack.c.b16 %v10218, %v10217
    %v10263 = vpack.c.b16 %v10220, %v10219
    %v10264 = vpack.c.b16 %v10222, %v10221
    %v10265 = vpack.c.b16 %v10224, %v10223
    %v10266 = vpack.c.b16 %v10226, %v10225
    %v10267 = vpack.c.b16 %v10228, %v10227
    %v10268 = vpack.c.b16 %v10230, %v10229
    %v10269 = vpack.c.b16 %v10232, %v10231
    %v10270 = vpack.c.b16 %v10234, %v10233
    %v10271 = vpack.c.b16 %v10236, %v10235
    %v10272 = vpack.c.b16 %v10238, %v10237
    %v10273 = vpack.c.b16 %v10240, %v10239
    %v10274 = vpack.c.b16 %v10242, %v10241
    %10307 = vmatprep.subr.bf16.mxu0 0
    %10308 = vmatpush1.bf16.msra.mxu0 %v10250
    %10309 = vmatprep.subr.bf16.mxu0 0
    %10310 = vmatpush1.bf16.msra.mxu0 %v10249
    %10311 = vmatprep.subr.bf16.mxu0 0
    %10312 = vmatpush1.bf16.msra.mxu0 %v10248
    %10313 = vmatprep.subr.bf16.mxu0 0
    %10314 = vmatpush1.bf16.msra.mxu0 %v10247
    %10315 = vmatprep.subr.bf16.mxu0 0
    %10316 = vmatpush1.bf16.msra.mxu0 %v10246
    %10317 = vmatprep.subr.bf16.mxu0 0
    %10318 = vmatpush1.bf16.msra.mxu0 %v10245
    %10319 = vmatprep.subr.bf16.mxu0 0
    %10320 = vmatpush1.bf16.msra.mxu0 %v10244
    %10321 = vmatprep.subr.bf16.mxu0 0
    %10322 = vmatpush1.bf16.msra.mxu0 %v10243
    %10323 = vmatprep.subr.bf16.mxu0 0
    %10324 = vmatpush2.bf16.msra.mxu0 %v10258
    %10325 = vmatprep.subr.bf16.mxu0 0
    %10326 = vmatpush2.bf16.msra.mxu0 %v10257
    %10327 = vmatprep.subr.bf16.mxu0 0
    %10328 = vmatpush2.bf16.msra.mxu0 %v10256
    %10329 = vmatprep.subr.bf16.mxu0 0
    %10330 = vmatpush2.bf16.msra.mxu0 %v10255
    %10331 = vmatprep.subr.bf16.mxu0 0
    %10332 = vmatpush2.bf16.msra.mxu0 %v10254
    %10333 = vmatprep.subr.bf16.mxu0 0
    %10334 = vmatpush2.bf16.msra.mxu0 %v10253
    %10335 = vmatprep.subr.bf16.mxu0 0
    %10336 = vmatpush2.bf16.msra.mxu0 %v10252
    %10337 = vmatprep.subr.bf16.mxu0 0
    %10338 = vmatpush2.bf16.msra.mxu0 %v10251
    %10339 = vmatprep.mubr.bf16.mxu0 %v10034
    %10340 = vmatmul.mubr.bf16.gmra.mxu0 %v10033
    %v10341 = vpop.f32.mrf.mxu0
    %v10342 = vadd.f32 %v10114, %v10341
    %v10343 = vpop.f32.mrf.mxu0
    %v10344 = vpop.f32.mrf.mxu0
    %v10345 = vadd.f32 %v10114, %v10344
    %v10346 = vpop.f32.mrf.mxu0
    %10347 = vmatprep.mubr.bf16.mxu0 %v10038
    %10348 = vmatmul.mubr.bf16.gmra.mxu0 %v10037
    %v10349 = vpop.f32.mrf.mxu0
    %v10350 = vadd.f32 %v10114, %v10349
    %v10351 = vpop.f32.mrf.mxu0
    %v10352 = vpop.f32.mrf.mxu0
    %v10353 = vadd.f32 %v10114, %v10352
    %v10354 = vpop.f32.mrf.mxu0
    %10355 = vmatprep.mubr.bf16.mxu0 %v10042
    %10356 = vmatmul.mubr.bf16.gmra.mxu0 %v10041
    %v10357 = vpop.f32.mrf.mxu0
    %v10358 = vadd.f32 %v10114, %v10357
    %v10359 = vpop.f32.mrf.mxu0
    %v10360 = vpop.f32.mrf.mxu0
    %v10361 = vadd.f32 %v10114, %v10360
    %v10362 = vpop.f32.mrf.mxu0
    %10363 = vmatprep.mubr.bf16.mxu0 %v10046
    %10364 = vmatmul.mubr.bf16.gmra.mxu0 %v10045
    %v10365 = vpop.f32.mrf.mxu0
    %v10366 = vadd.f32 %v10114, %v10365
    %v10367 = vpop.f32.mrf.mxu0
    %v10368 = vpop.f32.mrf.mxu0
    %v10369 = vadd.f32 %v10114, %v10368
    %v10370 = vpop.f32.mrf.mxu0
    %10371 = vdwg.mxu0
    %10372 = vmatprep.subr.bf16.mxu0 0
    %10373 = vmatpush1.bf16.msra.mxu0 %v10266
    %10374 = vmatprep.subr.bf16.mxu0 0
    %10375 = vmatpush1.bf16.msra.mxu0 %v10265
    %10376 = vmatprep.subr.bf16.mxu0 0
    %10377 = vmatpush1.bf16.msra.mxu0 %v10264
    %10378 = vmatprep.subr.bf16.mxu0 0
    %10379 = vmatpush1.bf16.msra.mxu0 %v10263
    %10380 = vmatprep.subr.bf16.mxu0 0
    %10381 = vmatpush1.bf16.msra.mxu0 %v10262
    %10382 = vmatprep.subr.bf16.mxu0 0
    %10383 = vmatpush1.bf16.msra.mxu0 %v10261
    %10384 = vmatprep.subr.bf16.mxu0 0
    %10385 = vmatpush1.bf16.msra.mxu0 %v10260
    %10386 = vmatprep.subr.bf16.mxu0 0
    %10387 = vmatpush1.bf16.msra.mxu0 %v10259
    %10388 = vmatprep.subr.bf16.mxu0 0
    %10389 = vmatpush2.bf16.msra.mxu0 %v10274
    %10390 = vmatprep.subr.bf16.mxu0 0
    %10391 = vmatpush2.bf16.msra.mxu0 %v10273
    %10392 = vmatprep.subr.bf16.mxu0 0
    %10393 = vmatpush2.bf16.msra.mxu0 %v10272
    %10394 = vmatprep.subr.bf16.mxu0 0
    %10395 = vmatpush2.bf16.msra.mxu0 %v10271
    %10396 = vmatprep.subr.bf16.mxu0 0
    %10397 = vmatpush2.bf16.msra.mxu0 %v10270
    %10398 = vmatprep.subr.bf16.mxu0 0
    %10399 = vmatpush2.bf16.msra.mxu0 %v10269
    %10400 = vmatprep.subr.bf16.mxu0 0
    %10401 = vmatpush2.bf16.msra.mxu0 %v10268
    %10402 = vmatprep.subr.bf16.mxu0 0
    %10403 = vmatpush2.bf16.msra.mxu0 %v10267
    %10404 = vmatprep.mubr.bf16.mxu0 %v10036
    %10405 = vmatmul.mubr.bf16.gmra.mxu0 %v10035
    %v10406 = vpop.f32.mrf.mxu0
    %v10407 = vadd.f32 %v10342, %v10406
    %v10408 = vpop.f32.mrf.mxu0
    %v10409 = vpop.f32.mrf.mxu0
    %v10410 = vadd.f32 %v10345, %v10409
    %v10411 = vpop.f32.mrf.mxu0
    %10412 = vmatprep.mubr.bf16.mxu0 %v10040
    %10413 = vmatmul.mubr.bf16.gmra.mxu0 %v10039
    %v10414 = vpop.f32.mrf.mxu0
    %v10415 = vadd.f32 %v10350, %v10414
    %v10416 = vpop.f32.mrf.mxu0
    %v10417 = vpop.f32.mrf.mxu0
    %v10418 = vadd.f32 %v10353, %v10417
    %v10419 = vpop.f32.mrf.mxu0
    %10420 = vmatprep.mubr.bf16.mxu0 %v10044
    %10421 = vmatmul.mubr.bf16.gmra.mxu0 %v10043
    %v10422 = vpop.f32.mrf.mxu0
    %v10423 = vadd.f32 %v10358, %v10422
    %v10424 = vpop.f32.mrf.mxu0
    %v10425 = vpop.f32.mrf.mxu0
    %v10426 = vadd.f32 %v10361, %v10425
    %v10427 = vpop.f32.mrf.mxu0
    %10428 = vmatprep.mubr.bf16.mxu0 %v10048
    %10429 = vmatmul.mubr.bf16.gmra.mxu0 %v10047
    %v10430 = vpop.f32.mrf.mxu0
    %v10431 = vadd.f32 %v10366, %v10430
    %v10432 = vpop.f32.mrf.mxu0
    %v10433 = vpop.f32.mrf.mxu0
    %v10434 = vadd.f32 %v10369, %v10433
    %v10435 = vpop.f32.mrf.mxu0
    %10436 = vdwg.mxu0
    %vm10437 = vcmask 523264
    %v10438 = vsel %vm10437, %v10407, 0.0
    %v10439 = vsel %vm10437, %v10410, 0.0
    %v10440 = vadd.f32 %v10438, %v10439
    %v10441 = vsel %vm10437, %v10415, 0.0
    %v10442 = vadd.f32 %v10440, %v10441
    %v10443 = vsel %vm10437, %v10418, 0.0
    %v10444 = vadd.f32 %v10442, %v10443
    %v10445 = vsel %vm10437, %v10423, 0.0
    %v10446 = vadd.f32 %v10444, %v10445
    %v10447 = vsel %vm10437, %v10426, 0.0
    %v10448 = vadd.f32 %v10446, %v10447
    %v10449 = vsel %vm10437, %v10431, 0.0
    %v10450 = vadd.f32 %v10448, %v10449
    %v10451 = vsel %vm10437, %v10434, 0.0
    %v10452 = vadd.f32 %v10450, %v10451
    %v10453 = vrot.slane %v10452, 4
    %v10454 = vadd.f32 %v10452, %v10453
    %v10455 = vrot.slane %v10454, 2
    %v10456 = vadd.f32 %v10454, %v10455
    %v10457 = vrot.slane %v10456, 1
    %v10458 = vadd.f32 %v10456, %v10457
    %v10459 = vsel %vm10437, %v10458, 0.0
    %10460 = vadd.xlane.f32.xlu0 %v10459
    %v10461 = vpop.xlane.xlu0 %10460
    %v10462 = vmul.f32 %v10407, %v10407
    %v10463 = vmul.f32 %v10410, %v10410
    %v10464 = vmul.f32 %v10415, %v10415
    %v10465 = vmul.f32 %v10418, %v10418
    %v10466 = vmul.f32 %v10423, %v10423
    %v10467 = vmul.f32 %v10426, %v10426
    %v10468 = vmul.f32 %v10431, %v10431
    %v10469 = vmul.f32 %v10434, %v10434
    %v10470 = vsel %vm10437, %v10462, 0.0
    %v10471 = vsel %vm10437, %v10463, 0.0
    %v10472 = vadd.f32 %v10470, %v10471
    %v10473 = vsel %vm10437, %v10464, 0.0
    %v10474 = vadd.f32 %v10472, %v10473
    %v10475 = vsel %vm10437, %v10465, 0.0
    %v10476 = vadd.f32 %v10474, %v10475
    %v10477 = vsel %vm10437, %v10466, 0.0
    %v10478 = vadd.f32 %v10476, %v10477
    %v10479 = vsel %vm10437, %v10467, 0.0
    %v10480 = vadd.f32 %v10478, %v10479
    %v10481 = vsel %vm10437, %v10468, 0.0
    %v10482 = vadd.f32 %v10480, %v10481
    %v10483 = vsel %vm10437, %v10469, 0.0
    %v10484 = vadd.f32 %v10482, %v10483
    %v10485 = vrot.slane %v10484, 4
    %v10486 = vadd.f32 %v10484, %v10485
    %v10487 = vrot.slane %v10486, 2
    %v10488 = vadd.f32 %v10486, %v10487
    %v10489 = vrot.slane %v10488, 1
    %v10490 = vadd.f32 %v10488, %v10489
    %v10491 = vsel %vm10437, %v10490, 0.0
    %10492 = vadd.xlane.f32.xlu0 %v10491
    %v10493 = vpop.xlane.xlu0 %10492
    %v10494 = vmul.f32 %v10461, 0.00024414063
    %v10495 = vmul.f32 %v10493, 0.00024414063
    %v10496 = vmul.f32 %v10494, %v10494
    %v10497 = vsub.f32 %v10495, %v10496
    %v10498 = vsub.f32 %v10407, %v10494
    %v10499 = vsub.f32 %v10410, %v10494
    %v10500 = vsub.f32 %v10415, %v10494
    %v10501 = vsub.f32 %v10418, %v10494
    %v10502 = vsub.f32 %v10423, %v10494
    %v10503 = vsub.f32 %v10426, %v10494
    %v10504 = vsub.f32 %v10431, %v10494
    %v10505 = vsub.f32 %v10434, %v10494
    %v10506 = vadd.f32 %v10497, 1e-05
    %v10507 = vrsqrt.pop %v10506
    %s10508 = sld [smem:[#allocation11 + $0x1]]
    %v10509 = vstv %s10508
    %v10510 = vmul.f32 %v10507, %v10509
    %v10511 = vmul.f32 %v10498, %v10510
    %v10512 = vmul.f32 %v10499, %v10510
    %v10513 = vmul.f32 %v10500, %v10510
    %v10514 = vmul.f32 %v10501, %v10510
    %v10515 = vmul.f32 %v10502, %v10510
    %v10516 = vmul.f32 %v10503, %v10510
    %v10517 = vmul.f32 %v10504, %v10510
    %v10518 = vmul.f32 %v10505, %v10510
    %s10519 = sld [smem:[#allocation11 + $0x2]]
    %v10520 = vstv %s10519
    %v10521 = vadd.f32 %v10511, %v10520
    %v10522 = vadd.f32 %v10512, %v10520
    %v10523 = vadd.f32 %v10513, %v10520
    %v10524 = vadd.f32 %v10514, %v10520
    %v10525 = vadd.f32 %v10515, %v10520
    %v10526 = vadd.f32 %v10516, %v10520
    %v10527 = vadd.f32 %v10517, %v10520
    %v10528 = vadd.f32 %v10518, %v10520
    %v10529 = vxor.u32 %v10521, 2147483648
    %v10530 = vxor.u32 %v10522, 2147483648
    %v10531 = vxor.u32 %v10523, 2147483648
    %v10532 = vxor.u32 %v10524, 2147483648
    %v10533 = vxor.u32 %v10525, 2147483648
    %v10534 = vxor.u32 %v10526, 2147483648
    %v10535 = vxor.u32 %v10527, 2147483648
    %v10536 = vxor.u32 %v10528, 2147483648
    %v10537 = vmul.f32 %v10529, 1.442695
    %v10538 = vpow.pop %v10537
    %v10539 = vmul.f32 %v10530, 1.442695
    %v10540 = vpow.pop %v10539
    %v10541 = vmul.f32 %v10531, 1.442695
    %v10542 = vpow.pop %v10541
    %v10543 = vmul.f32 %v10532, 1.442695
    %v10544 = vpow.pop %v10543
    %v10545 = vmul.f32 %v10533, 1.442695
    %v10546 = vpow.pop %v10545
    %v10547 = vmul.f32 %v10534, 1.442695
    %v10548 = vpow.pop %v10547
    %v10549 = vmul.f32 %v10535, 1.442695
    %v10550 = vpow.pop %v10549
    %v10551 = vmul.f32 %v10536, 1.442695
    %v10552 = vpow.pop %v10551
    %v10553 = vadd.f32 %v10538, 1.0
    %v10554 = vadd.f32 %v10540, 1.0
    %v10555 = vadd.f32 %v10542, 1.0
    %v10556 = vadd.f32 %v10544, 1.0
    %v10557 = vadd.f32 %v10546, 1.0
    %v10558 = vadd.f32 %v10548, 1.0
    %v10559 = vadd.f32 %v10550, 1.0
    %v10560 = vadd.f32 %v10552, 1.0
    %v10561 = vrcp.pop %v10553
    %v10562 = vmul.f32 1.0, %v10561
    %v10563 = vrcp.pop %v10554
    %v10564 = vmul.f32 1.0, %v10563
    %v10565 = vrcp.pop %v10555
    %v10566 = vmul.f32 1.0, %v10565
    %v10567 = vrcp.pop %v10556
    %v10568 = vmul.f32 1.0, %v10567
    %v10569 = vrcp.pop %v10557
    %v10570 = vmul.f32 1.0, %v10569
    %v10571 = vrcp.pop %v10558
    %v10572 = vmul.f32 1.0, %v10571
    %v10573 = vrcp.pop %v10559
    %v10574 = vmul.f32 1.0, %v10573
    %v10575 = vrcp.pop %v10560
    %v10576 = vmul.f32 1.0, %v10575
    %10577 = vst.msk [vmem:[#allocation12] sm:$0xff] %vm10437, %v10562
    %10578 = vst.msk [vmem:[#allocation12 + $0x8] sm:$0xff] %vm10437, %v10564
    %10579 = vst.msk [vmem:[#allocation12 + $0x10] sm:$0xff] %vm10437, %v10566
    %10580 = vst.msk [vmem:[#allocation12 + $0x18] sm:$0xff] %vm10437, %v10568
    %10581 = vst.msk [vmem:[#allocation12 + $0x20] sm:$0xff] %vm10437, %v10570
    %10582 = vst.msk [vmem:[#allocation12 + $0x28] sm:$0xff] %vm10437, %v10572
    %10583 = vst.msk [vmem:[#allocation12 + $0x30] sm:$0xff] %vm10437, %v10574
    %10584 = vst.msk [vmem:[#allocation12 + $0x38] sm:$0xff] %vm10437, %v10576
    // Predicated region
    $region70: #{tpu_custom_call.1} parent=1 // pred_check
      _
    $region71: #{tpu_custom_call.1} parent=1 // pred_check_branch
      %10586 = sbr.rel (0) target = $region73
    $region72: #{tpu_custom_call.1} parent=1 // pred_region
      %s10588 = ssub.s32 1024, 1024
      %10589 = vsyncadd [#allocation4], %s10588
      %s10590 = sshll.u32 [#allocation12], 4
      %s10591 = int_to_ptr.vmem [resolvable:$true] %s10590
      %10596 = dma.vmem_to_hbm [thread:$0]  %s10591, 1024, %s12, [#allocation4], 128, 128, 8
    $region73: #{tpu_custom_call.1} parent=1 // pred_fallthru
      _
    // Predicated region
    $region74: #{tpu_custom_call.1} parent=1 // pred_check
      _
    $region75: #{tpu_custom_call.1} parent=1 // pred_check_branch
      %10598 = sbr.rel (0) target = $region77
    $region76: #{tpu_custom_call.1} parent=1 // pred_region
      %10599 = dma.done [#allocation4], 1024
    $region77: #{tpu_custom_call.1} parent=1 // pred_fallthru
      _
    %10600 = vsyncpa [#allocation3], 1
    %10601 = vsyncpa [#allocation7], 1
    %10602 = vsyncpa [#allocation10], 1
    %10603 = vsyncpa [#allocation4], 1
    %10604 = vsyncpa [#allocation5], 1

</llo_original>
